<compile_context>
chip_gen: v6e
topology: v6e:2x2x1
jax: 0.10.0
libtpu: 0.0.40
codegen_flags: <defaults>
</compile_context>

<pallas_src>
import jax
import jax.numpy as jnp
from jax.experimental import pallas as pl
from jax.experimental.pallas import tpu as pltpu


# ----------------------------------------------------------------------------
# Configuration (hidden must be 256 to match Linear(256, 2) in the spec).
# ----------------------------------------------------------------------------
B, C, H, W = 2, 3, 16, 16
PATCH = 8
DIM = 256
HEADS = 4
HEAD_DIM = DIM // HEADS              # 64  (real head width)
HEAD_SLOT = 128                      # padded per-head lane slot (128-lane aligned)
QKV_WIDTH = 3 * HEADS * HEAD_SLOT    # 1536
MLP_DIM = 4 * DIM                    # 1024
DEPTH = 2
N_PATCHES = (H // PATCH) * (W // PATCH)   # 4
SEQ = N_PATCHES + 1                  # 5 real tokens (CLS + patches)
SEQ_PAD = 8                          # padded to a full sublane tile
ROWS = B * SEQ_PAD                   # 16
NUM_CLASSES = 2
K_RAW = C * PATCH * PATCH            # 192
K_PAD = 256                          # patch-embed contraction dim padded to 256
SCALE = 1.0 / (HEAD_DIM ** 0.5)      # scale uses the REAL head dim (64)
LN_EPS = 1e-6


# ----------------------------------------------------------------------------
# In-kernel math helpers (f32 math; matmul inputs cast to bf16, f32 accumulate)
# ----------------------------------------------------------------------------
def _erf_f32(z):
    # Abramowitz & Stegun 7.1.26 rational approximation (|err| < 1.5e-7).
    a1, a2, a3, a4, a5 = 0.254829592, -0.284496736, 1.421413741, -1.453152027, 1.061405429
    p = 0.3275911
    az = jnp.abs(z)
    t = 1.0 / (1.0 + p * az)
    poly = t * (a1 + t * (a2 + t * (a3 + t * (a4 + t * a5))))
    e = 1.0 - poly * jnp.exp(-az * az)
    return jnp.where(z >= 0.0, e, -e)


def _gelu_exact(x):
    # matches PyTorch nn.GELU() / jax.nn.gelu(approximate=False) up to ~1e-7
    return 0.5 * x * (1.0 + _erf_f32(x * 0.7071067811865475))


def _layernorm(x, gb):
    # Single-pass statistics: mean(x) and mean(x*x) computed independently,
    # var = E[x^2] - mu^2 (halves the serialized cross-lane reductions).
    g = gb[0:1, :]
    b = gb[1:2, :]
    mu = jnp.mean(x, axis=-1, keepdims=True)
    ms = jnp.mean(x * x, axis=-1, keepdims=True)
    var = ms - mu * mu
    return (x - mu) * jax.lax.rsqrt(var + LN_EPS) * g + b


def _mm(a_f32, w_bf16):
    # MXU matmul: bf16 x bf16 -> f32 accumulate
    return jnp.dot(a_f32.astype(jnp.bfloat16), w_bf16,
                   preferred_element_type=jnp.float32)


# ----------------------------------------------------------------------------
# The fused forward kernel, gridded over transformer layers (grid=(DEPTH,))
# ----------------------------------------------------------------------------
def _fused_vit_kernel(x_tok_ref, pw_ref, add_ref,
                      wqkv_ref, bqkv_ref, wo_ref, bo_ref,
                      w1_ref, b1_ref, w2_ref, b2_ref,
                      ln1_ref, ln2_ref, lnf_ref,
                      cw_ref, cb_ref,
                      o_ref,
                      h_sc, attn_sc):
    l = pl.program_id(0)

    # --- layer 0 prologue: patch embedding + (cls/bias + pos) additive term ---
    @pl.when(l == 0)
    def _():
        h_sc[...] = _mm(x_tok_ref[...], pw_ref[...]) + add_ref[...]   # (ROWS, DIM)

    h = h_sc[...]                                                     # carried activations

    # ---- multi-head self-attention (pre-LN) ----
    hn = _layernorm(h, ln1_ref[0])
    qkv = _mm(hn, wqkv_ref[0]) + bqkv_ref[0]                          # (ROWS, 1536)

    k_off = HEADS * HEAD_SLOT          # 512
    v_off = 2 * HEADS * HEAD_SLOT      # 1024

    s_blocks = []
    v_blocks = []
    for b in range(B):                 # static unroll, all slices 8/128 aligned
        r = b * SEQ_PAD
        for hh in range(HEADS):
            c = hh * HEAD_SLOT
            q = qkv[r:r + SEQ_PAD, c:c + HEAD_SLOT].astype(jnp.bfloat16)
            k = qkv[r:r + SEQ_PAD, k_off + c:k_off + c + HEAD_SLOT].astype(jnp.bfloat16)
            v = qkv[r:r + SEQ_PAD, v_off + c:v_off + c + HEAD_SLOT].astype(jnp.bfloat16)
            s = jax.lax.dot_general(
                q, k, (((1,), (1,)), ((), ())),
                preferred_element_type=jnp.float32) * SCALE           # (SEQ_PAD, SEQ_PAD)
            s_blocks.append(s)
            v_blocks.append(v)

    # Batched softmax over all (batch, head) pairs: one max/exp/sum/recip pass.
    s_all = jnp.concatenate(s_blocks, axis=0)                         # (B*HEADS*SEQ_PAD, SEQ_PAD)
    key_mask = (jax.lax.broadcasted_iota(jnp.int32, (1, SEQ_PAD), 1) < SEQ
                ).astype(jnp.float32)                                 # zero out padded keys
    m = jnp.max(s_all, axis=-1, keepdims=True)
    p = jnp.exp(s_all - m) * key_mask
    denom = jnp.sum(p, axis=-1, keepdims=True)
    p = (p * pl.reciprocal(denom, approx=True)).astype(jnp.bfloat16)

    for b in range(B):
        r = b * SEQ_PAD
        for hh in range(HEADS):
            c = hh * HEAD_SLOT
            pair = b * HEADS + hh
            pb = p[pair * SEQ_PAD:(pair + 1) * SEQ_PAD, :]
            attn_sc[r:r + SEQ_PAD, c:c + HEAD_SLOT] = jnp.dot(
                pb, v_blocks[pair], preferred_element_type=jnp.float32)

    h = h + _mm(attn_sc[...], wo_ref[0]) + bo_ref[0]                  # out-proj + residual

    # ---- MLP block (pre-LN, exact GELU) ----
    hn = _layernorm(h, ln2_ref[0])
    m1 = _gelu_exact(_mm(hn, w1_ref[0]) + b1_ref[0])                  # (ROWS, MLP_DIM)
    h = h + _mm(m1, w2_ref[0]) + b2_ref[0]

    h_sc[...] = h                                                     # carry to next layer

    # --- last layer epilogue: final LN -> classifier -> per-row softmax ---
    @pl.when(l == pl.num_programs(0) - 1)
    def _():
        hf = _layernorm(h, lnf_ref[...])
        logits = _mm(hf, cw_ref[...]) + cb_ref[...]                   # (ROWS, 2)
        mx = jnp.max(logits, axis=-1, keepdims=True)
        e = jnp.exp(logits - mx)
        o_ref[...] = (e / jnp.sum(e, axis=-1, keepdims=True)).astype(o_ref.dtype)


def _fixed_spec(shape):
    # constant block index across the layer grid axis
    return pl.BlockSpec(tuple(shape), lambda l: (0,) * len(shape))


def _layer_spec(shape):
    # per-layer block: leading (DEPTH) axis indexed by the grid
    nrest = len(shape) - 1
    return pl.BlockSpec((1,) + tuple(shape[1:]),
                        lambda l: (l,) + (0,) * nrest)


def fused_forward(x_tok, tok_add, p):
    args = (x_tok, p["patch_w"], tok_add,
            p["wqkv"], p["bqkv"], p["wo"], p["bo"],
            p["w1"], p["b1"], p["w2"], p["b2"],
            p["ln1"], p["ln2"], p["lnf"],
            p["cls_w"], p["cls_b"])
    in_specs = [
        _fixed_spec(x_tok.shape), _fixed_spec(p["patch_w"].shape), _fixed_spec(tok_add.shape),
        _layer_spec(p["wqkv"].shape), _layer_spec(p["bqkv"].shape),
        _layer_spec(p["wo"].shape), _layer_spec(p["bo"].shape),
        _layer_spec(p["w1"].shape), _layer_spec(p["b1"].shape),
        _layer_spec(p["w2"].shape), _layer_spec(p["b2"].shape),
        _layer_spec(p["ln1"].shape), _layer_spec(p["ln2"].shape),
        _fixed_spec(p["lnf"].shape),
        _fixed_spec(p["cls_w"].shape), _fixed_spec(p["cls_b"].shape),
    ]
    return pl.pallas_call(
        _fused_vit_kernel,
        out_shape=jax.ShapeDtypeStruct((ROWS, NUM_CLASSES), jnp.float32),
        grid=(DEPTH,),
        in_specs=in_specs,
        out_specs=pl.BlockSpec((ROWS, NUM_CLASSES), lambda l: (0, 0)),
        scratch_shapes=[
            pltpu.VMEM((ROWS, DIM), jnp.float32),               # activation carry across layers
            pltpu.VMEM((ROWS, HEADS * HEAD_SLOT), jnp.float32),  # merged-head attention output
        ],
        compiler_params=pltpu.CompilerParams(
            dimension_semantics=("arbitrary",),                  # layer axis carries state
            vmem_limit_bytes=32 * 1024 * 1024,
        ),
    )(*args)


# ----------------------------------------------------------------------------
# Synthetic parameters + packing (bf16 weights, fused/padded QKV, per-layer stack)
# ----------------------------------------------------------------------------
def init_params(key):
    ks = iter(jax.random.split(key, 64))
    std = 0.02

    def normal(shape):
        return (std * jax.random.normal(next(ks), shape)).astype(jnp.float32)

    params = {
        "patch_w": normal((K_RAW, DIM)),
        "patch_b": jnp.zeros((DIM,), jnp.float32),
        "cls": normal((1, 1, DIM)),
        "pos": normal((1, SEQ, DIM)),
        "ln_f_g": jnp.ones((DIM,), jnp.float32),
        "ln_f_b": jnp.zeros((DIM,), jnp.float32),
        "cls_w": normal((DIM, NUM_CLASSES)),
        "cls_b": jnp.zeros((NUM_CLASSES,), jnp.float32),
        "layers": [],
    }
    for _ in range(DEPTH):
        params["layers"].append({
            "ln1_g": jnp.ones((DIM,), jnp.float32),
            "ln1_b": jnp.zeros((DIM,), jnp.float32),
            "wq": normal((DIM, DIM)), "bq": jnp.zeros((DIM,), jnp.float32),
            "wk": normal((DIM, DIM)), "bk": jnp.zeros((DIM,), jnp.float32),
            "wv": normal((DIM, DIM)), "bv": jnp.zeros((DIM,), jnp.float32),
            "wo": normal((DIM, DIM)), "bo": jnp.zeros((DIM,), jnp.float32),
            "ln2_g": jnp.ones((DIM,), jnp.float32),
            "ln2_b": jnp.zeros((DIM,), jnp.float32),
            "w1": normal((DIM, MLP_DIM)), "b1": jnp.zeros((MLP_DIM,), jnp.float32),
            "w2": normal((MLP_DIM, DIM)), "b2": jnp.zeros((DIM,), jnp.float32),
        })
    return params


def pack_params(params):
    bf16 = lambda a: a.astype(jnp.bfloat16)
    L = params["layers"]

    def pad_head_cols(w):   # (DIM, DIM) -> (DIM, HEADS*HEAD_SLOT), zero pad per head
        w = w.reshape(DIM, HEADS, HEAD_DIM)
        w = jnp.pad(w, ((0, 0), (0, 0), (0, HEAD_SLOT - HEAD_DIM)))
        return w.reshape(DIM, HEADS * HEAD_SLOT)

    def pad_head_rows(w):   # (DIM, DIM) -> (HEADS*HEAD_SLOT, DIM), zero rows for pad cols
        w = w.reshape(HEADS, HEAD_DIM, DIM)
        w = jnp.pad(w, ((0, 0), (0, HEAD_SLOT - HEAD_DIM), (0, 0)))
        return w.reshape(HEADS * HEAD_SLOT, DIM)

    def pad_head_vec(v):    # (DIM,) -> (HEADS*HEAD_SLOT,)
        v = v.reshape(HEADS, HEAD_DIM)
        v = jnp.pad(v, ((0, 0), (0, HEAD_SLOT - HEAD_DIM)))
        return v.reshape(HEADS * HEAD_SLOT)

    # pad patch-embed contraction dim 192 -> 256 with zero rows
    patch_w = jnp.zeros((K_PAD, DIM), jnp.float32).at[:K_RAW, :].set(params["patch_w"])

    # per-token additive term over the padded sequence:
    #   row 0 = cls + pos[0]; rows 1..SEQ-1 = patch_b + pos[1:]; padded rows = 0
    tok_add = jnp.zeros((SEQ_PAD, DIM), jnp.float32)
    tok_add = tok_add.at[0, :].set(params["cls"][0, 0] + params["pos"][0, 0])
    tok_add = tok_add.at[1:SEQ, :].set(params["patch_b"][None, :] + params["pos"][0, 1:SEQ])

    wqkv = jnp.stack([jnp.concatenate([pad_head_cols(l["wq"]),
                                       pad_head_cols(l["wk"]),
                                       pad_head_cols(l["wv"])], axis=1) for l in L])
    bqkv = jnp.stack([jnp.concatenate([pad_head_vec(l["bq"]),
                                       pad_head_vec(l["bk"]),
                                       pad_head_vec(l["bv"])])[None, :] for l in L])

    return {
        "patch_w": bf16(patch_w),                                      # (256, 256)
        "tok_add": tok_add,                                            # (SEQ_PAD, 256)
        "wqkv": bf16(wqkv),                                            # (DEPTH, 256, 1536)
        "bqkv": bqkv,                                                  # (DEPTH, 1, 1536)
        "wo": bf16(jnp.stack([pad_head_rows(l["wo"]) for l in L])),    # (DEPTH, 512, 256)
        "bo": jnp.stack([l["bo"][None, :] for l in L]),                # (DEPTH, 1, 256)
        "w1": bf16(jnp.stack([l["w1"] for l in L])),                   # (DEPTH, 256, 1024)
        "b1": jnp.stack([l["b1"][None, :] for l in L]),                # (DEPTH, 1, 1024)
        "w2": bf16(jnp.stack([l["w2"] for l in L])),                   # (DEPTH, 1024, 256)
        "b2": jnp.stack([l["b2"][None, :] for l in L]),                # (DEPTH, 1, 256)
        "ln1": jnp.stack([jnp.stack([l["ln1_g"], l["ln1_b"]]) for l in L]),  # (DEPTH, 2, 256)
        "ln2": jnp.stack([jnp.stack([l["ln2_g"], l["ln2_b"]]) for l in L]),  # (DEPTH, 2, 256)
        "lnf": jnp.stack([params["ln_f_g"], params["ln_f_b"]]),        # (2, 256)
        "cls_w": bf16(params["cls_w"]),                                # (256, 2)
        "cls_b": params["cls_b"][None, :],                             # (1, 2)
    }


# ----------------------------------------------------------------------------
# Host-side (XLA) glue: one-time patch extraction / padding only
# ----------------------------------------------------------------------------
def patchify(x):
    # NCHW -> [B, num_patches, C*P*P], row-major over (C, ph, pw)
    b, c, h, w = x.shape
    gh, gw = h // PATCH, w // PATCH
    x = x.reshape(b, c, gh, PATCH, gw, PATCH)
    x = x.transpose(0, 2, 4, 1, 3, 5)
    return x.reshape(b, gh * gw, c * PATCH * PATCH)


@jax.jit
def vit_discriminator_forward(packed, x):
    assert x.shape[0] == B
    patches = patchify(x)                                              # (B, nP, 192)
    patches = jnp.pad(patches, ((0, 0), (0, 0), (0, K_PAD - K_RAW)))   # pad K to 256
    # padded token matrix: row 0 = CLS slot (zero features), rows 1..4 patches, rows 5..7 pad
    x_tok = jnp.zeros((B, SEQ_PAD, K_PAD), patches.dtype)
    x_tok = x_tok.at[:, 1:SEQ, :].set(patches)
    x_tok = x_tok.reshape(B * SEQ_PAD, K_PAD)
    tok_add = jnp.tile(packed["tok_add"], (B, 1))                      # (ROWS, DIM)
    probs_all = fused_forward(x_tok, tok_add, packed)                  # (ROWS, 2) per-row softmax
    # CLS rows sit on 8-row boundaries; extract them host-side
    return probs_all.reshape(B, SEQ_PAD, NUM_CLASSES)[:, 0, :]         # (B, 2) softmax probs


if __name__ == "__main__":
    key = jax.random.PRNGKey(0)
    pkey, xkey = jax.random.split(key)
    params = init_params(pkey)
    packed = pack_params(params)
    x = jax.random.normal(xkey, (B, C, H, W), dtype=jnp.float32)   # NCHW, like PyTorch

    probs = vit_discriminator_forward(packed, x)
    probs = jax.block_until_ready(probs)

    assert probs.shape == (B, NUM_CLASSES)
    assert bool(jnp.allclose(jnp.sum(probs, axis=1), 1.0, atol=1e-5))
    print("KERNEL_OK")
</pallas_src>

<mosaic_0001>
module attributes {stable_mosaic.version = 11 : i64} {
  func.func @_fused_vit_kernel(%arg0: i32, %arg1: memref<16x256xf32, #tpu.memory_space<vmem>>, %arg2: memref<256x256xbf16, #tpu.memory_space<vmem>>, %arg3: memref<16x256xf32, #tpu.memory_space<vmem>>, %arg4: memref<1x256x1536xbf16, #tpu.memory_space<vmem>>, %arg5: memref<1x1x1536xf32, #tpu.memory_space<vmem>>, %arg6: memref<1x512x256xbf16, #tpu.memory_space<vmem>>, %arg7: memref<1x1x256xf32, #tpu.memory_space<vmem>>, %arg8: memref<1x256x1024xbf16, #tpu.memory_space<vmem>>, %arg9: memref<1x1x1024xf32, #tpu.memory_space<vmem>>, %arg10: memref<1x1024x256xbf16, #tpu.memory_space<vmem>>, %arg11: memref<1x1x256xf32, #tpu.memory_space<vmem>>, %arg12: memref<1x2x256xf32, #tpu.memory_space<vmem>>, %arg13: memref<1x2x256xf32, #tpu.memory_space<vmem>>, %arg14: memref<2x256xf32, #tpu.memory_space<vmem>>, %arg15: memref<256x2xbf16, #tpu.memory_space<vmem>>, %arg16: memref<1x2xf32, #tpu.memory_space<vmem>>, %arg17: memref<16x2xf32, #tpu.memory_space<vmem>>, %arg18: memref<16x256xf32, #tpu.memory_space<vmem>>, %arg19: memref<16x512xf32, #tpu.memory_space<vmem>>) attributes {dimension_semantics = [#tpu.dimension_semantics<arbitrary>], iteration_bounds = array<i64: 2>, scalar_prefetch = 0 : i64, scratch_operands = 2 : i64, tpu.core_type = #tpu.core_type<tc>, window_params = [{pipeline_mode = #tpu.pipeline_mode<synchronous>, transform_indices = @transform_0, window_bounds = array<i64: 16, 256>}, {pipeline_mode = #tpu.pipeline_mode<synchronous>, transform_indices = @transform_1, window_bounds = array<i64: 256, 256>}, {pipeline_mode = #tpu.pipeline_mode<synchronous>, transform_indices = @transform_2, window_bounds = array<i64: 16, 256>}, {transform_indices = @transform_3, window_bounds = array<i64: 1, 256, 1536>}, {transform_indices = @transform_4, window_bounds = array<i64: 1, 1, 1536>}, {transform_indices = @transform_5, window_bounds = array<i64: 1, 512, 256>}, {transform_indices = @transform_6, window_bounds = array<i64: 1, 1, 256>}, {transform_indices = @transform_7, window_bounds = array<i64: 1, 256, 1024>}, {transform_indices = @transform_8, window_bounds = array<i64: 1, 1, 1024>}, {transform_indices = @transform_9, window_bounds = array<i64: 1, 1024, 256>}, {transform_indices = @transform_10, window_bounds = array<i64: 1, 1, 256>}, {transform_indices = @transform_11, window_bounds = array<i64: 1, 2, 256>}, {transform_indices = @transform_12, window_bounds = array<i64: 1, 2, 256>}, {pipeline_mode = #tpu.pipeline_mode<synchronous>, transform_indices = @transform_13, window_bounds = array<i64: 2, 256>}, {pipeline_mode = #tpu.pipeline_mode<synchronous>, transform_indices = @transform_14, window_bounds = array<i64: 256, 2>}, {pipeline_mode = #tpu.pipeline_mode<synchronous>, transform_indices = @transform_15, window_bounds = array<i64: 1, 2>}, {pipeline_mode = #tpu.pipeline_mode<synchronous>, transform_indices = @transform_16, window_bounds = array<i64: 16, 2>}]} {
    %c0_i32 = arith.constant 0 : i32
    %0 = arith.cmpi eq, %arg0, %c0_i32 : i32
    %1 = arith.extui %0 : i1 to i32
    %c0_i32_0 = arith.constant 0 : i32
    %2 = arith.cmpi ne, %1, %c0_i32_0 : i32
    scf.if %2 {
      %c0_103 = arith.constant 0 : index
      %c0_104 = arith.constant 0 : index
      %250 = vector.load %arg1[%c0_103, %c0_104] : memref<16x256xf32, #tpu.memory_space<vmem>>, vector<16x256xf32>
      %c0_105 = arith.constant 0 : index
      %c0_106 = arith.constant 0 : index
      %251 = vector.load %arg2[%c0_105, %c0_106] : memref<256x256xbf16, #tpu.memory_space<vmem>>, vector<256x256xbf16>
      %252 = arith.truncf %250 : vector<16x256xf32> to vector<16x256xbf16>
      %cst_107 = arith.constant dense<0.000000e+00> : vector<16x256xf32>
      %253 = tpu.matmul %252, %251, %cst_107 {dimension_numbers = #tpu.dot_dimension_numbers<[1], [0], [0], [1], [0, 0, 1, 1], [], []>} : vector<16x256xbf16>, vector<256x256xbf16>, vector<16x256xf32> -> vector<16x256xf32>
      %c0_108 = arith.constant 0 : index
      %c0_109 = arith.constant 0 : index
      %254 = vector.load %arg3[%c0_108, %c0_109] : memref<16x256xf32, #tpu.memory_space<vmem>>, vector<16x256xf32>
      %255 = arith.addf %253, %254 : vector<16x256xf32>
      %c0_110 = arith.constant 0 : index
      %c0_111 = arith.constant 0 : index
      %256 = vector.load %arg18[%c0_110, %c0_111] : memref<16x256xf32, #tpu.memory_space<vmem>>, vector<16x256xf32>
      tpu.vector_store %arg18[%c0_110, %c0_111], %255 {strides = array<i32>} : memref<16x256xf32, #tpu.memory_space<vmem>>, vector<16x256xf32>,
    } else {
    }
    %c0 = arith.constant 0 : index
    %c0_1 = arith.constant 0 : index
    %3 = vector.load %arg18[%c0, %c0_1] : memref<16x256xf32, #tpu.memory_space<vmem>>, vector<16x256xf32>
    %c0_2 = arith.constant 0 : index
    %c0_3 = arith.constant 0 : index
    %c0_4 = arith.constant 0 : index
    %4 = vector.load %arg12[%c0_2, %c0_3, %c0_4] : memref<1x2x256xf32, #tpu.memory_space<vmem>>, vector<1x2x256xf32>
    %5 = vector.shape_cast %4 : vector<1x2x256xf32> to vector<2x256xf32>
    %6 = vector.extract_strided_slice %5 {offsets = [0, 0], sizes = [1, 256], strides = [1, 1]} : vector<2x256xf32> to vector<1x256xf32>
    %7 = vector.extract_strided_slice %5 {offsets = [1, 0], sizes = [1, 256], strides = [1, 1]} : vector<2x256xf32> to vector<1x256xf32>
    %cst = arith.constant dense<0.000000e+00> : vector<16xf32>
    %8 = vector.multi_reduction <add>, %3, %cst [1] : vector<16x256xf32> to vector<16xf32>
    %9 = vector.shape_cast %8 : vector<16xf32> to vector<16x1xf32>
    %cst_5 = arith.constant 2.560000e+02 : f32
    %10 = vector.broadcast %cst_5 : f32 to vector<16x1xf32>
    %11 = arith.divf %9, %10 : vector<16x1xf32>
    %12 = arith.mulf %3, %3 : vector<16x256xf32>
    %cst_6 = arith.constant dense<0.000000e+00> : vector<16xf32>
    %13 = vector.multi_reduction <add>, %12, %cst_6 [1] : vector<16x256xf32> to vector<16xf32>
    %14 = vector.shape_cast %13 : vector<16xf32> to vector<16x1xf32>
    %cst_7 = arith.constant 2.560000e+02 : f32
    %15 = vector.broadcast %cst_7 : f32 to vector<16x1xf32>
    %16 = arith.divf %14, %15 : vector<16x1xf32>
    %17 = arith.mulf %11, %11 : vector<16x1xf32>
    %18 = arith.subf %16, %17 : vector<16x1xf32>
    %19 = vector.broadcast %11 : vector<16x1xf32> to vector<16x256xf32>
    %20 = arith.subf %3, %19 : vector<16x256xf32>
    %cst_8 = arith.constant 9.99999997E-7 : f32
    %21 = vector.broadcast %cst_8 : f32 to vector<16x1xf32>
    %22 = arith.addf %18, %21 : vector<16x1xf32>
    %23 = math.rsqrt %22 : vector<16x1xf32>
    %24 = vector.broadcast %23 : vector<16x1xf32> to vector<16x256xf32>
    %25 = arith.mulf %20, %24 : vector<16x256xf32>
    %26 = vector.broadcast %6 : vector<1x256xf32> to vector<16x256xf32>
    %27 = arith.mulf %25, %26 : vector<16x256xf32>
    %28 = vector.broadcast %7 : vector<1x256xf32> to vector<16x256xf32>
    %29 = arith.addf %27, %28 : vector<16x256xf32>
    %c0_9 = arith.constant 0 : index
    %c0_10 = arith.constant 0 : index
    %c0_11 = arith.constant 0 : index
    %30 = vector.load %arg4[%c0_9, %c0_10, %c0_11] : memref<1x256x1536xbf16, #tpu.memory_space<vmem>>, vector<1x256x1536xbf16>
    %31 = vector.shape_cast %30 : vector<1x256x1536xbf16> to vector<256x1536xbf16>
    %32 = arith.truncf %29 : vector<16x256xf32> to vector<16x256xbf16>
    %cst_12 = arith.constant dense<0.000000e+00> : vector<16x1536xf32>
    %33 = tpu.matmul %32, %31, %cst_12 {dimension_numbers = #tpu.dot_dimension_numbers<[1], [0], [0], [1], [0, 0, 1, 1], [], []>} : vector<16x256xbf16>, vector<256x1536xbf16>, vector<16x1536xf32> -> vector<16x1536xf32>
    %c0_13 = arith.constant 0 : index
    %c0_14 = arith.constant 0 : index
    %c0_15 = arith.constant 0 : index
    %34 = vector.load %arg5[%c0_13, %c0_14, %c0_15] : memref<1x1x1536xf32, #tpu.memory_space<vmem>>, vector<1x1x1536xf32>
    %35 = vector.shape_cast %34 : vector<1x1x1536xf32> to vector<1x1536xf32>
    %36 = vector.broadcast %35 : vector<1x1536xf32> to vector<16x1536xf32>
    %37 = arith.addf %33, %36 : vector<16x1536xf32>
    %38 = vector.extract_strided_slice %37 {offsets = [0, 0], sizes = [8, 128], strides = [1, 1]} : vector<16x1536xf32> to vector<8x128xf32>
    %39 = arith.truncf %38 : vector<8x128xf32> to vector<8x128xbf16>
    %40 = vector.extract_strided_slice %37 {offsets = [0, 512], sizes = [8, 128], strides = [1, 1]} : vector<16x1536xf32> to vector<8x128xf32>
    %41 = arith.truncf %40 : vector<8x128xf32> to vector<8x128xbf16>
    %42 = vector.extract_strided_slice %37 {offsets = [0, 1024], sizes = [8, 128], strides = [1, 1]} : vector<16x1536xf32> to vector<8x128xf32>
    %43 = arith.truncf %42 : vector<8x128xf32> to vector<8x128xbf16>
    %cst_16 = arith.constant dense<0.000000e+00> : vector<8x8xf32>
    %44 = tpu.matmul %39, %41, %cst_16 {dimension_numbers = #tpu.dot_dimension_numbers<[1], [1], [0], [0], [0, 0, 1, 0], [], []>} : vector<8x128xbf16>, vector<8x128xbf16>, vector<8x8xf32> -> vector<8x8xf32>
    %cst_17 = arith.constant 1.250000e-01 : f32
    %45 = vector.broadcast %cst_17 : f32 to vector<8x8xf32>
    %46 = arith.mulf %44, %45 : vector<8x8xf32>
    %47 = vector.extract_strided_slice %37 {offsets = [0, 128], sizes = [8, 128], strides = [1, 1]} : vector<16x1536xf32> to vector<8x128xf32>
    %48 = arith.truncf %47 : vector<8x128xf32> to vector<8x128xbf16>
    %49 = vector.extract_strided_slice %37 {offsets = [0, 640], sizes = [8, 128], strides = [1, 1]} : vector<16x1536xf32> to vector<8x128xf32>
    %50 = arith.truncf %49 : vector<8x128xf32> to vector<8x128xbf16>
    %51 = vector.extract_strided_slice %37 {offsets = [0, 1152], sizes = [8, 128], strides = [1, 1]} : vector<16x1536xf32> to vector<8x128xf32>
    %52 = arith.truncf %51 : vector<8x128xf32> to vector<8x128xbf16>
    %cst_18 = arith.constant dense<0.000000e+00> : vector<8x8xf32>
    %53 = tpu.matmul %48, %50, %cst_18 {dimension_numbers = #tpu.dot_dimension_numbers<[1], [1], [0], [0], [0, 0, 1, 0], [], []>} : vector<8x128xbf16>, vector<8x128xbf16>, vector<8x8xf32> -> vector<8x8xf32>
    %cst_19 = arith.constant 1.250000e-01 : f32
    %54 = vector.broadcast %cst_19 : f32 to vector<8x8xf32>
    %55 = arith.mulf %53, %54 : vector<8x8xf32>
    %56 = vector.extract_strided_slice %37 {offsets = [0, 256], sizes = [8, 128], strides = [1, 1]} : vector<16x1536xf32> to vector<8x128xf32>
    %57 = arith.truncf %56 : vector<8x128xf32> to vector<8x128xbf16>
    %58 = vector.extract_strided_slice %37 {offsets = [0, 768], sizes = [8, 128], strides = [1, 1]} : vector<16x1536xf32> to vector<8x128xf32>
    %59 = arith.truncf %58 : vector<8x128xf32> to vector<8x128xbf16>
    %60 = vector.extract_strided_slice %37 {offsets = [0, 1280], sizes = [8, 128], strides = [1, 1]} : vector<16x1536xf32> to vector<8x128xf32>
    %61 = arith.truncf %60 : vector<8x128xf32> to vector<8x128xbf16>
    %cst_20 = arith.constant dense<0.000000e+00> : vector<8x8xf32>
    %62 = tpu.matmul %57, %59, %cst_20 {dimension_numbers = #tpu.dot_dimension_numbers<[1], [1], [0], [0], [0, 0, 1, 0], [], []>} : vector<8x128xbf16>, vector<8x128xbf16>, vector<8x8xf32> -> vector<8x8xf32>
    %cst_21 = arith.constant 1.250000e-01 : f32
    %63 = vector.broadcast %cst_21 : f32 to vector<8x8xf32>
    %64 = arith.mulf %62, %63 : vector<8x8xf32>
    %65 = vector.extract_strided_slice %37 {offsets = [0, 384], sizes = [8, 128], strides = [1, 1]} : vector<16x1536xf32> to vector<8x128xf32>
    %66 = arith.truncf %65 : vector<8x128xf32> to vector<8x128xbf16>
    %67 = vector.extract_strided_slice %37 {offsets = [0, 896], sizes = [8, 128], strides = [1, 1]} : vector<16x1536xf32> to vector<8x128xf32>
    %68 = arith.truncf %67 : vector<8x128xf32> to vector<8x128xbf16>
    %69 = vector.extract_strided_slice %37 {offsets = [0, 1408], sizes = [8, 128], strides = [1, 1]} : vector<16x1536xf32> to vector<8x128xf32>
    %70 = arith.truncf %69 : vector<8x128xf32> to vector<8x128xbf16>
    %cst_22 = arith.constant dense<0.000000e+00> : vector<8x8xf32>
    %71 = tpu.matmul %66, %68, %cst_22 {dimension_numbers = #tpu.dot_dimension_numbers<[1], [1], [0], [0], [0, 0, 1, 0], [], []>} : vector<8x128xbf16>, vector<8x128xbf16>, vector<8x8xf32> -> vector<8x8xf32>
    %cst_23 = arith.constant 1.250000e-01 : f32
    %72 = vector.broadcast %cst_23 : f32 to vector<8x8xf32>
    %73 = arith.mulf %71, %72 : vector<8x8xf32>
    %74 = vector.extract_strided_slice %37 {offsets = [8, 0], sizes = [8, 128], strides = [1, 1]} : vector<16x1536xf32> to vector<8x128xf32>
    %75 = arith.truncf %74 : vector<8x128xf32> to vector<8x128xbf16>
    %76 = vector.extract_strided_slice %37 {offsets = [8, 512], sizes = [8, 128], strides = [1, 1]} : vector<16x1536xf32> to vector<8x128xf32>
    %77 = arith.truncf %76 : vector<8x128xf32> to vector<8x128xbf16>
    %78 = vector.extract_strided_slice %37 {offsets = [8, 1024], sizes = [8, 128], strides = [1, 1]} : vector<16x1536xf32> to vector<8x128xf32>
    %79 = arith.truncf %78 : vector<8x128xf32> to vector<8x128xbf16>
    %cst_24 = arith.constant dense<0.000000e+00> : vector<8x8xf32>
    %80 = tpu.matmul %75, %77, %cst_24 {dimension_numbers = #tpu.dot_dimension_numbers<[1], [1], [0], [0], [0, 0, 1, 0], [], []>} : vector<8x128xbf16>, vector<8x128xbf16>, vector<8x8xf32> -> vector<8x8xf32>
    %cst_25 = arith.constant 1.250000e-01 : f32
    %81 = vector.broadcast %cst_25 : f32 to vector<8x8xf32>
    %82 = arith.mulf %80, %81 : vector<8x8xf32>
    %83 = vector.extract_strided_slice %37 {offsets = [8, 128], sizes = [8, 128], strides = [1, 1]} : vector<16x1536xf32> to vector<8x128xf32>
    %84 = arith.truncf %83 : vector<8x128xf32> to vector<8x128xbf16>
    %85 = vector.extract_strided_slice %37 {offsets = [8, 640], sizes = [8, 128], strides = [1, 1]} : vector<16x1536xf32> to vector<8x128xf32>
    %86 = arith.truncf %85 : vector<8x128xf32> to vector<8x128xbf16>
    %87 = vector.extract_strided_slice %37 {offsets = [8, 1152], sizes = [8, 128], strides = [1, 1]} : vector<16x1536xf32> to vector<8x128xf32>
    %88 = arith.truncf %87 : vector<8x128xf32> to vector<8x128xbf16>
    %cst_26 = arith.constant dense<0.000000e+00> : vector<8x8xf32>
    %89 = tpu.matmul %84, %86, %cst_26 {dimension_numbers = #tpu.dot_dimension_numbers<[1], [1], [0], [0], [0, 0, 1, 0], [], []>} : vector<8x128xbf16>, vector<8x128xbf16>, vector<8x8xf32> -> vector<8x8xf32>
    %cst_27 = arith.constant 1.250000e-01 : f32
    %90 = vector.broadcast %cst_27 : f32 to vector<8x8xf32>
    %91 = arith.mulf %89, %90 : vector<8x8xf32>
    %92 = vector.extract_strided_slice %37 {offsets = [8, 256], sizes = [8, 128], strides = [1, 1]} : vector<16x1536xf32> to vector<8x128xf32>
    %93 = arith.truncf %92 : vector<8x128xf32> to vector<8x128xbf16>
    %94 = vector.extract_strided_slice %37 {offsets = [8, 768], sizes = [8, 128], strides = [1, 1]} : vector<16x1536xf32> to vector<8x128xf32>
    %95 = arith.truncf %94 : vector<8x128xf32> to vector<8x128xbf16>
    %96 = vector.extract_strided_slice %37 {offsets = [8, 1280], sizes = [8, 128], strides = [1, 1]} : vector<16x1536xf32> to vector<8x128xf32>
    %97 = arith.truncf %96 : vector<8x128xf32> to vector<8x128xbf16>
    %cst_28 = arith.constant dense<0.000000e+00> : vector<8x8xf32>
    %98 = tpu.matmul %93, %95, %cst_28 {dimension_numbers = #tpu.dot_dimension_numbers<[1], [1], [0], [0], [0, 0, 1, 0], [], []>} : vector<8x128xbf16>, vector<8x128xbf16>, vector<8x8xf32> -> vector<8x8xf32>
    %cst_29 = arith.constant 1.250000e-01 : f32
    %99 = vector.broadcast %cst_29 : f32 to vector<8x8xf32>
    %100 = arith.mulf %98, %99 : vector<8x8xf32>
    %101 = vector.extract_strided_slice %37 {offsets = [8, 384], sizes = [8, 128], strides = [1, 1]} : vector<16x1536xf32> to vector<8x128xf32>
    %102 = arith.truncf %101 : vector<8x128xf32> to vector<8x128xbf16>
    %103 = vector.extract_strided_slice %37 {offsets = [8, 896], sizes = [8, 128], strides = [1, 1]} : vector<16x1536xf32> to vector<8x128xf32>
    %104 = arith.truncf %103 : vector<8x128xf32> to vector<8x128xbf16>
    %105 = vector.extract_strided_slice %37 {offsets = [8, 1408], sizes = [8, 128], strides = [1, 1]} : vector<16x1536xf32> to vector<8x128xf32>
    %106 = arith.truncf %105 : vector<8x128xf32> to vector<8x128xbf16>
    %cst_30 = arith.constant dense<0.000000e+00> : vector<8x8xf32>
    %107 = tpu.matmul %102, %104, %cst_30 {dimension_numbers = #tpu.dot_dimension_numbers<[1], [1], [0], [0], [0, 0, 1, 0], [], []>} : vector<8x128xbf16>, vector<8x128xbf16>, vector<8x8xf32> -> vector<8x8xf32>
    %cst_31 = arith.constant 1.250000e-01 : f32
    %108 = vector.broadcast %cst_31 : f32 to vector<8x8xf32>
    %109 = arith.mulf %107, %108 : vector<8x8xf32>
    %110 = tpu.concatenate %46, %55, %64, %73, %82, %91, %100, %109 in 0 : vector<8x8xf32>, vector<8x8xf32>, vector<8x8xf32>, vector<8x8xf32>, vector<8x8xf32>, vector<8x8xf32>, vector<8x8xf32>, vector<8x8xf32> -> vector<64x8xf32>
    %111 = tpu.iota {dimensions = array<i32: 1>} : vector<1x8xi32>
    %c5_i32 = arith.constant 5 : i32
    %112 = vector.broadcast %c5_i32 : i32 to vector<1x8xi32>
    %113 = arith.cmpi slt, %111, %112 : vector<1x8xi32>
    %114 = arith.extui %113 : vector<1x8xi1> to vector<1x8xi32>
    %115 = arith.sitofp %114 : vector<1x8xi32> to vector<1x8xf32>
    %cst_32 = arith.constant dense<0xFF800000> : vector<64xf32>
    %116 = vector.multi_reduction <maximumf>, %110, %cst_32 [1] : vector<64x8xf32> to vector<64xf32>
    %117 = vector.shape_cast %116 : vector<64xf32> to vector<64x1xf32>
    %118 = vector.broadcast %117 : vector<64x1xf32> to vector<64x8xf32>
    %119 = arith.subf %110, %118 : vector<64x8xf32>
    %120 = math.exp %119 : vector<64x8xf32>
    %121 = vector.broadcast %115 : vector<1x8xf32> to vector<64x8xf32>
    %122 = arith.mulf %120, %121 : vector<64x8xf32>
    %cst_33 = arith.constant dense<0.000000e+00> : vector<64xf32>
    %123 = vector.multi_reduction <add>, %122, %cst_33 [1] : vector<64x8xf32> to vector<64xf32>
    %124 = vector.shape_cast %123 : vector<64xf32> to vector<64x1xf32>
    %125 = tpu.reciprocal %124 {approx = true} : vector<64x1xf32> -> vector<64x1xf32>
    %126 = vector.broadcast %125 : vector<64x1xf32> to vector<64x8xf32>
    %127 = arith.mulf %122, %126 : vector<64x8xf32>
    %128 = arith.truncf %127 : vector<64x8xf32> to vector<64x8xbf16>
    %129 = vector.extract_strided_slice %128 {offsets = [0, 0], sizes = [8, 8], strides = [1, 1]} : vector<64x8xbf16> to vector<8x8xbf16>
    %cst_34 = arith.constant dense<0.000000e+00> : vector<8x128xf32>
    %130 = tpu.matmul %129, %43, %cst_34 {dimension_numbers = #tpu.dot_dimension_numbers<[1], [0], [0], [1], [0, 0, 1, 1], [], []>} : vector<8x8xbf16>, vector<8x128xbf16>, vector<8x128xf32> -> vector<8x128xf32>
    %c0_35 = arith.constant 0 : index
    %c0_36 = arith.constant 0 : index
    %131 = vector.load %arg19[%c0_35, %c0_36] : memref<16x512xf32, #tpu.memory_space<vmem>>, vector<8x128xf32>
    tpu.vector_store %arg19[%c0_35, %c0_36], %130 {strides = array<i32>} : memref<16x512xf32, #tpu.memory_space<vmem>>, vector<8x128xf32>,
    %132 = vector.extract_strided_slice %128 {offsets = [8, 0], sizes = [8, 8], strides = [1, 1]} : vector<64x8xbf16> to vector<8x8xbf16>
    %cst_37 = arith.constant dense<0.000000e+00> : vector<8x128xf32>
    %133 = tpu.matmul %132, %52, %cst_37 {dimension_numbers = #tpu.dot_dimension_numbers<[1], [0], [0], [1], [0, 0, 1, 1], [], []>} : vector<8x8xbf16>, vector<8x128xbf16>, vector<8x128xf32> -> vector<8x128xf32>
    %c0_38 = arith.constant 0 : index
    %c128 = arith.constant 128 : index
    %134 = vector.load %arg19[%c0_38, %c128] : memref<16x512xf32, #tpu.memory_space<vmem>>, vector<8x128xf32>
    tpu.vector_store %arg19[%c0_38, %c128], %133 {strides = array<i32>} : memref<16x512xf32, #tpu.memory_space<vmem>>, vector<8x128xf32>,
    %135 = vector.extract_strided_slice %128 {offsets = [16, 0], sizes = [8, 8], strides = [1, 1]} : vector<64x8xbf16> to vector<8x8xbf16>
    %cst_39 = arith.constant dense<0.000000e+00> : vector<8x128xf32>
    %136 = tpu.matmul %135, %61, %cst_39 {dimension_numbers = #tpu.dot_dimension_numbers<[1], [0], [0], [1], [0, 0, 1, 1], [], []>} : vector<8x8xbf16>, vector<8x128xbf16>, vector<8x128xf32> -> vector<8x128xf32>
    %c0_40 = arith.constant 0 : index
    %c256 = arith.constant 256 : index
    %137 = vector.load %arg19[%c0_40, %c256] : memref<16x512xf32, #tpu.memory_space<vmem>>, vector<8x128xf32>
    tpu.vector_store %arg19[%c0_40, %c256], %136 {strides = array<i32>} : memref<16x512xf32, #tpu.memory_space<vmem>>, vector<8x128xf32>,
    %138 = vector.extract_strided_slice %128 {offsets = [24, 0], sizes = [8, 8], strides = [1, 1]} : vector<64x8xbf16> to vector<8x8xbf16>
    %cst_41 = arith.constant dense<0.000000e+00> : vector<8x128xf32>
    %139 = tpu.matmul %138, %70, %cst_41 {dimension_numbers = #tpu.dot_dimension_numbers<[1], [0], [0], [1], [0, 0, 1, 1], [], []>} : vector<8x8xbf16>, vector<8x128xbf16>, vector<8x128xf32> -> vector<8x128xf32>
    %c0_42 = arith.constant 0 : index
    %c384 = arith.constant 384 : index
    %140 = vector.load %arg19[%c0_42, %c384] : memref<16x512xf32, #tpu.memory_space<vmem>>, vector<8x128xf32>
    tpu.vector_store %arg19[%c0_42, %c384], %139 {strides = array<i32>} : memref<16x512xf32, #tpu.memory_space<vmem>>, vector<8x128xf32>,
    %141 = vector.extract_strided_slice %128 {offsets = [32, 0], sizes = [8, 8], strides = [1, 1]} : vector<64x8xbf16> to vector<8x8xbf16>
    %cst_43 = arith.constant dense<0.000000e+00> : vector<8x128xf32>
    %142 = tpu.matmul %141, %79, %cst_43 {dimension_numbers = #tpu.dot_dimension_numbers<[1], [0], [0], [1], [0, 0, 1, 1], [], []>} : vector<8x8xbf16>, vector<8x128xbf16>, vector<8x128xf32> -> vector<8x128xf32>
    %c8 = arith.constant 8 : index
    %c0_44 = arith.constant 0 : index
    %143 = vector.load %arg19[%c8, %c0_44] : memref<16x512xf32, #tpu.memory_space<vmem>>, vector<8x128xf32>
    tpu.vector_store %arg19[%c8, %c0_44], %142 {strides = array<i32>} : memref<16x512xf32, #tpu.memory_space<vmem>>, vector<8x128xf32>,
    %144 = vector.extract_strided_slice %128 {offsets = [40, 0], sizes = [8, 8], strides = [1, 1]} : vector<64x8xbf16> to vector<8x8xbf16>
    %cst_45 = arith.constant dense<0.000000e+00> : vector<8x128xf32>
    %145 = tpu.matmul %144, %88, %cst_45 {dimension_numbers = #tpu.dot_dimension_numbers<[1], [0], [0], [1], [0, 0, 1, 1], [], []>} : vector<8x8xbf16>, vector<8x128xbf16>, vector<8x128xf32> -> vector<8x128xf32>
    %c8_46 = arith.constant 8 : index
    %c128_47 = arith.constant 128 : index
    %146 = vector.load %arg19[%c8_46, %c128_47] : memref<16x512xf32, #tpu.memory_space<vmem>>, vector<8x128xf32>
    tpu.vector_store %arg19[%c8_46, %c128_47], %145 {strides = array<i32>} : memref<16x512xf32, #tpu.memory_space<vmem>>, vector<8x128xf32>,
    %147 = vector.extract_strided_slice %128 {offsets = [48, 0], sizes = [8, 8], strides = [1, 1]} : vector<64x8xbf16> to vector<8x8xbf16>
    %cst_48 = arith.constant dense<0.000000e+00> : vector<8x128xf32>
    %148 = tpu.matmul %147, %97, %cst_48 {dimension_numbers = #tpu.dot_dimension_numbers<[1], [0], [0], [1], [0, 0, 1, 1], [], []>} : vector<8x8xbf16>, vector<8x128xbf16>, vector<8x128xf32> -> vector<8x128xf32>
    %c8_49 = arith.constant 8 : index
    %c256_50 = arith.constant 256 : index
    %149 = vector.load %arg19[%c8_49, %c256_50] : memref<16x512xf32, #tpu.memory_space<vmem>>, vector<8x128xf32>
    tpu.vector_store %arg19[%c8_49, %c256_50], %148 {strides = array<i32>} : memref<16x512xf32, #tpu.memory_space<vmem>>, vector<8x128xf32>,
    %150 = vector.extract_strided_slice %128 {offsets = [56, 0], sizes = [8, 8], strides = [1, 1]} : vector<64x8xbf16> to vector<8x8xbf16>
    %cst_51 = arith.constant dense<0.000000e+00> : vector<8x128xf32>
    %151 = tpu.matmul %150, %106, %cst_51 {dimension_numbers = #tpu.dot_dimension_numbers<[1], [0], [0], [1], [0, 0, 1, 1], [], []>} : vector<8x8xbf16>, vector<8x128xbf16>, vector<8x128xf32> -> vector<8x128xf32>
    %c8_52 = arith.constant 8 : index
    %c384_53 = arith.constant 384 : index
    %152 = vector.load %arg19[%c8_52, %c384_53] : memref<16x512xf32, #tpu.memory_space<vmem>>, vector<8x128xf32>
    tpu.vector_store %arg19[%c8_52, %c384_53], %151 {strides = array<i32>} : memref<16x512xf32, #tpu.memory_space<vmem>>, vector<8x128xf32>,
    %c0_54 = arith.constant 0 : index
    %c0_55 = arith.constant 0 : index
    %153 = vector.load %arg19[%c0_54, %c0_55] : memref<16x512xf32, #tpu.memory_space<vmem>>, vector<16x512xf32>
    %c0_56 = arith.constant 0 : index
    %c0_57 = arith.constant 0 : index
    %c0_58 = arith.constant 0 : index
    %154 = vector.load %arg6[%c0_56, %c0_57, %c0_58] : memref<1x512x256xbf16, #tpu.memory_space<vmem>>, vector<1x512x256xbf16>
    %155 = vector.shape_cast %154 : vector<1x512x256xbf16> to vector<512x256xbf16>
    %156 = arith.truncf %153 : vector<16x512xf32> to vector<16x512xbf16>
    %cst_59 = arith.constant dense<0.000000e+00> : vector<16x256xf32>
    %157 = tpu.matmul %156, %155, %cst_59 {dimension_numbers = #tpu.dot_dimension_numbers<[1], [0], [0], [1], [0, 0, 1, 1], [], []>} : vector<16x512xbf16>, vector<512x256xbf16>, vector<16x256xf32> -> vector<16x256xf32>
    %158 = arith.addf %3, %157 : vector<16x256xf32>
    %c0_60 = arith.constant 0 : index
    %c0_61 = arith.constant 0 : index
    %c0_62 = arith.constant 0 : index
    %159 = vector.load %arg7[%c0_60, %c0_61, %c0_62] : memref<1x1x256xf32, #tpu.memory_space<vmem>>, vector<1x1x256xf32>
    %160 = vector.shape_cast %159 : vector<1x1x256xf32> to vector<1x256xf32>
    %161 = vector.broadcast %160 : vector<1x256xf32> to vector<16x256xf32>
    %162 = arith.addf %158, %161 : vector<16x256xf32>
    %c0_63 = arith.constant 0 : index
    %c0_64 = arith.constant 0 : index
    %c0_65 = arith.constant 0 : index
    %163 = vector.load %arg13[%c0_63, %c0_64, %c0_65] : memref<1x2x256xf32, #tpu.memory_space<vmem>>, vector<1x2x256xf32>
    %164 = vector.shape_cast %163 : vector<1x2x256xf32> to vector<2x256xf32>
    %165 = vector.extract_strided_slice %164 {offsets = [0, 0], sizes = [1, 256], strides = [1, 1]} : vector<2x256xf32> to vector<1x256xf32>
    %166 = vector.extract_strided_slice %164 {offsets = [1, 0], sizes = [1, 256], strides = [1, 1]} : vector<2x256xf32> to vector<1x256xf32>
    %cst_66 = arith.constant dense<0.000000e+00> : vector<16xf32>
    %167 = vector.multi_reduction <add>, %162, %cst_66 [1] : vector<16x256xf32> to vector<16xf32>
    %168 = vector.shape_cast %167 : vector<16xf32> to vector<16x1xf32>
    %cst_67 = arith.constant 2.560000e+02 : f32
    %169 = vector.broadcast %cst_67 : f32 to vector<16x1xf32>
    %170 = arith.divf %168, %169 : vector<16x1xf32>
    %171 = arith.mulf %162, %162 : vector<16x256xf32>
    %cst_68 = arith.constant dense<0.000000e+00> : vector<16xf32>
    %172 = vector.multi_reduction <add>, %171, %cst_68 [1] : vector<16x256xf32> to vector<16xf32>
    %173 = vector.shape_cast %172 : vector<16xf32> to vector<16x1xf32>
    %cst_69 = arith.constant 2.560000e+02 : f32
    %174 = vector.broadcast %cst_69 : f32 to vector<16x1xf32>
    %175 = arith.divf %173, %174 : vector<16x1xf32>
    %176 = arith.mulf %170, %170 : vector<16x1xf32>
    %177 = arith.subf %175, %176 : vector<16x1xf32>
    %178 = vector.broadcast %170 : vector<16x1xf32> to vector<16x256xf32>
    %179 = arith.subf %162, %178 : vector<16x256xf32>
    %cst_70 = arith.constant 9.99999997E-7 : f32
    %180 = vector.broadcast %cst_70 : f32 to vector<16x1xf32>
    %181 = arith.addf %177, %180 : vector<16x1xf32>
    %182 = math.rsqrt %181 : vector<16x1xf32>
    %183 = vector.broadcast %182 : vector<16x1xf32> to vector<16x256xf32>
    %184 = arith.mulf %179, %183 : vector<16x256xf32>
    %185 = vector.broadcast %165 : vector<1x256xf32> to vector<16x256xf32>
    %186 = arith.mulf %184, %185 : vector<16x256xf32>
    %187 = vector.broadcast %166 : vector<1x256xf32> to vector<16x256xf32>
    %188 = arith.addf %186, %187 : vector<16x256xf32>
    %c0_71 = arith.constant 0 : index
    %c0_72 = arith.constant 0 : index
    %c0_73 = arith.constant 0 : index
    %189 = vector.load %arg8[%c0_71, %c0_72, %c0_73] : memref<1x256x1024xbf16, #tpu.memory_space<vmem>>, vector<1x256x1024xbf16>
    %190 = vector.shape_cast %189 : vector<1x256x1024xbf16> to vector<256x1024xbf16>
    %191 = arith.truncf %188 : vector<16x256xf32> to vector<16x256xbf16>
    %cst_74 = arith.constant dense<0.000000e+00> : vector<16x1024xf32>
    %192 = tpu.matmul %191, %190, %cst_74 {dimension_numbers = #tpu.dot_dimension_numbers<[1], [0], [0], [1], [0, 0, 1, 1], [], []>} : vector<16x256xbf16>, vector<256x1024xbf16>, vector<16x1024xf32> -> vector<16x1024xf32>
    %c0_75 = arith.constant 0 : index
    %c0_76 = arith.constant 0 : index
    %c0_77 = arith.constant 0 : index
    %193 = vector.load %arg9[%c0_75, %c0_76, %c0_77] : memref<1x1x1024xf32, #tpu.memory_space<vmem>>, vector<1x1x1024xf32>
    %194 = vector.shape_cast %193 : vector<1x1x1024xf32> to vector<1x1024xf32>
    %195 = vector.broadcast %194 : vector<1x1024xf32> to vector<16x1024xf32>
    %196 = arith.addf %192, %195 : vector<16x1024xf32>
    %cst_78 = arith.constant 5.000000e-01 : f32
    %197 = vector.broadcast %cst_78 : f32 to vector<16x1024xf32>
    %198 = arith.mulf %197, %196 : vector<16x1024xf32>
    %cst_79 = arith.constant 0.707106769 : f32
    %199 = vector.broadcast %cst_79 : f32 to vector<16x1024xf32>
    %200 = arith.mulf %196, %199 : vector<16x1024xf32>
    %201 = math.absf %200 : vector<16x1024xf32>
    %cst_80 = arith.constant 0.327591091 : f32
    %202 = vector.broadcast %cst_80 : f32 to vector<16x1024xf32>
    %203 = arith.mulf %202, %201 : vector<16x1024xf32>
    %cst_81 = arith.constant 1.000000e+00 : f32
    %204 = vector.broadcast %cst_81 : f32 to vector<16x1024xf32>
    %205 = arith.addf %204, %203 : vector<16x1024xf32>
    %cst_82 = arith.constant 1.000000e+00 : f32
    %206 = vector.broadcast %cst_82 : f32 to vector<16x1024xf32>
    %207 = arith.divf %206, %205 : vector<16x1024xf32>
    %cst_83 = arith.constant 1.06140542 : f32
    %208 = vector.broadcast %cst_83 : f32 to vector<16x1024xf32>
    %209 = arith.mulf %207, %208 : vector<16x1024xf32>
    %cst_84 = arith.constant -1.45315206 : f32
    %210 = vector.broadcast %cst_84 : f32 to vector<16x1024xf32>
    %211 = arith.addf %210, %209 : vector<16x1024xf32>
    %212 = arith.mulf %207, %211 : vector<16x1024xf32>
    %cst_85 = arith.constant 1.42141378 : f32
    %213 = vector.broadcast %cst_85 : f32 to vector<16x1024xf32>
    %214 = arith.addf %213, %212 : vector<16x1024xf32>
    %215 = arith.mulf %207, %214 : vector<16x1024xf32>
    %cst_86 = arith.constant -0.284496725 : f32
    %216 = vector.broadcast %cst_86 : f32 to vector<16x1024xf32>
    %217 = arith.addf %216, %215 : vector<16x1024xf32>
    %218 = arith.mulf %207, %217 : vector<16x1024xf32>
    %cst_87 = arith.constant 0.254829586 : f32
    %219 = vector.broadcast %cst_87 : f32 to vector<16x1024xf32>
    %220 = arith.addf %219, %218 : vector<16x1024xf32>
    %221 = arith.mulf %207, %220 : vector<16x1024xf32>
    %cst_88 = arith.constant 0.000000e+00 : f32
    %222 = vector.broadcast %cst_88 : f32 to vector<16x1024xf32>
    %223 = arith.subf %222, %201 : vector<16x1024xf32>
    %224 = arith.mulf %223, %201 : vector<16x1024xf32>
    %225 = math.exp %224 : vector<16x1024xf32>
    %226 = arith.mulf %221, %225 : vector<16x1024xf32>
    %cst_89 = arith.constant 1.000000e+00 : f32
    %227 = vector.broadcast %cst_89 : f32 to vector<16x1024xf32>
    %228 = arith.subf %227, %226 : vector<16x1024xf32>
    %cst_90 = arith.constant 0.000000e+00 : f32
    %229 = vector.broadcast %cst_90 : f32 to vector<16x1024xf32>
    %230 = arith.cmpf oge, %200, %229 : vector<16x1024xf32>
    %cst_91 = arith.constant 0.000000e+00 : f32
    %231 = vector.broadcast %cst_91 : f32 to vector<16x1024xf32>
    %232 = arith.subf %231, %228 : vector<16x1024xf32>
    %233 = arith.select %230, %228, %232 : vector<16x1024xi1>, vector<16x1024xf32>
    %cst_92 = arith.constant 1.000000e+00 : f32
    %234 = vector.broadcast %cst_92 : f32 to vector<16x1024xf32>
    %235 = arith.addf %234, %233 : vector<16x1024xf32>
    %236 = arith.mulf %198, %235 : vector<16x1024xf32>
    %c0_93 = arith.constant 0 : index
    %c0_94 = arith.constant 0 : index
    %c0_95 = arith.constant 0 : index
    %237 = vector.load %arg10[%c0_93, %c0_94, %c0_95] : memref<1x1024x256xbf16, #tpu.memory_space<vmem>>, vector<1x1024x256xbf16>
    %238 = vector.shape_cast %237 : vector<1x1024x256xbf16> to vector<1024x256xbf16>
    %239 = arith.truncf %236 : vector<16x1024xf32> to vector<16x1024xbf16>
    %cst_96 = arith.constant dense<0.000000e+00> : vector<16x256xf32>
    %240 = tpu.matmul %239, %238, %cst_96 {dimension_numbers = #tpu.dot_dimension_numbers<[1], [0], [0], [1], [0, 0, 1, 1], [], []>} : vector<16x1024xbf16>, vector<1024x256xbf16>, vector<16x256xf32> -> vector<16x256xf32>
    %241 = arith.addf %162, %240 : vector<16x256xf32>
    %c0_97 = arith.constant 0 : index
    %c0_98 = arith.constant 0 : index
    %c0_99 = arith.constant 0 : index
    %242 = vector.load %arg11[%c0_97, %c0_98, %c0_99] : memref<1x1x256xf32, #tpu.memory_space<vmem>>, vector<1x1x256xf32>
    %243 = vector.shape_cast %242 : vector<1x1x256xf32> to vector<1x256xf32>
    %244 = vector.broadcast %243 : vector<1x256xf32> to vector<16x256xf32>
    %245 = arith.addf %241, %244 : vector<16x256xf32>
    %c0_100 = arith.constant 0 : index
    %c0_101 = arith.constant 0 : index
    %246 = vector.load %arg18[%c0_100, %c0_101] : memref<16x256xf32, #tpu.memory_space<vmem>>, vector<16x256xf32>
    tpu.vector_store %arg18[%c0_100, %c0_101], %245 {strides = array<i32>} : memref<16x256xf32, #tpu.memory_space<vmem>>, vector<16x256xf32>,
    %c1_i32 = arith.constant 1 : i32
    %247 = arith.cmpi eq, %arg0, %c1_i32 : i32
    %248 = arith.extui %247 : i1 to i32
    %c0_i32_102 = arith.constant 0 : i32
    %249 = arith.cmpi ne, %248, %c0_i32_102 : i32
    scf.if %249 {
      %c0_103 = arith.constant 0 : index
      %c0_104 = arith.constant 0 : index
      %250 = vector.load %arg14[%c0_103, %c0_104] : memref<2x256xf32, #tpu.memory_space<vmem>>, vector<2x256xf32>
      %251 = vector.extract_strided_slice %250 {offsets = [0, 0], sizes = [1, 256], strides = [1, 1]} : vector<2x256xf32> to vector<1x256xf32>
      %252 = vector.extract_strided_slice %250 {offsets = [1, 0], sizes = [1, 256], strides = [1, 1]} : vector<2x256xf32> to vector<1x256xf32>
      %cst_105 = arith.constant dense<0.000000e+00> : vector<16xf32>
      %253 = vector.multi_reduction <add>, %245, %cst_105 [1] : vector<16x256xf32> to vector<16xf32>
      %254 = vector.shape_cast %253 : vector<16xf32> to vector<16x1xf32>
      %cst_106 = arith.constant 2.560000e+02 : f32
      %255 = vector.broadcast %cst_106 : f32 to vector<16x1xf32>
      %256 = arith.divf %254, %255 : vector<16x1xf32>
      %257 = arith.mulf %245, %245 : vector<16x256xf32>
      %cst_107 = arith.constant dense<0.000000e+00> : vector<16xf32>
      %258 = vector.multi_reduction <add>, %257, %cst_107 [1] : vector<16x256xf32> to vector<16xf32>
      %259 = vector.shape_cast %258 : vector<16xf32> to vector<16x1xf32>
      %cst_108 = arith.constant 2.560000e+02 : f32
      %260 = vector.broadcast %cst_108 : f32 to vector<16x1xf32>
      %261 = arith.divf %259, %260 : vector<16x1xf32>
      %262 = arith.mulf %256, %256 : vector<16x1xf32>
      %263 = arith.subf %261, %262 : vector<16x1xf32>
      %264 = vector.broadcast %256 : vector<16x1xf32> to vector<16x256xf32>
      %265 = arith.subf %245, %264 : vector<16x256xf32>
      %cst_109 = arith.constant 9.99999997E-7 : f32
      %266 = vector.broadcast %cst_109 : f32 to vector<16x1xf32>
      %267 = arith.addf %263, %266 : vector<16x1xf32>
      %268 = math.rsqrt %267 : vector<16x1xf32>
      %269 = vector.broadcast %268 : vector<16x1xf32> to vector<16x256xf32>
      %270 = arith.mulf %265, %269 : vector<16x256xf32>
      %271 = vector.broadcast %251 : vector<1x256xf32> to vector<16x256xf32>
      %272 = arith.mulf %270, %271 : vector<16x256xf32>
      %273 = vector.broadcast %252 : vector<1x256xf32> to vector<16x256xf32>
      %274 = arith.addf %272, %273 : vector<16x256xf32>
      %c0_110 = arith.constant 0 : index
      %c0_111 = arith.constant 0 : index
      %275 = vector.load %arg15[%c0_110, %c0_111] : memref<256x2xbf16, #tpu.memory_space<vmem>>, vector<256x2xbf16>
      %276 = arith.truncf %274 : vector<16x256xf32> to vector<16x256xbf16>
      %cst_112 = arith.constant dense<0.000000e+00> : vector<16x2xf32>
      %277 = tpu.matmul %276, %275, %cst_112 {dimension_numbers = #tpu.dot_dimension_numbers<[1], [0], [0], [1], [0, 0, 1, 1], [], []>} : vector<16x256xbf16>, vector<256x2xbf16>, vector<16x2xf32> -> vector<16x2xf32>
      %c0_113 = arith.constant 0 : index
      %c0_114 = arith.constant 0 : index
      %278 = vector.load %arg16[%c0_113, %c0_114] : memref<1x2xf32, #tpu.memory_space<vmem>>, vector<1x2xf32>
      %279 = vector.broadcast %278 : vector<1x2xf32> to vector<16x2xf32>
      %280 = arith.addf %277, %279 : vector<16x2xf32>
      %cst_115 = arith.constant dense<0xFF800000> : vector<16xf32>
      %281 = vector.multi_reduction <maximumf>, %280, %cst_115 [1] : vector<16x2xf32> to vector<16xf32>
      %282 = vector.shape_cast %281 : vector<16xf32> to vector<16x1xf32>
      %283 = vector.broadcast %282 : vector<16x1xf32> to vector<16x2xf32>
      %284 = arith.subf %280, %283 : vector<16x2xf32>
      %285 = math.exp %284 : vector<16x2xf32>
      %cst_116 = arith.constant dense<0.000000e+00> : vector<16xf32>
      %286 = vector.multi_reduction <add>, %285, %cst_116 [1] : vector<16x2xf32> to vector<16xf32>
      %287 = vector.shape_cast %286 : vector<16xf32> to vector<16x1xf32>
      %288 = vector.broadcast %287 : vector<16x1xf32> to vector<16x2xf32>
      %289 = arith.divf %285, %288 : vector<16x2xf32>
      %c0_117 = arith.constant 0 : index
      %c0_118 = arith.constant 0 : index
      %290 = vector.load %arg17[%c0_117, %c0_118] : memref<16x2xf32, #tpu.memory_space<vmem>>, vector<16x2xf32>
      tpu.vector_store %arg17[%c0_117, %c0_118], %289 {strides = array<i32>} : memref<16x2xf32, #tpu.memory_space<vmem>>, vector<16x2xf32>,
    } else {
    }
    return
  }
  func.func @transform_0(%arg0: i32) -> (i32, i32) {
    %c0_i32 = arith.constant 0 : i32
    %c0_i32_0 = arith.constant 0 : i32
    %c0_i32_1 = arith.constant 0 : i32
    return %c0_i32, %c0_i32_0 : i32, i32
  }
  func.func @transform_1(%arg0: i32) -> (i32, i32) {
    %c0_i32 = arith.constant 0 : i32
    %c0_i32_0 = arith.constant 0 : i32
    %c0_i32_1 = arith.constant 0 : i32
    return %c0_i32, %c0_i32_0 : i32, i32
  }
  func.func @transform_2(%arg0: i32) -> (i32, i32) {
    %c0_i32 = arith.constant 0 : i32
    %c0_i32_0 = arith.constant 0 : i32
    %c0_i32_1 = arith.constant 0 : i32
    return %c0_i32, %c0_i32_0 : i32, i32
  }
  func.func @transform_3(%arg0: i32) -> (i32, i32, i32) {
    %c0_i32 = arith.constant 0 : i32
    %c0_i32_0 = arith.constant 0 : i32
    %c0_i32_1 = arith.constant 0 : i32
    return %arg0, %c0_i32, %c0_i32_0 : i32, i32, i32
  }
  func.func @transform_4(%arg0: i32) -> (i32, i32, i32) {
    %c0_i32 = arith.constant 0 : i32
    %c0_i32_0 = arith.constant 0 : i32
    %c0_i32_1 = arith.constant 0 : i32
    return %arg0, %c0_i32, %c0_i32_0 : i32, i32, i32
  }
  func.func @transform_5(%arg0: i32) -> (i32, i32, i32) {
    %c0_i32 = arith.constant 0 : i32
    %c0_i32_0 = arith.constant 0 : i32
    %c0_i32_1 = arith.constant 0 : i32
    return %arg0, %c0_i32, %c0_i32_0 : i32, i32, i32
  }
  func.func @transform_6(%arg0: i32) -> (i32, i32, i32) {
    %c0_i32 = arith.constant 0 : i32
    %c0_i32_0 = arith.constant 0 : i32
    %c0_i32_1 = arith.constant 0 : i32
    return %arg0, %c0_i32, %c0_i32_0 : i32, i32, i32
  }
  func.func @transform_7(%arg0: i32) -> (i32, i32, i32) {
    %c0_i32 = arith.constant 0 : i32
    %c0_i32_0 = arith.constant 0 : i32
    %c0_i32_1 = arith.constant 0 : i32
    return %arg0, %c0_i32, %c0_i32_0 : i32, i32, i32
  }
  func.func @transform_8(%arg0: i32) -> (i32, i32, i32) {
    %c0_i32 = arith.constant 0 : i32
    %c0_i32_0 = arith.constant 0 : i32
    %c0_i32_1 = arith.constant 0 : i32
    return %arg0, %c0_i32, %c0_i32_0 : i32, i32, i32
  }
  func.func @transform_9(%arg0: i32) -> (i32, i32, i32) {
    %c0_i32 = arith.constant 0 : i32
    %c0_i32_0 = arith.constant 0 : i32
    %c0_i32_1 = arith.constant 0 : i32
    return %arg0, %c0_i32, %c0_i32_0 : i32, i32, i32
  }
  func.func @transform_10(%arg0: i32) -> (i32, i32, i32) {
    %c0_i32 = arith.constant 0 : i32
    %c0_i32_0 = arith.constant 0 : i32
    %c0_i32_1 = arith.constant 0 : i32
    return %arg0, %c0_i32, %c0_i32_0 : i32, i32, i32
  }
  func.func @transform_11(%arg0: i32) -> (i32, i32, i32) {
    %c0_i32 = arith.constant 0 : i32
    %c0_i32_0 = arith.constant 0 : i32
    %c0_i32_1 = arith.constant 0 : i32
    return %arg0, %c0_i32, %c0_i32_0 : i32, i32, i32
  }
  func.func @transform_12(%arg0: i32) -> (i32, i32, i32) {
    %c0_i32 = arith.constant 0 : i32
    %c0_i32_0 = arith.constant 0 : i32
    %c0_i32_1 = arith.constant 0 : i32
    return %arg0, %c0_i32, %c0_i32_0 : i32, i32, i32
  }
  func.func @transform_13(%arg0: i32) -> (i32, i32) {
    %c0_i32 = arith.constant 0 : i32
    %c0_i32_0 = arith.constant 0 : i32
    %c0_i32_1 = arith.constant 0 : i32
    return %c0_i32, %c0_i32_0 : i32, i32
  }
  func.func @transform_14(%arg0: i32) -> (i32, i32) {
    %c0_i32 = arith.constant 0 : i32
    %c0_i32_0 = arith.constant 0 : i32
    %c0_i32_1 = arith.constant 0 : i32
    return %c0_i32, %c0_i32_0 : i32, i32
  }
  func.func @transform_15(%arg0: i32) -> (i32, i32) {
    %c0_i32 = arith.constant 0 : i32
    %c0_i32_0 = arith.constant 0 : i32
    %c0_i32_1 = arith.constant 0 : i32
    return %c0_i32, %c0_i32_0 : i32, i32
  }
  func.func @transform_16(%arg0: i32) -> (i32, i32) {
    %c0_i32 = arith.constant 0 : i32
    %c0_i32_0 = arith.constant 0 : i32
    %c0_i32_1 = arith.constant 0 : i32
    return %c0_i32, %c0_i32_0 : i32, i32
  }
}

</mosaic_0001>

<llo_original>
// kernel: vit_discriminator_forward.1
$region0: #{vit_discriminator_forward.1}
  #allocation0 [shape = 'u32[]', space=smem, size = 0x4, offset = 0x4, fixed_abs, tag = 'smem constant byte address 0x4 - core index']
  #allocation1 [shape = 'u32[144,128]{1,0:T(1,128)}', space=vmem, size = 0x12000, scoped, tag = 'internal scratch']
  #allocation2 [shape = 'f32[16,256]{1,0:T(8,128)}', space=vmem, size = 0x4000, scoped, tag = 'scratch operand']
  #allocation3 [shape = 'f32[16,512]{1,0:T(8,128)}', space=vmem, size = 0x8000, scoped, tag = 'scratch operand']
  %s0 = inlined_call_operand.vmem [shape: f32[16,256], index: 0, kind: input, shape index: {}]
  %s1 = inlined_call_operand.hbm [shape: bf16[256,256], index: 1, kind: input, shape index: {}]
  %s2 = inlined_call_operand.vmem [shape: f32[16,256], index: 2, kind: input, shape index: {}]
  %s3 = inlined_call_operand.hbm [shape: bf16[2,256,1536], index: 3, kind: input, shape index: {}]
  %s4 = inlined_call_operand.hbm [shape: f32[2,1,1536], index: 4, kind: input, shape index: {}]
  %s5 = inlined_call_operand.hbm [shape: bf16[2,512,256], index: 5, kind: input, shape index: {}]
  %s6 = inlined_call_operand.hbm [shape: f32[2,1,256], index: 6, kind: input, shape index: {}]
  %s7 = inlined_call_operand.hbm [shape: bf16[2,256,1024], index: 7, kind: input, shape index: {}]
  %s8 = inlined_call_operand.hbm [shape: f32[2,1,1024], index: 8, kind: input, shape index: {}]
  %s9 = inlined_call_operand.hbm [shape: bf16[2,1024,256], index: 9, kind: input, shape index: {}]
  %s10 = inlined_call_operand.hbm [shape: f32[2,1,256], index: 10, kind: input, shape index: {}]
  %s11 = inlined_call_operand.hbm [shape: f32[2,2,256], index: 11, kind: input, shape index: {}]
  %s12 = inlined_call_operand.hbm [shape: f32[2,2,256], index: 12, kind: input, shape index: {}]
  %s13 = inlined_call_operand.hbm [shape: f32[2,256], index: 13, kind: input, shape index: {}]
  %s14 = inlined_call_operand.vmem [shape: bf16[256,2], index: 14, kind: input, shape index: {}]
  %s15 = inlined_call_operand.hbm [shape: f32[1,2], index: 15, kind: input, shape index: {}]
  %s16 = inlined_call_operand.vmem [shape: f32[16,2], index: 16, kind: output, shape index: {}]
  %s17 = sld [smem:[#allocation0]]
  $region157: #{vit_discriminator_forward.1} parent=0
    _
  %s19 = ssub.s32 1, %s17
  %s20 = scalar_select 0, %s19, %s17
  $region1: #{vit_discriminator_forward.1} parent=0
    #allocation4 [shape = 'u8[131072]{0}', space=vmem, size = 0x20000, scoped, tag = 'input window, operand 1, single buffered']
    #allocation5 [shape = 's32[2]{0}', space=sflag, size = 0x8, scoped, tag = 'scoped memory for vit_discriminator_forward.1']
    #allocation6 [shape = 'u8[1572864]{0}', space=vmem, size = 0x180000, scoped, tag = 'input window, operand 3']
    #allocation7 [shape = 's32[2]{0}', space=sflag, size = 0x8, scoped, tag = 'scoped memory for vit_discriminator_forward.1']
    #allocation8 [shape = 'u8[12288]{0}', space=vmem, size = 0x3000, scoped, tag = 'input window, operand 4']
    #allocation9 [shape = 'u8[524288]{0}', space=vmem, size = 0x80000, scoped, tag = 'input window, operand 5']
    #allocation10 [shape = 's32[2]{0}', space=sflag, size = 0x8, scoped, tag = 'scoped memory for vit_discriminator_forward.1']
    #allocation11 [shape = 'u8[2048]{0}', space=vmem, size = 0x800, scoped, tag = 'input window, operand 6']
    #allocation12 [shape = 'u8[1048576]{0}', space=vmem, size = 0x100000, scoped, tag = 'input window, operand 7']
    #allocation13 [shape = 's32[2]{0}', space=sflag, size = 0x8, scoped, tag = 'scoped memory for vit_discriminator_forward.1']
    #allocation14 [shape = 'u8[8192]{0}', space=vmem, size = 0x2000, scoped, tag = 'input window, operand 8']
    #allocation15 [shape = 'u8[1048576]{0}', space=vmem, size = 0x100000, scoped, tag = 'input window, operand 9']
    #allocation16 [shape = 's32[2]{0}', space=sflag, size = 0x8, scoped, tag = 'scoped memory for vit_discriminator_forward.1']
    #allocation17 [shape = 'u8[2048]{0}', space=vmem, size = 0x800, scoped, tag = 'input window, operand 10']
    #allocation18 [shape = 'u8[4096]{0}', space=vmem, size = 0x1000, scoped, tag = 'input window, operand 11']
    #allocation19 [shape = 's32[2]{0}', space=sflag, size = 0x8, scoped, tag = 'scoped memory for vit_discriminator_forward.1']
    #allocation20 [shape = 'u8[4096]{0}', space=vmem, size = 0x1000, scoped, tag = 'input window, operand 12']
    #allocation21 [shape = 'u8[2048]{0}', space=vmem, size = 0x800, scoped, tag = 'input window, operand 13, single buffered']
    #allocation22 [shape = 's32[1]{0}', space=sflag, size = 0x4, scoped, tag = 'scoped memory for vit_discriminator_forward.1']
    #allocation23 [shape = 'u8[512]{0}', space=vmem, size = 0x400, scoped, tag = 'input window, operand 15, single buffered']
    %21 = vsyncpa [#allocation5], 0
    %22 = vsyncpa [#allocation7], 0
    %s23 = scalar_lea.sflag [#allocation7], 1
    %24 = vsyncpa %s23, 0
    %25 = vsyncpa [#allocation10], 0
    %s26 = scalar_lea.sflag [#allocation10], 1
    %27 = vsyncpa %s26, 0
    %28 = vsyncpa [#allocation13], 0
    %s29 = scalar_lea.sflag [#allocation13], 1
    %30 = vsyncpa %s29, 0
    %31 = vsyncpa [#allocation16], 0
    %s32 = scalar_lea.sflag [#allocation16], 1
    %33 = vsyncpa %s32, 0
    %34 = vsyncpa [#allocation19], 0
    %s35 = scalar_lea.sflag [#allocation19], 1
    %36 = vsyncpa %s35, 0
    %37 = vsyncpa [#allocation22], 0
    loop: start=0, step=1, limit=4
    $region2: #{vit_discriminator_forward.1} parent=1 // loop_pre_header
      _
    $region3: #{vit_discriminator_forward.1} parent=1 // loop_header
      %s39 = sphi 0, %s43
      %p40 = scmp.ge.s32.totalorder %s39, 4
      %s47 = sphi 0, %s47
      %s49 = sphi 0, %s47
      %s50 = sphi 0, %s49
      %s64 = sphi 0, %s50
      %s68 = sphi 0, %s68
      %s70 = sphi 0, %s68
      %s71 = sphi 0, %s70
      %s85 = sphi 0, %s71
      %s89 = sphi 0, %s89
      %s91 = sphi 0, %s89
      %s92 = sphi 0, %s91
      %s106 = sphi 0, %s92
      %s112 = sphi 0, %s114
      %s115 = sphi 0, %s112
      %s116 = sphi 0, %s115
      %s132 = sphi 0, %s116
      %s138 = sphi 0, %s140
      %s141 = sphi 0, %s138
      %s142 = sphi 0, %s141
      %s158 = sphi 0, %s142
      %s164 = sphi 0, %s166
      %s167 = sphi 0, %s164
      %s168 = sphi 0, %s167
      %s184 = sphi 0, %s168
      %s190 = sphi 0, %s192
      %s193 = sphi 0, %s190
      %s194 = sphi 0, %s193
      %s210 = sphi 0, %s194
      %s216 = sphi 0, %s218
      %s219 = sphi 0, %s216
      %s220 = sphi 0, %s219
      %s236 = sphi 0, %s220
      %s242 = sphi 0, %s244
      %s245 = sphi 0, %s242
      %s246 = sphi 0, %s245
      %s262 = sphi 0, %s246
      %s268 = sphi 0, %s270
      %s271 = sphi 0, %s268
      %s272 = sphi 0, %s271
      %s288 = sphi 0, %s272
      %s294 = sphi 0, %s296
      %s297 = sphi 0, %s294
      %s298 = sphi 0, %s297
      %s314 = sphi 0, %s298
      %s320 = sphi 0, %s322
      %s323 = sphi 0, %s320
      %s324 = sphi 0, %s323
      %s340 = sphi 0, %s324
      %s346 = sphi 0, %s348
      %s349 = sphi 0, %s346
      %s350 = sphi 0, %s349
      %s366 = sphi 0, %s350
      %s370 = sphi 0, %s370
      %s372 = sphi 0, %s370
      %s373 = sphi 0, %s372
      %s387 = sphi 0, %s373
      %s391 = sphi 0, %s391
      %s393 = sphi 0, %s391
      %s394 = sphi 0, %s393
      %s408 = sphi 0, %s394
      %s412 = sphi 0, %s412
      %s414 = sphi 0, %s412
      %s415 = sphi 0, %s414
      %s429 = sphi 0, %s415
      %s433 = sphi 0, %s433
      %s435 = sphi 0, %s433
      %s436 = sphi 0, %s435
      %s450 = sphi 0, %s436
    $region4: #{vit_discriminator_forward.1} parent=1 // loop_header_branch
      %42 = sbr.rel (%p40) target = $region8
    $region5: #{vit_discriminator_forward.1} parent=1 // loop_body
      %s44 = ssub.s32 %s39, 1
      %s45 = ssub.s32 %s39, 2
      %s46 = sadd.s32 %s39, 1
      %s48 = sadd.s32 %s47, 1
      %p51 = scmp.eq.s32.totalorder %s39, 1
      %p52 = scmp.ne.s32.totalorder %s47, %s49
      %p53 = scmp.eq.s32.totalorder %s39, 0
      %p54 = por %p52, %p53
      %p55 = scmp.ne.s32.totalorder %s47, %s49
      %p56 = scmp.eq.s32.totalorder %s44, 1
      %p57 = por %p55, %p56
      %p58 = scmp.ne.s32.totalorder %s49, %s50
      %p59 = scmp.eq.s32.totalorder %s44, 0
      %p60 = por %p58, %p59
      %p61 = scmp.ne.s32.totalorder %s49, %s50
      %p62 = scmp.eq.s32.totalorder %s45, 1
      %p63 = por %p61, %p62
      %p65 = scmp.ne.s32.totalorder %s50, %s64
      %p66 = scmp.eq.s32.totalorder %s45, 0
      %p67 = por %p65, %p66
      %s69 = sadd.s32 %s68, 1
      %p72 = scmp.eq.s32.totalorder %s39, 1
      %p73 = scmp.ne.s32.totalorder %s68, %s70
      %p74 = scmp.eq.s32.totalorder %s39, 0
      %p75 = por %p73, %p74
      %p76 = scmp.ne.s32.totalorder %s68, %s70
      %p77 = scmp.eq.s32.totalorder %s44, 1
      %p78 = por %p76, %p77
      %p79 = scmp.ne.s32.totalorder %s70, %s71
      %p80 = scmp.eq.s32.totalorder %s44, 0
      %p81 = por %p79, %p80
      %p82 = scmp.ne.s32.totalorder %s70, %s71
      %p83 = scmp.eq.s32.totalorder %s45, 1
      %p84 = por %p82, %p83
      %p86 = scmp.ne.s32.totalorder %s71, %s85
      %p87 = scmp.eq.s32.totalorder %s45, 0
      %p88 = por %p86, %p87
      %s90 = sadd.s32 %s89, 1
      %p93 = scmp.eq.s32.totalorder %s39, 1
      %p94 = scmp.ne.s32.totalorder %s89, %s91
      %p95 = scmp.eq.s32.totalorder %s39, 0
      %p96 = por %p94, %p95
      %p97 = scmp.ne.s32.totalorder %s89, %s91
      %p98 = scmp.eq.s32.totalorder %s44, 1
      %p99 = por %p97, %p98
      %p100 = scmp.ne.s32.totalorder %s91, %s92
      %p101 = scmp.eq.s32.totalorder %s44, 0
      %p102 = por %p100, %p101
      %p103 = scmp.ne.s32.totalorder %s91, %s92
      %p104 = scmp.eq.s32.totalorder %s45, 1
      %p105 = por %p103, %p104
      %p107 = scmp.ne.s32.totalorder %s92, %s106
      %p108 = scmp.eq.s32.totalorder %s45, 0
      %p109 = por %p107, %p108
      %s110 = ssub.s32 %s39, %s46
      %p111 = scmp.eq.s32.totalorder %s110, 0
      %s113 = sadd.s32 %s112, 1
      %s114 = scalar_select %p111, %s112, %s113
      %p117 = pneg %p111
      %p118 = scmp.eq.s32.totalorder %s39, 1
      %p119 = por %p117, %p118
      %p120 = scmp.ne.s32.totalorder %s112, %s115
      %p121 = scmp.eq.s32.totalorder %s39, 0
      %p122 = por %p120, %p121
      %p123 = scmp.ne.s32.totalorder %s112, %s115
      %p124 = scmp.eq.s32.totalorder %s44, 1
      %p125 = por %p123, %p124
      %p126 = scmp.ne.s32.totalorder %s115, %s116
      %p127 = scmp.eq.s32.totalorder %s44, 0
      %p128 = por %p126, %p127
      %p129 = scmp.ne.s32.totalorder %s115, %s116
      %p130 = scmp.eq.s32.totalorder %s45, 1
      %p131 = por %p129, %p130
      %p133 = scmp.ne.s32.totalorder %s116, %s132
      %p134 = scmp.eq.s32.totalorder %s45, 0
      %p135 = por %p133, %p134
      %s136 = ssub.s32 %s39, %s46
      %p137 = scmp.eq.s32.totalorder %s136, 0
      %s139 = sadd.s32 %s138, 1
      %s140 = scalar_select %p137, %s138, %s139
      %p143 = pneg %p137
      %p144 = scmp.eq.s32.totalorder %s39, 1
      %p145 = por %p143, %p144
      %p146 = scmp.ne.s32.totalorder %s138, %s141
      %p147 = scmp.eq.s32.totalorder %s39, 0
      %p148 = por %p146, %p147
      %p149 = scmp.ne.s32.totalorder %s138, %s141
      %p150 = scmp.eq.s32.totalorder %s44, 1
      %p151 = por %p149, %p150
      %p152 = scmp.ne.s32.totalorder %s141, %s142
      %p153 = scmp.eq.s32.totalorder %s44, 0
      %p154 = por %p152, %p153
      %p155 = scmp.ne.s32.totalorder %s141, %s142
      %p156 = scmp.eq.s32.totalorder %s45, 1
      %p157 = por %p155, %p156
      %p159 = scmp.ne.s32.totalorder %s142, %s158
      %p160 = scmp.eq.s32.totalorder %s45, 0
      %p161 = por %p159, %p160
      %s162 = ssub.s32 %s39, %s46
      %p163 = scmp.eq.s32.totalorder %s162, 0
      %s165 = sadd.s32 %s164, 1
      %s166 = scalar_select %p163, %s164, %s165
      %p169 = pneg %p163
      %p170 = scmp.eq.s32.totalorder %s39, 1
      %p171 = por %p169, %p170
      %p172 = scmp.ne.s32.totalorder %s164, %s167
      %p173 = scmp.eq.s32.totalorder %s39, 0
      %p174 = por %p172, %p173
      %p175 = scmp.ne.s32.totalorder %s164, %s167
      %p176 = scmp.eq.s32.totalorder %s44, 1
      %p177 = por %p175, %p176
      %p178 = scmp.ne.s32.totalorder %s167, %s168
      %p179 = scmp.eq.s32.totalorder %s44, 0
      %p180 = por %p178, %p179
      %p181 = scmp.ne.s32.totalorder %s167, %s168
      %p182 = scmp.eq.s32.totalorder %s45, 1
      %p183 = por %p181, %p182
      %p185 = scmp.ne.s32.totalorder %s168, %s184
      %p186 = scmp.eq.s32.totalorder %s45, 0
      %p187 = por %p185, %p186
      %s188 = ssub.s32 %s39, %s46
      %p189 = scmp.eq.s32.totalorder %s188, 0
      %s191 = sadd.s32 %s190, 1
      %s192 = scalar_select %p189, %s190, %s191
      %p195 = pneg %p189
      %p196 = scmp.eq.s32.totalorder %s39, 1
      %p197 = por %p195, %p196
      %p198 = scmp.ne.s32.totalorder %s190, %s193
      %p199 = scmp.eq.s32.totalorder %s39, 0
      %p200 = por %p198, %p199
      %p201 = scmp.ne.s32.totalorder %s190, %s193
      %p202 = scmp.eq.s32.totalorder %s44, 1
      %p203 = por %p201, %p202
      %p204 = scmp.ne.s32.totalorder %s193, %s194
      %p205 = scmp.eq.s32.totalorder %s44, 0
      %p206 = por %p204, %p205
      %p207 = scmp.ne.s32.totalorder %s193, %s194
      %p208 = scmp.eq.s32.totalorder %s45, 1
      %p209 = por %p207, %p208
      %p211 = scmp.ne.s32.totalorder %s194, %s210
      %p212 = scmp.eq.s32.totalorder %s45, 0
      %p213 = por %p211, %p212
      %s214 = ssub.s32 %s39, %s46
      %p215 = scmp.eq.s32.totalorder %s214, 0
      %s217 = sadd.s32 %s216, 1
      %s218 = scalar_select %p215, %s216, %s217
      %p221 = pneg %p215
      %p222 = scmp.eq.s32.totalorder %s39, 1
      %p223 = por %p221, %p222
      %p224 = scmp.ne.s32.totalorder %s216, %s219
      %p225 = scmp.eq.s32.totalorder %s39, 0
      %p226 = por %p224, %p225
      %p227 = scmp.ne.s32.totalorder %s216, %s219
      %p228 = scmp.eq.s32.totalorder %s44, 1
      %p229 = por %p227, %p228
      %p230 = scmp.ne.s32.totalorder %s219, %s220
      %p231 = scmp.eq.s32.totalorder %s44, 0
      %p232 = por %p230, %p231
      %p233 = scmp.ne.s32.totalorder %s219, %s220
      %p234 = scmp.eq.s32.totalorder %s45, 1
      %p235 = por %p233, %p234
      %p237 = scmp.ne.s32.totalorder %s220, %s236
      %p238 = scmp.eq.s32.totalorder %s45, 0
      %p239 = por %p237, %p238
      %s240 = ssub.s32 %s39, %s46
      %p241 = scmp.eq.s32.totalorder %s240, 0
      %s243 = sadd.s32 %s242, 1
      %s244 = scalar_select %p241, %s242, %s243
      %p247 = pneg %p241
      %p248 = scmp.eq.s32.totalorder %s39, 1
      %p249 = por %p247, %p248
      %p250 = scmp.ne.s32.totalorder %s242, %s245
      %p251 = scmp.eq.s32.totalorder %s39, 0
      %p252 = por %p250, %p251
      %p253 = scmp.ne.s32.totalorder %s242, %s245
      %p254 = scmp.eq.s32.totalorder %s44, 1
      %p255 = por %p253, %p254
      %p256 = scmp.ne.s32.totalorder %s245, %s246
      %p257 = scmp.eq.s32.totalorder %s44, 0
      %p258 = por %p256, %p257
      %p259 = scmp.ne.s32.totalorder %s245, %s246
      %p260 = scmp.eq.s32.totalorder %s45, 1
      %p261 = por %p259, %p260
      %p263 = scmp.ne.s32.totalorder %s246, %s262
      %p264 = scmp.eq.s32.totalorder %s45, 0
      %p265 = por %p263, %p264
      %s266 = ssub.s32 %s39, %s46
      %p267 = scmp.eq.s32.totalorder %s266, 0
      %s269 = sadd.s32 %s268, 1
      %s270 = scalar_select %p267, %s268, %s269
      %p273 = pneg %p267
      %p274 = scmp.eq.s32.totalorder %s39, 1
      %p275 = por %p273, %p274
      %p276 = scmp.ne.s32.totalorder %s268, %s271
      %p277 = scmp.eq.s32.totalorder %s39, 0
      %p278 = por %p276, %p277
      %p279 = scmp.ne.s32.totalorder %s268, %s271
      %p280 = scmp.eq.s32.totalorder %s44, 1
      %p281 = por %p279, %p280
      %p282 = scmp.ne.s32.totalorder %s271, %s272
      %p283 = scmp.eq.s32.totalorder %s44, 0
      %p284 = por %p282, %p283
      %p285 = scmp.ne.s32.totalorder %s271, %s272
      %p286 = scmp.eq.s32.totalorder %s45, 1
      %p287 = por %p285, %p286
      %p289 = scmp.ne.s32.totalorder %s272, %s288
      %p290 = scmp.eq.s32.totalorder %s45, 0
      %p291 = por %p289, %p290
      %s292 = ssub.s32 %s39, %s46
      %p293 = scmp.eq.s32.totalorder %s292, 0
      %s295 = sadd.s32 %s294, 1
      %s296 = scalar_select %p293, %s294, %s295
      %p299 = pneg %p293
      %p300 = scmp.eq.s32.totalorder %s39, 1
      %p301 = por %p299, %p300
      %p302 = scmp.ne.s32.totalorder %s294, %s297
      %p303 = scmp.eq.s32.totalorder %s39, 0
      %p304 = por %p302, %p303
      %p305 = scmp.ne.s32.totalorder %s294, %s297
      %p306 = scmp.eq.s32.totalorder %s44, 1
      %p307 = por %p305, %p306
      %p308 = scmp.ne.s32.totalorder %s297, %s298
      %p309 = scmp.eq.s32.totalorder %s44, 0
      %p310 = por %p308, %p309
      %p311 = scmp.ne.s32.totalorder %s297, %s298
      %p312 = scmp.eq.s32.totalorder %s45, 1
      %p313 = por %p311, %p312
      %p315 = scmp.ne.s32.totalorder %s298, %s314
      %p316 = scmp.eq.s32.totalorder %s45, 0
      %p317 = por %p315, %p316
      %s318 = ssub.s32 %s39, %s46
      %p319 = scmp.eq.s32.totalorder %s318, 0
      %s321 = sadd.s32 %s320, 1
      %s322 = scalar_select %p319, %s320, %s321
      %p325 = pneg %p319
      %p326 = scmp.eq.s32.totalorder %s39, 1
      %p327 = por %p325, %p326
      %p328 = scmp.ne.s32.totalorder %s320, %s323
      %p329 = scmp.eq.s32.totalorder %s39, 0
      %p330 = por %p328, %p329
      %p331 = scmp.ne.s32.totalorder %s320, %s323
      %p332 = scmp.eq.s32.totalorder %s44, 1
      %p333 = por %p331, %p332
      %p334 = scmp.ne.s32.totalorder %s323, %s324
      %p335 = scmp.eq.s32.totalorder %s44, 0
      %p336 = por %p334, %p335
      %p337 = scmp.ne.s32.totalorder %s323, %s324
      %p338 = scmp.eq.s32.totalorder %s45, 1
      %p339 = por %p337, %p338
      %p341 = scmp.ne.s32.totalorder %s324, %s340
      %p342 = scmp.eq.s32.totalorder %s45, 0
      %p343 = por %p341, %p342
      %s344 = ssub.s32 %s39, %s46
      %p345 = scmp.eq.s32.totalorder %s344, 0
      %s347 = sadd.s32 %s346, 1
      %s348 = scalar_select %p345, %s346, %s347
      %p351 = pneg %p345
      %p352 = scmp.eq.s32.totalorder %s39, 1
      %p353 = por %p351, %p352
      %p354 = scmp.ne.s32.totalorder %s346, %s349
      %p355 = scmp.eq.s32.totalorder %s39, 0
      %p356 = por %p354, %p355
      %p357 = scmp.ne.s32.totalorder %s346, %s349
      %p358 = scmp.eq.s32.totalorder %s44, 1
      %p359 = por %p357, %p358
      %p360 = scmp.ne.s32.totalorder %s349, %s350
      %p361 = scmp.eq.s32.totalorder %s44, 0
      %p362 = por %p360, %p361
      %p363 = scmp.ne.s32.totalorder %s349, %s350
      %p364 = scmp.eq.s32.totalorder %s45, 1
      %p365 = por %p363, %p364
      %p367 = scmp.ne.s32.totalorder %s350, %s366
      %p368 = scmp.eq.s32.totalorder %s45, 0
      %p369 = por %p367, %p368
      %s371 = sadd.s32 %s370, 1
      %p374 = scmp.eq.s32.totalorder %s39, 1
      %p375 = scmp.ne.s32.totalorder %s370, %s372
      %p376 = scmp.eq.s32.totalorder %s39, 0
      %p377 = por %p375, %p376
      %p378 = scmp.ne.s32.totalorder %s370, %s372
      %p379 = scmp.eq.s32.totalorder %s44, 1
      %p380 = por %p378, %p379
      %p381 = scmp.ne.s32.totalorder %s372, %s373
      %p382 = scmp.eq.s32.totalorder %s44, 0
      %p383 = por %p381, %p382
      %p384 = scmp.ne.s32.totalorder %s372, %s373
      %p385 = scmp.eq.s32.totalorder %s45, 1
      %p386 = por %p384, %p385
      %p388 = scmp.ne.s32.totalorder %s373, %s387
      %p389 = scmp.eq.s32.totalorder %s45, 0
      %p390 = por %p388, %p389
      %s392 = sadd.s32 %s391, 1
      %p395 = scmp.eq.s32.totalorder %s39, 1
      %p396 = scmp.ne.s32.totalorder %s391, %s393
      %p397 = scmp.eq.s32.totalorder %s39, 0
      %p398 = por %p396, %p397
      %p399 = scmp.ne.s32.totalorder %s391, %s393
      %p400 = scmp.eq.s32.totalorder %s44, 1
      %p401 = por %p399, %p400
      %p402 = scmp.ne.s32.totalorder %s393, %s394
      %p403 = scmp.eq.s32.totalorder %s44, 0
      %p404 = por %p402, %p403
      %p405 = scmp.ne.s32.totalorder %s393, %s394
      %p406 = scmp.eq.s32.totalorder %s45, 1
      %p407 = por %p405, %p406
      %p409 = scmp.ne.s32.totalorder %s394, %s408
      %p410 = scmp.eq.s32.totalorder %s45, 0
      %p411 = por %p409, %p410
      %s413 = sadd.s32 %s412, 1
      %p416 = scmp.eq.s32.totalorder %s39, 1
      %p417 = scmp.ne.s32.totalorder %s412, %s414
      %p418 = scmp.eq.s32.totalorder %s39, 0
      %p419 = por %p417, %p418
      %p420 = scmp.ne.s32.totalorder %s412, %s414
      %p421 = scmp.eq.s32.totalorder %s44, 1
      %p422 = por %p420, %p421
      %p423 = scmp.ne.s32.totalorder %s414, %s415
      %p424 = scmp.eq.s32.totalorder %s44, 0
      %p425 = por %p423, %p424
      %p426 = scmp.ne.s32.totalorder %s414, %s415
      %p427 = scmp.eq.s32.totalorder %s45, 1
      %p428 = por %p426, %p427
      %p430 = scmp.ne.s32.totalorder %s415, %s429
      %p431 = scmp.eq.s32.totalorder %s45, 0
      %p432 = por %p430, %p431
      %s434 = sadd.s32 %s433, 1
      %p437 = scmp.eq.s32.totalorder %s39, 1
      %p438 = scmp.ne.s32.totalorder %s433, %s435
      %p439 = scmp.eq.s32.totalorder %s39, 0
      %p440 = por %p438, %p439
      %p441 = scmp.ne.s32.totalorder %s433, %s435
      %p442 = scmp.eq.s32.totalorder %s44, 1
      %p443 = por %p441, %p442
      %p444 = scmp.ne.s32.totalorder %s435, %s436
      %p445 = scmp.eq.s32.totalorder %s44, 0
      %p446 = por %p444, %p445
      %p447 = scmp.ne.s32.totalorder %s435, %s436
      %p448 = scmp.eq.s32.totalorder %s45, 1
      %p449 = por %p447, %p448
      %p451 = scmp.ne.s32.totalorder %s436, %s450
      %p452 = scmp.eq.s32.totalorder %s45, 0
      %p453 = por %p451, %p452
      %p454 = scmp.le.s32.totalorder 1, %s39
      %p455 = scmp.lt.s32.totalorder %s39, 3
      %p456 = pnand %p454, %p455
      %p457 = pneg %p456
      // Predicated region
      $region9: #{vit_discriminator_forward.1} parent=5 // pred_check
        _
      $region10: #{vit_discriminator_forward.1} parent=5 // pred_check_branch
        %459 = sbr.rel (%p456) target = $region12
      $region11: #{vit_discriminator_forward.1} parent=5 // pred_region
        %s460 = ssub.s32 %s39, 1
        // Predicated region
        $region13: #{vit_discriminator_forward.1} parent=11 // pred_check
          %p461 = pneg %p60
        $region14: #{vit_discriminator_forward.1} parent=11 // pred_check_branch
          %463 = sbr.rel (%p461) target = $region16
        $region15: #{vit_discriminator_forward.1} parent=11 // pred_region
          _
        $region16: #{vit_discriminator_forward.1} parent=11 // pred_fallthru
          _
        // Predicated region
        $region17: #{vit_discriminator_forward.1} parent=11 // pred_check
          %p464 = pneg %p81
        $region18: #{vit_discriminator_forward.1} parent=11 // pred_check_branch
          %466 = sbr.rel (%p464) target = $region20
        $region19: #{vit_discriminator_forward.1} parent=11 // pred_region
          %s468 = ssub.s32 4096, 4096
          %469 = vsyncadd [#allocation5], %s468
          %s470 = sshll.u32 [#allocation4], 4
          %s471 = int_to_ptr.vmem [resolvable:$true] %s470
          %476 = dma.hbm_to_vmem [thread:$0]  %s1, 4096, %s471, [#allocation5], 128, 128, 8
        $region20: #{vit_discriminator_forward.1} parent=11 // pred_fallthru
          _
        // Predicated region
        $region21: #{vit_discriminator_forward.1} parent=11 // pred_check
          %p477 = pneg %p102
        $region22: #{vit_discriminator_forward.1} parent=11 // pred_check_branch
          %479 = sbr.rel (%p477) target = $region24
        $region23: #{vit_discriminator_forward.1} parent=11 // pred_region
          _
        $region24: #{vit_discriminator_forward.1} parent=11 // pred_fallthru
          _
        // Predicated region
        $region25: #{vit_discriminator_forward.1} parent=11 // pred_check
          %p480 = pneg %p383
        $region26: #{vit_discriminator_forward.1} parent=11 // pred_check_branch
          %482 = sbr.rel (%p480) target = $region28
        $region27: #{vit_discriminator_forward.1} parent=11 // pred_region
          %s484 = ssub.s32 64, 64
          %485 = vsyncadd [#allocation22], %s484
          %s487 = sshll.u32 [#allocation21], 4
          %s488 = int_to_ptr.vmem [resolvable:$true] %s487
          %490 = dma.hbm_to_vmem [thread:$0]  %s13, 64, %s488, [#allocation22]
        $region28: #{vit_discriminator_forward.1} parent=11 // pred_fallthru
          _
        // Predicated region
        $region29: #{vit_discriminator_forward.1} parent=11 // pred_check
          %p491 = pneg %p404
        $region30: #{vit_discriminator_forward.1} parent=11 // pred_check_branch
          %493 = sbr.rel (%p491) target = $region32
        $region31: #{vit_discriminator_forward.1} parent=11 // pred_region
          _
        $region32: #{vit_discriminator_forward.1} parent=11 // pred_fallthru
          _
        // Predicated region
        $region33: #{vit_discriminator_forward.1} parent=11 // pred_check
          %p494 = pneg %p425
        $region34: #{vit_discriminator_forward.1} parent=11 // pred_check_branch
          %496 = sbr.rel (%p494) target = $region36
        $region35: #{vit_discriminator_forward.1} parent=11 // pred_region
          %s498 = ssub.s32 16, 16
          %499 = vsyncadd [#allocation22], %s498
          %s501 = sshll.u32 [#allocation23], 4
          %s502 = int_to_ptr.vmem [resolvable:$true] %s501
          %504 = dma.hbm_to_vmem [thread:$0]  %s15, 16, %s502, [#allocation22]
        $region36: #{vit_discriminator_forward.1} parent=11 // pred_fallthru
          _
      $region12: #{vit_discriminator_forward.1} parent=5 // pred_fallthru
        _
      %p505 = scmp.lt.s32.totalorder %s39, 2
      // Predicated region
      $region37: #{vit_discriminator_forward.1} parent=5 // pred_check
        %p506 = pneg %p505
      $region38: #{vit_discriminator_forward.1} parent=5 // pred_check_branch
        %508 = sbr.rel (%p506) target = $region40
      $region39: #{vit_discriminator_forward.1} parent=5 // pred_region
        // Predicated region
        $region41: #{vit_discriminator_forward.1} parent=39 // pred_check
          %p509 = pneg %p122
        $region42: #{vit_discriminator_forward.1} parent=39 // pred_check_branch
          %511 = sbr.rel (%p509) target = $region44
        $region43: #{vit_discriminator_forward.1} parent=39 // pred_region
          %s512 = sand.u32 %s39, 1
          %s513 = scalar_lea.sflag [#allocation7], %s512
          %s514 = sand.u32 %s112, 1
          %s515 = smul.addr %s514, 1536
          %s516 = scalar_lea.vmem [#allocation6], %s515
          %s518 = ssub.s32 24576, 24576
          %519 = vsyncadd %s513, %s518
          %s520 = smul.addr %s39, 384
          %s521 = smul.addr %s520, 64
          %s522 = scalar_lea.hbm %s3, %s521
          %s523 = sshll.u32 %s516, 4
          %s524 = int_to_ptr.vmem [resolvable:$true] %s523
          %529 = dma.hbm_to_vmem [thread:$0]  %s522, 24576, %s524, %s513, 768, 768, 48
        $region44: #{vit_discriminator_forward.1} parent=39 // pred_fallthru
          _
        // Predicated region
        $region45: #{vit_discriminator_forward.1} parent=39 // pred_check
          %p530 = pneg %p148
        $region46: #{vit_discriminator_forward.1} parent=39 // pred_check_branch
          %532 = sbr.rel (%p530) target = $region48
        $region47: #{vit_discriminator_forward.1} parent=39 // pred_region
          %s533 = sand.u32 %s39, 1
          %s534 = scalar_lea.sflag [#allocation7], %s533
          %s535 = sand.u32 %s138, 1
          %s536 = smul.addr %s535, 12
          %s537 = scalar_lea.vmem [#allocation8], %s536
          %s539 = ssub.s32 192, 192
          %540 = vsyncadd %s534, %s539
          %s541 = smul.addr %s39, 12
          %s542 = smul.addr %s541, 16
          %s543 = scalar_lea.hbm %s4, %s542
          %s545 = sshll.u32 %s537, 4
          %s546 = int_to_ptr.vmem [resolvable:$true] %s545
          %548 = dma.hbm_to_vmem [thread:$0]  %s543, 192, %s546, %s534
        $region48: #{vit_discriminator_forward.1} parent=39 // pred_fallthru
          _
        // Predicated region
        $region49: #{vit_discriminator_forward.1} parent=39 // pred_check
          %p549 = pneg %p174
        $region50: #{vit_discriminator_forward.1} parent=39 // pred_check_branch
          %551 = sbr.rel (%p549) target = $region52
        $region51: #{vit_discriminator_forward.1} parent=39 // pred_region
          %s552 = sand.u32 %s39, 1
          %s553 = scalar_lea.sflag [#allocation10], %s552
          %s554 = sand.u32 %s164, 1
          %s555 = smul.addr %s554, 512
          %s556 = scalar_lea.vmem [#allocation9], %s555
          %s558 = ssub.s32 8192, 8192
          %559 = vsyncadd %s553, %s558
          %s560 = smul.addr %s39, 128
          %s561 = smul.addr %s560, 64
          %s562 = scalar_lea.hbm %s5, %s561
          %s563 = sshll.u32 %s556, 4
          %s564 = int_to_ptr.vmem [resolvable:$true] %s563
          %569 = dma.hbm_to_vmem [thread:$0]  %s562, 8192, %s564, %s553, 128, 128, 8
        $region52: #{vit_discriminator_forward.1} parent=39 // pred_fallthru
          _
        // Predicated region
        $region53: #{vit_discriminator_forward.1} parent=39 // pred_check
          %p570 = pneg %p200
        $region54: #{vit_discriminator_forward.1} parent=39 // pred_check_branch
          %572 = sbr.rel (%p570) target = $region56
        $region55: #{vit_discriminator_forward.1} parent=39 // pred_region
          %s573 = sand.u32 %s39, 1
          %s574 = scalar_lea.sflag [#allocation10], %s573
          %s575 = sand.u32 %s190, 1
          %s576 = smul.addr %s575, 2
          %s577 = scalar_lea.vmem [#allocation11], %s576
          %s579 = ssub.s32 32, 32
          %580 = vsyncadd %s574, %s579
          %s581 = smul.addr %s39, 2
          %s582 = smul.addr %s581, 16
          %s583 = scalar_lea.hbm %s6, %s582
          %s585 = sshll.u32 %s577, 4
          %s586 = int_to_ptr.vmem [resolvable:$true] %s585
          %588 = dma.hbm_to_vmem [thread:$0]  %s583, 32, %s586, %s574
        $region56: #{vit_discriminator_forward.1} parent=39 // pred_fallthru
          _
        // Predicated region
        $region57: #{vit_discriminator_forward.1} parent=39 // pred_check
          %p589 = pneg %p226
        $region58: #{vit_discriminator_forward.1} parent=39 // pred_check_branch
          %591 = sbr.rel (%p589) target = $region60
        $region59: #{vit_discriminator_forward.1} parent=39 // pred_region
          %s592 = sand.u32 %s39, 1
          %s593 = scalar_lea.sflag [#allocation13], %s592
          %s594 = sand.u32 %s216, 1
          %s595 = smul.addr %s594, 1024
          %s596 = scalar_lea.vmem [#allocation12], %s595
          %s598 = ssub.s32 16384, 16384
          %599 = vsyncadd %s593, %s598
          %s600 = smul.addr %s39, 256
          %s601 = smul.addr %s600, 64
          %s602 = scalar_lea.hbm %s7, %s601
          %s603 = sshll.u32 %s596, 4
          %s604 = int_to_ptr.vmem [resolvable:$true] %s603
          %609 = dma.hbm_to_vmem [thread:$0]  %s602, 16384, %s604, %s593, 512, 512, 32
        $region60: #{vit_discriminator_forward.1} parent=39 // pred_fallthru
          _
        // Predicated region
        $region61: #{vit_discriminator_forward.1} parent=39 // pred_check
          %p610 = pneg %p252
        $region62: #{vit_discriminator_forward.1} parent=39 // pred_check_branch
          %612 = sbr.rel (%p610) target = $region64
        $region63: #{vit_discriminator_forward.1} parent=39 // pred_region
          %s613 = sand.u32 %s39, 1
          %s614 = scalar_lea.sflag [#allocation13], %s613
          %s615 = sand.u32 %s242, 1
          %s616 = smul.addr %s615, 8
          %s617 = scalar_lea.vmem [#allocation14], %s616
          %s619 = ssub.s32 128, 128
          %620 = vsyncadd %s614, %s619
          %s621 = smul.addr %s39, 8
          %s622 = smul.addr %s621, 16
          %s623 = scalar_lea.hbm %s8, %s622
          %s625 = sshll.u32 %s617, 4
          %s626 = int_to_ptr.vmem [resolvable:$true] %s625
          %628 = dma.hbm_to_vmem [thread:$0]  %s623, 128, %s626, %s614
        $region64: #{vit_discriminator_forward.1} parent=39 // pred_fallthru
          _
        // Predicated region
        $region65: #{vit_discriminator_forward.1} parent=39 // pred_check
          %p629 = pneg %p278
        $region66: #{vit_discriminator_forward.1} parent=39 // pred_check_branch
          %631 = sbr.rel (%p629) target = $region68
        $region67: #{vit_discriminator_forward.1} parent=39 // pred_region
          %s632 = sand.u32 %s39, 1
          %s633 = scalar_lea.sflag [#allocation16], %s632
          %s634 = sand.u32 %s268, 1
          %s635 = smul.addr %s634, 1024
          %s636 = scalar_lea.vmem [#allocation15], %s635
          %s638 = ssub.s32 16384, 16384
          %639 = vsyncadd %s633, %s638
          %s640 = smul.addr %s39, 256
          %s641 = smul.addr %s640, 64
          %s642 = scalar_lea.hbm %s9, %s641
          %s643 = sshll.u32 %s636, 4
          %s644 = int_to_ptr.vmem [resolvable:$true] %s643
          %649 = dma.hbm_to_vmem [thread:$0]  %s642, 16384, %s644, %s633, 128, 128, 8
        $region68: #{vit_discriminator_forward.1} parent=39 // pred_fallthru
          _
        // Predicated region
        $region69: #{vit_discriminator_forward.1} parent=39 // pred_check
          %p650 = pneg %p304
        $region70: #{vit_discriminator_forward.1} parent=39 // pred_check_branch
          %652 = sbr.rel (%p650) target = $region72
        $region71: #{vit_discriminator_forward.1} parent=39 // pred_region
          %s653 = sand.u32 %s39, 1
          %s654 = scalar_lea.sflag [#allocation16], %s653
          %s655 = sand.u32 %s294, 1
          %s656 = smul.addr %s655, 2
          %s657 = scalar_lea.vmem [#allocation17], %s656
          %s659 = ssub.s32 32, 32
          %660 = vsyncadd %s654, %s659
          %s661 = smul.addr %s39, 2
          %s662 = smul.addr %s661, 16
          %s663 = scalar_lea.hbm %s10, %s662
          %s665 = sshll.u32 %s657, 4
          %s666 = int_to_ptr.vmem [resolvable:$true] %s665
          %668 = dma.hbm_to_vmem [thread:$0]  %s663, 32, %s666, %s654
        $region72: #{vit_discriminator_forward.1} parent=39 // pred_fallthru
          _
        // Predicated region
        $region73: #{vit_discriminator_forward.1} parent=39 // pred_check
          %p669 = pneg %p330
        $region74: #{vit_discriminator_forward.1} parent=39 // pred_check_branch
          %671 = sbr.rel (%p669) target = $region76
        $region75: #{vit_discriminator_forward.1} parent=39 // pred_region
          %s672 = sand.u32 %s39, 1
          %s673 = scalar_lea.sflag [#allocation19], %s672
          %s674 = sand.u32 %s320, 1
          %s675 = smul.addr %s674, 4
          %s676 = scalar_lea.vmem [#allocation18], %s675
          %s678 = ssub.s32 64, 64
          %679 = vsyncadd %s673, %s678
          %s680 = smul.addr %s39, 2
          %s681 = smul.addr %s680, 32
          %s682 = scalar_lea.hbm %s11, %s681
          %s684 = sshll.u32 %s676, 4
          %s685 = int_to_ptr.vmem [resolvable:$true] %s684
          %687 = dma.hbm_to_vmem [thread:$0]  %s682, 64, %s685, %s673
        $region76: #{vit_discriminator_forward.1} parent=39 // pred_fallthru
          _
        // Predicated region
        $region77: #{vit_discriminator_forward.1} parent=39 // pred_check
          %p688 = pneg %p356
        $region78: #{vit_discriminator_forward.1} parent=39 // pred_check_branch
          %690 = sbr.rel (%p688) target = $region80
        $region79: #{vit_discriminator_forward.1} parent=39 // pred_region
          %s691 = sand.u32 %s39, 1
          %s692 = scalar_lea.sflag [#allocation19], %s691
          %s693 = sand.u32 %s346, 1
          %s694 = smul.addr %s693, 4
          %s695 = scalar_lea.vmem [#allocation20], %s694
          %s697 = ssub.s32 64, 64
          %698 = vsyncadd %s692, %s697
          %s699 = smul.addr %s39, 2
          %s700 = smul.addr %s699, 32
          %s701 = scalar_lea.hbm %s12, %s700
          %s703 = sshll.u32 %s695, 4
          %s704 = int_to_ptr.vmem [resolvable:$true] %s703
          %706 = dma.hbm_to_vmem [thread:$0]  %s701, 64, %s704, %s692
        $region80: #{vit_discriminator_forward.1} parent=39 // pred_fallthru
          _
      $region40: #{vit_discriminator_forward.1} parent=5 // pred_fallthru
        _
      %p707 = scmp.le.s32.totalorder 1, %s39
      %p708 = scmp.lt.s32.totalorder %s39, 3
      %p709 = pnand %p707, %p708
      %p710 = pneg %p709
      // Predicated region
      $region81: #{vit_discriminator_forward.1} parent=5 // pred_check
        _
      $region82: #{vit_discriminator_forward.1} parent=5 // pred_check_branch
        %712 = sbr.rel (%p709) target = $region84
      $region83: #{vit_discriminator_forward.1} parent=5 // pred_region
        %s713 = ssub.s32 %s39, 1
        // Predicated region
        $region85: #{vit_discriminator_forward.1} parent=83 // pred_check
          %p714 = pneg %p81
        $region86: #{vit_discriminator_forward.1} parent=83 // pred_check_branch
          %716 = sbr.rel (%p714) target = $region88
        $region87: #{vit_discriminator_forward.1} parent=83 // pred_region
          %717 = dma.done [#allocation5], 4096
        $region88: #{vit_discriminator_forward.1} parent=83 // pred_fallthru
          _
        %s718 = sand.u32 %s44, 1
        %s719 = scalar_lea.sflag [#allocation7], %s718
        %s720 = sand.u32 %s115, 1
        %s721 = smul.addr %s720, 1536
        %s722 = scalar_lea.vmem [#allocation6], %s721
        // Predicated region
        $region89: #{vit_discriminator_forward.1} parent=83 // pred_check
          %p723 = pneg %p128
        $region90: #{vit_discriminator_forward.1} parent=83 // pred_check_branch
          %725 = sbr.rel (%p723) target = $region92
        $region91: #{vit_discriminator_forward.1} parent=83 // pred_region
          %726 = dma.done %s719, 24576
        $region92: #{vit_discriminator_forward.1} parent=83 // pred_fallthru
          _
        %s727 = sand.u32 %s44, 1
        %s728 = scalar_lea.sflag [#allocation7], %s727
        %s729 = sand.u32 %s141, 1
        %s730 = smul.addr %s729, 12
        %s731 = scalar_lea.vmem [#allocation8], %s730
        // Predicated region
        $region93: #{vit_discriminator_forward.1} parent=83 // pred_check
          %p732 = pneg %p154
        $region94: #{vit_discriminator_forward.1} parent=83 // pred_check_branch
          %734 = sbr.rel (%p732) target = $region96
        $region95: #{vit_discriminator_forward.1} parent=83 // pred_region
          %735 = dma.done %s728, 192
        $region96: #{vit_discriminator_forward.1} parent=83 // pred_fallthru
          _
        %s736 = sand.u32 %s44, 1
        %s737 = scalar_lea.sflag [#allocation10], %s736
        %s738 = sand.u32 %s167, 1
        %s739 = smul.addr %s738, 512
        %s740 = scalar_lea.vmem [#allocation9], %s739
        // Predicated region
        $region97: #{vit_discriminator_forward.1} parent=83 // pred_check
          %p741 = pneg %p180
        $region98: #{vit_discriminator_forward.1} parent=83 // pred_check_branch
          %743 = sbr.rel (%p741) target = $region100
        $region99: #{vit_discriminator_forward.1} parent=83 // pred_region
          %744 = dma.done %s737, 8192
        $region100: #{vit_discriminator_forward.1} parent=83 // pred_fallthru
          _
        %s745 = sand.u32 %s44, 1
        %s746 = scalar_lea.sflag [#allocation10], %s745
        %s747 = sand.u32 %s193, 1
        %s748 = smul.addr %s747, 2
        %s749 = scalar_lea.vmem [#allocation11], %s748
        // Predicated region
        $region101: #{vit_discriminator_forward.1} parent=83 // pred_check
          %p750 = pneg %p206
        $region102: #{vit_discriminator_forward.1} parent=83 // pred_check_branch
          %752 = sbr.rel (%p750) target = $region104
        $region103: #{vit_discriminator_forward.1} parent=83 // pred_region
          %753 = dma.done %s746, 32
        $region104: #{vit_discriminator_forward.1} parent=83 // pred_fallthru
          _
        %s754 = sand.u32 %s44, 1
        %s755 = scalar_lea.sflag [#allocation13], %s754
        %s756 = sand.u32 %s219, 1
        %s757 = smul.addr %s756, 1024
        %s758 = scalar_lea.vmem [#allocation12], %s757
        // Predicated region
        $region105: #{vit_discriminator_forward.1} parent=83 // pred_check
          %p759 = pneg %p232
        $region106: #{vit_discriminator_forward.1} parent=83 // pred_check_branch
          %761 = sbr.rel (%p759) target = $region108
        $region107: #{vit_discriminator_forward.1} parent=83 // pred_region
          %762 = dma.done %s755, 16384
        $region108: #{vit_discriminator_forward.1} parent=83 // pred_fallthru
          _
        %s763 = sand.u32 %s44, 1
        %s764 = scalar_lea.sflag [#allocation13], %s763
        %s765 = sand.u32 %s245, 1
        %s766 = smul.addr %s765, 8
        %s767 = scalar_lea.vmem [#allocation14], %s766
        // Predicated region
        $region109: #{vit_discriminator_forward.1} parent=83 // pred_check
          %p768 = pneg %p258
        $region110: #{vit_discriminator_forward.1} parent=83 // pred_check_branch
          %770 = sbr.rel (%p768) target = $region112
        $region111: #{vit_discriminator_forward.1} parent=83 // pred_region
          %771 = dma.done %s764, 128
        $region112: #{vit_discriminator_forward.1} parent=83 // pred_fallthru
          _
        %s772 = sand.u32 %s44, 1
        %s773 = scalar_lea.sflag [#allocation16], %s772
        %s774 = sand.u32 %s271, 1
        %s775 = smul.addr %s774, 1024
        %s776 = scalar_lea.vmem [#allocation15], %s775
        // Predicated region
        $region113: #{vit_discriminator_forward.1} parent=83 // pred_check
          %p777 = pneg %p284
        $region114: #{vit_discriminator_forward.1} parent=83 // pred_check_branch
          %779 = sbr.rel (%p777) target = $region116
        $region115: #{vit_discriminator_forward.1} parent=83 // pred_region
          %780 = dma.done %s773, 16384
        $region116: #{vit_discriminator_forward.1} parent=83 // pred_fallthru
          _
        %s781 = sand.u32 %s44, 1
        %s782 = scalar_lea.sflag [#allocation16], %s781
        %s783 = sand.u32 %s297, 1
        %s784 = smul.addr %s783, 2
        %s785 = scalar_lea.vmem [#allocation17], %s784
        // Predicated region
        $region117: #{vit_discriminator_forward.1} parent=83 // pred_check
          %p786 = pneg %p310
        $region118: #{vit_discriminator_forward.1} parent=83 // pred_check_branch
          %788 = sbr.rel (%p786) target = $region120
        $region119: #{vit_discriminator_forward.1} parent=83 // pred_region
          %789 = dma.done %s782, 32
        $region120: #{vit_discriminator_forward.1} parent=83 // pred_fallthru
          _
        %s790 = sand.u32 %s44, 1
        %s791 = scalar_lea.sflag [#allocation19], %s790
        %s792 = sand.u32 %s323, 1
        %s793 = smul.addr %s792, 4
        %s794 = scalar_lea.vmem [#allocation18], %s793
        // Predicated region
        $region121: #{vit_discriminator_forward.1} parent=83 // pred_check
          %p795 = pneg %p336
        $region122: #{vit_discriminator_forward.1} parent=83 // pred_check_branch
          %797 = sbr.rel (%p795) target = $region124
        $region123: #{vit_discriminator_forward.1} parent=83 // pred_region
          %798 = dma.done %s791, 64
        $region124: #{vit_discriminator_forward.1} parent=83 // pred_fallthru
          _
        %s799 = sand.u32 %s44, 1
        %s800 = scalar_lea.sflag [#allocation19], %s799
        %s801 = sand.u32 %s349, 1
        %s802 = smul.addr %s801, 4
        %s803 = scalar_lea.vmem [#allocation20], %s802
        // Predicated region
        $region125: #{vit_discriminator_forward.1} parent=83 // pred_check
          %p804 = pneg %p362
        $region126: #{vit_discriminator_forward.1} parent=83 // pred_check_branch
          %806 = sbr.rel (%p804) target = $region128
        $region127: #{vit_discriminator_forward.1} parent=83 // pred_region
          %807 = dma.done %s800, 64
        $region128: #{vit_discriminator_forward.1} parent=83 // pred_fallthru
          _
        // Predicated region
        $region129: #{vit_discriminator_forward.1} parent=83 // pred_check
          %p808 = pneg %p383
        $region130: #{vit_discriminator_forward.1} parent=83 // pred_check_branch
          %810 = sbr.rel (%p808) target = $region132
        $region131: #{vit_discriminator_forward.1} parent=83 // pred_region
          %811 = dma.done [#allocation22], 64
        $region132: #{vit_discriminator_forward.1} parent=83 // pred_fallthru
          _
        // Predicated region
        $region133: #{vit_discriminator_forward.1} parent=83 // pred_check
          %p812 = pneg %p425
        $region134: #{vit_discriminator_forward.1} parent=83 // pred_check_branch
          %814 = sbr.rel (%p812) target = $region136
        $region135: #{vit_discriminator_forward.1} parent=83 // pred_region
          %815 = dma.done [#allocation22], 16
        $region136: #{vit_discriminator_forward.1} parent=83 // pred_fallthru
          _
        %p816 = pneg %p60
        %p817 = pneg %p57
        %p818 = pneg %p81
        %p819 = pneg %p78
        %p820 = pneg %p102
        %p821 = pneg %p99
        %s822 = sand.u32 %s44, 1
        %s823 = scalar_lea.sflag [#allocation7], %s822
        %s824 = sand.u32 %s115, 1
        %s825 = smul.addr %s824, 1536
        %s826 = scalar_lea.vmem [#allocation6], %s825
        %p827 = pneg %p128
        %p828 = pneg %p125
        %s829 = sand.u32 %s44, 1
        %s830 = scalar_lea.sflag [#allocation7], %s829
        %s831 = sand.u32 %s141, 1
        %s832 = smul.addr %s831, 12
        %s833 = scalar_lea.vmem [#allocation8], %s832
        %p834 = pneg %p154
        %p835 = pneg %p151
        %s836 = sand.u32 %s44, 1
        %s837 = scalar_lea.sflag [#allocation10], %s836
        %s838 = sand.u32 %s167, 1
        %s839 = smul.addr %s838, 512
        %s840 = scalar_lea.vmem [#allocation9], %s839
        %p841 = pneg %p180
        %p842 = pneg %p177
        %s843 = sand.u32 %s44, 1
        %s844 = scalar_lea.sflag [#allocation10], %s843
        %s845 = sand.u32 %s193, 1
        %s846 = smul.addr %s845, 2
        %s847 = scalar_lea.vmem [#allocation11], %s846
        %p848 = pneg %p206
        %p849 = pneg %p203
        %s850 = sand.u32 %s44, 1
        %s851 = scalar_lea.sflag [#allocation13], %s850
        %s852 = sand.u32 %s219, 1
        %s853 = smul.addr %s852, 1024
        %s854 = scalar_lea.vmem [#allocation12], %s853
        %p855 = pneg %p232
        %p856 = pneg %p229
        %s857 = sand.u32 %s44, 1
        %s858 = scalar_lea.sflag [#allocation13], %s857
        %s859 = sand.u32 %s245, 1
        %s860 = smul.addr %s859, 8
        %s861 = scalar_lea.vmem [#allocation14], %s860
        %p862 = pneg %p258
        %p863 = pneg %p255
        %s864 = sand.u32 %s44, 1
        %s865 = scalar_lea.sflag [#allocation16], %s864
        %s866 = sand.u32 %s271, 1
        %s867 = smul.addr %s866, 1024
        %s868 = scalar_lea.vmem [#allocation15], %s867
        %p869 = pneg %p284
        %p870 = pneg %p281
        %s871 = sand.u32 %s44, 1
        %s872 = scalar_lea.sflag [#allocation16], %s871
        %s873 = sand.u32 %s297, 1
        %s874 = smul.addr %s873, 2
        %s875 = scalar_lea.vmem [#allocation17], %s874
        %p876 = pneg %p310
        %p877 = pneg %p307
        %s878 = sand.u32 %s44, 1
        %s879 = scalar_lea.sflag [#allocation19], %s878
        %s880 = sand.u32 %s323, 1
        %s881 = smul.addr %s880, 4
        %s882 = scalar_lea.vmem [#allocation18], %s881
        %p883 = pneg %p336
        %p884 = pneg %p333
        %s885 = sand.u32 %s44, 1
        %s886 = scalar_lea.sflag [#allocation19], %s885
        %s887 = sand.u32 %s349, 1
        %s888 = smul.addr %s887, 4
        %s889 = scalar_lea.vmem [#allocation20], %s888
        %p890 = pneg %p362
        %p891 = pneg %p359
        %p892 = pneg %p383
        %p893 = pneg %p380
        %p894 = pneg %p404
        %p895 = pneg %p401
        %p896 = pneg %p425
        %p897 = pneg %p422
        %p898 = pneg %p446
        %p899 = pneg %p443
        %p901 = scmp.eq.s32.totalorder %s44, 0
        // Predicated region
        $region137: #{vit_discriminator_forward.1} parent=83 // pred_check
          %p902 = pneg %p901
        $region138: #{vit_discriminator_forward.1} parent=83 // pred_check_branch
          %904 = sbr.rel (%p902) target = $region140
        $region139: #{vit_discriminator_forward.1} parent=83 // pred_region
          %v905 = vld [vmem:[%s0] sm:$0xff]
          %v906 = vld [vmem:[%s0 + $0x8] sm:$0xff]
          %v907 = vld [vmem:[%s0 + $0x10] sm:$0xff]
          %v908 = vld [vmem:[%s0 + $0x18] sm:$0xff]
          %v909 = vld [vmem:[#allocation4] sm:$0xff]
          %v910 = vld [vmem:[#allocation4 + $0x8] sm:$0xff]
          %v911 = vld [vmem:[#allocation4 + $0x10] sm:$0xff]
          %v912 = vld [vmem:[#allocation4 + $0x18] sm:$0xff]
          %v913 = vld [vmem:[#allocation4 + $0x20] sm:$0xff]
          %v914 = vld [vmem:[#allocation4 + $0x28] sm:$0xff]
          %v915 = vld [vmem:[#allocation4 + $0x30] sm:$0xff]
          %v916 = vld [vmem:[#allocation4 + $0x38] sm:$0xff]
          %v917 = vld [vmem:[#allocation4 + $0x40] sm:$0xff]
          %v918 = vld [vmem:[#allocation4 + $0x48] sm:$0xff]
          %v919 = vld [vmem:[#allocation4 + $0x50] sm:$0xff]
          %v920 = vld [vmem:[#allocation4 + $0x58] sm:$0xff]
          %v921 = vld [vmem:[#allocation4 + $0x60] sm:$0xff]
          %v922 = vld [vmem:[#allocation4 + $0x68] sm:$0xff]
          %v923 = vld [vmem:[#allocation4 + $0x70] sm:$0xff]
          %v924 = vld [vmem:[#allocation4 + $0x78] sm:$0xff]
          %v925 = vld [vmem:[#allocation4 + $0x80] sm:$0xff]
          %v926 = vld [vmem:[#allocation4 + $0x88] sm:$0xff]
          %v927 = vld [vmem:[#allocation4 + $0x90] sm:$0xff]
          %v928 = vld [vmem:[#allocation4 + $0x98] sm:$0xff]
          %v929 = vld [vmem:[#allocation4 + $0xa0] sm:$0xff]
          %v930 = vld [vmem:[#allocation4 + $0xa8] sm:$0xff]
          %v931 = vld [vmem:[#allocation4 + $0xb0] sm:$0xff]
          %v932 = vld [vmem:[#allocation4 + $0xb8] sm:$0xff]
          %v933 = vld [vmem:[#allocation4 + $0xc0] sm:$0xff]
          %v934 = vld [vmem:[#allocation4 + $0xc8] sm:$0xff]
          %v935 = vld [vmem:[#allocation4 + $0xd0] sm:$0xff]
          %v936 = vld [vmem:[#allocation4 + $0xd8] sm:$0xff]
          %v937 = vld [vmem:[#allocation4 + $0xe0] sm:$0xff]
          %v938 = vld [vmem:[#allocation4 + $0xe8] sm:$0xff]
          %v939 = vld [vmem:[#allocation4 + $0xf0] sm:$0xff]
          %v940 = vld [vmem:[#allocation4 + $0xf8] sm:$0xff]
          %v941 = vpack.c.bf16 %v907, %v905
          %v942 = vpack.c.bf16 %v908, %v906
          %v943 = vld [vmem:[%s2] sm:$0xff]
          %v944 = vld [vmem:[%s2 + $0x8] sm:$0xff]
          %v945 = vld [vmem:[%s2 + $0x10] sm:$0xff]
          %v946 = vld [vmem:[%s2 + $0x18] sm:$0xff]
          %v979 = vunpack.c.l.b16 %v909
          %v980 = vunpack.c.h.b16 %v909
          %v981 = vunpack.c.l.b16 %v910
          %v982 = vunpack.c.h.b16 %v910
          %v983 = vunpack.c.l.b16 %v911
          %v984 = vunpack.c.h.b16 %v911
          %v985 = vunpack.c.l.b16 %v912
          %v986 = vunpack.c.h.b16 %v912
          %v987 = vunpack.c.l.b16 %v913
          %v988 = vunpack.c.h.b16 %v913
          %v989 = vunpack.c.l.b16 %v914
          %v990 = vunpack.c.h.b16 %v914
          %v991 = vunpack.c.l.b16 %v915
          %v992 = vunpack.c.h.b16 %v915
          %v993 = vunpack.c.l.b16 %v916
          %v994 = vunpack.c.h.b16 %v916
          %v995 = vunpack.c.l.b16 %v917
          %v996 = vunpack.c.h.b16 %v917
          %v997 = vunpack.c.l.b16 %v918
          %v998 = vunpack.c.h.b16 %v918
          %v999 = vunpack.c.l.b16 %v919
          %v1000 = vunpack.c.h.b16 %v919
          %v1001 = vunpack.c.l.b16 %v920
          %v1002 = vunpack.c.h.b16 %v920
          %v1003 = vunpack.c.l.b16 %v921
          %v1004 = vunpack.c.h.b16 %v921
          %v1005 = vunpack.c.l.b16 %v922
          %v1006 = vunpack.c.h.b16 %v922
          %v1007 = vunpack.c.l.b16 %v923
          %v1008 = vunpack.c.h.b16 %v923
          %v1009 = vunpack.c.l.b16 %v924
          %v1010 = vunpack.c.h.b16 %v924
          %v1011 = vunpack.c.l.b16 %v925
          %v1012 = vunpack.c.h.b16 %v925
          %v1013 = vunpack.c.l.b16 %v926
          %v1014 = vunpack.c.h.b16 %v926
          %v1015 = vunpack.c.l.b16 %v927
          %v1016 = vunpack.c.h.b16 %v927
          %v1017 = vunpack.c.l.b16 %v928
          %v1018 = vunpack.c.h.b16 %v928
          %v1019 = vunpack.c.l.b16 %v929
          %v1020 = vunpack.c.h.b16 %v929
          %v1021 = vunpack.c.l.b16 %v930
          %v1022 = vunpack.c.h.b16 %v930
          %v1023 = vunpack.c.l.b16 %v931
          %v1024 = vunpack.c.h.b16 %v931
          %v1025 = vunpack.c.l.b16 %v932
          %v1026 = vunpack.c.h.b16 %v932
          %v1027 = vunpack.c.l.b16 %v933
          %v1028 = vunpack.c.h.b16 %v933
          %v1029 = vunpack.c.l.b16 %v934
          %v1030 = vunpack.c.h.b16 %v934
          %v1031 = vunpack.c.l.b16 %v935
          %v1032 = vunpack.c.h.b16 %v935
          %v1033 = vunpack.c.l.b16 %v936
          %v1034 = vunpack.c.h.b16 %v936
          %v1035 = vunpack.c.l.b16 %v937
          %v1036 = vunpack.c.h.b16 %v937
          %v1037 = vunpack.c.l.b16 %v938
          %v1038 = vunpack.c.h.b16 %v938
          %v1039 = vunpack.c.l.b16 %v939
          %v1040 = vunpack.c.h.b16 %v939
          %v1041 = vunpack.c.l.b16 %v940
          %v1042 = vunpack.c.h.b16 %v940
          %v1043 = vpack.c.b16 %v981, %v979
          %v1044 = vpack.c.b16 %v982, %v980
          %v1045 = vpack.c.b16 %v985, %v983
          %v1046 = vpack.c.b16 %v986, %v984
          %v1047 = vpack.c.b16 %v989, %v987
          %v1048 = vpack.c.b16 %v990, %v988
          %v1049 = vpack.c.b16 %v993, %v991
          %v1050 = vpack.c.b16 %v994, %v992
          %v1051 = vpack.c.b16 %v997, %v995
          %v1052 = vpack.c.b16 %v998, %v996
          %v1053 = vpack.c.b16 %v1001, %v999
          %v1054 = vpack.c.b16 %v1002, %v1000
          %v1055 = vpack.c.b16 %v1005, %v1003
          %v1056 = vpack.c.b16 %v1006, %v1004
          %v1057 = vpack.c.b16 %v1009, %v1007
          %v1058 = vpack.c.b16 %v1010, %v1008
          %v1059 = vpack.c.b16 %v1013, %v1011
          %v1060 = vpack.c.b16 %v1014, %v1012
          %v1061 = vpack.c.b16 %v1017, %v1015
          %v1062 = vpack.c.b16 %v1018, %v1016
          %v1063 = vpack.c.b16 %v1021, %v1019
          %v1064 = vpack.c.b16 %v1022, %v1020
          %v1065 = vpack.c.b16 %v1025, %v1023
          %v1066 = vpack.c.b16 %v1026, %v1024
          %v1067 = vpack.c.b16 %v1029, %v1027
          %v1068 = vpack.c.b16 %v1030, %v1028
          %v1069 = vpack.c.b16 %v1033, %v1031
          %v1070 = vpack.c.b16 %v1034, %v1032
          %v1071 = vpack.c.b16 %v1037, %v1035
          %v1072 = vpack.c.b16 %v1038, %v1036
          %v1073 = vpack.c.b16 %v1041, %v1039
          %v1074 = vpack.c.b16 %v1042, %v1040
          %1107 = vmatprep.subr.bf16.mxu0 %v1058
          %1108 = vmatpush1.bf16.msra.mxu0 %v1057
          %1109 = vmatprep.subr.bf16.mxu0 %v1056
          %1110 = vmatpush1.bf16.msra.mxu0 %v1055
          %1111 = vmatprep.subr.bf16.mxu0 %v1054
          %1112 = vmatpush1.bf16.msra.mxu0 %v1053
          %1113 = vmatprep.subr.bf16.mxu0 %v1052
          %1114 = vmatpush1.bf16.msra.mxu0 %v1051
          %1115 = vmatprep.subr.bf16.mxu0 %v1050
          %1116 = vmatpush1.bf16.msra.mxu0 %v1049
          %1117 = vmatprep.subr.bf16.mxu0 %v1048
          %1118 = vmatpush1.bf16.msra.mxu0 %v1047
          %1119 = vmatprep.subr.bf16.mxu0 %v1046
          %1120 = vmatpush1.bf16.msra.mxu0 %v1045
          %1121 = vmatprep.subr.bf16.mxu0 %v1044
          %1122 = vmatpush1.bf16.msra.mxu0 %v1043
          %1123 = vmatprep.subr.bf16.mxu0 %v1074
          %1124 = vmatpush2.bf16.msra.mxu0 %v1073
          %1125 = vmatprep.subr.bf16.mxu0 %v1072
          %1126 = vmatpush2.bf16.msra.mxu0 %v1071
          %1127 = vmatprep.subr.bf16.mxu0 %v1070
          %1128 = vmatpush2.bf16.msra.mxu0 %v1069
          %1129 = vmatprep.subr.bf16.mxu0 %v1068
          %1130 = vmatpush2.bf16.msra.mxu0 %v1067
          %1131 = vmatprep.subr.bf16.mxu0 %v1066
          %1132 = vmatpush2.bf16.msra.mxu0 %v1065
          %1133 = vmatprep.subr.bf16.mxu0 %v1064
          %1134 = vmatpush2.bf16.msra.mxu0 %v1063
          %1135 = vmatprep.subr.bf16.mxu0 %v1062
          %1136 = vmatpush2.bf16.msra.mxu0 %v1061
          %1137 = vmatprep.subr.bf16.mxu0 %v1060
          %1138 = vmatpush2.bf16.msra.mxu0 %v1059
          %1139 = vmatprep.mubr.bf16.mxu0 %v942
          %1140 = vmatmul.mubr.bf16.gmra.mxu0 %v941
          %v1141 = vpop.f32.mrf.mxu0
          %v1142 = vadd.f32 %v943, %v1141
          %v1143 = vpop.f32.mrf.mxu0
          %v1144 = vadd.f32 %v944, %v1143
          %v1145 = vpop.f32.mrf.mxu0
          %v1146 = vadd.f32 %v945, %v1145
          %v1147 = vpop.f32.mrf.mxu0
          %v1148 = vadd.f32 %v946, %v1147
          %1149 = vdwg.mxu0
          %1150 = vst [vmem:[#allocation2] sm:$0xff] %v1142
          %1151 = vst [vmem:[#allocation2 + $0x8] sm:$0xff] %v1144
          %1152 = vst [vmem:[#allocation2 + $0x10] sm:$0xff] %v1146
          %1153 = vst [vmem:[#allocation2 + $0x18] sm:$0xff] %v1148
        $region140: #{vit_discriminator_forward.1} parent=83 // pred_fallthru
          _
        %v1154 = vld [vmem:[#allocation2] sm:$0xff]
        %v1155 = vld [vmem:[#allocation2 + $0x8] sm:$0xff]
        %v1156 = vld [vmem:[#allocation2 + $0x10] sm:$0xff]
        %v1157 = vld [vmem:[#allocation2 + $0x18] sm:$0xff]
        %v1158 = vld [vmem:[%s794] sm:$0xf]
        %v1159 = vadd.f32 %v1154, %v1155
        %1160 = vadd.xlane.f32.xlu0 %v1159
        %v1161 = vpop.xlane.xlu0 %1160
        %v1162 = vadd.f32 %v1156, %v1157
        %1163 = vadd.xlane.f32.xlu0 %v1162
        %v1164 = vpop.xlane.xlu0 %1163
        %v1165 = vrcp.pop 256.0
        %v1166 = vmul.f32 %v1161, %v1165
        %v1167 = vmul.f32 %v1164, %v1165
        %v1168 = vmul.f32 %v1154, %v1154
        %v1169 = vmul.f32 %v1155, %v1155
        %v1170 = vmul.f32 %v1156, %v1156
        %v1171 = vmul.f32 %v1157, %v1157
        %v1172 = vadd.f32 %v1168, %v1169
        %1173 = vadd.xlane.f32.xlu0 %v1172
        %v1174 = vpop.xlane.xlu0 %1173
        %v1175 = vadd.f32 %v1170, %v1171
        %1176 = vadd.xlane.f32.xlu0 %v1175
        %v1177 = vpop.xlane.xlu0 %1176
        %v1178 = vmul.f32 %v1174, %v1165
        %v1179 = vmul.f32 %v1177, %v1165
        %v1180 = vmul.f32 %v1166, %v1166
        %v1181 = vmul.f32 %v1167, %v1167
        %v1182 = vsub.f32 %v1178, %v1180
        %v1183 = vsub.f32 %v1179, %v1181
        %v1184 = vsub.f32 %v1154, %v1166
        %v1185 = vsub.f32 %v1155, %v1166
        %v1186 = vsub.f32 %v1156, %v1167
        %v1187 = vsub.f32 %v1157, %v1167
        %v1188 = vadd.f32 %v1182, 1e-06
        %v1189 = vadd.f32 %v1183, 1e-06
        %v1190 = vrsqrt.pop %v1188
        %v1191 = vrsqrt.pop %v1189
        %v1192 = vmul.f32 %v1184, %v1190
        %v1193 = vmul.f32 %v1185, %v1190
        %v1194 = vmul.f32 %v1186, %v1191
        %v1195 = vmul.f32 %v1187, %v1191
        %v1197 = vlaneseq
        %v1198 = vshrl.u32 %v1197, 7
        %v1199 = vsub.s32 0, %v1198
        %v1200 = vrot.slane %v1158, %v1199
        %v1201 = vlaneseq
        %v1202 = vshrl.u32 %v1201, 7
        %v1203 = vsub.s32 2, %v1202
        %v1204 = vrot.slane %v1158, %v1203
        %v1207 = vlaneseq
        %v1208 = vshrl.u32 %v1207, 7
        %v1209 = vsub.s32 0, %v1208
        %v1210 = vrot.slane %v1200, %v1209
        %v1211 = vlaneseq
        %v1212 = vshrl.u32 %v1211, 7
        %v1213 = vsub.s32 0, %v1212
        %v1214 = vrot.slane %v1204, %v1213
        %v1215 = vmul.f32 %v1192, %v1210
        %v1216 = vmul.f32 %v1193, %v1214
        %v1217 = vmul.f32 %v1194, %v1210
        %v1218 = vmul.f32 %v1195, %v1214
        %v1219 = vlaneseq
        %v1220 = vshrl.u32 %v1219, 7
        %v1221 = vsub.s32 1, %v1220
        %v1222 = vrot.slane %v1158, %v1221
        %v1223 = vlaneseq
        %v1224 = vshrl.u32 %v1223, 7
        %v1225 = vsub.s32 3, %v1224
        %v1226 = vrot.slane %v1158, %v1225
        %v1229 = vlaneseq
        %v1230 = vshrl.u32 %v1229, 7
        %v1231 = vsub.s32 1, %v1230
        %v1232 = vrot.slane %v1222, %v1231
        %v1233 = vlaneseq
        %v1234 = vshrl.u32 %v1233, 7
        %v1235 = vsub.s32 1, %v1234
        %v1236 = vrot.slane %v1226, %v1235
        %v1237 = vadd.f32 %v1215, %v1232
        %v1238 = vadd.f32 %v1216, %v1236
        %v1239 = vadd.f32 %v1217, %v1232
        %v1240 = vadd.f32 %v1218, %v1236
        %v1241 = vld [vmem:[%s722] sm:$0xff]
        %v1242 = vld [vmem:[%s722 + $0x8] sm:$0xff]
        %v1243 = vld [vmem:[%s722 + $0x10] sm:$0xff]
        %v1244 = vld [vmem:[%s722 + $0x18] sm:$0xff]
        %v1245 = vld [vmem:[%s722 + $0x20] sm:$0xff]
        %v1246 = vld [vmem:[%s722 + $0x28] sm:$0xff]
        %v1247 = vld [vmem:[%s722 + $0x30] sm:$0xff]
        %v1248 = vld [vmem:[%s722 + $0x38] sm:$0xff]
        %v1249 = vld [vmem:[%s722 + $0x40] sm:$0xff]
        %v1250 = vld [vmem:[%s722 + $0x48] sm:$0xff]
        %v1251 = vld [vmem:[%s722 + $0x50] sm:$0xff]
        %v1252 = vld [vmem:[%s722 + $0x58] sm:$0xff]
        %v1253 = vld [vmem:[%s722 + $0x60] sm:$0xff]
        %v1254 = vld [vmem:[%s722 + $0x68] sm:$0xff]
        %v1255 = vld [vmem:[%s722 + $0x70] sm:$0xff]
        %v1256 = vld [vmem:[%s722 + $0x78] sm:$0xff]
        %v1257 = vld [vmem:[%s722 + $0x80] sm:$0xff]
        %v1258 = vld [vmem:[%s722 + $0x88] sm:$0xff]
        %v1259 = vld [vmem:[%s722 + $0x90] sm:$0xff]
        %v1260 = vld [vmem:[%s722 + $0x98] sm:$0xff]
        %v1261 = vld [vmem:[%s722 + $0xa0] sm:$0xff]
        %v1262 = vld [vmem:[%s722 + $0xa8] sm:$0xff]
        %v1263 = vld [vmem:[%s722 + $0xb0] sm:$0xff]
        %v1264 = vld [vmem:[%s722 + $0xb8] sm:$0xff]
        %v1265 = vld [vmem:[%s722 + $0xc0] sm:$0xff]
        %v1266 = vld [vmem:[%s722 + $0xc8] sm:$0xff]
        %v1267 = vld [vmem:[%s722 + $0xd0] sm:$0xff]
        %v1268 = vld [vmem:[%s722 + $0xd8] sm:$0xff]
        %v1269 = vld [vmem:[%s722 + $0xe0] sm:$0xff]
        %v1270 = vld [vmem:[%s722 + $0xe8] sm:$0xff]
        %v1271 = vld [vmem:[%s722 + $0xf0] sm:$0xff]
        %v1272 = vld [vmem:[%s722 + $0xf8] sm:$0xff]
        %v1273 = vld [vmem:[%s722 + $0x100] sm:$0xff]
        %v1274 = vld [vmem:[%s722 + $0x108] sm:$0xff]
        %v1275 = vld [vmem:[%s722 + $0x110] sm:$0xff]
        %v1276 = vld [vmem:[%s722 + $0x118] sm:$0xff]
        %v1277 = vld [vmem:[%s722 + $0x120] sm:$0xff]
        %v1278 = vld [vmem:[%s722 + $0x128] sm:$0xff]
        %v1279 = vld [vmem:[%s722 + $0x130] sm:$0xff]
        %v1280 = vld [vmem:[%s722 + $0x138] sm:$0xff]
        %v1281 = vld [vmem:[%s722 + $0x140] sm:$0xff]
        %v1282 = vld [vmem:[%s722 + $0x148] sm:$0xff]
        %v1283 = vld [vmem:[%s722 + $0x150] sm:$0xff]
        %v1284 = vld [vmem:[%s722 + $0x158] sm:$0xff]
        %v1285 = vld [vmem:[%s722 + $0x160] sm:$0xff]
        %v1286 = vld [vmem:[%s722 + $0x168] sm:$0xff]
        %v1287 = vld [vmem:[%s722 + $0x170] sm:$0xff]
        %v1288 = vld [vmem:[%s722 + $0x178] sm:$0xff]
        %v1289 = vld [vmem:[%s722 + $0x180] sm:$0xff]
        %v1290 = vld [vmem:[%s722 + $0x188] sm:$0xff]
        %v1291 = vld [vmem:[%s722 + $0x190] sm:$0xff]
        %v1292 = vld [vmem:[%s722 + $0x198] sm:$0xff]
        %v1293 = vld [vmem:[%s722 + $0x1a0] sm:$0xff]
        %v1294 = vld [vmem:[%s722 + $0x1a8] sm:$0xff]
        %v1295 = vld [vmem:[%s722 + $0x1b0] sm:$0xff]
        %v1296 = vld [vmem:[%s722 + $0x1b8] sm:$0xff]
        %v1297 = vld [vmem:[%s722 + $0x1c0] sm:$0xff]
        %v1298 = vld [vmem:[%s722 + $0x1c8] sm:$0xff]
        %v1299 = vld [vmem:[%s722 + $0x1d0] sm:$0xff]
        %v1300 = vld [vmem:[%s722 + $0x1d8] sm:$0xff]
        %v1301 = vld [vmem:[%s722 + $0x1e0] sm:$0xff]
        %v1302 = vld [vmem:[%s722 + $0x1e8] sm:$0xff]
        %v1303 = vld [vmem:[%s722 + $0x1f0] sm:$0xff]
        %v1304 = vld [vmem:[%s722 + $0x1f8] sm:$0xff]
        %v1305 = vld [vmem:[%s722 + $0x200] sm:$0xff]
        %v1306 = vld [vmem:[%s722 + $0x208] sm:$0xff]
        %v1307 = vld [vmem:[%s722 + $0x210] sm:$0xff]
        %v1308 = vld [vmem:[%s722 + $0x218] sm:$0xff]
        %v1309 = vld [vmem:[%s722 + $0x220] sm:$0xff]
        %v1310 = vld [vmem:[%s722 + $0x228] sm:$0xff]
        %v1311 = vld [vmem:[%s722 + $0x230] sm:$0xff]
        %v1312 = vld [vmem:[%s722 + $0x238] sm:$0xff]
        %v1313 = vld [vmem:[%s722 + $0x240] sm:$0xff]
        %v1314 = vld [vmem:[%s722 + $0x248] sm:$0xff]
        %v1315 = vld [vmem:[%s722 + $0x250] sm:$0xff]
        %v1316 = vld [vmem:[%s722 + $0x258] sm:$0xff]
        %v1317 = vld [vmem:[%s722 + $0x260] sm:$0xff]
        %v1318 = vld [vmem:[%s722 + $0x268] sm:$0xff]
        %v1319 = vld [vmem:[%s722 + $0x270] sm:$0xff]
        %v1320 = vld [vmem:[%s722 + $0x278] sm:$0xff]
        %v1321 = vld [vmem:[%s722 + $0x280] sm:$0xff]
        %v1322 = vld [vmem:[%s722 + $0x288] sm:$0xff]
        %v1323 = vld [vmem:[%s722 + $0x290] sm:$0xff]
        %v1324 = vld [vmem:[%s722 + $0x298] sm:$0xff]
        %v1325 = vld [vmem:[%s722 + $0x2a0] sm:$0xff]
        %v1326 = vld [vmem:[%s722 + $0x2a8] sm:$0xff]
        %v1327 = vld [vmem:[%s722 + $0x2b0] sm:$0xff]
        %v1328 = vld [vmem:[%s722 + $0x2b8] sm:$0xff]
        %v1329 = vld [vmem:[%s722 + $0x2c0] sm:$0xff]
        %v1330 = vld [vmem:[%s722 + $0x2c8] sm:$0xff]
        %v1331 = vld [vmem:[%s722 + $0x2d0] sm:$0xff]
        %v1332 = vld [vmem:[%s722 + $0x2d8] sm:$0xff]
        %v1333 = vld [vmem:[%s722 + $0x2e0] sm:$0xff]
        %v1334 = vld [vmem:[%s722 + $0x2e8] sm:$0xff]
        %v1335 = vld [vmem:[%s722 + $0x2f0] sm:$0xff]
        %v1336 = vld [vmem:[%s722 + $0x2f8] sm:$0xff]
        %v1337 = vld [vmem:[%s722 + $0x300] sm:$0xff]
        %v1338 = vld [vmem:[%s722 + $0x308] sm:$0xff]
        %v1339 = vld [vmem:[%s722 + $0x310] sm:$0xff]
        %v1340 = vld [vmem:[%s722 + $0x318] sm:$0xff]
        %v1341 = vld [vmem:[%s722 + $0x320] sm:$0xff]
        %v1342 = vld [vmem:[%s722 + $0x328] sm:$0xff]
        %v1343 = vld [vmem:[%s722 + $0x330] sm:$0xff]
        %v1344 = vld [vmem:[%s722 + $0x338] sm:$0xff]
        %v1345 = vld [vmem:[%s722 + $0x340] sm:$0xff]
        %v1346 = vld [vmem:[%s722 + $0x348] sm:$0xff]
        %v1347 = vld [vmem:[%s722 + $0x350] sm:$0xff]
        %v1348 = vld [vmem:[%s722 + $0x358] sm:$0xff]
        %v1349 = vld [vmem:[%s722 + $0x360] sm:$0xff]
        %v1350 = vld [vmem:[%s722 + $0x368] sm:$0xff]
        %v1351 = vld [vmem:[%s722 + $0x370] sm:$0xff]
        %v1352 = vld [vmem:[%s722 + $0x378] sm:$0xff]
        %v1353 = vld [vmem:[%s722 + $0x380] sm:$0xff]
        %v1354 = vld [vmem:[%s722 + $0x388] sm:$0xff]
        %v1355 = vld [vmem:[%s722 + $0x390] sm:$0xff]
        %v1356 = vld [vmem:[%s722 + $0x398] sm:$0xff]
        %v1357 = vld [vmem:[%s722 + $0x3a0] sm:$0xff]
        %v1358 = vld [vmem:[%s722 + $0x3a8] sm:$0xff]
        %v1359 = vld [vmem:[%s722 + $0x3b0] sm:$0xff]
        %v1360 = vld [vmem:[%s722 + $0x3b8] sm:$0xff]
        %v1361 = vld [vmem:[%s722 + $0x3c0] sm:$0xff]
        %v1362 = vld [vmem:[%s722 + $0x3c8] sm:$0xff]
        %v1363 = vld [vmem:[%s722 + $0x3d0] sm:$0xff]
        %v1364 = vld [vmem:[%s722 + $0x3d8] sm:$0xff]
        %v1365 = vld [vmem:[%s722 + $0x3e0] sm:$0xff]
        %v1366 = vld [vmem:[%s722 + $0x3e8] sm:$0xff]
        %v1367 = vld [vmem:[%s722 + $0x3f0] sm:$0xff]
        %v1368 = vld [vmem:[%s722 + $0x3f8] sm:$0xff]
        %v1369 = vld [vmem:[%s722 + $0x400] sm:$0xff]
        %v1370 = vld [vmem:[%s722 + $0x408] sm:$0xff]
        %v1371 = vld [vmem:[%s722 + $0x410] sm:$0xff]
        %v1372 = vld [vmem:[%s722 + $0x418] sm:$0xff]
        %v1373 = vld [vmem:[%s722 + $0x420] sm:$0xff]
        %v1374 = vld [vmem:[%s722 + $0x428] sm:$0xff]
        %v1375 = vld [vmem:[%s722 + $0x430] sm:$0xff]
        %v1376 = vld [vmem:[%s722 + $0x438] sm:$0xff]
        %v1377 = vld [vmem:[%s722 + $0x440] sm:$0xff]
        %v1378 = vld [vmem:[%s722 + $0x448] sm:$0xff]
        %v1379 = vld [vmem:[%s722 + $0x450] sm:$0xff]
        %v1380 = vld [vmem:[%s722 + $0x458] sm:$0xff]
        %v1381 = vld [vmem:[%s722 + $0x460] sm:$0xff]
        %v1382 = vld [vmem:[%s722 + $0x468] sm:$0xff]
        %v1383 = vld [vmem:[%s722 + $0x470] sm:$0xff]
        %v1384 = vld [vmem:[%s722 + $0x478] sm:$0xff]
        %v1385 = vld [vmem:[%s722 + $0x480] sm:$0xff]
        %v1386 = vld [vmem:[%s722 + $0x488] sm:$0xff]
        %v1387 = vld [vmem:[%s722 + $0x490] sm:$0xff]
        %v1388 = vld [vmem:[%s722 + $0x498] sm:$0xff]
        %v1389 = vld [vmem:[%s722 + $0x4a0] sm:$0xff]
        %v1390 = vld [vmem:[%s722 + $0x4a8] sm:$0xff]
        %v1391 = vld [vmem:[%s722 + $0x4b0] sm:$0xff]
        %v1392 = vld [vmem:[%s722 + $0x4b8] sm:$0xff]
        %v1393 = vld [vmem:[%s722 + $0x4c0] sm:$0xff]
        %v1394 = vld [vmem:[%s722 + $0x4c8] sm:$0xff]
        %v1395 = vld [vmem:[%s722 + $0x4d0] sm:$0xff]
        %v1396 = vld [vmem:[%s722 + $0x4d8] sm:$0xff]
        %v1397 = vld [vmem:[%s722 + $0x4e0] sm:$0xff]
        %v1398 = vld [vmem:[%s722 + $0x4e8] sm:$0xff]
        %v1399 = vld [vmem:[%s722 + $0x4f0] sm:$0xff]
        %v1400 = vld [vmem:[%s722 + $0x4f8] sm:$0xff]
        %v1401 = vld [vmem:[%s722 + $0x500] sm:$0xff]
        %v1402 = vld [vmem:[%s722 + $0x508] sm:$0xff]
        %v1403 = vld [vmem:[%s722 + $0x510] sm:$0xff]
        %v1404 = vld [vmem:[%s722 + $0x518] sm:$0xff]
        %v1405 = vld [vmem:[%s722 + $0x520] sm:$0xff]
        %v1406 = vld [vmem:[%s722 + $0x528] sm:$0xff]
        %v1407 = vld [vmem:[%s722 + $0x530] sm:$0xff]
        %v1408 = vld [vmem:[%s722 + $0x538] sm:$0xff]
        %v1409 = vld [vmem:[%s722 + $0x540] sm:$0xff]
        %v1410 = vld [vmem:[%s722 + $0x548] sm:$0xff]
        %v1411 = vld [vmem:[%s722 + $0x550] sm:$0xff]
        %v1412 = vld [vmem:[%s722 + $0x558] sm:$0xff]
        %v1413 = vld [vmem:[%s722 + $0x560] sm:$0xff]
        %v1414 = vld [vmem:[%s722 + $0x568] sm:$0xff]
        %v1415 = vld [vmem:[%s722 + $0x570] sm:$0xff]
        %v1416 = vld [vmem:[%s722 + $0x578] sm:$0xff]
        %v1417 = vld [vmem:[%s722 + $0x580] sm:$0xff]
        %v1418 = vld [vmem:[%s722 + $0x588] sm:$0xff]
        %v1419 = vld [vmem:[%s722 + $0x590] sm:$0xff]
        %v1420 = vld [vmem:[%s722 + $0x598] sm:$0xff]
        %v1421 = vld [vmem:[%s722 + $0x5a0] sm:$0xff]
        %v1422 = vld [vmem:[%s722 + $0x5a8] sm:$0xff]
        %v1423 = vld [vmem:[%s722 + $0x5b0] sm:$0xff]
        %v1424 = vld [vmem:[%s722 + $0x5b8] sm:$0xff]
        %v1425 = vld [vmem:[%s722 + $0x5c0] sm:$0xff]
        %v1426 = vld [vmem:[%s722 + $0x5c8] sm:$0xff]
        %v1427 = vld [vmem:[%s722 + $0x5d0] sm:$0xff]
        %v1428 = vld [vmem:[%s722 + $0x5d8] sm:$0xff]
        %v1429 = vld [vmem:[%s722 + $0x5e0] sm:$0xff]
        %v1430 = vld [vmem:[%s722 + $0x5e8] sm:$0xff]
        %v1431 = vld [vmem:[%s722 + $0x5f0] sm:$0xff]
        %v1432 = vld [vmem:[%s722 + $0x5f8] sm:$0xff]
        %v1433 = vpack.c.bf16 %v1239, %v1237
        %v1434 = vpack.c.bf16 %v1240, %v1238
        %v1435 = vld [vmem:[%s731] sm:$0xff]
        %v1436 = vld [vmem:[%s731 + $0x8] sm:$0xf]
        %v1439 = vlaneseq
        %v1440 = vshrl.u32 %v1439, 7
        %v1441 = vsub.s32 0, %v1440
        %v1442 = vrot.slane %v1435, %v1441
        %v1443 = vlaneseq
        %v1444 = vshrl.u32 %v1443, 7
        %v1445 = vsub.s32 1, %v1444
        %v1446 = vrot.slane %v1435, %v1445
        %v1447 = vlaneseq
        %v1448 = vshrl.u32 %v1447, 7
        %v1449 = vsub.s32 2, %v1448
        %v1450 = vrot.slane %v1435, %v1449
        %v1451 = vlaneseq
        %v1452 = vshrl.u32 %v1451, 7
        %v1453 = vsub.s32 3, %v1452
        %v1454 = vrot.slane %v1435, %v1453
        %v1455 = vlaneseq
        %v1456 = vshrl.u32 %v1455, 7
        %v1457 = vsub.s32 4, %v1456
        %v1458 = vrot.slane %v1435, %v1457
        %v1459 = vlaneseq
        %v1460 = vshrl.u32 %v1459, 7
        %v1461 = vsub.s32 5, %v1460
        %v1462 = vrot.slane %v1435, %v1461
        %v1463 = vlaneseq
        %v1464 = vshrl.u32 %v1463, 7
        %v1465 = vsub.s32 6, %v1464
        %v1466 = vrot.slane %v1435, %v1465
        %v1467 = vlaneseq
        %v1468 = vshrl.u32 %v1467, 7
        %v1469 = vsub.s32 7, %v1468
        %v1470 = vrot.slane %v1435, %v1469
        %v1471 = vlaneseq
        %v1472 = vshrl.u32 %v1471, 7
        %v1473 = vsub.s32 0, %v1472
        %v1474 = vrot.slane %v1436, %v1473
        %v1475 = vlaneseq
        %v1476 = vshrl.u32 %v1475, 7
        %v1477 = vsub.s32 1, %v1476
        %v1478 = vrot.slane %v1436, %v1477
        %v1479 = vlaneseq
        %v1480 = vshrl.u32 %v1479, 7
        %v1481 = vsub.s32 2, %v1480
        %v1482 = vrot.slane %v1436, %v1481
        %v1483 = vlaneseq
        %v1484 = vshrl.u32 %v1483, 7
        %v1485 = vsub.s32 3, %v1484
        %v1486 = vrot.slane %v1436, %v1485
        %v1691 = vunpack.c.l.b16 %v1241
        %v1692 = vunpack.c.h.b16 %v1241
        %v1693 = vunpack.c.l.b16 %v1242
        %v1694 = vunpack.c.h.b16 %v1242
        %v1695 = vunpack.c.l.b16 %v1243
        %v1696 = vunpack.c.h.b16 %v1243
        %v1697 = vunpack.c.l.b16 %v1244
        %v1698 = vunpack.c.h.b16 %v1244
        %v1699 = vunpack.c.l.b16 %v1245
        %v1700 = vunpack.c.h.b16 %v1245
        %v1701 = vunpack.c.l.b16 %v1246
        %v1702 = vunpack.c.h.b16 %v1246
        %v1703 = vunpack.c.l.b16 %v1247
        %v1704 = vunpack.c.h.b16 %v1247
        %v1705 = vunpack.c.l.b16 %v1248
        %v1706 = vunpack.c.h.b16 %v1248
        %v1707 = vunpack.c.l.b16 %v1249
        %v1708 = vunpack.c.h.b16 %v1249
        %v1709 = vunpack.c.l.b16 %v1250
        %v1710 = vunpack.c.h.b16 %v1250
        %v1711 = vunpack.c.l.b16 %v1251
        %v1712 = vunpack.c.h.b16 %v1251
        %v1713 = vunpack.c.l.b16 %v1252
        %v1714 = vunpack.c.h.b16 %v1252
        %v1715 = vunpack.c.l.b16 %v1253
        %v1716 = vunpack.c.h.b16 %v1253
        %v1717 = vunpack.c.l.b16 %v1254
        %v1718 = vunpack.c.h.b16 %v1254
        %v1719 = vunpack.c.l.b16 %v1255
        %v1720 = vunpack.c.h.b16 %v1255
        %v1721 = vunpack.c.l.b16 %v1256
        %v1722 = vunpack.c.h.b16 %v1256
        %v1723 = vunpack.c.l.b16 %v1257
        %v1724 = vunpack.c.h.b16 %v1257
        %v1725 = vunpack.c.l.b16 %v1258
        %v1726 = vunpack.c.h.b16 %v1258
        %v1727 = vunpack.c.l.b16 %v1259
        %v1728 = vunpack.c.h.b16 %v1259
        %v1729 = vunpack.c.l.b16 %v1260
        %v1730 = vunpack.c.h.b16 %v1260
        %v1731 = vunpack.c.l.b16 %v1261
        %v1732 = vunpack.c.h.b16 %v1261
        %v1733 = vunpack.c.l.b16 %v1262
        %v1734 = vunpack.c.h.b16 %v1262
        %v1735 = vunpack.c.l.b16 %v1263
        %v1736 = vunpack.c.h.b16 %v1263
        %v1737 = vunpack.c.l.b16 %v1264
        %v1738 = vunpack.c.h.b16 %v1264
        %v1739 = vunpack.c.l.b16 %v1265
        %v1740 = vunpack.c.h.b16 %v1265
        %v1741 = vunpack.c.l.b16 %v1266
        %v1742 = vunpack.c.h.b16 %v1266
        %v1743 = vunpack.c.l.b16 %v1267
        %v1744 = vunpack.c.h.b16 %v1267
        %v1745 = vunpack.c.l.b16 %v1268
        %v1746 = vunpack.c.h.b16 %v1268
        %v1747 = vunpack.c.l.b16 %v1269
        %v1748 = vunpack.c.h.b16 %v1269
        %v1749 = vunpack.c.l.b16 %v1270
        %v1750 = vunpack.c.h.b16 %v1270
        %v1751 = vunpack.c.l.b16 %v1271
        %v1752 = vunpack.c.h.b16 %v1271
        %v1753 = vunpack.c.l.b16 %v1272
        %v1754 = vunpack.c.h.b16 %v1272
        %v1755 = vunpack.c.l.b16 %v1273
        %v1756 = vunpack.c.h.b16 %v1273
        %v1757 = vunpack.c.l.b16 %v1274
        %v1758 = vunpack.c.h.b16 %v1274
        %v1759 = vunpack.c.l.b16 %v1275
        %v1760 = vunpack.c.h.b16 %v1275
        %v1761 = vunpack.c.l.b16 %v1276
        %v1762 = vunpack.c.h.b16 %v1276
        %v1763 = vunpack.c.l.b16 %v1277
        %v1764 = vunpack.c.h.b16 %v1277
        %v1765 = vunpack.c.l.b16 %v1278
        %v1766 = vunpack.c.h.b16 %v1278
        %v1767 = vunpack.c.l.b16 %v1279
        %v1768 = vunpack.c.h.b16 %v1279
        %v1769 = vunpack.c.l.b16 %v1280
        %v1770 = vunpack.c.h.b16 %v1280
        %v1771 = vunpack.c.l.b16 %v1281
        %v1772 = vunpack.c.h.b16 %v1281
        %v1773 = vunpack.c.l.b16 %v1282
        %v1774 = vunpack.c.h.b16 %v1282
        %v1775 = vunpack.c.l.b16 %v1283
        %v1776 = vunpack.c.h.b16 %v1283
        %v1777 = vunpack.c.l.b16 %v1284
        %v1778 = vunpack.c.h.b16 %v1284
        %v1779 = vunpack.c.l.b16 %v1285
        %v1780 = vunpack.c.h.b16 %v1285
        %v1781 = vunpack.c.l.b16 %v1286
        %v1782 = vunpack.c.h.b16 %v1286
        %v1783 = vunpack.c.l.b16 %v1287
        %v1784 = vunpack.c.h.b16 %v1287
        %v1785 = vunpack.c.l.b16 %v1288
        %v1786 = vunpack.c.h.b16 %v1288
        %v1787 = vunpack.c.l.b16 %v1289
        %v1788 = vunpack.c.h.b16 %v1289
        %v1789 = vunpack.c.l.b16 %v1290
        %v1790 = vunpack.c.h.b16 %v1290
        %v1791 = vunpack.c.l.b16 %v1291
        %v1792 = vunpack.c.h.b16 %v1291
        %v1793 = vunpack.c.l.b16 %v1292
        %v1794 = vunpack.c.h.b16 %v1292
        %v1795 = vunpack.c.l.b16 %v1293
        %v1796 = vunpack.c.h.b16 %v1293
        %v1797 = vunpack.c.l.b16 %v1294
        %v1798 = vunpack.c.h.b16 %v1294
        %v1799 = vunpack.c.l.b16 %v1295
        %v1800 = vunpack.c.h.b16 %v1295
        %v1801 = vunpack.c.l.b16 %v1296
        %v1802 = vunpack.c.h.b16 %v1296
        %v1803 = vunpack.c.l.b16 %v1297
        %v1804 = vunpack.c.h.b16 %v1297
        %v1805 = vunpack.c.l.b16 %v1298
        %v1806 = vunpack.c.h.b16 %v1298
        %v1807 = vunpack.c.l.b16 %v1299
        %v1808 = vunpack.c.h.b16 %v1299
        %v1809 = vunpack.c.l.b16 %v1300
        %v1810 = vunpack.c.h.b16 %v1300
        %v1811 = vunpack.c.l.b16 %v1301
        %v1812 = vunpack.c.h.b16 %v1301
        %v1813 = vunpack.c.l.b16 %v1302
        %v1814 = vunpack.c.h.b16 %v1302
        %v1815 = vunpack.c.l.b16 %v1303
        %v1816 = vunpack.c.h.b16 %v1303
        %v1817 = vunpack.c.l.b16 %v1304
        %v1818 = vunpack.c.h.b16 %v1304
        %v1819 = vunpack.c.l.b16 %v1305
        %v1820 = vunpack.c.h.b16 %v1305
        %v1821 = vunpack.c.l.b16 %v1306
        %v1822 = vunpack.c.h.b16 %v1306
        %v1823 = vunpack.c.l.b16 %v1307
        %v1824 = vunpack.c.h.b16 %v1307
        %v1825 = vunpack.c.l.b16 %v1308
        %v1826 = vunpack.c.h.b16 %v1308
        %v1827 = vunpack.c.l.b16 %v1309
        %v1828 = vunpack.c.h.b16 %v1309
        %v1829 = vunpack.c.l.b16 %v1310
        %v1830 = vunpack.c.h.b16 %v1310
        %v1831 = vunpack.c.l.b16 %v1311
        %v1832 = vunpack.c.h.b16 %v1311
        %v1833 = vunpack.c.l.b16 %v1312
        %v1834 = vunpack.c.h.b16 %v1312
        %v1835 = vunpack.c.l.b16 %v1313
        %v1836 = vunpack.c.h.b16 %v1313
        %v1837 = vunpack.c.l.b16 %v1314
        %v1838 = vunpack.c.h.b16 %v1314
        %v1839 = vunpack.c.l.b16 %v1315
        %v1840 = vunpack.c.h.b16 %v1315
        %v1841 = vunpack.c.l.b16 %v1316
        %v1842 = vunpack.c.h.b16 %v1316
        %v1843 = vunpack.c.l.b16 %v1317
        %v1844 = vunpack.c.h.b16 %v1317
        %v1845 = vunpack.c.l.b16 %v1318
        %v1846 = vunpack.c.h.b16 %v1318
        %v1847 = vunpack.c.l.b16 %v1319
        %v1848 = vunpack.c.h.b16 %v1319
        %v1849 = vunpack.c.l.b16 %v1320
        %v1850 = vunpack.c.h.b16 %v1320
        %v1851 = vunpack.c.l.b16 %v1321
        %v1852 = vunpack.c.h.b16 %v1321
        %v1853 = vunpack.c.l.b16 %v1322
        %v1854 = vunpack.c.h.b16 %v1322
        %v1855 = vunpack.c.l.b16 %v1323
        %v1856 = vunpack.c.h.b16 %v1323
        %v1857 = vunpack.c.l.b16 %v1324
        %v1858 = vunpack.c.h.b16 %v1324
        %v1859 = vunpack.c.l.b16 %v1325
        %v1860 = vunpack.c.h.b16 %v1325
        %v1861 = vunpack.c.l.b16 %v1326
        %v1862 = vunpack.c.h.b16 %v1326
        %v1863 = vunpack.c.l.b16 %v1327
        %v1864 = vunpack.c.h.b16 %v1327
        %v1865 = vunpack.c.l.b16 %v1328
        %v1866 = vunpack.c.h.b16 %v1328
        %v1867 = vunpack.c.l.b16 %v1329
        %v1868 = vunpack.c.h.b16 %v1329
        %v1869 = vunpack.c.l.b16 %v1330
        %v1870 = vunpack.c.h.b16 %v1330
        %v1871 = vunpack.c.l.b16 %v1331
        %v1872 = vunpack.c.h.b16 %v1331
        %v1873 = vunpack.c.l.b16 %v1332
        %v1874 = vunpack.c.h.b16 %v1332
        %v1875 = vunpack.c.l.b16 %v1333
        %v1876 = vunpack.c.h.b16 %v1333
        %v1877 = vunpack.c.l.b16 %v1334
        %v1878 = vunpack.c.h.b16 %v1334
        %v1879 = vunpack.c.l.b16 %v1335
        %v1880 = vunpack.c.h.b16 %v1335
        %v1881 = vunpack.c.l.b16 %v1336
        %v1882 = vunpack.c.h.b16 %v1336
        %v1883 = vunpack.c.l.b16 %v1337
        %v1884 = vunpack.c.h.b16 %v1337
        %v1885 = vunpack.c.l.b16 %v1338
        %v1886 = vunpack.c.h.b16 %v1338
        %v1887 = vunpack.c.l.b16 %v1339
        %v1888 = vunpack.c.h.b16 %v1339
        %v1889 = vunpack.c.l.b16 %v1340
        %v1890 = vunpack.c.h.b16 %v1340
        %v1891 = vunpack.c.l.b16 %v1341
        %v1892 = vunpack.c.h.b16 %v1341
        %v1893 = vunpack.c.l.b16 %v1342
        %v1894 = vunpack.c.h.b16 %v1342
        %v1895 = vunpack.c.l.b16 %v1343
        %v1896 = vunpack.c.h.b16 %v1343
        %v1897 = vunpack.c.l.b16 %v1344
        %v1898 = vunpack.c.h.b16 %v1344
        %v1899 = vunpack.c.l.b16 %v1345
        %v1900 = vunpack.c.h.b16 %v1345
        %v1901 = vunpack.c.l.b16 %v1346
        %v1902 = vunpack.c.h.b16 %v1346
        %v1903 = vunpack.c.l.b16 %v1347
        %v1904 = vunpack.c.h.b16 %v1347
        %v1905 = vunpack.c.l.b16 %v1348
        %v1906 = vunpack.c.h.b16 %v1348
        %v1907 = vunpack.c.l.b16 %v1349
        %v1908 = vunpack.c.h.b16 %v1349
        %v1909 = vunpack.c.l.b16 %v1350
        %v1910 = vunpack.c.h.b16 %v1350
        %v1911 = vunpack.c.l.b16 %v1351
        %v1912 = vunpack.c.h.b16 %v1351
        %v1913 = vunpack.c.l.b16 %v1352
        %v1914 = vunpack.c.h.b16 %v1352
        %v1915 = vunpack.c.l.b16 %v1353
        %v1916 = vunpack.c.h.b16 %v1353
        %v1917 = vunpack.c.l.b16 %v1354
        %v1918 = vunpack.c.h.b16 %v1354
        %v1919 = vunpack.c.l.b16 %v1355
        %v1920 = vunpack.c.h.b16 %v1355
        %v1921 = vunpack.c.l.b16 %v1356
        %v1922 = vunpack.c.h.b16 %v1356
        %v1923 = vunpack.c.l.b16 %v1357
        %v1924 = vunpack.c.h.b16 %v1357
        %v1925 = vunpack.c.l.b16 %v1358
        %v1926 = vunpack.c.h.b16 %v1358
        %v1927 = vunpack.c.l.b16 %v1359
        %v1928 = vunpack.c.h.b16 %v1359
        %v1929 = vunpack.c.l.b16 %v1360
        %v1930 = vunpack.c.h.b16 %v1360
        %v1931 = vunpack.c.l.b16 %v1361
        %v1932 = vunpack.c.h.b16 %v1361
        %v1933 = vunpack.c.l.b16 %v1362
        %v1934 = vunpack.c.h.b16 %v1362
        %v1935 = vunpack.c.l.b16 %v1363
        %v1936 = vunpack.c.h.b16 %v1363
        %v1937 = vunpack.c.l.b16 %v1364
        %v1938 = vunpack.c.h.b16 %v1364
        %v1939 = vunpack.c.l.b16 %v1365
        %v1940 = vunpack.c.h.b16 %v1365
        %v1941 = vunpack.c.l.b16 %v1366
        %v1942 = vunpack.c.h.b16 %v1366
        %v1943 = vunpack.c.l.b16 %v1367
        %v1944 = vunpack.c.h.b16 %v1367
        %v1945 = vunpack.c.l.b16 %v1368
        %v1946 = vunpack.c.h.b16 %v1368
        %v1947 = vunpack.c.l.b16 %v1369
        %v1948 = vunpack.c.h.b16 %v1369
        %v1949 = vunpack.c.l.b16 %v1370
        %v1950 = vunpack.c.h.b16 %v1370
        %v1951 = vunpack.c.l.b16 %v1371
        %v1952 = vunpack.c.h.b16 %v1371
        %v1953 = vunpack.c.l.b16 %v1372
        %v1954 = vunpack.c.h.b16 %v1372
        %v1955 = vunpack.c.l.b16 %v1373
        %v1956 = vunpack.c.h.b16 %v1373
        %v1957 = vunpack.c.l.b16 %v1374
        %v1958 = vunpack.c.h.b16 %v1374
        %v1959 = vunpack.c.l.b16 %v1375
        %v1960 = vunpack.c.h.b16 %v1375
        %v1961 = vunpack.c.l.b16 %v1376
        %v1962 = vunpack.c.h.b16 %v1376
        %v1963 = vunpack.c.l.b16 %v1377
        %v1964 = vunpack.c.h.b16 %v1377
        %v1965 = vunpack.c.l.b16 %v1378
        %v1966 = vunpack.c.h.b16 %v1378
        %v1967 = vunpack.c.l.b16 %v1379
        %v1968 = vunpack.c.h.b16 %v1379
        %v1969 = vunpack.c.l.b16 %v1380
        %v1970 = vunpack.c.h.b16 %v1380
        %v1971 = vunpack.c.l.b16 %v1381
        %v1972 = vunpack.c.h.b16 %v1381
        %v1973 = vunpack.c.l.b16 %v1382
        %v1974 = vunpack.c.h.b16 %v1382
        %v1975 = vunpack.c.l.b16 %v1383
        %v1976 = vunpack.c.h.b16 %v1383
        %v1977 = vunpack.c.l.b16 %v1384
        %v1978 = vunpack.c.h.b16 %v1384
        %v1979 = vunpack.c.l.b16 %v1385
        %v1980 = vunpack.c.h.b16 %v1385
        %v1981 = vunpack.c.l.b16 %v1386
        %v1982 = vunpack.c.h.b16 %v1386
        %v1983 = vunpack.c.l.b16 %v1387
        %v1984 = vunpack.c.h.b16 %v1387
        %v1985 = vunpack.c.l.b16 %v1388
        %v1986 = vunpack.c.h.b16 %v1388
        %v1987 = vunpack.c.l.b16 %v1389
        %v1988 = vunpack.c.h.b16 %v1389
        %v1989 = vunpack.c.l.b16 %v1390
        %v1990 = vunpack.c.h.b16 %v1390
        %v1991 = vunpack.c.l.b16 %v1391
        %v1992 = vunpack.c.h.b16 %v1391
        %v1993 = vunpack.c.l.b16 %v1392
        %v1994 = vunpack.c.h.b16 %v1392
        %v1995 = vunpack.c.l.b16 %v1393
        %v1996 = vunpack.c.h.b16 %v1393
        %v1997 = vunpack.c.l.b16 %v1394
        %v1998 = vunpack.c.h.b16 %v1394
        %v1999 = vunpack.c.l.b16 %v1395
        %v2000 = vunpack.c.h.b16 %v1395
        %v2001 = vunpack.c.l.b16 %v1396
        %v2002 = vunpack.c.h.b16 %v1396
        %v2003 = vunpack.c.l.b16 %v1397
        %v2004 = vunpack.c.h.b16 %v1397
        %v2005 = vunpack.c.l.b16 %v1398
        %v2006 = vunpack.c.h.b16 %v1398
        %v2007 = vunpack.c.l.b16 %v1399
        %v2008 = vunpack.c.h.b16 %v1399
        %v2009 = vunpack.c.l.b16 %v1400
        %v2010 = vunpack.c.h.b16 %v1400
        %v2011 = vunpack.c.l.b16 %v1401
        %v2012 = vunpack.c.h.b16 %v1401
        %v2013 = vunpack.c.l.b16 %v1402
        %v2014 = vunpack.c.h.b16 %v1402
        %v2015 = vunpack.c.l.b16 %v1403
        %v2016 = vunpack.c.h.b16 %v1403
        %v2017 = vunpack.c.l.b16 %v1404
        %v2018 = vunpack.c.h.b16 %v1404
        %v2019 = vunpack.c.l.b16 %v1405
        %v2020 = vunpack.c.h.b16 %v1405
        %v2021 = vunpack.c.l.b16 %v1406
        %v2022 = vunpack.c.h.b16 %v1406
        %v2023 = vunpack.c.l.b16 %v1407
        %v2024 = vunpack.c.h.b16 %v1407
        %v2025 = vunpack.c.l.b16 %v1408
        %v2026 = vunpack.c.h.b16 %v1408
        %v2027 = vunpack.c.l.b16 %v1409
        %v2028 = vunpack.c.h.b16 %v1409
        %v2029 = vunpack.c.l.b16 %v1410
        %v2030 = vunpack.c.h.b16 %v1410
        %v2031 = vunpack.c.l.b16 %v1411
        %v2032 = vunpack.c.h.b16 %v1411
        %v2033 = vunpack.c.l.b16 %v1412
        %v2034 = vunpack.c.h.b16 %v1412
        %v2035 = vunpack.c.l.b16 %v1413
        %v2036 = vunpack.c.h.b16 %v1413
        %v2037 = vunpack.c.l.b16 %v1414
        %v2038 = vunpack.c.h.b16 %v1414
        %v2039 = vunpack.c.l.b16 %v1415
        %v2040 = vunpack.c.h.b16 %v1415
        %v2041 = vunpack.c.l.b16 %v1416
        %v2042 = vunpack.c.h.b16 %v1416
        %v2043 = vunpack.c.l.b16 %v1417
        %v2044 = vunpack.c.h.b16 %v1417
        %v2045 = vunpack.c.l.b16 %v1418
        %v2046 = vunpack.c.h.b16 %v1418
        %v2047 = vunpack.c.l.b16 %v1419
        %v2048 = vunpack.c.h.b16 %v1419
        %v2049 = vunpack.c.l.b16 %v1420
        %v2050 = vunpack.c.h.b16 %v1420
        %v2051 = vunpack.c.l.b16 %v1421
        %v2052 = vunpack.c.h.b16 %v1421
        %v2053 = vunpack.c.l.b16 %v1422
        %v2054 = vunpack.c.h.b16 %v1422
        %v2055 = vunpack.c.l.b16 %v1423
        %v2056 = vunpack.c.h.b16 %v1423
        %v2057 = vunpack.c.l.b16 %v1424
        %v2058 = vunpack.c.h.b16 %v1424
        %v2059 = vunpack.c.l.b16 %v1425
        %v2060 = vunpack.c.h.b16 %v1425
        %v2061 = vunpack.c.l.b16 %v1426
        %v2062 = vunpack.c.h.b16 %v1426
        %v2063 = vunpack.c.l.b16 %v1427
        %v2064 = vunpack.c.h.b16 %v1427
        %v2065 = vunpack.c.l.b16 %v1428
        %v2066 = vunpack.c.h.b16 %v1428
        %v2067 = vunpack.c.l.b16 %v1429
        %v2068 = vunpack.c.h.b16 %v1429
        %v2069 = vunpack.c.l.b16 %v1430
        %v2070 = vunpack.c.h.b16 %v1430
        %v2071 = vunpack.c.l.b16 %v1431
        %v2072 = vunpack.c.h.b16 %v1431
        %v2073 = vunpack.c.l.b16 %v1432
        %v2074 = vunpack.c.h.b16 %v1432
        %v2075 = vpack.c.b16 %v1703, %v1691
        %v2076 = vpack.c.b16 %v1704, %v1692
        %v2077 = vpack.c.b16 %v1705, %v1693
        %v2078 = vpack.c.b16 %v1706, %v1694
        %v2079 = vpack.c.b16 %v1707, %v1695
        %v2080 = vpack.c.b16 %v1708, %v1696
        %v2081 = vpack.c.b16 %v1709, %v1697
        %v2082 = vpack.c.b16 %v1710, %v1698
        %v2083 = vpack.c.b16 %v1711, %v1699
        %v2084 = vpack.c.b16 %v1712, %v1700
        %v2085 = vpack.c.b16 %v1713, %v1701
        %v2086 = vpack.c.b16 %v1714, %v1702
        %v2087 = vpack.c.b16 %v1727, %v1715
        %v2088 = vpack.c.b16 %v1728, %v1716
        %v2089 = vpack.c.b16 %v1729, %v1717
        %v2090 = vpack.c.b16 %v1730, %v1718
        %v2091 = vpack.c.b16 %v1731, %v1719
        %v2092 = vpack.c.b16 %v1732, %v1720
        %v2093 = vpack.c.b16 %v1733, %v1721
        %v2094 = vpack.c.b16 %v1734, %v1722
        %v2095 = vpack.c.b16 %v1735, %v1723
        %v2096 = vpack.c.b16 %v1736, %v1724
        %v2097 = vpack.c.b16 %v1737, %v1725
        %v2098 = vpack.c.b16 %v1738, %v1726
        %v2099 = vpack.c.b16 %v1751, %v1739
        %v2100 = vpack.c.b16 %v1752, %v1740
        %v2101 = vpack.c.b16 %v1753, %v1741
        %v2102 = vpack.c.b16 %v1754, %v1742
        %v2103 = vpack.c.b16 %v1755, %v1743
        %v2104 = vpack.c.b16 %v1756, %v1744
        %v2105 = vpack.c.b16 %v1757, %v1745
        %v2106 = vpack.c.b16 %v1758, %v1746
        %v2107 = vpack.c.b16 %v1759, %v1747
        %v2108 = vpack.c.b16 %v1760, %v1748
        %v2109 = vpack.c.b16 %v1761, %v1749
        %v2110 = vpack.c.b16 %v1762, %v1750
        %v2111 = vpack.c.b16 %v1775, %v1763
        %v2112 = vpack.c.b16 %v1776, %v1764
        %v2113 = vpack.c.b16 %v1777, %v1765
        %v2114 = vpack.c.b16 %v1778, %v1766
        %v2115 = vpack.c.b16 %v1779, %v1767
        %v2116 = vpack.c.b16 %v1780, %v1768
        %v2117 = vpack.c.b16 %v1781, %v1769
        %v2118 = vpack.c.b16 %v1782, %v1770
        %v2119 = vpack.c.b16 %v1783, %v1771
        %v2120 = vpack.c.b16 %v1784, %v1772
        %v2121 = vpack.c.b16 %v1785, %v1773
        %v2122 = vpack.c.b16 %v1786, %v1774
        %v2123 = vpack.c.b16 %v1799, %v1787
        %v2124 = vpack.c.b16 %v1800, %v1788
        %v2125 = vpack.c.b16 %v1801, %v1789
        %v2126 = vpack.c.b16 %v1802, %v1790
        %v2127 = vpack.c.b16 %v1803, %v1791
        %v2128 = vpack.c.b16 %v1804, %v1792
        %v2129 = vpack.c.b16 %v1805, %v1793
        %v2130 = vpack.c.b16 %v1806, %v1794
        %v2131 = vpack.c.b16 %v1807, %v1795
        %v2132 = vpack.c.b16 %v1808, %v1796
        %v2133 = vpack.c.b16 %v1809, %v1797
        %v2134 = vpack.c.b16 %v1810, %v1798
        %v2135 = vpack.c.b16 %v1823, %v1811
        %v2136 = vpack.c.b16 %v1824, %v1812
        %v2137 = vpack.c.b16 %v1825, %v1813
        %v2138 = vpack.c.b16 %v1826, %v1814
        %v2139 = vpack.c.b16 %v1827, %v1815
        %v2140 = vpack.c.b16 %v1828, %v1816
        %v2141 = vpack.c.b16 %v1829, %v1817
        %v2142 = vpack.c.b16 %v1830, %v1818
        %v2143 = vpack.c.b16 %v1831, %v1819
        %v2144 = vpack.c.b16 %v1832, %v1820
        %v2145 = vpack.c.b16 %v1833, %v1821
        %v2146 = vpack.c.b16 %v1834, %v1822
        %v2147 = vpack.c.b16 %v1847, %v1835
        %v2148 = vpack.c.b16 %v1848, %v1836
        %v2149 = vpack.c.b16 %v1849, %v1837
        %v2150 = vpack.c.b16 %v1850, %v1838
        %v2151 = vpack.c.b16 %v1851, %v1839
        %v2152 = vpack.c.b16 %v1852, %v1840
        %v2153 = vpack.c.b16 %v1853, %v1841
        %v2154 = vpack.c.b16 %v1854, %v1842
        %v2155 = vpack.c.b16 %v1855, %v1843
        %v2156 = vpack.c.b16 %v1856, %v1844
        %v2157 = vpack.c.b16 %v1857, %v1845
        %v2158 = vpack.c.b16 %v1858, %v1846
        %v2159 = vpack.c.b16 %v1871, %v1859
        %v2160 = vpack.c.b16 %v1872, %v1860
        %v2161 = vpack.c.b16 %v1873, %v1861
        %v2162 = vpack.c.b16 %v1874, %v1862
        %v2163 = vpack.c.b16 %v1875, %v1863
        %v2164 = vpack.c.b16 %v1876, %v1864
        %v2165 = vpack.c.b16 %v1877, %v1865
        %v2166 = vpack.c.b16 %v1878, %v1866
        %v2167 = vpack.c.b16 %v1879, %v1867
        %v2168 = vpack.c.b16 %v1880, %v1868
        %v2169 = vpack.c.b16 %v1881, %v1869
        %v2170 = vpack.c.b16 %v1882, %v1870
        %v2171 = vpack.c.b16 %v1895, %v1883
        %v2172 = vpack.c.b16 %v1896, %v1884
        %v2173 = vpack.c.b16 %v1897, %v1885
        %v2174 = vpack.c.b16 %v1898, %v1886
        %v2175 = vpack.c.b16 %v1899, %v1887
        %v2176 = vpack.c.b16 %v1900, %v1888
        %v2177 = vpack.c.b16 %v1901, %v1889
        %v2178 = vpack.c.b16 %v1902, %v1890
        %v2179 = vpack.c.b16 %v1903, %v1891
        %v2180 = vpack.c.b16 %v1904, %v1892
        %v2181 = vpack.c.b16 %v1905, %v1893
        %v2182 = vpack.c.b16 %v1906, %v1894
        %v2183 = vpack.c.b16 %v1919, %v1907
        %v2184 = vpack.c.b16 %v1920, %v1908
        %v2185 = vpack.c.b16 %v1921, %v1909
        %v2186 = vpack.c.b16 %v1922, %v1910
        %v2187 = vpack.c.b16 %v1923, %v1911
        %v2188 = vpack.c.b16 %v1924, %v1912
        %v2189 = vpack.c.b16 %v1925, %v1913
        %v2190 = vpack.c.b16 %v1926, %v1914
        %v2191 = vpack.c.b16 %v1927, %v1915
        %v2192 = vpack.c.b16 %v1928, %v1916
        %v2193 = vpack.c.b16 %v1929, %v1917
        %v2194 = vpack.c.b16 %v1930, %v1918
        %v2195 = vpack.c.b16 %v1943, %v1931
        %v2196 = vpack.c.b16 %v1944, %v1932
        %v2197 = vpack.c.b16 %v1945, %v1933
        %v2198 = vpack.c.b16 %v1946, %v1934
        %v2199 = vpack.c.b16 %v1947, %v1935
        %v2200 = vpack.c.b16 %v1948, %v1936
        %v2201 = vpack.c.b16 %v1949, %v1937
        %v2202 = vpack.c.b16 %v1950, %v1938
        %v2203 = vpack.c.b16 %v1951, %v1939
        %v2204 = vpack.c.b16 %v1952, %v1940
        %v2205 = vpack.c.b16 %v1953, %v1941
        %v2206 = vpack.c.b16 %v1954, %v1942
        %v2207 = vpack.c.b16 %v1967, %v1955
        %v2208 = vpack.c.b16 %v1968, %v1956
        %v2209 = vpack.c.b16 %v1969, %v1957
        %v2210 = vpack.c.b16 %v1970, %v1958
        %v2211 = vpack.c.b16 %v1971, %v1959
        %v2212 = vpack.c.b16 %v1972, %v1960
        %v2213 = vpack.c.b16 %v1973, %v1961
        %v2214 = vpack.c.b16 %v1974, %v1962
        %v2215 = vpack.c.b16 %v1975, %v1963
        %v2216 = vpack.c.b16 %v1976, %v1964
        %v2217 = vpack.c.b16 %v1977, %v1965
        %v2218 = vpack.c.b16 %v1978, %v1966
        %v2219 = vpack.c.b16 %v1991, %v1979
        %v2220 = vpack.c.b16 %v1992, %v1980
        %v2221 = vpack.c.b16 %v1993, %v1981
        %v2222 = vpack.c.b16 %v1994, %v1982
        %v2223 = vpack.c.b16 %v1995, %v1983
        %v2224 = vpack.c.b16 %v1996, %v1984
        %v2225 = vpack.c.b16 %v1997, %v1985
        %v2226 = vpack.c.b16 %v1998, %v1986
        %v2227 = vpack.c.b16 %v1999, %v1987
        %v2228 = vpack.c.b16 %v2000, %v1988
        %v2229 = vpack.c.b16 %v2001, %v1989
        %v2230 = vpack.c.b16 %v2002, %v1990
        %v2231 = vpack.c.b16 %v2015, %v2003
        %v2232 = vpack.c.b16 %v2016, %v2004
        %v2233 = vpack.c.b16 %v2017, %v2005
        %v2234 = vpack.c.b16 %v2018, %v2006
        %v2235 = vpack.c.b16 %v2019, %v2007
        %v2236 = vpack.c.b16 %v2020, %v2008
        %v2237 = vpack.c.b16 %v2021, %v2009
        %v2238 = vpack.c.b16 %v2022, %v2010
        %v2239 = vpack.c.b16 %v2023, %v2011
        %v2240 = vpack.c.b16 %v2024, %v2012
        %v2241 = vpack.c.b16 %v2025, %v2013
        %v2242 = vpack.c.b16 %v2026, %v2014
        %v2243 = vpack.c.b16 %v2039, %v2027
        %v2244 = vpack.c.b16 %v2040, %v2028
        %v2245 = vpack.c.b16 %v2041, %v2029
        %v2246 = vpack.c.b16 %v2042, %v2030
        %v2247 = vpack.c.b16 %v2043, %v2031
        %v2248 = vpack.c.b16 %v2044, %v2032
        %v2249 = vpack.c.b16 %v2045, %v2033
        %v2250 = vpack.c.b16 %v2046, %v2034
        %v2251 = vpack.c.b16 %v2047, %v2035
        %v2252 = vpack.c.b16 %v2048, %v2036
        %v2253 = vpack.c.b16 %v2049, %v2037
        %v2254 = vpack.c.b16 %v2050, %v2038
        %v2255 = vpack.c.b16 %v2063, %v2051
        %v2256 = vpack.c.b16 %v2064, %v2052
        %v2257 = vpack.c.b16 %v2065, %v2053
        %v2258 = vpack.c.b16 %v2066, %v2054
        %v2259 = vpack.c.b16 %v2067, %v2055
        %v2260 = vpack.c.b16 %v2068, %v2056
        %v2261 = vpack.c.b16 %v2069, %v2057
        %v2262 = vpack.c.b16 %v2070, %v2058
        %v2263 = vpack.c.b16 %v2071, %v2059
        %v2264 = vpack.c.b16 %v2072, %v2060
        %v2265 = vpack.c.b16 %v2073, %v2061
        %v2266 = vpack.c.b16 %v2074, %v2062
        %2459 = vmatprep.subr.bf16.mxu0 %v2160
        %2460 = vmatpush1.bf16.msra.mxu0 %v2159
        %2461 = vmatprep.subr.bf16.mxu0 %v2148
        %2462 = vmatpush1.bf16.msra.mxu0 %v2147
        %2463 = vmatprep.subr.bf16.mxu0 %v2136
        %2464 = vmatpush1.bf16.msra.mxu0 %v2135
        %2465 = vmatprep.subr.bf16.mxu0 %v2124
        %2466 = vmatpush1.bf16.msra.mxu0 %v2123
        %2467 = vmatprep.subr.bf16.mxu0 %v2112
        %2468 = vmatpush1.bf16.msra.mxu0 %v2111
        %2469 = vmatprep.subr.bf16.mxu0 %v2100
        %2470 = vmatpush1.bf16.msra.mxu0 %v2099
        %2471 = vmatprep.subr.bf16.mxu0 %v2088
        %2472 = vmatpush1.bf16.msra.mxu0 %v2087
        %2473 = vmatprep.subr.bf16.mxu0 %v2076
        %2474 = vmatpush1.bf16.msra.mxu0 %v2075
        %2475 = vmatprep.subr.bf16.mxu0 %v2256
        %2476 = vmatpush2.bf16.msra.mxu0 %v2255
        %2477 = vmatprep.subr.bf16.mxu0 %v2244
        %2478 = vmatpush2.bf16.msra.mxu0 %v2243
        %2479 = vmatprep.subr.bf16.mxu0 %v2232
        %2480 = vmatpush2.bf16.msra.mxu0 %v2231
        %2481 = vmatprep.subr.bf16.mxu0 %v2220
        %2482 = vmatpush2.bf16.msra.mxu0 %v2219
        %2483 = vmatprep.subr.bf16.mxu0 %v2208
        %2484 = vmatpush2.bf16.msra.mxu0 %v2207
        %2485 = vmatprep.subr.bf16.mxu0 %v2196
        %2486 = vmatpush2.bf16.msra.mxu0 %v2195
        %2487 = vmatprep.subr.bf16.mxu0 %v2184
        %2488 = vmatpush2.bf16.msra.mxu0 %v2183
        %2489 = vmatprep.subr.bf16.mxu0 %v2172
        %2490 = vmatpush2.bf16.msra.mxu0 %v2171
        %2491 = vmatprep.mubr.bf16.mxu0 %v1434
        %2492 = vmatmul.mubr.bf16.gmra.mxu0 %v1433
        %v2493 = vpop.f32.mrf.mxu0
        %v2494 = vadd.f32 %v1442, %v2493
        %v2495 = vpop.f32.mrf.mxu0
        %v2496 = vadd.f32 %v1446, %v2495
        %v2497 = vpop.f32.mrf.mxu0
        %v2498 = vadd.f32 %v1442, %v2497
        %v2499 = vpop.f32.mrf.mxu0
        %v2500 = vadd.f32 %v1446, %v2499
        %2501 = vdwg.mxu0
        %2502 = vmatprep.subr.bf16.mxu0 %v2162
        %2503 = vmatpush1.bf16.msra.mxu0 %v2161
        %2504 = vmatprep.subr.bf16.mxu0 %v2150
        %2505 = vmatpush1.bf16.msra.mxu0 %v2149
        %2506 = vmatprep.subr.bf16.mxu0 %v2138
        %2507 = vmatpush1.bf16.msra.mxu0 %v2137
        %2508 = vmatprep.subr.bf16.mxu0 %v2126
        %2509 = vmatpush1.bf16.msra.mxu0 %v2125
        %2510 = vmatprep.subr.bf16.mxu0 %v2114
        %2511 = vmatpush1.bf16.msra.mxu0 %v2113
        %2512 = vmatprep.subr.bf16.mxu0 %v2102
        %2513 = vmatpush1.bf16.msra.mxu0 %v2101
        %2514 = vmatprep.subr.bf16.mxu0 %v2090
        %2515 = vmatpush1.bf16.msra.mxu0 %v2089
        %2516 = vmatprep.subr.bf16.mxu0 %v2078
        %2517 = vmatpush1.bf16.msra.mxu0 %v2077
        %2518 = vmatprep.subr.bf16.mxu0 %v2258
        %2519 = vmatpush2.bf16.msra.mxu0 %v2257
        %2520 = vmatprep.subr.bf16.mxu0 %v2246
        %2521 = vmatpush2.bf16.msra.mxu0 %v2245
        %2522 = vmatprep.subr.bf16.mxu0 %v2234
        %2523 = vmatpush2.bf16.msra.mxu0 %v2233
        %2524 = vmatprep.subr.bf16.mxu0 %v2222
        %2525 = vmatpush2.bf16.msra.mxu0 %v2221
        %2526 = vmatprep.subr.bf16.mxu0 %v2210
        %2527 = vmatpush2.bf16.msra.mxu0 %v2209
        %2528 = vmatprep.subr.bf16.mxu0 %v2198
        %2529 = vmatpush2.bf16.msra.mxu0 %v2197
        %2530 = vmatprep.subr.bf16.mxu0 %v2186
        %2531 = vmatpush2.bf16.msra.mxu0 %v2185
        %2532 = vmatprep.subr.bf16.mxu0 %v2174
        %2533 = vmatpush2.bf16.msra.mxu0 %v2173
        %2534 = vmatprep.mubr.bf16.mxu0 %v1434
        %2535 = vmatmul.mubr.bf16.gmra.mxu0 %v1433
        %v2536 = vpop.f32.mrf.mxu0
        %v2537 = vadd.f32 %v1450, %v2536
        %v2538 = vpop.f32.mrf.mxu0
        %v2539 = vadd.f32 %v1454, %v2538
        %v2540 = vpop.f32.mrf.mxu0
        %v2541 = vadd.f32 %v1450, %v2540
        %v2542 = vpop.f32.mrf.mxu0
        %v2543 = vadd.f32 %v1454, %v2542
        %2544 = vdwg.mxu0
        %2545 = vmatprep.subr.bf16.mxu0 %v2164
        %2546 = vmatpush1.bf16.msra.mxu0 %v2163
        %2547 = vmatprep.subr.bf16.mxu0 %v2152
        %2548 = vmatpush1.bf16.msra.mxu0 %v2151
        %2549 = vmatprep.subr.bf16.mxu0 %v2140
        %2550 = vmatpush1.bf16.msra.mxu0 %v2139
        %2551 = vmatprep.subr.bf16.mxu0 %v2128
        %2552 = vmatpush1.bf16.msra.mxu0 %v2127
        %2553 = vmatprep.subr.bf16.mxu0 %v2116
        %2554 = vmatpush1.bf16.msra.mxu0 %v2115
        %2555 = vmatprep.subr.bf16.mxu0 %v2104
        %2556 = vmatpush1.bf16.msra.mxu0 %v2103
        %2557 = vmatprep.subr.bf16.mxu0 %v2092
        %2558 = vmatpush1.bf16.msra.mxu0 %v2091
        %2559 = vmatprep.subr.bf16.mxu0 %v2080
        %2560 = vmatpush1.bf16.msra.mxu0 %v2079
        %2561 = vmatprep.subr.bf16.mxu0 %v2260
        %2562 = vmatpush2.bf16.msra.mxu0 %v2259
        %2563 = vmatprep.subr.bf16.mxu0 %v2248
        %2564 = vmatpush2.bf16.msra.mxu0 %v2247
        %2565 = vmatprep.subr.bf16.mxu0 %v2236
        %2566 = vmatpush2.bf16.msra.mxu0 %v2235
        %2567 = vmatprep.subr.bf16.mxu0 %v2224
        %2568 = vmatpush2.bf16.msra.mxu0 %v2223
        %2569 = vmatprep.subr.bf16.mxu0 %v2212
        %2570 = vmatpush2.bf16.msra.mxu0 %v2211
        %2571 = vmatprep.subr.bf16.mxu0 %v2200
        %2572 = vmatpush2.bf16.msra.mxu0 %v2199
        %2573 = vmatprep.subr.bf16.mxu0 %v2188
        %2574 = vmatpush2.bf16.msra.mxu0 %v2187
        %2575 = vmatprep.subr.bf16.mxu0 %v2176
        %2576 = vmatpush2.bf16.msra.mxu0 %v2175
        %2577 = vmatprep.mubr.bf16.mxu0 %v1434
        %2578 = vmatmul.mubr.bf16.gmra.mxu0 %v1433
        %v2579 = vpop.f32.mrf.mxu0
        %v2580 = vadd.f32 %v1458, %v2579
        %v2581 = vpop.f32.mrf.mxu0
        %v2582 = vadd.f32 %v1462, %v2581
        %v2583 = vpop.f32.mrf.mxu0
        %v2584 = vadd.f32 %v1458, %v2583
        %v2585 = vpop.f32.mrf.mxu0
        %v2586 = vadd.f32 %v1462, %v2585
        %2587 = vdwg.mxu0
        %2588 = vmatprep.subr.bf16.mxu0 %v2166
        %2589 = vmatpush1.bf16.msra.mxu0 %v2165
        %2590 = vmatprep.subr.bf16.mxu0 %v2154
        %2591 = vmatpush1.bf16.msra.mxu0 %v2153
        %2592 = vmatprep.subr.bf16.mxu0 %v2142
        %2593 = vmatpush1.bf16.msra.mxu0 %v2141
        %2594 = vmatprep.subr.bf16.mxu0 %v2130
        %2595 = vmatpush1.bf16.msra.mxu0 %v2129
        %2596 = vmatprep.subr.bf16.mxu0 %v2118
        %2597 = vmatpush1.bf16.msra.mxu0 %v2117
        %2598 = vmatprep.subr.bf16.mxu0 %v2106
        %2599 = vmatpush1.bf16.msra.mxu0 %v2105
        %2600 = vmatprep.subr.bf16.mxu0 %v2094
        %2601 = vmatpush1.bf16.msra.mxu0 %v2093
        %2602 = vmatprep.subr.bf16.mxu0 %v2082
        %2603 = vmatpush1.bf16.msra.mxu0 %v2081
        %2604 = vmatprep.subr.bf16.mxu0 %v2262
        %2605 = vmatpush2.bf16.msra.mxu0 %v2261
        %2606 = vmatprep.subr.bf16.mxu0 %v2250
        %2607 = vmatpush2.bf16.msra.mxu0 %v2249
        %2608 = vmatprep.subr.bf16.mxu0 %v2238
        %2609 = vmatpush2.bf16.msra.mxu0 %v2237
        %2610 = vmatprep.subr.bf16.mxu0 %v2226
        %2611 = vmatpush2.bf16.msra.mxu0 %v2225
        %2612 = vmatprep.subr.bf16.mxu0 %v2214
        %2613 = vmatpush2.bf16.msra.mxu0 %v2213
        %2614 = vmatprep.subr.bf16.mxu0 %v2202
        %2615 = vmatpush2.bf16.msra.mxu0 %v2201
        %2616 = vmatprep.subr.bf16.mxu0 %v2190
        %2617 = vmatpush2.bf16.msra.mxu0 %v2189
        %2618 = vmatprep.subr.bf16.mxu0 %v2178
        %2619 = vmatpush2.bf16.msra.mxu0 %v2177
        %2620 = vmatprep.mubr.bf16.mxu0 %v1434
        %2621 = vmatmul.mubr.bf16.gmra.mxu0 %v1433
        %v2622 = vpop.f32.mrf.mxu0
        %v2623 = vadd.f32 %v1466, %v2622
        %v2624 = vpop.f32.mrf.mxu0
        %v2625 = vadd.f32 %v1470, %v2624
        %v2626 = vpop.f32.mrf.mxu0
        %v2627 = vadd.f32 %v1466, %v2626
        %v2628 = vpop.f32.mrf.mxu0
        %v2629 = vadd.f32 %v1470, %v2628
        %2630 = vdwg.mxu0
        %2631 = vmatprep.subr.bf16.mxu0 %v2168
        %2632 = vmatpush1.bf16.msra.mxu0 %v2167
        %2633 = vmatprep.subr.bf16.mxu0 %v2156
        %2634 = vmatpush1.bf16.msra.mxu0 %v2155
        %2635 = vmatprep.subr.bf16.mxu0 %v2144
        %2636 = vmatpush1.bf16.msra.mxu0 %v2143
        %2637 = vmatprep.subr.bf16.mxu0 %v2132
        %2638 = vmatpush1.bf16.msra.mxu0 %v2131
        %2639 = vmatprep.subr.bf16.mxu0 %v2120
        %2640 = vmatpush1.bf16.msra.mxu0 %v2119
        %2641 = vmatprep.subr.bf16.mxu0 %v2108
        %2642 = vmatpush1.bf16.msra.mxu0 %v2107
        %2643 = vmatprep.subr.bf16.mxu0 %v2096
        %2644 = vmatpush1.bf16.msra.mxu0 %v2095
        %2645 = vmatprep.subr.bf16.mxu0 %v2084
        %2646 = vmatpush1.bf16.msra.mxu0 %v2083
        %2647 = vmatprep.subr.bf16.mxu0 %v2264
        %2648 = vmatpush2.bf16.msra.mxu0 %v2263
        %2649 = vmatprep.subr.bf16.mxu0 %v2252
        %2650 = vmatpush2.bf16.msra.mxu0 %v2251
        %2651 = vmatprep.subr.bf16.mxu0 %v2240
        %2652 = vmatpush2.bf16.msra.mxu0 %v2239
        %2653 = vmatprep.subr.bf16.mxu0 %v2228
        %2654 = vmatpush2.bf16.msra.mxu0 %v2227
        %2655 = vmatprep.subr.bf16.mxu0 %v2216
        %2656 = vmatpush2.bf16.msra.mxu0 %v2215
        %2657 = vmatprep.subr.bf16.mxu0 %v2204
        %2658 = vmatpush2.bf16.msra.mxu0 %v2203
        %2659 = vmatprep.subr.bf16.mxu0 %v2192
        %2660 = vmatpush2.bf16.msra.mxu0 %v2191
        %2661 = vmatprep.subr.bf16.mxu0 %v2180
        %2662 = vmatpush2.bf16.msra.mxu0 %v2179
        %2663 = vmatprep.mubr.bf16.mxu0 %v1434
        %2664 = vmatmul.mubr.bf16.gmra.mxu0 %v1433
        %v2665 = vpop.f32.mrf.mxu0
        %v2666 = vadd.f32 %v1474, %v2665
        %v2667 = vpop.f32.mrf.mxu0
        %v2668 = vadd.f32 %v1478, %v2667
        %v2669 = vpop.f32.mrf.mxu0
        %v2670 = vadd.f32 %v1474, %v2669
        %v2671 = vpop.f32.mrf.mxu0
        %v2672 = vadd.f32 %v1478, %v2671
        %2673 = vdwg.mxu0
        %2674 = vmatprep.subr.bf16.mxu0 %v2170
        %2675 = vmatpush1.bf16.msra.mxu0 %v2169
        %2676 = vmatprep.subr.bf16.mxu0 %v2158
        %2677 = vmatpush1.bf16.msra.mxu0 %v2157
        %2678 = vmatprep.subr.bf16.mxu0 %v2146
        %2679 = vmatpush1.bf16.msra.mxu0 %v2145
        %2680 = vmatprep.subr.bf16.mxu0 %v2134
        %2681 = vmatpush1.bf16.msra.mxu0 %v2133
        %2682 = vmatprep.subr.bf16.mxu0 %v2122
        %2683 = vmatpush1.bf16.msra.mxu0 %v2121
        %2684 = vmatprep.subr.bf16.mxu0 %v2110
        %2685 = vmatpush1.bf16.msra.mxu0 %v2109
        %2686 = vmatprep.subr.bf16.mxu0 %v2098
        %2687 = vmatpush1.bf16.msra.mxu0 %v2097
        %2688 = vmatprep.subr.bf16.mxu0 %v2086
        %2689 = vmatpush1.bf16.msra.mxu0 %v2085
        %2690 = vmatprep.subr.bf16.mxu0 %v2266
        %2691 = vmatpush2.bf16.msra.mxu0 %v2265
        %2692 = vmatprep.subr.bf16.mxu0 %v2254
        %2693 = vmatpush2.bf16.msra.mxu0 %v2253
        %2694 = vmatprep.subr.bf16.mxu0 %v2242
        %2695 = vmatpush2.bf16.msra.mxu0 %v2241
        %2696 = vmatprep.subr.bf16.mxu0 %v2230
        %2697 = vmatpush2.bf16.msra.mxu0 %v2229
        %2698 = vmatprep.subr.bf16.mxu0 %v2218
        %2699 = vmatpush2.bf16.msra.mxu0 %v2217
        %2700 = vmatprep.subr.bf16.mxu0 %v2206
        %2701 = vmatpush2.bf16.msra.mxu0 %v2205
        %2702 = vmatprep.subr.bf16.mxu0 %v2194
        %2703 = vmatpush2.bf16.msra.mxu0 %v2193
        %2704 = vmatprep.subr.bf16.mxu0 %v2182
        %2705 = vmatpush2.bf16.msra.mxu0 %v2181
        %2706 = vmatprep.mubr.bf16.mxu0 %v1434
        %2707 = vmatmul.mubr.bf16.gmra.mxu0 %v1433
        %v2708 = vpop.f32.mrf.mxu0
        %v2709 = vadd.f32 %v1482, %v2708
        %v2710 = vpop.f32.mrf.mxu0
        %v2711 = vadd.f32 %v1486, %v2710
        %v2712 = vpop.f32.mrf.mxu0
        %v2713 = vadd.f32 %v1482, %v2712
        %v2714 = vpop.f32.mrf.mxu0
        %v2715 = vadd.f32 %v1486, %v2714
        %2716 = vdwg.mxu0
        %v2717 = vpack.c.bf16 %v2494, %v2494
        %v2718 = vpack.c.bf16 %v2580, %v2580
        %v2719 = vpack.c.bf16 %v2666, %v2666
        %2720 = vmatprep.subr.bf16.mxu0 0
        %2721 = vmatpush1.bf16.xpose.msra.mxu0 0
        %2722 = vmatprep.subr.bf16.mxu0 0
        %2723 = vmatpush1.bf16.xpose.msra.mxu0 0
        %2724 = vmatprep.subr.bf16.mxu0 0
        %2725 = vmatpush1.bf16.xpose.msra.mxu0 0
        %2726 = vmatprep.subr.bf16.mxu0 0
        %2727 = vmatpush1.bf16.xpose.msra.mxu0 0
        %2728 = vmatprep.subr.bf16.mxu0 0
        %2729 = vmatpush1.bf16.xpose.msra.mxu0 0
        %2730 = vmatprep.subr.bf16.mxu0 0
        %2731 = vmatpush1.bf16.xpose.msra.mxu0 0
        %2732 = vmatprep.subr.bf16.mxu0 0
        %2733 = vmatpush1.bf16.xpose.msra.mxu0 0
        %2734 = vmatprep.subr.bf16.mxu0 0
        %2735 = vmatpush1.bf16.xpose.msra.mxu0 %v2718
        %2736 = vmatprep.subr.bf16.mxu0 0
        %2737 = vmatpush2.bf16.xpose.msra.mxu0 0
        %2738 = vmatprep.subr.bf16.mxu0 0
        %2739 = vmatpush2.bf16.xpose.msra.mxu0 0
        %2740 = vmatprep.subr.bf16.mxu0 0
        %2741 = vmatpush2.bf16.xpose.msra.mxu0 0
        %2742 = vmatprep.subr.bf16.mxu0 0
        %2743 = vmatpush2.bf16.xpose.msra.mxu0 0
        %2744 = vmatprep.subr.bf16.mxu0 0
        %2745 = vmatpush2.bf16.xpose.msra.mxu0 0
        %2746 = vmatprep.subr.bf16.mxu0 0
        %2747 = vmatpush2.bf16.xpose.msra.mxu0 0
        %2748 = vmatprep.subr.bf16.mxu0 0
        %2749 = vmatpush2.bf16.xpose.msra.mxu0 0
        %2750 = vmatprep.subr.bf16.mxu0 0
        %2751 = vmatpush2.bf16.xpose.msra.mxu0 0
        %2752 = vmatprep.mubr.bf16.mxu0 0
        %2753 = vmatmul.mubr.bf16.gmra.mxu0 %v2717
        %v2754 = vpop.f32.mrf.mxu0
        %v2755 = vadd.f32 0.0, %v2754
        %v2756 = vpop.f32.mrf.mxu0
        %v2757 = vpop.f32.mrf.mxu0
        %v2758 = vpop.f32.mrf.mxu0
        %2759 = vdwg.mxu0
        %v2760 = vmul.f32 %v2755, 0.125
        %v2761 = vpack.c.bf16 %v2496, %v2496
        %v2762 = vpack.c.bf16 %v2582, %v2582
        %v2763 = vpack.c.bf16 %v2668, %v2668
        %2764 = vmatprep.subr.bf16.mxu0 0
        %2765 = vmatpush1.bf16.xpose.msra.mxu0 0
        %2766 = vmatprep.subr.bf16.mxu0 0
        %2767 = vmatpush1.bf16.xpose.msra.mxu0 0
        %2768 = vmatprep.subr.bf16.mxu0 0
        %2769 = vmatpush1.bf16.xpose.msra.mxu0 0
        %2770 = vmatprep.subr.bf16.mxu0 0
        %2771 = vmatpush1.bf16.xpose.msra.mxu0 0
        %2772 = vmatprep.subr.bf16.mxu0 0
        %2773 = vmatpush1.bf16.xpose.msra.mxu0 0
        %2774 = vmatprep.subr.bf16.mxu0 0
        %2775 = vmatpush1.bf16.xpose.msra.mxu0 0
        %2776 = vmatprep.subr.bf16.mxu0 0
        %2777 = vmatpush1.bf16.xpose.msra.mxu0 0
        %2778 = vmatprep.subr.bf16.mxu0 0
        %2779 = vmatpush1.bf16.xpose.msra.mxu0 %v2762
        %2780 = vmatprep.subr.bf16.mxu0 0
        %2781 = vmatpush2.bf16.xpose.msra.mxu0 0
        %2782 = vmatprep.subr.bf16.mxu0 0
        %2783 = vmatpush2.bf16.xpose.msra.mxu0 0
        %2784 = vmatprep.subr.bf16.mxu0 0
        %2785 = vmatpush2.bf16.xpose.msra.mxu0 0
        %2786 = vmatprep.subr.bf16.mxu0 0
        %2787 = vmatpush2.bf16.xpose.msra.mxu0 0
        %2788 = vmatprep.subr.bf16.mxu0 0
        %2789 = vmatpush2.bf16.xpose.msra.mxu0 0
        %2790 = vmatprep.subr.bf16.mxu0 0
        %2791 = vmatpush2.bf16.xpose.msra.mxu0 0
        %2792 = vmatprep.subr.bf16.mxu0 0
        %2793 = vmatpush2.bf16.xpose.msra.mxu0 0
        %2794 = vmatprep.subr.bf16.mxu0 0
        %2795 = vmatpush2.bf16.xpose.msra.mxu0 0
        %2796 = vmatprep.mubr.bf16.mxu0 0
        %2797 = vmatmul.mubr.bf16.gmra.mxu0 %v2761
        %v2798 = vpop.f32.mrf.mxu0
        %v2799 = vadd.f32 0.0, %v2798
        %v2800 = vpop.f32.mrf.mxu0
        %v2801 = vpop.f32.mrf.mxu0
        %v2802 = vpop.f32.mrf.mxu0
        %2803 = vdwg.mxu0
        %v2804 = vmul.f32 %v2799, 0.125
        %v2805 = vpack.c.bf16 %v2537, %v2537
        %v2806 = vpack.c.bf16 %v2623, %v2623
        %v2807 = vpack.c.bf16 %v2709, %v2709
        %2808 = vmatprep.subr.bf16.mxu0 0
        %2809 = vmatpush1.bf16.xpose.msra.mxu0 0
        %2810 = vmatprep.subr.bf16.mxu0 0
        %2811 = vmatpush1.bf16.xpose.msra.mxu0 0
        %2812 = vmatprep.subr.bf16.mxu0 0
        %2813 = vmatpush1.bf16.xpose.msra.mxu0 0
        %2814 = vmatprep.subr.bf16.mxu0 0
        %2815 = vmatpush1.bf16.xpose.msra.mxu0 0
        %2816 = vmatprep.subr.bf16.mxu0 0
        %2817 = vmatpush1.bf16.xpose.msra.mxu0 0
        %2818 = vmatprep.subr.bf16.mxu0 0
        %2819 = vmatpush1.bf16.xpose.msra.mxu0 0
        %2820 = vmatprep.subr.bf16.mxu0 0
        %2821 = vmatpush1.bf16.xpose.msra.mxu0 0
        %2822 = vmatprep.subr.bf16.mxu0 0
        %2823 = vmatpush1.bf16.xpose.msra.mxu0 %v2806
        %2824 = vmatprep.subr.bf16.mxu0 0
        %2825 = vmatpush2.bf16.xpose.msra.mxu0 0
        %2826 = vmatprep.subr.bf16.mxu0 0
        %2827 = vmatpush2.bf16.xpose.msra.mxu0 0
        %2828 = vmatprep.subr.bf16.mxu0 0
        %2829 = vmatpush2.bf16.xpose.msra.mxu0 0
        %2830 = vmatprep.subr.bf16.mxu0 0
        %2831 = vmatpush2.bf16.xpose.msra.mxu0 0
        %2832 = vmatprep.subr.bf16.mxu0 0
        %2833 = vmatpush2.bf16.xpose.msra.mxu0 0
        %2834 = vmatprep.subr.bf16.mxu0 0
        %2835 = vmatpush2.bf16.xpose.msra.mxu0 0
        %2836 = vmatprep.subr.bf16.mxu0 0
        %2837 = vmatpush2.bf16.xpose.msra.mxu0 0
        %2838 = vmatprep.subr.bf16.mxu0 0
        %2839 = vmatpush2.bf16.xpose.msra.mxu0 0
        %2840 = vmatprep.mubr.bf16.mxu0 0
        %2841 = vmatmul.mubr.bf16.gmra.mxu0 %v2805
        %v2842 = vpop.f32.mrf.mxu0
        %v2843 = vadd.f32 0.0, %v2842
        %v2844 = vpop.f32.mrf.mxu0
        %v2845 = vpop.f32.mrf.mxu0
        %v2846 = vpop.f32.mrf.mxu0
        %2847 = vdwg.mxu0
        %v2848 = vmul.f32 %v2843, 0.125
        %v2849 = vpack.c.bf16 %v2539, %v2539
        %v2850 = vpack.c.bf16 %v2625, %v2625
        %v2851 = vpack.c.bf16 %v2711, %v2711
        %2852 = vmatprep.subr.bf16.mxu0 0
        %2853 = vmatpush1.bf16.xpose.msra.mxu0 0
        %2854 = vmatprep.subr.bf16.mxu0 0
        %2855 = vmatpush1.bf16.xpose.msra.mxu0 0
        %2856 = vmatprep.subr.bf16.mxu0 0
        %2857 = vmatpush1.bf16.xpose.msra.mxu0 0
        %2858 = vmatprep.subr.bf16.mxu0 0
        %2859 = vmatpush1.bf16.xpose.msra.mxu0 0
        %2860 = vmatprep.subr.bf16.mxu0 0
        %2861 = vmatpush1.bf16.xpose.msra.mxu0 0
        %2862 = vmatprep.subr.bf16.mxu0 0
        %2863 = vmatpush1.bf16.xpose.msra.mxu0 0
        %2864 = vmatprep.subr.bf16.mxu0 0
        %2865 = vmatpush1.bf16.xpose.msra.mxu0 0
        %2866 = vmatprep.subr.bf16.mxu0 0
        %2867 = vmatpush1.bf16.xpose.msra.mxu0 %v2850
        %2868 = vmatprep.subr.bf16.mxu0 0
        %2869 = vmatpush2.bf16.xpose.msra.mxu0 0
        %2870 = vmatprep.subr.bf16.mxu0 0
        %2871 = vmatpush2.bf16.xpose.msra.mxu0 0
        %2872 = vmatprep.subr.bf16.mxu0 0
        %2873 = vmatpush2.bf16.xpose.msra.mxu0 0
        %2874 = vmatprep.subr.bf16.mxu0 0
        %2875 = vmatpush2.bf16.xpose.msra.mxu0 0
        %2876 = vmatprep.subr.bf16.mxu0 0
        %2877 = vmatpush2.bf16.xpose.msra.mxu0 0
        %2878 = vmatprep.subr.bf16.mxu0 0
        %2879 = vmatpush2.bf16.xpose.msra.mxu0 0
        %2880 = vmatprep.subr.bf16.mxu0 0
        %2881 = vmatpush2.bf16.xpose.msra.mxu0 0
        %2882 = vmatprep.subr.bf16.mxu0 0
        %2883 = vmatpush2.bf16.xpose.msra.mxu0 0
        %2884 = vmatprep.mubr.bf16.mxu0 0
        %2885 = vmatmul.mubr.bf16.gmra.mxu0 %v2849
        %v2886 = vpop.f32.mrf.mxu0
        %v2887 = vadd.f32 0.0, %v2886
        %v2888 = vpop.f32.mrf.mxu0
        %v2889 = vpop.f32.mrf.mxu0
        %v2890 = vpop.f32.mrf.mxu0
        %2891 = vdwg.mxu0
        %v2892 = vmul.f32 %v2887, 0.125
        %v2893 = vpack.c.bf16 %v2498, %v2498
        %v2894 = vpack.c.bf16 %v2584, %v2584
        %v2895 = vpack.c.bf16 %v2670, %v2670
        %2896 = vmatprep.subr.bf16.mxu0 0
        %2897 = vmatpush1.bf16.xpose.msra.mxu0 0
        %2898 = vmatprep.subr.bf16.mxu0 0
        %2899 = vmatpush1.bf16.xpose.msra.mxu0 0
        %2900 = vmatprep.subr.bf16.mxu0 0
        %2901 = vmatpush1.bf16.xpose.msra.mxu0 0
        %2902 = vmatprep.subr.bf16.mxu0 0
        %2903 = vmatpush1.bf16.xpose.msra.mxu0 0
        %2904 = vmatprep.subr.bf16.mxu0 0
        %2905 = vmatpush1.bf16.xpose.msra.mxu0 0
        %2906 = vmatprep.subr.bf16.mxu0 0
        %2907 = vmatpush1.bf16.xpose.msra.mxu0 0
        %2908 = vmatprep.subr.bf16.mxu0 0
        %2909 = vmatpush1.bf16.xpose.msra.mxu0 0
        %2910 = vmatprep.subr.bf16.mxu0 0
        %2911 = vmatpush1.bf16.xpose.msra.mxu0 %v2894
        %2912 = vmatprep.subr.bf16.mxu0 0
        %2913 = vmatpush2.bf16.xpose.msra.mxu0 0
        %2914 = vmatprep.subr.bf16.mxu0 0
        %2915 = vmatpush2.bf16.xpose.msra.mxu0 0
        %2916 = vmatprep.subr.bf16.mxu0 0
        %2917 = vmatpush2.bf16.xpose.msra.mxu0 0
        %2918 = vmatprep.subr.bf16.mxu0 0
        %2919 = vmatpush2.bf16.xpose.msra.mxu0 0
        %2920 = vmatprep.subr.bf16.mxu0 0
        %2921 = vmatpush2.bf16.xpose.msra.mxu0 0
        %2922 = vmatprep.subr.bf16.mxu0 0
        %2923 = vmatpush2.bf16.xpose.msra.mxu0 0
        %2924 = vmatprep.subr.bf16.mxu0 0
        %2925 = vmatpush2.bf16.xpose.msra.mxu0 0
        %2926 = vmatprep.subr.bf16.mxu0 0
        %2927 = vmatpush2.bf16.xpose.msra.mxu0 0
        %2928 = vmatprep.mubr.bf16.mxu0 0
        %2929 = vmatmul.mubr.bf16.gmra.mxu0 %v2893
        %v2930 = vpop.f32.mrf.mxu0
        %v2931 = vadd.f32 0.0, %v2930
        %v2932 = vpop.f32.mrf.mxu0
        %v2933 = vpop.f32.mrf.mxu0
        %v2934 = vpop.f32.mrf.mxu0
        %2935 = vdwg.mxu0
        %v2936 = vmul.f32 %v2931, 0.125
        %v2937 = vpack.c.bf16 %v2500, %v2500
        %v2938 = vpack.c.bf16 %v2586, %v2586
        %v2939 = vpack.c.bf16 %v2672, %v2672
        %2940 = vmatprep.subr.bf16.mxu0 0
        %2941 = vmatpush1.bf16.xpose.msra.mxu0 0
        %2942 = vmatprep.subr.bf16.mxu0 0
        %2943 = vmatpush1.bf16.xpose.msra.mxu0 0
        %2944 = vmatprep.subr.bf16.mxu0 0
        %2945 = vmatpush1.bf16.xpose.msra.mxu0 0
        %2946 = vmatprep.subr.bf16.mxu0 0
        %2947 = vmatpush1.bf16.xpose.msra.mxu0 0
        %2948 = vmatprep.subr.bf16.mxu0 0
        %2949 = vmatpush1.bf16.xpose.msra.mxu0 0
        %2950 = vmatprep.subr.bf16.mxu0 0
        %2951 = vmatpush1.bf16.xpose.msra.mxu0 0
        %2952 = vmatprep.subr.bf16.mxu0 0
        %2953 = vmatpush1.bf16.xpose.msra.mxu0 0
        %2954 = vmatprep.subr.bf16.mxu0 0
        %2955 = vmatpush1.bf16.xpose.msra.mxu0 %v2938
        %2956 = vmatprep.subr.bf16.mxu0 0
        %2957 = vmatpush2.bf16.xpose.msra.mxu0 0
        %2958 = vmatprep.subr.bf16.mxu0 0
        %2959 = vmatpush2.bf16.xpose.msra.mxu0 0
        %2960 = vmatprep.subr.bf16.mxu0 0
        %2961 = vmatpush2.bf16.xpose.msra.mxu0 0
        %2962 = vmatprep.subr.bf16.mxu0 0
        %2963 = vmatpush2.bf16.xpose.msra.mxu0 0
        %2964 = vmatprep.subr.bf16.mxu0 0
        %2965 = vmatpush2.bf16.xpose.msra.mxu0 0
        %2966 = vmatprep.subr.bf16.mxu0 0
        %2967 = vmatpush2.bf16.xpose.msra.mxu0 0
        %2968 = vmatprep.subr.bf16.mxu0 0
        %2969 = vmatpush2.bf16.xpose.msra.mxu0 0
        %2970 = vmatprep.subr.bf16.mxu0 0
        %2971 = vmatpush2.bf16.xpose.msra.mxu0 0
        %2972 = vmatprep.mubr.bf16.mxu0 0
        %2973 = vmatmul.mubr.bf16.gmra.mxu0 %v2937
        %v2974 = vpop.f32.mrf.mxu0
        %v2975 = vadd.f32 0.0, %v2974
        %v2976 = vpop.f32.mrf.mxu0
        %v2977 = vpop.f32.mrf.mxu0
        %v2978 = vpop.f32.mrf.mxu0
        %2979 = vdwg.mxu0
        %v2980 = vmul.f32 %v2975, 0.125
        %v2981 = vpack.c.bf16 %v2541, %v2541
        %v2982 = vpack.c.bf16 %v2627, %v2627
        %v2983 = vpack.c.bf16 %v2713, %v2713
        %2984 = vmatprep.subr.bf16.mxu0 0
        %2985 = vmatpush1.bf16.xpose.msra.mxu0 0
        %2986 = vmatprep.subr.bf16.mxu0 0
        %2987 = vmatpush1.bf16.xpose.msra.mxu0 0
        %2988 = vmatprep.subr.bf16.mxu0 0
        %2989 = vmatpush1.bf16.xpose.msra.mxu0 0
        %2990 = vmatprep.subr.bf16.mxu0 0
        %2991 = vmatpush1.bf16.xpose.msra.mxu0 0
        %2992 = vmatprep.subr.bf16.mxu0 0
        %2993 = vmatpush1.bf16.xpose.msra.mxu0 0
        %2994 = vmatprep.subr.bf16.mxu0 0
        %2995 = vmatpush1.bf16.xpose.msra.mxu0 0
        %2996 = vmatprep.subr.bf16.mxu0 0
        %2997 = vmatpush1.bf16.xpose.msra.mxu0 0
        %2998 = vmatprep.subr.bf16.mxu0 0
        %2999 = vmatpush1.bf16.xpose.msra.mxu0 %v2982
        %3000 = vmatprep.subr.bf16.mxu0 0
        %3001 = vmatpush2.bf16.xpose.msra.mxu0 0
        %3002 = vmatprep.subr.bf16.mxu0 0
        %3003 = vmatpush2.bf16.xpose.msra.mxu0 0
        %3004 = vmatprep.subr.bf16.mxu0 0
        %3005 = vmatpush2.bf16.xpose.msra.mxu0 0
        %3006 = vmatprep.subr.bf16.mxu0 0
        %3007 = vmatpush2.bf16.xpose.msra.mxu0 0
        %3008 = vmatprep.subr.bf16.mxu0 0
        %3009 = vmatpush2.bf16.xpose.msra.mxu0 0
        %3010 = vmatprep.subr.bf16.mxu0 0
        %3011 = vmatpush2.bf16.xpose.msra.mxu0 0
        %3012 = vmatprep.subr.bf16.mxu0 0
        %3013 = vmatpush2.bf16.xpose.msra.mxu0 0
        %3014 = vmatprep.subr.bf16.mxu0 0
        %3015 = vmatpush2.bf16.xpose.msra.mxu0 0
        %3016 = vmatprep.mubr.bf16.mxu0 0
        %3017 = vmatmul.mubr.bf16.gmra.mxu0 %v2981
        %v3018 = vpop.f32.mrf.mxu0
        %v3019 = vadd.f32 0.0, %v3018
        %v3020 = vpop.f32.mrf.mxu0
        %v3021 = vpop.f32.mrf.mxu0
        %v3022 = vpop.f32.mrf.mxu0
        %3023 = vdwg.mxu0
        %v3024 = vmul.f32 %v3019, 0.125
        %v3025 = vpack.c.bf16 %v2543, %v2543
        %v3026 = vpack.c.bf16 %v2629, %v2629
        %v3027 = vpack.c.bf16 %v2715, %v2715
        %3028 = vmatprep.subr.bf16.mxu0 0
        %3029 = vmatpush1.bf16.xpose.msra.mxu0 0
        %3030 = vmatprep.subr.bf16.mxu0 0
        %3031 = vmatpush1.bf16.xpose.msra.mxu0 0
        %3032 = vmatprep.subr.bf16.mxu0 0
        %3033 = vmatpush1.bf16.xpose.msra.mxu0 0
        %3034 = vmatprep.subr.bf16.mxu0 0
        %3035 = vmatpush1.bf16.xpose.msra.mxu0 0
        %3036 = vmatprep.subr.bf16.mxu0 0
        %3037 = vmatpush1.bf16.xpose.msra.mxu0 0
        %3038 = vmatprep.subr.bf16.mxu0 0
        %3039 = vmatpush1.bf16.xpose.msra.mxu0 0
        %3040 = vmatprep.subr.bf16.mxu0 0
        %3041 = vmatpush1.bf16.xpose.msra.mxu0 0
        %3042 = vmatprep.subr.bf16.mxu0 0
        %3043 = vmatpush1.bf16.xpose.msra.mxu0 %v3026
        %3044 = vmatprep.subr.bf16.mxu0 0
        %3045 = vmatpush2.bf16.xpose.msra.mxu0 0
        %3046 = vmatprep.subr.bf16.mxu0 0
        %3047 = vmatpush2.bf16.xpose.msra.mxu0 0
        %3048 = vmatprep.subr.bf16.mxu0 0
        %3049 = vmatpush2.bf16.xpose.msra.mxu0 0
        %3050 = vmatprep.subr.bf16.mxu0 0
        %3051 = vmatpush2.bf16.xpose.msra.mxu0 0
        %3052 = vmatprep.subr.bf16.mxu0 0
        %3053 = vmatpush2.bf16.xpose.msra.mxu0 0
        %3054 = vmatprep.subr.bf16.mxu0 0
        %3055 = vmatpush2.bf16.xpose.msra.mxu0 0
        %3056 = vmatprep.subr.bf16.mxu0 0
        %3057 = vmatpush2.bf16.xpose.msra.mxu0 0
        %3058 = vmatprep.subr.bf16.mxu0 0
        %3059 = vmatpush2.bf16.xpose.msra.mxu0 0
        %3060 = vmatprep.mubr.bf16.mxu0 0
        %3061 = vmatmul.mubr.bf16.gmra.mxu0 %v3025
        %v3062 = vpop.f32.mrf.mxu0
        %v3063 = vadd.f32 0.0, %v3062
        %v3064 = vpop.f32.mrf.mxu0
        %v3065 = vpop.f32.mrf.mxu0
        %v3066 = vpop.f32.mrf.mxu0
        %3067 = vdwg.mxu0
        %v3068 = vmul.f32 %v3063, 0.125
        %v3069 = vlaneseq
        %v3070 = vand.u32 %v3069, 127
        %vm3071 = vcmp.lt.s32.totalorder %v3070, 5
        %v3072 = vsel %vm3071, 1, 0
        %v3073 = vcvt.s32.f32 %v3072
        %vm3074 = vcmask 64512
        %v3075 = vsel %vm3074, %v2760, -inf
        %3076 = vmax.xlane.f32.xlu0 %v3075
        %v3077 = vpop.xlane.xlu0 %3076
        %v3078 = vsel %vm3074, %v2804, -inf
        %3079 = vmax.xlane.f32.xlu0 %v3078
        %v3080 = vpop.xlane.xlu0 %3079
        %v3081 = vsel %vm3074, %v2848, -inf
        %3082 = vmax.xlane.f32.xlu0 %v3081
        %v3083 = vpop.xlane.xlu0 %3082
        %v3084 = vsel %vm3074, %v2892, -inf
        %3085 = vmax.xlane.f32.xlu0 %v3084
        %v3086 = vpop.xlane.xlu0 %3085
        %v3087 = vsel %vm3074, %v2936, -inf
        %3088 = vmax.xlane.f32.xlu0 %v3087
        %v3089 = vpop.xlane.xlu0 %3088
        %v3090 = vsel %vm3074, %v2980, -inf
        %3091 = vmax.xlane.f32.xlu0 %v3090
        %v3092 = vpop.xlane.xlu0 %3091
        %v3093 = vsel %vm3074, %v3024, -inf
        %3094 = vmax.xlane.f32.xlu0 %v3093
        %v3095 = vpop.xlane.xlu0 %3094
        %v3096 = vsel %vm3074, %v3068, -inf
        %3097 = vmax.xlane.f32.xlu0 %v3096
        %v3098 = vpop.xlane.xlu0 %3097
        %v3099 = vsub.f32 %v2760, %v3077
        %v3100 = vsub.f32 %v2804, %v3080
        %v3101 = vsub.f32 %v2848, %v3083
        %v3102 = vsub.f32 %v2892, %v3086
        %v3103 = vsub.f32 %v2936, %v3089
        %v3104 = vsub.f32 %v2980, %v3092
        %v3105 = vsub.f32 %v3024, %v3095
        %v3106 = vsub.f32 %v3068, %v3098
        %v3107 = vmul.f32 %v3099, 1.442695
        %v3108 = vpow.pop %v3107
        %v3109 = vmul.f32 %v3100, 1.442695
        %v3110 = vpow.pop %v3109
        %v3111 = vmul.f32 %v3101, 1.442695
        %v3112 = vpow.pop %v3111
        %v3113 = vmul.f32 %v3102, 1.442695
        %v3114 = vpow.pop %v3113
        %v3115 = vmul.f32 %v3103, 1.442695
        %v3116 = vpow.pop %v3115
        %v3117 = vmul.f32 %v3104, 1.442695
        %v3118 = vpow.pop %v3117
        %v3119 = vmul.f32 %v3105, 1.442695
        %v3120 = vpow.pop %v3119
        %v3121 = vmul.f32 %v3106, 1.442695
        %v3122 = vpow.pop %v3121
        %v3123 = vmul.f32 %v3108, %v3073
        %v3124 = vmul.f32 %v3110, %v3073
        %v3125 = vmul.f32 %v3112, %v3073
        %v3126 = vmul.f32 %v3114, %v3073
        %v3127 = vmul.f32 %v3116, %v3073
        %v3128 = vmul.f32 %v3118, %v3073
        %v3129 = vmul.f32 %v3120, %v3073
        %v3130 = vmul.f32 %v3122, %v3073
        %v3131 = vsel %vm3074, %v3123, 0.0
        %3132 = vadd.xlane.f32.xlu0 %v3131
        %v3133 = vpop.xlane.xlu0 %3132
        %v3134 = vsel %vm3074, %v3124, 0.0
        %3135 = vadd.xlane.f32.xlu0 %v3134
        %v3136 = vpop.xlane.xlu0 %3135
        %v3137 = vsel %vm3074, %v3125, 0.0
        %3138 = vadd.xlane.f32.xlu0 %v3137
        %v3139 = vpop.xlane.xlu0 %3138
        %v3140 = vsel %vm3074, %v3126, 0.0
        %3141 = vadd.xlane.f32.xlu0 %v3140
        %v3142 = vpop.xlane.xlu0 %3141
        %v3143 = vsel %vm3074, %v3127, 0.0
        %3144 = vadd.xlane.f32.xlu0 %v3143
        %v3145 = vpop.xlane.xlu0 %3144
        %v3146 = vsel %vm3074, %v3128, 0.0
        %3147 = vadd.xlane.f32.xlu0 %v3146
        %v3148 = vpop.xlane.xlu0 %3147
        %v3149 = vsel %vm3074, %v3129, 0.0
        %3150 = vadd.xlane.f32.xlu0 %v3149
        %v3151 = vpop.xlane.xlu0 %3150
        %v3152 = vsel %vm3074, %v3130, 0.0
        %3153 = vadd.xlane.f32.xlu0 %v3152
        %v3154 = vpop.xlane.xlu0 %3153
        %v3155 = vrcp.pop %v3133
        %v3156 = vrcp.pop %v3136
        %v3157 = vrcp.pop %v3139
        %v3158 = vrcp.pop %v3142
        %v3159 = vrcp.pop %v3145
        %v3160 = vrcp.pop %v3148
        %v3161 = vrcp.pop %v3151
        %v3162 = vrcp.pop %v3154
        %v3163 = vmul.f32 %v3123, %v3155
        %v3164 = vmul.f32 %v3124, %v3156
        %v3165 = vmul.f32 %v3125, %v3157
        %v3166 = vmul.f32 %v3126, %v3158
        %v3167 = vmul.f32 %v3127, %v3159
        %v3168 = vmul.f32 %v3128, %v3160
        %v3169 = vmul.f32 %v3129, %v3161
        %v3170 = vmul.f32 %v3130, %v3162
        %v3171 = vpack.c.bf16 %v3164, %v3163
        %v3172 = vpack.c.bf16 %v3166, %v3165
        %v3173 = vpack.c.bf16 %v3168, %v3167
        %v3174 = vpack.c.bf16 %v3170, %v3169
        %v3176 = vsel %vm3074, %v3171, 0
        %vm3178 = vcmask 1043456
        %v3180 = vsel %vm3178, %v2719, 0
        %3182 = vmatprep.subr.bf16.mxu0 0
        %3183 = vmatpush1.bf16.msra.mxu0 0
        %3184 = vmatprep.subr.bf16.mxu0 0
        %3185 = vmatpush1.bf16.msra.mxu0 0
        %3186 = vmatprep.subr.bf16.mxu0 0
        %3187 = vmatpush1.bf16.msra.mxu0 0
        %3188 = vmatprep.subr.bf16.mxu0 0
        %3189 = vmatpush1.bf16.msra.mxu0 0
        %3190 = vmatprep.subr.bf16.mxu0 0
        %3191 = vmatpush1.bf16.msra.mxu0 0
        %3192 = vmatprep.subr.bf16.mxu0 0
        %3193 = vmatpush1.bf16.msra.mxu0 0
        %3194 = vmatprep.subr.bf16.mxu0 0
        %3195 = vmatpush1.bf16.msra.mxu0 0
        %3196 = vmatprep.subr.bf16.mxu0 0
        %3197 = vmatpush1.bf16.msra.mxu0 %v3180
        %3198 = vmatprep.subr.bf16.mxu0 0
        %3199 = vmatpush2.bf16.msra.mxu0 0
        %3200 = vmatprep.subr.bf16.mxu0 0
        %3201 = vmatpush2.bf16.msra.mxu0 0
        %3202 = vmatprep.subr.bf16.mxu0 0
        %3203 = vmatpush2.bf16.msra.mxu0 0
        %3204 = vmatprep.subr.bf16.mxu0 0
        %3205 = vmatpush2.bf16.msra.mxu0 0
        %3206 = vmatprep.subr.bf16.mxu0 0
        %3207 = vmatpush2.bf16.msra.mxu0 0
        %3208 = vmatprep.subr.bf16.mxu0 0
        %3209 = vmatpush2.bf16.msra.mxu0 0
        %3210 = vmatprep.subr.bf16.mxu0 0
        %3211 = vmatpush2.bf16.msra.mxu0 0
        %3212 = vmatprep.subr.bf16.mxu0 0
        %3213 = vmatpush2.bf16.msra.mxu0 0
        %3214 = vmatprep.mubr.bf16.mxu0 0
        %3215 = vmatmul.mubr.bf16.gmra.mxu0 %v3176
        %v3216 = vpop.f32.mrf.mxu0
        %v3217 = vadd.f32 0.0, %v3216
        %v3218 = vpop.f32.mrf.mxu0
        %v3219 = vpop.f32.mrf.mxu0
        %v3220 = vpop.f32.mrf.mxu0
        %3221 = vdwg.mxu0
        %3222 = vst [vmem:[#allocation3] sm:$0xff] %v3217
        %v3224 = vrot.slane %v3171, 4
        %v3226 = vsel %vm3074, %v3224, 0
        %v3229 = vsel %vm3178, %v2763, 0
        %3231 = vmatprep.subr.bf16.mxu0 0
        %3232 = vmatpush1.bf16.msra.mxu0 0
        %3233 = vmatprep.subr.bf16.mxu0 0
        %3234 = vmatpush1.bf16.msra.mxu0 0
        %3235 = vmatprep.subr.bf16.mxu0 0
        %3236 = vmatpush1.bf16.msra.mxu0 0
        %3237 = vmatprep.subr.bf16.mxu0 0
        %3238 = vmatpush1.bf16.msra.mxu0 0
        %3239 = vmatprep.subr.bf16.mxu0 0
        %3240 = vmatpush1.bf16.msra.mxu0 0
        %3241 = vmatprep.subr.bf16.mxu0 0
        %3242 = vmatpush1.bf16.msra.mxu0 0
        %3243 = vmatprep.subr.bf16.mxu0 0
        %3244 = vmatpush1.bf16.msra.mxu0 0
        %3245 = vmatprep.subr.bf16.mxu0 0
        %3246 = vmatpush1.bf16.msra.mxu0 %v3229
        %3247 = vmatprep.subr.bf16.mxu0 0
        %3248 = vmatpush2.bf16.msra.mxu0 0
        %3249 = vmatprep.subr.bf16.mxu0 0
        %3250 = vmatpush2.bf16.msra.mxu0 0
        %3251 = vmatprep.subr.bf16.mxu0 0
        %3252 = vmatpush2.bf16.msra.mxu0 0
        %3253 = vmatprep.subr.bf16.mxu0 0
        %3254 = vmatpush2.bf16.msra.mxu0 0
        %3255 = vmatprep.subr.bf16.mxu0 0
        %3256 = vmatpush2.bf16.msra.mxu0 0
        %3257 = vmatprep.subr.bf16.mxu0 0
        %3258 = vmatpush2.bf16.msra.mxu0 0
        %3259 = vmatprep.subr.bf16.mxu0 0
        %3260 = vmatpush2.bf16.msra.mxu0 0
        %3261 = vmatprep.subr.bf16.mxu0 0
        %3262 = vmatpush2.bf16.msra.mxu0 0
        %3263 = vmatprep.mubr.bf16.mxu0 0
        %3264 = vmatmul.mubr.bf16.gmra.mxu0 %v3226
        %v3265 = vpop.f32.mrf.mxu0
        %v3266 = vadd.f32 0.0, %v3265
        %v3267 = vpop.f32.mrf.mxu0
        %v3268 = vpop.f32.mrf.mxu0
        %v3269 = vpop.f32.mrf.mxu0
        %3270 = vdwg.mxu0
        %3271 = vst [vmem:[#allocation3 + $0x8] sm:$0xff] %v3266
        %v3273 = vsel %vm3074, %v3172, 0
        %v3276 = vsel %vm3178, %v2807, 0
        %3278 = vmatprep.subr.bf16.mxu0 0
        %3279 = vmatpush1.bf16.msra.mxu0 0
        %3280 = vmatprep.subr.bf16.mxu0 0
        %3281 = vmatpush1.bf16.msra.mxu0 0
        %3282 = vmatprep.subr.bf16.mxu0 0
        %3283 = vmatpush1.bf16.msra.mxu0 0
        %3284 = vmatprep.subr.bf16.mxu0 0
        %3285 = vmatpush1.bf16.msra.mxu0 0
        %3286 = vmatprep.subr.bf16.mxu0 0
        %3287 = vmatpush1.bf16.msra.mxu0 0
        %3288 = vmatprep.subr.bf16.mxu0 0
        %3289 = vmatpush1.bf16.msra.mxu0 0
        %3290 = vmatprep.subr.bf16.mxu0 0
        %3291 = vmatpush1.bf16.msra.mxu0 0
        %3292 = vmatprep.subr.bf16.mxu0 0
        %3293 = vmatpush1.bf16.msra.mxu0 %v3276
        %3294 = vmatprep.subr.bf16.mxu0 0
        %3295 = vmatpush2.bf16.msra.mxu0 0
        %3296 = vmatprep.subr.bf16.mxu0 0
        %3297 = vmatpush2.bf16.msra.mxu0 0
        %3298 = vmatprep.subr.bf16.mxu0 0
        %3299 = vmatpush2.bf16.msra.mxu0 0
        %3300 = vmatprep.subr.bf16.mxu0 0
        %3301 = vmatpush2.bf16.msra.mxu0 0
        %3302 = vmatprep.subr.bf16.mxu0 0
        %3303 = vmatpush2.bf16.msra.mxu0 0
        %3304 = vmatprep.subr.bf16.mxu0 0
        %3305 = vmatpush2.bf16.msra.mxu0 0
        %3306 = vmatprep.subr.bf16.mxu0 0
        %3307 = vmatpush2.bf16.msra.mxu0 0
        %3308 = vmatprep.subr.bf16.mxu0 0
        %3309 = vmatpush2.bf16.msra.mxu0 0
        %3310 = vmatprep.mubr.bf16.mxu0 0
        %3311 = vmatmul.mubr.bf16.gmra.mxu0 %v3273
        %v3312 = vpop.f32.mrf.mxu0
        %v3313 = vadd.f32 0.0, %v3312
        %v3314 = vpop.f32.mrf.mxu0
        %v3315 = vpop.f32.mrf.mxu0
        %v3316 = vpop.f32.mrf.mxu0
        %3317 = vdwg.mxu0
        %3318 = vst [vmem:[#allocation3 + $0x10] sm:$0xff] %v3313
        %v3320 = vrot.slane %v3172, 4
        %v3322 = vsel %vm3074, %v3320, 0
        %v3325 = vsel %vm3178, %v2851, 0
        %3327 = vmatprep.subr.bf16.mxu0 0
        %3328 = vmatpush1.bf16.msra.mxu0 0
        %3329 = vmatprep.subr.bf16.mxu0 0
        %3330 = vmatpush1.bf16.msra.mxu0 0
        %3331 = vmatprep.subr.bf16.mxu0 0
        %3332 = vmatpush1.bf16.msra.mxu0 0
        %3333 = vmatprep.subr.bf16.mxu0 0
        %3334 = vmatpush1.bf16.msra.mxu0 0
        %3335 = vmatprep.subr.bf16.mxu0 0
        %3336 = vmatpush1.bf16.msra.mxu0 0
        %3337 = vmatprep.subr.bf16.mxu0 0
        %3338 = vmatpush1.bf16.msra.mxu0 0
        %3339 = vmatprep.subr.bf16.mxu0 0
        %3340 = vmatpush1.bf16.msra.mxu0 0
        %3341 = vmatprep.subr.bf16.mxu0 0
        %3342 = vmatpush1.bf16.msra.mxu0 %v3325
        %3343 = vmatprep.subr.bf16.mxu0 0
        %3344 = vmatpush2.bf16.msra.mxu0 0
        %3345 = vmatprep.subr.bf16.mxu0 0
        %3346 = vmatpush2.bf16.msra.mxu0 0
        %3347 = vmatprep.subr.bf16.mxu0 0
        %3348 = vmatpush2.bf16.msra.mxu0 0
        %3349 = vmatprep.subr.bf16.mxu0 0
        %3350 = vmatpush2.bf16.msra.mxu0 0
        %3351 = vmatprep.subr.bf16.mxu0 0
        %3352 = vmatpush2.bf16.msra.mxu0 0
        %3353 = vmatprep.subr.bf16.mxu0 0
        %3354 = vmatpush2.bf16.msra.mxu0 0
        %3355 = vmatprep.subr.bf16.mxu0 0
        %3356 = vmatpush2.bf16.msra.mxu0 0
        %3357 = vmatprep.subr.bf16.mxu0 0
        %3358 = vmatpush2.bf16.msra.mxu0 0
        %3359 = vmatprep.mubr.bf16.mxu0 0
        %3360 = vmatmul.mubr.bf16.gmra.mxu0 %v3322
        %v3361 = vpop.f32.mrf.mxu0
        %v3362 = vadd.f32 0.0, %v3361
        %v3363 = vpop.f32.mrf.mxu0
        %v3364 = vpop.f32.mrf.mxu0
        %v3365 = vpop.f32.mrf.mxu0
        %3366 = vdwg.mxu0
        %3367 = vst [vmem:[#allocation3 + $0x18] sm:$0xff] %v3362
        %v3369 = vsel %vm3074, %v3173, 0
        %v3372 = vsel %vm3178, %v2895, 0
        %3374 = vmatprep.subr.bf16.mxu0 0
        %3375 = vmatpush1.bf16.msra.mxu0 0
        %3376 = vmatprep.subr.bf16.mxu0 0
        %3377 = vmatpush1.bf16.msra.mxu0 0
        %3378 = vmatprep.subr.bf16.mxu0 0
        %3379 = vmatpush1.bf16.msra.mxu0 0
        %3380 = vmatprep.subr.bf16.mxu0 0
        %3381 = vmatpush1.bf16.msra.mxu0 0
        %3382 = vmatprep.subr.bf16.mxu0 0
        %3383 = vmatpush1.bf16.msra.mxu0 0
        %3384 = vmatprep.subr.bf16.mxu0 0
        %3385 = vmatpush1.bf16.msra.mxu0 0
        %3386 = vmatprep.subr.bf16.mxu0 0
        %3387 = vmatpush1.bf16.msra.mxu0 0
        %3388 = vmatprep.subr.bf16.mxu0 0
        %3389 = vmatpush1.bf16.msra.mxu0 %v3372
        %3390 = vmatprep.subr.bf16.mxu0 0
        %3391 = vmatpush2.bf16.msra.mxu0 0
        %3392 = vmatprep.subr.bf16.mxu0 0
        %3393 = vmatpush2.bf16.msra.mxu0 0
        %3394 = vmatprep.subr.bf16.mxu0 0
        %3395 = vmatpush2.bf16.msra.mxu0 0
        %3396 = vmatprep.subr.bf16.mxu0 0
        %3397 = vmatpush2.bf16.msra.mxu0 0
        %3398 = vmatprep.subr.bf16.mxu0 0
        %3399 = vmatpush2.bf16.msra.mxu0 0
        %3400 = vmatprep.subr.bf16.mxu0 0
        %3401 = vmatpush2.bf16.msra.mxu0 0
        %3402 = vmatprep.subr.bf16.mxu0 0
        %3403 = vmatpush2.bf16.msra.mxu0 0
        %3404 = vmatprep.subr.bf16.mxu0 0
        %3405 = vmatpush2.bf16.msra.mxu0 0
        %3406 = vmatprep.mubr.bf16.mxu0 0
        %3407 = vmatmul.mubr.bf16.gmra.mxu0 %v3369
        %v3408 = vpop.f32.mrf.mxu0
        %v3409 = vadd.f32 0.0, %v3408
        %v3410 = vpop.f32.mrf.mxu0
        %v3411 = vpop.f32.mrf.mxu0
        %v3412 = vpop.f32.mrf.mxu0
        %3413 = vdwg.mxu0
        %3414 = vst [vmem:[#allocation3 + $0x20] sm:$0xff] %v3409
        %v3416 = vrot.slane %v3173, 4
        %v3418 = vsel %vm3074, %v3416, 0
        %v3421 = vsel %vm3178, %v2939, 0
        %3423 = vmatprep.subr.bf16.mxu0 0
        %3424 = vmatpush1.bf16.msra.mxu0 0
        %3425 = vmatprep.subr.bf16.mxu0 0
        %3426 = vmatpush1.bf16.msra.mxu0 0
        %3427 = vmatprep.subr.bf16.mxu0 0
        %3428 = vmatpush1.bf16.msra.mxu0 0
        %3429 = vmatprep.subr.bf16.mxu0 0
        %3430 = vmatpush1.bf16.msra.mxu0 0
        %3431 = vmatprep.subr.bf16.mxu0 0
        %3432 = vmatpush1.bf16.msra.mxu0 0
        %3433 = vmatprep.subr.bf16.mxu0 0
        %3434 = vmatpush1.bf16.msra.mxu0 0
        %3435 = vmatprep.subr.bf16.mxu0 0
        %3436 = vmatpush1.bf16.msra.mxu0 0
        %3437 = vmatprep.subr.bf16.mxu0 0
        %3438 = vmatpush1.bf16.msra.mxu0 %v3421
        %3439 = vmatprep.subr.bf16.mxu0 0
        %3440 = vmatpush2.bf16.msra.mxu0 0
        %3441 = vmatprep.subr.bf16.mxu0 0
        %3442 = vmatpush2.bf16.msra.mxu0 0
        %3443 = vmatprep.subr.bf16.mxu0 0
        %3444 = vmatpush2.bf16.msra.mxu0 0
        %3445 = vmatprep.subr.bf16.mxu0 0
        %3446 = vmatpush2.bf16.msra.mxu0 0
        %3447 = vmatprep.subr.bf16.mxu0 0
        %3448 = vmatpush2.bf16.msra.mxu0 0
        %3449 = vmatprep.subr.bf16.mxu0 0
        %3450 = vmatpush2.bf16.msra.mxu0 0
        %3451 = vmatprep.subr.bf16.mxu0 0
        %3452 = vmatpush2.bf16.msra.mxu0 0
        %3453 = vmatprep.subr.bf16.mxu0 0
        %3454 = vmatpush2.bf16.msra.mxu0 0
        %3455 = vmatprep.mubr.bf16.mxu0 0
        %3456 = vmatmul.mubr.bf16.gmra.mxu0 %v3418
        %v3457 = vpop.f32.mrf.mxu0
        %v3458 = vadd.f32 0.0, %v3457
        %v3459 = vpop.f32.mrf.mxu0
        %v3460 = vpop.f32.mrf.mxu0
        %v3461 = vpop.f32.mrf.mxu0
        %3462 = vdwg.mxu0
        %3463 = vst [vmem:[#allocation3 + $0x28] sm:$0xff] %v3458
        %v3465 = vsel %vm3074, %v3174, 0
        %v3468 = vsel %vm3178, %v2983, 0
        %3470 = vmatprep.subr.bf16.mxu0 0
        %3471 = vmatpush1.bf16.msra.mxu0 0
        %3472 = vmatprep.subr.bf16.mxu0 0
        %3473 = vmatpush1.bf16.msra.mxu0 0
        %3474 = vmatprep.subr.bf16.mxu0 0
        %3475 = vmatpush1.bf16.msra.mxu0 0
        %3476 = vmatprep.subr.bf16.mxu0 0
        %3477 = vmatpush1.bf16.msra.mxu0 0
        %3478 = vmatprep.subr.bf16.mxu0 0
        %3479 = vmatpush1.bf16.msra.mxu0 0
        %3480 = vmatprep.subr.bf16.mxu0 0
        %3481 = vmatpush1.bf16.msra.mxu0 0
        %3482 = vmatprep.subr.bf16.mxu0 0
        %3483 = vmatpush1.bf16.msra.mxu0 0
        %3484 = vmatprep.subr.bf16.mxu0 0
        %3485 = vmatpush1.bf16.msra.mxu0 %v3468
        %3486 = vmatprep.subr.bf16.mxu0 0
        %3487 = vmatpush2.bf16.msra.mxu0 0
        %3488 = vmatprep.subr.bf16.mxu0 0
        %3489 = vmatpush2.bf16.msra.mxu0 0
        %3490 = vmatprep.subr.bf16.mxu0 0
        %3491 = vmatpush2.bf16.msra.mxu0 0
        %3492 = vmatprep.subr.bf16.mxu0 0
        %3493 = vmatpush2.bf16.msra.mxu0 0
        %3494 = vmatprep.subr.bf16.mxu0 0
        %3495 = vmatpush2.bf16.msra.mxu0 0
        %3496 = vmatprep.subr.bf16.mxu0 0
        %3497 = vmatpush2.bf16.msra.mxu0 0
        %3498 = vmatprep.subr.bf16.mxu0 0
        %3499 = vmatpush2.bf16.msra.mxu0 0
        %3500 = vmatprep.subr.bf16.mxu0 0
        %3501 = vmatpush2.bf16.msra.mxu0 0
        %3502 = vmatprep.mubr.bf16.mxu0 0
        %3503 = vmatmul.mubr.bf16.gmra.mxu0 %v3465
        %v3504 = vpop.f32.mrf.mxu0
        %v3505 = vadd.f32 0.0, %v3504
        %v3506 = vpop.f32.mrf.mxu0
        %v3507 = vpop.f32.mrf.mxu0
        %v3508 = vpop.f32.mrf.mxu0
        %3509 = vdwg.mxu0
        %3510 = vst [vmem:[#allocation3 + $0x30] sm:$0xff] %v3505
        %v3512 = vrot.slane %v3174, 4
        %v3514 = vsel %vm3074, %v3512, 0
        %v3517 = vsel %vm3178, %v3027, 0
        %3519 = vmatprep.subr.bf16.mxu0 0
        %3520 = vmatpush1.bf16.msra.mxu0 0
        %3521 = vmatprep.subr.bf16.mxu0 0
        %3522 = vmatpush1.bf16.msra.mxu0 0
        %3523 = vmatprep.subr.bf16.mxu0 0
        %3524 = vmatpush1.bf16.msra.mxu0 0
        %3525 = vmatprep.subr.bf16.mxu0 0
        %3526 = vmatpush1.bf16.msra.mxu0 0
        %3527 = vmatprep.subr.bf16.mxu0 0
        %3528 = vmatpush1.bf16.msra.mxu0 0
        %3529 = vmatprep.subr.bf16.mxu0 0
        %3530 = vmatpush1.bf16.msra.mxu0 0
        %3531 = vmatprep.subr.bf16.mxu0 0
        %3532 = vmatpush1.bf16.msra.mxu0 0
        %3533 = vmatprep.subr.bf16.mxu0 0
        %3534 = vmatpush1.bf16.msra.mxu0 %v3517
        %3535 = vmatprep.subr.bf16.mxu0 0
        %3536 = vmatpush2.bf16.msra.mxu0 0
        %3537 = vmatprep.subr.bf16.mxu0 0
        %3538 = vmatpush2.bf16.msra.mxu0 0
        %3539 = vmatprep.subr.bf16.mxu0 0
        %3540 = vmatpush2.bf16.msra.mxu0 0
        %3541 = vmatprep.subr.bf16.mxu0 0
        %3542 = vmatpush2.bf16.msra.mxu0 0
        %3543 = vmatprep.subr.bf16.mxu0 0
        %3544 = vmatpush2.bf16.msra.mxu0 0
        %3545 = vmatprep.subr.bf16.mxu0 0
        %3546 = vmatpush2.bf16.msra.mxu0 0
        %3547 = vmatprep.subr.bf16.mxu0 0
        %3548 = vmatpush2.bf16.msra.mxu0 0
        %3549 = vmatprep.subr.bf16.mxu0 0
        %3550 = vmatpush2.bf16.msra.mxu0 0
        %3551 = vmatprep.mubr.bf16.mxu0 0
        %3552 = vmatmul.mubr.bf16.gmra.mxu0 %v3514
        %v3553 = vpop.f32.mrf.mxu0
        %v3554 = vadd.f32 0.0, %v3553
        %v3555 = vpop.f32.mrf.mxu0
        %v3556 = vpop.f32.mrf.mxu0
        %v3557 = vpop.f32.mrf.mxu0
        %3558 = vdwg.mxu0
        %3559 = vst [vmem:[#allocation3 + $0x38] sm:$0xff] %v3554
        %v3560 = vld [vmem:[#allocation3] sm:$0xff]
        %v3561 = vld [vmem:[#allocation3 + $0x8] sm:$0xff]
        %v3562 = vld [vmem:[#allocation3 + $0x10] sm:$0xff]
        %v3563 = vld [vmem:[#allocation3 + $0x18] sm:$0xff]
        %v3564 = vld [vmem:[#allocation3 + $0x20] sm:$0xff]
        %v3565 = vld [vmem:[#allocation3 + $0x28] sm:$0xff]
        %v3566 = vld [vmem:[#allocation3 + $0x30] sm:$0xff]
        %v3567 = vld [vmem:[#allocation3 + $0x38] sm:$0xff]
        %v3568 = vld [vmem:[%s740] sm:$0xff]
        %v3569 = vld [vmem:[%s740 + $0x8] sm:$0xff]
        %v3570 = vld [vmem:[%s740 + $0x10] sm:$0xff]
        %v3571 = vld [vmem:[%s740 + $0x18] sm:$0xff]
        %v3572 = vld [vmem:[%s740 + $0x20] sm:$0xff]
        %v3573 = vld [vmem:[%s740 + $0x28] sm:$0xff]
        %v3574 = vld [vmem:[%s740 + $0x30] sm:$0xff]
        %v3575 = vld [vmem:[%s740 + $0x38] sm:$0xff]
        %v3576 = vld [vmem:[%s740 + $0x40] sm:$0xff]
        %v3577 = vld [vmem:[%s740 + $0x48] sm:$0xff]
        %v3578 = vld [vmem:[%s740 + $0x50] sm:$0xff]
        %v3579 = vld [vmem:[%s740 + $0x58] sm:$0xff]
        %v3580 = vld [vmem:[%s740 + $0x60] sm:$0xff]
        %v3581 = vld [vmem:[%s740 + $0x68] sm:$0xff]
        %v3582 = vld [vmem:[%s740 + $0x70] sm:$0xff]
        %v3583 = vld [vmem:[%s740 + $0x78] sm:$0xff]
        %v3584 = vld [vmem:[%s740 + $0x80] sm:$0xff]
        %v3585 = vld [vmem:[%s740 + $0x88] sm:$0xff]
        %v3586 = vld [vmem:[%s740 + $0x90] sm:$0xff]
        %v3587 = vld [vmem:[%s740 + $0x98] sm:$0xff]
        %v3588 = vld [vmem:[%s740 + $0xa0] sm:$0xff]
        %v3589 = vld [vmem:[%s740 + $0xa8] sm:$0xff]
        %v3590 = vld [vmem:[%s740 + $0xb0] sm:$0xff]
        %v3591 = vld [vmem:[%s740 + $0xb8] sm:$0xff]
        %v3592 = vld [vmem:[%s740 + $0xc0] sm:$0xff]
        %v3593 = vld [vmem:[%s740 + $0xc8] sm:$0xff]
        %v3594 = vld [vmem:[%s740 + $0xd0] sm:$0xff]
        %v3595 = vld [vmem:[%s740 + $0xd8] sm:$0xff]
        %v3596 = vld [vmem:[%s740 + $0xe0] sm:$0xff]
        %v3597 = vld [vmem:[%s740 + $0xe8] sm:$0xff]
        %v3598 = vld [vmem:[%s740 + $0xf0] sm:$0xff]
        %v3599 = vld [vmem:[%s740 + $0xf8] sm:$0xff]
        %v3600 = vld [vmem:[%s740 + $0x100] sm:$0xff]
        %v3601 = vld [vmem:[%s740 + $0x108] sm:$0xff]
        %v3602 = vld [vmem:[%s740 + $0x110] sm:$0xff]
        %v3603 = vld [vmem:[%s740 + $0x118] sm:$0xff]
        %v3604 = vld [vmem:[%s740 + $0x120] sm:$0xff]
        %v3605 = vld [vmem:[%s740 + $0x128] sm:$0xff]
        %v3606 = vld [vmem:[%s740 + $0x130] sm:$0xff]
        %v3607 = vld [vmem:[%s740 + $0x138] sm:$0xff]
        %v3608 = vld [vmem:[%s740 + $0x140] sm:$0xff]
        %v3609 = vld [vmem:[%s740 + $0x148] sm:$0xff]
        %v3610 = vld [vmem:[%s740 + $0x150] sm:$0xff]
        %v3611 = vld [vmem:[%s740 + $0x158] sm:$0xff]
        %v3612 = vld [vmem:[%s740 + $0x160] sm:$0xff]
        %v3613 = vld [vmem:[%s740 + $0x168] sm:$0xff]
        %v3614 = vld [vmem:[%s740 + $0x170] sm:$0xff]
        %v3615 = vld [vmem:[%s740 + $0x178] sm:$0xff]
        %v3616 = vld [vmem:[%s740 + $0x180] sm:$0xff]
        %v3617 = vld [vmem:[%s740 + $0x188] sm:$0xff]
        %v3618 = vld [vmem:[%s740 + $0x190] sm:$0xff]
        %v3619 = vld [vmem:[%s740 + $0x198] sm:$0xff]
        %v3620 = vld [vmem:[%s740 + $0x1a0] sm:$0xff]
        %v3621 = vld [vmem:[%s740 + $0x1a8] sm:$0xff]
        %v3622 = vld [vmem:[%s740 + $0x1b0] sm:$0xff]
        %v3623 = vld [vmem:[%s740 + $0x1b8] sm:$0xff]
        %v3624 = vld [vmem:[%s740 + $0x1c0] sm:$0xff]
        %v3625 = vld [vmem:[%s740 + $0x1c8] sm:$0xff]
        %v3626 = vld [vmem:[%s740 + $0x1d0] sm:$0xff]
        %v3627 = vld [vmem:[%s740 + $0x1d8] sm:$0xff]
        %v3628 = vld [vmem:[%s740 + $0x1e0] sm:$0xff]
        %v3629 = vld [vmem:[%s740 + $0x1e8] sm:$0xff]
        %v3630 = vld [vmem:[%s740 + $0x1f0] sm:$0xff]
        %v3631 = vld [vmem:[%s740 + $0x1f8] sm:$0xff]
        %v3632 = vpack.c.bf16 %v3564, %v3560
        %v3633 = vpack.c.bf16 %v3565, %v3561
        %v3634 = vpack.c.bf16 %v3566, %v3562
        %v3635 = vpack.c.bf16 %v3567, %v3563
        %v3700 = vunpack.c.l.b16 %v3568
        %v3701 = vunpack.c.h.b16 %v3568
        %v3702 = vunpack.c.l.b16 %v3569
        %v3703 = vunpack.c.h.b16 %v3569
        %v3704 = vunpack.c.l.b16 %v3570
        %v3705 = vunpack.c.h.b16 %v3570
        %v3706 = vunpack.c.l.b16 %v3571
        %v3707 = vunpack.c.h.b16 %v3571
        %v3708 = vunpack.c.l.b16 %v3572
        %v3709 = vunpack.c.h.b16 %v3572
        %v3710 = vunpack.c.l.b16 %v3573
        %v3711 = vunpack.c.h.b16 %v3573
        %v3712 = vunpack.c.l.b16 %v3574
        %v3713 = vunpack.c.h.b16 %v3574
        %v3714 = vunpack.c.l.b16 %v3575
        %v3715 = vunpack.c.h.b16 %v3575
        %v3716 = vunpack.c.l.b16 %v3576
        %v3717 = vunpack.c.h.b16 %v3576
        %v3718 = vunpack.c.l.b16 %v3577
        %v3719 = vunpack.c.h.b16 %v3577
        %v3720 = vunpack.c.l.b16 %v3578
        %v3721 = vunpack.c.h.b16 %v3578
        %v3722 = vunpack.c.l.b16 %v3579
        %v3723 = vunpack.c.h.b16 %v3579
        %v3724 = vunpack.c.l.b16 %v3580
        %v3725 = vunpack.c.h.b16 %v3580
        %v3726 = vunpack.c.l.b16 %v3581
        %v3727 = vunpack.c.h.b16 %v3581
        %v3728 = vunpack.c.l.b16 %v3582
        %v3729 = vunpack.c.h.b16 %v3582
        %v3730 = vunpack.c.l.b16 %v3583
        %v3731 = vunpack.c.h.b16 %v3583
        %v3732 = vunpack.c.l.b16 %v3584
        %v3733 = vunpack.c.h.b16 %v3584
        %v3734 = vunpack.c.l.b16 %v3585
        %v3735 = vunpack.c.h.b16 %v3585
        %v3736 = vunpack.c.l.b16 %v3586
        %v3737 = vunpack.c.h.b16 %v3586
        %v3738 = vunpack.c.l.b16 %v3587
        %v3739 = vunpack.c.h.b16 %v3587
        %v3740 = vunpack.c.l.b16 %v3588
        %v3741 = vunpack.c.h.b16 %v3588
        %v3742 = vunpack.c.l.b16 %v3589
        %v3743 = vunpack.c.h.b16 %v3589
        %v3744 = vunpack.c.l.b16 %v3590
        %v3745 = vunpack.c.h.b16 %v3590
        %v3746 = vunpack.c.l.b16 %v3591
        %v3747 = vunpack.c.h.b16 %v3591
        %v3748 = vunpack.c.l.b16 %v3592
        %v3749 = vunpack.c.h.b16 %v3592
        %v3750 = vunpack.c.l.b16 %v3593
        %v3751 = vunpack.c.h.b16 %v3593
        %v3752 = vunpack.c.l.b16 %v3594
        %v3753 = vunpack.c.h.b16 %v3594
        %v3754 = vunpack.c.l.b16 %v3595
        %v3755 = vunpack.c.h.b16 %v3595
        %v3756 = vunpack.c.l.b16 %v3596
        %v3757 = vunpack.c.h.b16 %v3596
        %v3758 = vunpack.c.l.b16 %v3597
        %v3759 = vunpack.c.h.b16 %v3597
        %v3760 = vunpack.c.l.b16 %v3598
        %v3761 = vunpack.c.h.b16 %v3598
        %v3762 = vunpack.c.l.b16 %v3599
        %v3763 = vunpack.c.h.b16 %v3599
        %v3764 = vunpack.c.l.b16 %v3600
        %v3765 = vunpack.c.h.b16 %v3600
        %v3766 = vunpack.c.l.b16 %v3601
        %v3767 = vunpack.c.h.b16 %v3601
        %v3768 = vunpack.c.l.b16 %v3602
        %v3769 = vunpack.c.h.b16 %v3602
        %v3770 = vunpack.c.l.b16 %v3603
        %v3771 = vunpack.c.h.b16 %v3603
        %v3772 = vunpack.c.l.b16 %v3604
        %v3773 = vunpack.c.h.b16 %v3604
        %v3774 = vunpack.c.l.b16 %v3605
        %v3775 = vunpack.c.h.b16 %v3605
        %v3776 = vunpack.c.l.b16 %v3606
        %v3777 = vunpack.c.h.b16 %v3606
        %v3778 = vunpack.c.l.b16 %v3607
        %v3779 = vunpack.c.h.b16 %v3607
        %v3780 = vunpack.c.l.b16 %v3608
        %v3781 = vunpack.c.h.b16 %v3608
        %v3782 = vunpack.c.l.b16 %v3609
        %v3783 = vunpack.c.h.b16 %v3609
        %v3784 = vunpack.c.l.b16 %v3610
        %v3785 = vunpack.c.h.b16 %v3610
        %v3786 = vunpack.c.l.b16 %v3611
        %v3787 = vunpack.c.h.b16 %v3611
        %v3788 = vunpack.c.l.b16 %v3612
        %v3789 = vunpack.c.h.b16 %v3612
        %v3790 = vunpack.c.l.b16 %v3613
        %v3791 = vunpack.c.h.b16 %v3613
        %v3792 = vunpack.c.l.b16 %v3614
        %v3793 = vunpack.c.h.b16 %v3614
        %v3794 = vunpack.c.l.b16 %v3615
        %v3795 = vunpack.c.h.b16 %v3615
        %v3796 = vunpack.c.l.b16 %v3616
        %v3797 = vunpack.c.h.b16 %v3616
        %v3798 = vunpack.c.l.b16 %v3617
        %v3799 = vunpack.c.h.b16 %v3617
        %v3800 = vunpack.c.l.b16 %v3618
        %v3801 = vunpack.c.h.b16 %v3618
        %v3802 = vunpack.c.l.b16 %v3619
        %v3803 = vunpack.c.h.b16 %v3619
        %v3804 = vunpack.c.l.b16 %v3620
        %v3805 = vunpack.c.h.b16 %v3620
        %v3806 = vunpack.c.l.b16 %v3621
        %v3807 = vunpack.c.h.b16 %v3621
        %v3808 = vunpack.c.l.b16 %v3622
        %v3809 = vunpack.c.h.b16 %v3622
        %v3810 = vunpack.c.l.b16 %v3623
        %v3811 = vunpack.c.h.b16 %v3623
        %v3812 = vunpack.c.l.b16 %v3624
        %v3813 = vunpack.c.h.b16 %v3624
        %v3814 = vunpack.c.l.b16 %v3625
        %v3815 = vunpack.c.h.b16 %v3625
        %v3816 = vunpack.c.l.b16 %v3626
        %v3817 = vunpack.c.h.b16 %v3626
        %v3818 = vunpack.c.l.b16 %v3627
        %v3819 = vunpack.c.h.b16 %v3627
        %v3820 = vunpack.c.l.b16 %v3628
        %v3821 = vunpack.c.h.b16 %v3628
        %v3822 = vunpack.c.l.b16 %v3629
        %v3823 = vunpack.c.h.b16 %v3629
        %v3824 = vunpack.c.l.b16 %v3630
        %v3825 = vunpack.c.h.b16 %v3630
        %v3826 = vunpack.c.l.b16 %v3631
        %v3827 = vunpack.c.h.b16 %v3631
        %v3828 = vpack.c.b16 %v3702, %v3700
        %v3829 = vpack.c.b16 %v3703, %v3701
        %v3830 = vpack.c.b16 %v3706, %v3704
        %v3831 = vpack.c.b16 %v3707, %v3705
        %v3832 = vpack.c.b16 %v3710, %v3708
        %v3833 = vpack.c.b16 %v3711, %v3709
        %v3834 = vpack.c.b16 %v3714, %v3712
        %v3835 = vpack.c.b16 %v3715, %v3713
        %v3836 = vpack.c.b16 %v3718, %v3716
        %v3837 = vpack.c.b16 %v3719, %v3717
        %v3838 = vpack.c.b16 %v3722, %v3720
        %v3839 = vpack.c.b16 %v3723, %v3721
        %v3840 = vpack.c.b16 %v3726, %v3724
        %v3841 = vpack.c.b16 %v3727, %v3725
        %v3842 = vpack.c.b16 %v3730, %v3728
        %v3843 = vpack.c.b16 %v3731, %v3729
        %v3844 = vpack.c.b16 %v3734, %v3732
        %v3845 = vpack.c.b16 %v3735, %v3733
        %v3846 = vpack.c.b16 %v3738, %v3736
        %v3847 = vpack.c.b16 %v3739, %v3737
        %v3848 = vpack.c.b16 %v3742, %v3740
        %v3849 = vpack.c.b16 %v3743, %v3741
        %v3850 = vpack.c.b16 %v3746, %v3744
        %v3851 = vpack.c.b16 %v3747, %v3745
        %v3852 = vpack.c.b16 %v3750, %v3748
        %v3853 = vpack.c.b16 %v3751, %v3749
        %v3854 = vpack.c.b16 %v3754, %v3752
        %v3855 = vpack.c.b16 %v3755, %v3753
        %v3856 = vpack.c.b16 %v3758, %v3756
        %v3857 = vpack.c.b16 %v3759, %v3757
        %v3858 = vpack.c.b16 %v3762, %v3760
        %v3859 = vpack.c.b16 %v3763, %v3761
        %v3860 = vpack.c.b16 %v3766, %v3764
        %v3861 = vpack.c.b16 %v3767, %v3765
        %v3862 = vpack.c.b16 %v3770, %v3768
        %v3863 = vpack.c.b16 %v3771, %v3769
        %v3864 = vpack.c.b16 %v3774, %v3772
        %v3865 = vpack.c.b16 %v3775, %v3773
        %v3866 = vpack.c.b16 %v3778, %v3776
        %v3867 = vpack.c.b16 %v3779, %v3777
        %v3868 = vpack.c.b16 %v3782, %v3780
        %v3869 = vpack.c.b16 %v3783, %v3781
        %v3870 = vpack.c.b16 %v3786, %v3784
        %v3871 = vpack.c.b16 %v3787, %v3785
        %v3872 = vpack.c.b16 %v3790, %v3788
        %v3873 = vpack.c.b16 %v3791, %v3789
        %v3874 = vpack.c.b16 %v3794, %v3792
        %v3875 = vpack.c.b16 %v3795, %v3793
        %v3876 = vpack.c.b16 %v3798, %v3796
        %v3877 = vpack.c.b16 %v3799, %v3797
        %v3878 = vpack.c.b16 %v3802, %v3800
        %v3879 = vpack.c.b16 %v3803, %v3801
        %v3880 = vpack.c.b16 %v3806, %v3804
        %v3881 = vpack.c.b16 %v3807, %v3805
        %v3882 = vpack.c.b16 %v3810, %v3808
        %v3883 = vpack.c.b16 %v3811, %v3809
        %v3884 = vpack.c.b16 %v3814, %v3812
        %v3885 = vpack.c.b16 %v3815, %v3813
        %v3886 = vpack.c.b16 %v3818, %v3816
        %v3887 = vpack.c.b16 %v3819, %v3817
        %v3888 = vpack.c.b16 %v3822, %v3820
        %v3889 = vpack.c.b16 %v3823, %v3821
        %v3890 = vpack.c.b16 %v3826, %v3824
        %v3891 = vpack.c.b16 %v3827, %v3825
        %3956 = vmatprep.subr.bf16.mxu0 %v3843
        %3957 = vmatpush1.bf16.msra.mxu0 %v3842
        %3958 = vmatprep.subr.bf16.mxu0 %v3841
        %3959 = vmatpush1.bf16.msra.mxu0 %v3840
        %3960 = vmatprep.subr.bf16.mxu0 %v3839
        %3961 = vmatpush1.bf16.msra.mxu0 %v3838
        %3962 = vmatprep.subr.bf16.mxu0 %v3837
        %3963 = vmatpush1.bf16.msra.mxu0 %v3836
        %3964 = vmatprep.subr.bf16.mxu0 %v3835
        %3965 = vmatpush1.bf16.msra.mxu0 %v3834
        %3966 = vmatprep.subr.bf16.mxu0 %v3833
        %3967 = vmatpush1.bf16.msra.mxu0 %v3832
        %3968 = vmatprep.subr.bf16.mxu0 %v3831
        %3969 = vmatpush1.bf16.msra.mxu0 %v3830
        %3970 = vmatprep.subr.bf16.mxu0 %v3829
        %3971 = vmatpush1.bf16.msra.mxu0 %v3828
        %3972 = vmatprep.subr.bf16.mxu0 %v3859
        %3973 = vmatpush2.bf16.msra.mxu0 %v3858
        %3974 = vmatprep.subr.bf16.mxu0 %v3857
        %3975 = vmatpush2.bf16.msra.mxu0 %v3856
        %3976 = vmatprep.subr.bf16.mxu0 %v3855
        %3977 = vmatpush2.bf16.msra.mxu0 %v3854
        %3978 = vmatprep.subr.bf16.mxu0 %v3853
        %3979 = vmatpush2.bf16.msra.mxu0 %v3852
        %3980 = vmatprep.subr.bf16.mxu0 %v3851
        %3981 = vmatpush2.bf16.msra.mxu0 %v3850
        %3982 = vmatprep.subr.bf16.mxu0 %v3849
        %3983 = vmatpush2.bf16.msra.mxu0 %v3848
        %3984 = vmatprep.subr.bf16.mxu0 %v3847
        %3985 = vmatpush2.bf16.msra.mxu0 %v3846
        %3986 = vmatprep.subr.bf16.mxu0 %v3845
        %3987 = vmatpush2.bf16.msra.mxu0 %v3844
        %3988 = vmatprep.mubr.bf16.mxu0 %v3633
        %3989 = vmatmul.mubr.bf16.gmra.mxu0 %v3632
        %v3990 = vpop.f32.mrf.mxu0
        %v3991 = vadd.f32 0.0, %v3990
        %v3992 = vpop.f32.mrf.mxu0
        %v3993 = vadd.f32 0.0, %v3992
        %v3994 = vpop.f32.mrf.mxu0
        %v3995 = vadd.f32 0.0, %v3994
        %v3996 = vpop.f32.mrf.mxu0
        %v3997 = vadd.f32 0.0, %v3996
        %3998 = vdwg.mxu0
        %3999 = vmatprep.subr.bf16.mxu0 %v3875
        %4000 = vmatpush1.bf16.msra.mxu0 %v3874
        %4001 = vmatprep.subr.bf16.mxu0 %v3873
        %4002 = vmatpush1.bf16.msra.mxu0 %v3872
        %4003 = vmatprep.subr.bf16.mxu0 %v3871
        %4004 = vmatpush1.bf16.msra.mxu0 %v3870
        %4005 = vmatprep.subr.bf16.mxu0 %v3869
        %4006 = vmatpush1.bf16.msra.mxu0 %v3868
        %4007 = vmatprep.subr.bf16.mxu0 %v3867
        %4008 = vmatpush1.bf16.msra.mxu0 %v3866
        %4009 = vmatprep.subr.bf16.mxu0 %v3865
        %4010 = vmatpush1.bf16.msra.mxu0 %v3864
        %4011 = vmatprep.subr.bf16.mxu0 %v3863
        %4012 = vmatpush1.bf16.msra.mxu0 %v3862
        %4013 = vmatprep.subr.bf16.mxu0 %v3861
        %4014 = vmatpush1.bf16.msra.mxu0 %v3860
        %4015 = vmatprep.subr.bf16.mxu0 %v3891
        %4016 = vmatpush2.bf16.msra.mxu0 %v3890
        %4017 = vmatprep.subr.bf16.mxu0 %v3889
        %4018 = vmatpush2.bf16.msra.mxu0 %v3888
        %4019 = vmatprep.subr.bf16.mxu0 %v3887
        %4020 = vmatpush2.bf16.msra.mxu0 %v3886
        %4021 = vmatprep.subr.bf16.mxu0 %v3885
        %4022 = vmatpush2.bf16.msra.mxu0 %v3884
        %4023 = vmatprep.subr.bf16.mxu0 %v3883
        %4024 = vmatpush2.bf16.msra.mxu0 %v3882
        %4025 = vmatprep.subr.bf16.mxu0 %v3881
        %4026 = vmatpush2.bf16.msra.mxu0 %v3880
        %4027 = vmatprep.subr.bf16.mxu0 %v3879
        %4028 = vmatpush2.bf16.msra.mxu0 %v3878
        %4029 = vmatprep.subr.bf16.mxu0 %v3877
        %4030 = vmatpush2.bf16.msra.mxu0 %v3876
        %4031 = vmatprep.mubr.bf16.mxu0 %v3635
        %4032 = vmatmul.mubr.bf16.gmra.mxu0 %v3634
        %v4033 = vpop.f32.mrf.mxu0
        %v4034 = vadd.f32 %v3991, %v4033
        %v4035 = vpop.f32.mrf.mxu0
        %v4036 = vadd.f32 %v3993, %v4035
        %v4037 = vpop.f32.mrf.mxu0
        %v4038 = vadd.f32 %v3995, %v4037
        %v4039 = vpop.f32.mrf.mxu0
        %v4040 = vadd.f32 %v3997, %v4039
        %4041 = vdwg.mxu0
        %v4042 = vadd.f32 %v1154, %v4034
        %v4043 = vadd.f32 %v1155, %v4036
        %v4044 = vadd.f32 %v1156, %v4038
        %v4045 = vadd.f32 %v1157, %v4040
        %v4046 = vld [vmem:[%s749] sm:$0x3]
        %v4048 = vlaneseq
        %v4049 = vshrl.u32 %v4048, 7
        %v4050 = vsub.s32 0, %v4049
        %v4051 = vrot.slane %v4046, %v4050
        %v4052 = vlaneseq
        %v4053 = vshrl.u32 %v4052, 7
        %v4054 = vsub.s32 1, %v4053
        %v4055 = vrot.slane %v4046, %v4054
        %v4058 = vadd.f32 %v4042, %v4051
        %v4059 = vadd.f32 %v4043, %v4055
        %v4060 = vadd.f32 %v4044, %v4051
        %v4061 = vadd.f32 %v4045, %v4055
        %v4062 = vld [vmem:[%s803] sm:$0xf]
        %v4063 = vadd.f32 %v4058, %v4059
        %4064 = vadd.xlane.f32.xlu0 %v4063
        %v4065 = vpop.xlane.xlu0 %4064
        %v4066 = vadd.f32 %v4060, %v4061
        %4067 = vadd.xlane.f32.xlu0 %v4066
        %v4068 = vpop.xlane.xlu0 %4067
        %v4069 = vmul.f32 %v4065, %v1165
        %v4070 = vmul.f32 %v4068, %v1165
        %v4071 = vmul.f32 %v4058, %v4058
        %v4072 = vmul.f32 %v4059, %v4059
        %v4073 = vmul.f32 %v4060, %v4060
        %v4074 = vmul.f32 %v4061, %v4061
        %v4075 = vadd.f32 %v4071, %v4072
        %4076 = vadd.xlane.f32.xlu0 %v4075
        %v4077 = vpop.xlane.xlu0 %4076
        %v4078 = vadd.f32 %v4073, %v4074
        %4079 = vadd.xlane.f32.xlu0 %v4078
        %v4080 = vpop.xlane.xlu0 %4079
        %v4081 = vmul.f32 %v4077, %v1165
        %v4082 = vmul.f32 %v4080, %v1165
        %v4083 = vmul.f32 %v4069, %v4069
        %v4084 = vmul.f32 %v4070, %v4070
        %v4085 = vsub.f32 %v4081, %v4083
        %v4086 = vsub.f32 %v4082, %v4084
        %v4087 = vsub.f32 %v4058, %v4069
        %v4088 = vsub.f32 %v4059, %v4069
        %v4089 = vsub.f32 %v4060, %v4070
        %v4090 = vsub.f32 %v4061, %v4070
        %v4091 = vadd.f32 %v4085, 1e-06
        %v4092 = vadd.f32 %v4086, 1e-06
        %v4093 = vrsqrt.pop %v4091
        %v4094 = vrsqrt.pop %v4092
        %v4095 = vmul.f32 %v4087, %v4093
        %v4096 = vmul.f32 %v4088, %v4093
        %v4097 = vmul.f32 %v4089, %v4094
        %v4098 = vmul.f32 %v4090, %v4094
        %v4100 = vlaneseq
        %v4101 = vshrl.u32 %v4100, 7
        %v4102 = vsub.s32 0, %v4101
        %v4103 = vrot.slane %v4062, %v4102
        %v4104 = vlaneseq
        %v4105 = vshrl.u32 %v4104, 7
        %v4106 = vsub.s32 2, %v4105
        %v4107 = vrot.slane %v4062, %v4106
        %v4110 = vlaneseq
        %v4111 = vshrl.u32 %v4110, 7
        %v4112 = vsub.s32 0, %v4111
        %v4113 = vrot.slane %v4103, %v4112
        %v4114 = vlaneseq
        %v4115 = vshrl.u32 %v4114, 7
        %v4116 = vsub.s32 0, %v4115
        %v4117 = vrot.slane %v4107, %v4116
        %v4118 = vmul.f32 %v4095, %v4113
        %v4119 = vmul.f32 %v4096, %v4117
        %v4120 = vmul.f32 %v4097, %v4113
        %v4121 = vmul.f32 %v4098, %v4117
        %v4122 = vlaneseq
        %v4123 = vshrl.u32 %v4122, 7
        %v4124 = vsub.s32 1, %v4123
        %v4125 = vrot.slane %v4062, %v4124
        %v4126 = vlaneseq
        %v4127 = vshrl.u32 %v4126, 7
        %v4128 = vsub.s32 3, %v4127
        %v4129 = vrot.slane %v4062, %v4128
        %v4132 = vlaneseq
        %v4133 = vshrl.u32 %v4132, 7
        %v4134 = vsub.s32 1, %v4133
        %v4135 = vrot.slane %v4125, %v4134
        %v4136 = vlaneseq
        %v4137 = vshrl.u32 %v4136, 7
        %v4138 = vsub.s32 1, %v4137
        %v4139 = vrot.slane %v4129, %v4138
        %v4140 = vadd.f32 %v4118, %v4135
        %v4141 = vadd.f32 %v4119, %v4139
        %v4142 = vadd.f32 %v4120, %v4135
        %v4143 = vadd.f32 %v4121, %v4139
        %v4144 = vld [vmem:[%s758] sm:$0xff]
        %v4145 = vld [vmem:[%s758 + $0x8] sm:$0xff]
        %v4146 = vld [vmem:[%s758 + $0x10] sm:$0xff]
        %v4147 = vld [vmem:[%s758 + $0x18] sm:$0xff]
        %v4148 = vld [vmem:[%s758 + $0x20] sm:$0xff]
        %v4149 = vld [vmem:[%s758 + $0x28] sm:$0xff]
        %v4150 = vld [vmem:[%s758 + $0x30] sm:$0xff]
        %v4151 = vld [vmem:[%s758 + $0x38] sm:$0xff]
        %v4152 = vld [vmem:[%s758 + $0x40] sm:$0xff]
        %v4153 = vld [vmem:[%s758 + $0x48] sm:$0xff]
        %v4154 = vld [vmem:[%s758 + $0x50] sm:$0xff]
        %v4155 = vld [vmem:[%s758 + $0x58] sm:$0xff]
        %v4156 = vld [vmem:[%s758 + $0x60] sm:$0xff]
        %v4157 = vld [vmem:[%s758 + $0x68] sm:$0xff]
        %v4158 = vld [vmem:[%s758 + $0x70] sm:$0xff]
        %v4159 = vld [vmem:[%s758 + $0x78] sm:$0xff]
        %v4160 = vld [vmem:[%s758 + $0x80] sm:$0xff]
        %v4161 = vld [vmem:[%s758 + $0x88] sm:$0xff]
        %v4162 = vld [vmem:[%s758 + $0x90] sm:$0xff]
        %v4163 = vld [vmem:[%s758 + $0x98] sm:$0xff]
        %v4164 = vld [vmem:[%s758 + $0xa0] sm:$0xff]
        %v4165 = vld [vmem:[%s758 + $0xa8] sm:$0xff]
        %v4166 = vld [vmem:[%s758 + $0xb0] sm:$0xff]
        %v4167 = vld [vmem:[%s758 + $0xb8] sm:$0xff]
        %v4168 = vld [vmem:[%s758 + $0xc0] sm:$0xff]
        %v4169 = vld [vmem:[%s758 + $0xc8] sm:$0xff]
        %v4170 = vld [vmem:[%s758 + $0xd0] sm:$0xff]
        %v4171 = vld [vmem:[%s758 + $0xd8] sm:$0xff]
        %v4172 = vld [vmem:[%s758 + $0xe0] sm:$0xff]
        %v4173 = vld [vmem:[%s758 + $0xe8] sm:$0xff]
        %v4174 = vld [vmem:[%s758 + $0xf0] sm:$0xff]
        %v4175 = vld [vmem:[%s758 + $0xf8] sm:$0xff]
        %v4176 = vld [vmem:[%s758 + $0x100] sm:$0xff]
        %v4177 = vld [vmem:[%s758 + $0x108] sm:$0xff]
        %v4178 = vld [vmem:[%s758 + $0x110] sm:$0xff]
        %v4179 = vld [vmem:[%s758 + $0x118] sm:$0xff]
        %v4180 = vld [vmem:[%s758 + $0x120] sm:$0xff]
        %v4181 = vld [vmem:[%s758 + $0x128] sm:$0xff]
        %v4182 = vld [vmem:[%s758 + $0x130] sm:$0xff]
        %v4183 = vld [vmem:[%s758 + $0x138] sm:$0xff]
        %v4184 = vld [vmem:[%s758 + $0x140] sm:$0xff]
        %v4185 = vld [vmem:[%s758 + $0x148] sm:$0xff]
        %v4186 = vld [vmem:[%s758 + $0x150] sm:$0xff]
        %v4187 = vld [vmem:[%s758 + $0x158] sm:$0xff]
        %v4188 = vld [vmem:[%s758 + $0x160] sm:$0xff]
        %v4189 = vld [vmem:[%s758 + $0x168] sm:$0xff]
        %v4190 = vld [vmem:[%s758 + $0x170] sm:$0xff]
        %v4191 = vld [vmem:[%s758 + $0x178] sm:$0xff]
        %v4192 = vld [vmem:[%s758 + $0x180] sm:$0xff]
        %v4193 = vld [vmem:[%s758 + $0x188] sm:$0xff]
        %v4194 = vld [vmem:[%s758 + $0x190] sm:$0xff]
        %v4195 = vld [vmem:[%s758 + $0x198] sm:$0xff]
        %v4196 = vld [vmem:[%s758 + $0x1a0] sm:$0xff]
        %v4197 = vld [vmem:[%s758 + $0x1a8] sm:$0xff]
        %v4198 = vld [vmem:[%s758 + $0x1b0] sm:$0xff]
        %v4199 = vld [vmem:[%s758 + $0x1b8] sm:$0xff]
        %v4200 = vld [vmem:[%s758 + $0x1c0] sm:$0xff]
        %v4201 = vld [vmem:[%s758 + $0x1c8] sm:$0xff]
        %v4202 = vld [vmem:[%s758 + $0x1d0] sm:$0xff]
        %v4203 = vld [vmem:[%s758 + $0x1d8] sm:$0xff]
        %v4204 = vld [vmem:[%s758 + $0x1e0] sm:$0xff]
        %v4205 = vld [vmem:[%s758 + $0x1e8] sm:$0xff]
        %v4206 = vld [vmem:[%s758 + $0x1f0] sm:$0xff]
        %v4207 = vld [vmem:[%s758 + $0x1f8] sm:$0xff]
        %v4208 = vld [vmem:[%s758 + $0x200] sm:$0xff]
        %v4209 = vld [vmem:[%s758 + $0x208] sm:$0xff]
        %v4210 = vld [vmem:[%s758 + $0x210] sm:$0xff]
        %v4211 = vld [vmem:[%s758 + $0x218] sm:$0xff]
        %v4212 = vld [vmem:[%s758 + $0x220] sm:$0xff]
        %v4213 = vld [vmem:[%s758 + $0x228] sm:$0xff]
        %v4214 = vld [vmem:[%s758 + $0x230] sm:$0xff]
        %v4215 = vld [vmem:[%s758 + $0x238] sm:$0xff]
        %v4216 = vld [vmem:[%s758 + $0x240] sm:$0xff]
        %v4217 = vld [vmem:[%s758 + $0x248] sm:$0xff]
        %v4218 = vld [vmem:[%s758 + $0x250] sm:$0xff]
        %v4219 = vld [vmem:[%s758 + $0x258] sm:$0xff]
        %v4220 = vld [vmem:[%s758 + $0x260] sm:$0xff]
        %v4221 = vld [vmem:[%s758 + $0x268] sm:$0xff]
        %v4222 = vld [vmem:[%s758 + $0x270] sm:$0xff]
        %v4223 = vld [vmem:[%s758 + $0x278] sm:$0xff]
        %v4224 = vld [vmem:[%s758 + $0x280] sm:$0xff]
        %v4225 = vld [vmem:[%s758 + $0x288] sm:$0xff]
        %v4226 = vld [vmem:[%s758 + $0x290] sm:$0xff]
        %v4227 = vld [vmem:[%s758 + $0x298] sm:$0xff]
        %v4228 = vld [vmem:[%s758 + $0x2a0] sm:$0xff]
        %v4229 = vld [vmem:[%s758 + $0x2a8] sm:$0xff]
        %v4230 = vld [vmem:[%s758 + $0x2b0] sm:$0xff]
        %v4231 = vld [vmem:[%s758 + $0x2b8] sm:$0xff]
        %v4232 = vld [vmem:[%s758 + $0x2c0] sm:$0xff]
        %v4233 = vld [vmem:[%s758 + $0x2c8] sm:$0xff]
        %v4234 = vld [vmem:[%s758 + $0x2d0] sm:$0xff]
        %v4235 = vld [vmem:[%s758 + $0x2d8] sm:$0xff]
        %v4236 = vld [vmem:[%s758 + $0x2e0] sm:$0xff]
        %v4237 = vld [vmem:[%s758 + $0x2e8] sm:$0xff]
        %v4238 = vld [vmem:[%s758 + $0x2f0] sm:$0xff]
        %v4239 = vld [vmem:[%s758 + $0x2f8] sm:$0xff]
        %v4240 = vld [vmem:[%s758 + $0x300] sm:$0xff]
        %v4241 = vld [vmem:[%s758 + $0x308] sm:$0xff]
        %v4242 = vld [vmem:[%s758 + $0x310] sm:$0xff]
        %v4243 = vld [vmem:[%s758 + $0x318] sm:$0xff]
        %v4244 = vld [vmem:[%s758 + $0x320] sm:$0xff]
        %v4245 = vld [vmem:[%s758 + $0x328] sm:$0xff]
        %v4246 = vld [vmem:[%s758 + $0x330] sm:$0xff]
        %v4247 = vld [vmem:[%s758 + $0x338] sm:$0xff]
        %v4248 = vld [vmem:[%s758 + $0x340] sm:$0xff]
        %v4249 = vld [vmem:[%s758 + $0x348] sm:$0xff]
        %v4250 = vld [vmem:[%s758 + $0x350] sm:$0xff]
        %v4251 = vld [vmem:[%s758 + $0x358] sm:$0xff]
        %v4252 = vld [vmem:[%s758 + $0x360] sm:$0xff]
        %v4253 = vld [vmem:[%s758 + $0x368] sm:$0xff]
        %v4254 = vld [vmem:[%s758 + $0x370] sm:$0xff]
        %v4255 = vld [vmem:[%s758 + $0x378] sm:$0xff]
        %v4256 = vld [vmem:[%s758 + $0x380] sm:$0xff]
        %v4257 = vld [vmem:[%s758 + $0x388] sm:$0xff]
        %v4258 = vld [vmem:[%s758 + $0x390] sm:$0xff]
        %v4259 = vld [vmem:[%s758 + $0x398] sm:$0xff]
        %v4260 = vld [vmem:[%s758 + $0x3a0] sm:$0xff]
        %v4261 = vld [vmem:[%s758 + $0x3a8] sm:$0xff]
        %v4262 = vld [vmem:[%s758 + $0x3b0] sm:$0xff]
        %v4263 = vld [vmem:[%s758 + $0x3b8] sm:$0xff]
        %v4264 = vld [vmem:[%s758 + $0x3c0] sm:$0xff]
        %v4265 = vld [vmem:[%s758 + $0x3c8] sm:$0xff]
        %v4266 = vld [vmem:[%s758 + $0x3d0] sm:$0xff]
        %v4267 = vld [vmem:[%s758 + $0x3d8] sm:$0xff]
        %v4268 = vld [vmem:[%s758 + $0x3e0] sm:$0xff]
        %v4269 = vld [vmem:[%s758 + $0x3e8] sm:$0xff]
        %v4270 = vld [vmem:[%s758 + $0x3f0] sm:$0xff]
        %v4271 = vld [vmem:[%s758 + $0x3f8] sm:$0xff]
        %v4272 = vpack.c.bf16 %v4142, %v4140
        %v4273 = vpack.c.bf16 %v4143, %v4141
        %v4274 = vld [vmem:[%s767] sm:$0xff]
        %v4276 = vlaneseq
        %v4277 = vshrl.u32 %v4276, 7
        %v4278 = vsub.s32 0, %v4277
        %v4279 = vrot.slane %v4274, %v4278
        %v4280 = vlaneseq
        %v4281 = vshrl.u32 %v4280, 7
        %v4282 = vsub.s32 1, %v4281
        %v4283 = vrot.slane %v4274, %v4282
        %v4284 = vlaneseq
        %v4285 = vshrl.u32 %v4284, 7
        %v4286 = vsub.s32 2, %v4285
        %v4287 = vrot.slane %v4274, %v4286
        %v4288 = vlaneseq
        %v4289 = vshrl.u32 %v4288, 7
        %v4290 = vsub.s32 3, %v4289
        %v4291 = vrot.slane %v4274, %v4290
        %v4292 = vlaneseq
        %v4293 = vshrl.u32 %v4292, 7
        %v4294 = vsub.s32 4, %v4293
        %v4295 = vrot.slane %v4274, %v4294
        %v4296 = vlaneseq
        %v4297 = vshrl.u32 %v4296, 7
        %v4298 = vsub.s32 5, %v4297
        %v4299 = vrot.slane %v4274, %v4298
        %v4300 = vlaneseq
        %v4301 = vshrl.u32 %v4300, 7
        %v4302 = vsub.s32 6, %v4301
        %v4303 = vrot.slane %v4274, %v4302
        %v4304 = vlaneseq
        %v4305 = vshrl.u32 %v4304, 7
        %v4306 = vsub.s32 7, %v4305
        %v4307 = vrot.slane %v4274, %v4306
        %v4444 = vunpack.c.l.b16 %v4144
        %v4445 = vunpack.c.h.b16 %v4144
        %v4446 = vunpack.c.l.b16 %v4145
        %v4447 = vunpack.c.h.b16 %v4145
        %v4448 = vunpack.c.l.b16 %v4146
        %v4449 = vunpack.c.h.b16 %v4146
        %v4450 = vunpack.c.l.b16 %v4147
        %v4451 = vunpack.c.h.b16 %v4147
        %v4452 = vunpack.c.l.b16 %v4148
        %v4453 = vunpack.c.h.b16 %v4148
        %v4454 = vunpack.c.l.b16 %v4149
        %v4455 = vunpack.c.h.b16 %v4149
        %v4456 = vunpack.c.l.b16 %v4150
        %v4457 = vunpack.c.h.b16 %v4150
        %v4458 = vunpack.c.l.b16 %v4151
        %v4459 = vunpack.c.h.b16 %v4151
        %v4460 = vunpack.c.l.b16 %v4152
        %v4461 = vunpack.c.h.b16 %v4152
        %v4462 = vunpack.c.l.b16 %v4153
        %v4463 = vunpack.c.h.b16 %v4153
        %v4464 = vunpack.c.l.b16 %v4154
        %v4465 = vunpack.c.h.b16 %v4154
        %v4466 = vunpack.c.l.b16 %v4155
        %v4467 = vunpack.c.h.b16 %v4155
        %v4468 = vunpack.c.l.b16 %v4156
        %v4469 = vunpack.c.h.b16 %v4156
        %v4470 = vunpack.c.l.b16 %v4157
        %v4471 = vunpack.c.h.b16 %v4157
        %v4472 = vunpack.c.l.b16 %v4158
        %v4473 = vunpack.c.h.b16 %v4158
        %v4474 = vunpack.c.l.b16 %v4159
        %v4475 = vunpack.c.h.b16 %v4159
        %v4476 = vunpack.c.l.b16 %v4160
        %v4477 = vunpack.c.h.b16 %v4160
        %v4478 = vunpack.c.l.b16 %v4161
        %v4479 = vunpack.c.h.b16 %v4161
        %v4480 = vunpack.c.l.b16 %v4162
        %v4481 = vunpack.c.h.b16 %v4162
        %v4482 = vunpack.c.l.b16 %v4163
        %v4483 = vunpack.c.h.b16 %v4163
        %v4484 = vunpack.c.l.b16 %v4164
        %v4485 = vunpack.c.h.b16 %v4164
        %v4486 = vunpack.c.l.b16 %v4165
        %v4487 = vunpack.c.h.b16 %v4165
        %v4488 = vunpack.c.l.b16 %v4166
        %v4489 = vunpack.c.h.b16 %v4166
        %v4490 = vunpack.c.l.b16 %v4167
        %v4491 = vunpack.c.h.b16 %v4167
        %v4492 = vunpack.c.l.b16 %v4168
        %v4493 = vunpack.c.h.b16 %v4168
        %v4494 = vunpack.c.l.b16 %v4169
        %v4495 = vunpack.c.h.b16 %v4169
        %v4496 = vunpack.c.l.b16 %v4170
        %v4497 = vunpack.c.h.b16 %v4170
        %v4498 = vunpack.c.l.b16 %v4171
        %v4499 = vunpack.c.h.b16 %v4171
        %v4500 = vunpack.c.l.b16 %v4172
        %v4501 = vunpack.c.h.b16 %v4172
        %v4502 = vunpack.c.l.b16 %v4173
        %v4503 = vunpack.c.h.b16 %v4173
        %v4504 = vunpack.c.l.b16 %v4174
        %v4505 = vunpack.c.h.b16 %v4174
        %v4506 = vunpack.c.l.b16 %v4175
        %v4507 = vunpack.c.h.b16 %v4175
        %v4508 = vunpack.c.l.b16 %v4176
        %v4509 = vunpack.c.h.b16 %v4176
        %v4510 = vunpack.c.l.b16 %v4177
        %v4511 = vunpack.c.h.b16 %v4177
        %v4512 = vunpack.c.l.b16 %v4178
        %v4513 = vunpack.c.h.b16 %v4178
        %v4514 = vunpack.c.l.b16 %v4179
        %v4515 = vunpack.c.h.b16 %v4179
        %v4516 = vunpack.c.l.b16 %v4180
        %v4517 = vunpack.c.h.b16 %v4180
        %v4518 = vunpack.c.l.b16 %v4181
        %v4519 = vunpack.c.h.b16 %v4181
        %v4520 = vunpack.c.l.b16 %v4182
        %v4521 = vunpack.c.h.b16 %v4182
        %v4522 = vunpack.c.l.b16 %v4183
        %v4523 = vunpack.c.h.b16 %v4183
        %v4524 = vunpack.c.l.b16 %v4184
        %v4525 = vunpack.c.h.b16 %v4184
        %v4526 = vunpack.c.l.b16 %v4185
        %v4527 = vunpack.c.h.b16 %v4185
        %v4528 = vunpack.c.l.b16 %v4186
        %v4529 = vunpack.c.h.b16 %v4186
        %v4530 = vunpack.c.l.b16 %v4187
        %v4531 = vunpack.c.h.b16 %v4187
        %v4532 = vunpack.c.l.b16 %v4188
        %v4533 = vunpack.c.h.b16 %v4188
        %v4534 = vunpack.c.l.b16 %v4189
        %v4535 = vunpack.c.h.b16 %v4189
        %v4536 = vunpack.c.l.b16 %v4190
        %v4537 = vunpack.c.h.b16 %v4190
        %v4538 = vunpack.c.l.b16 %v4191
        %v4539 = vunpack.c.h.b16 %v4191
        %v4540 = vunpack.c.l.b16 %v4192
        %v4541 = vunpack.c.h.b16 %v4192
        %v4542 = vunpack.c.l.b16 %v4193
        %v4543 = vunpack.c.h.b16 %v4193
        %v4544 = vunpack.c.l.b16 %v4194
        %v4545 = vunpack.c.h.b16 %v4194
        %v4546 = vunpack.c.l.b16 %v4195
        %v4547 = vunpack.c.h.b16 %v4195
        %v4548 = vunpack.c.l.b16 %v4196
        %v4549 = vunpack.c.h.b16 %v4196
        %v4550 = vunpack.c.l.b16 %v4197
        %v4551 = vunpack.c.h.b16 %v4197
        %v4552 = vunpack.c.l.b16 %v4198
        %v4553 = vunpack.c.h.b16 %v4198
        %v4554 = vunpack.c.l.b16 %v4199
        %v4555 = vunpack.c.h.b16 %v4199
        %v4556 = vunpack.c.l.b16 %v4200
        %v4557 = vunpack.c.h.b16 %v4200
        %v4558 = vunpack.c.l.b16 %v4201
        %v4559 = vunpack.c.h.b16 %v4201
        %v4560 = vunpack.c.l.b16 %v4202
        %v4561 = vunpack.c.h.b16 %v4202
        %v4562 = vunpack.c.l.b16 %v4203
        %v4563 = vunpack.c.h.b16 %v4203
        %v4564 = vunpack.c.l.b16 %v4204
        %v4565 = vunpack.c.h.b16 %v4204
        %v4566 = vunpack.c.l.b16 %v4205
        %v4567 = vunpack.c.h.b16 %v4205
        %v4568 = vunpack.c.l.b16 %v4206
        %v4569 = vunpack.c.h.b16 %v4206
        %v4570 = vunpack.c.l.b16 %v4207
        %v4571 = vunpack.c.h.b16 %v4207
        %v4572 = vunpack.c.l.b16 %v4208
        %v4573 = vunpack.c.h.b16 %v4208
        %v4574 = vunpack.c.l.b16 %v4209
        %v4575 = vunpack.c.h.b16 %v4209
        %v4576 = vunpack.c.l.b16 %v4210
        %v4577 = vunpack.c.h.b16 %v4210
        %v4578 = vunpack.c.l.b16 %v4211
        %v4579 = vunpack.c.h.b16 %v4211
        %v4580 = vunpack.c.l.b16 %v4212
        %v4581 = vunpack.c.h.b16 %v4212
        %v4582 = vunpack.c.l.b16 %v4213
        %v4583 = vunpack.c.h.b16 %v4213
        %v4584 = vunpack.c.l.b16 %v4214
        %v4585 = vunpack.c.h.b16 %v4214
        %v4586 = vunpack.c.l.b16 %v4215
        %v4587 = vunpack.c.h.b16 %v4215
        %v4588 = vunpack.c.l.b16 %v4216
        %v4589 = vunpack.c.h.b16 %v4216
        %v4590 = vunpack.c.l.b16 %v4217
        %v4591 = vunpack.c.h.b16 %v4217
        %v4592 = vunpack.c.l.b16 %v4218
        %v4593 = vunpack.c.h.b16 %v4218
        %v4594 = vunpack.c.l.b16 %v4219
        %v4595 = vunpack.c.h.b16 %v4219
        %v4596 = vunpack.c.l.b16 %v4220
        %v4597 = vunpack.c.h.b16 %v4220
        %v4598 = vunpack.c.l.b16 %v4221
        %v4599 = vunpack.c.h.b16 %v4221
        %v4600 = vunpack.c.l.b16 %v4222
        %v4601 = vunpack.c.h.b16 %v4222
        %v4602 = vunpack.c.l.b16 %v4223
        %v4603 = vunpack.c.h.b16 %v4223
        %v4604 = vunpack.c.l.b16 %v4224
        %v4605 = vunpack.c.h.b16 %v4224
        %v4606 = vunpack.c.l.b16 %v4225
        %v4607 = vunpack.c.h.b16 %v4225
        %v4608 = vunpack.c.l.b16 %v4226
        %v4609 = vunpack.c.h.b16 %v4226
        %v4610 = vunpack.c.l.b16 %v4227
        %v4611 = vunpack.c.h.b16 %v4227
        %v4612 = vunpack.c.l.b16 %v4228
        %v4613 = vunpack.c.h.b16 %v4228
        %v4614 = vunpack.c.l.b16 %v4229
        %v4615 = vunpack.c.h.b16 %v4229
        %v4616 = vunpack.c.l.b16 %v4230
        %v4617 = vunpack.c.h.b16 %v4230
        %v4618 = vunpack.c.l.b16 %v4231
        %v4619 = vunpack.c.h.b16 %v4231
        %v4620 = vunpack.c.l.b16 %v4232
        %v4621 = vunpack.c.h.b16 %v4232
        %v4622 = vunpack.c.l.b16 %v4233
        %v4623 = vunpack.c.h.b16 %v4233
        %v4624 = vunpack.c.l.b16 %v4234
        %v4625 = vunpack.c.h.b16 %v4234
        %v4626 = vunpack.c.l.b16 %v4235
        %v4627 = vunpack.c.h.b16 %v4235
        %v4628 = vunpack.c.l.b16 %v4236
        %v4629 = vunpack.c.h.b16 %v4236
        %v4630 = vunpack.c.l.b16 %v4237
        %v4631 = vunpack.c.h.b16 %v4237
        %v4632 = vunpack.c.l.b16 %v4238
        %v4633 = vunpack.c.h.b16 %v4238
        %v4634 = vunpack.c.l.b16 %v4239
        %v4635 = vunpack.c.h.b16 %v4239
        %v4636 = vunpack.c.l.b16 %v4240
        %v4637 = vunpack.c.h.b16 %v4240
        %v4638 = vunpack.c.l.b16 %v4241
        %v4639 = vunpack.c.h.b16 %v4241
        %v4640 = vunpack.c.l.b16 %v4242
        %v4641 = vunpack.c.h.b16 %v4242
        %v4642 = vunpack.c.l.b16 %v4243
        %v4643 = vunpack.c.h.b16 %v4243
        %v4644 = vunpack.c.l.b16 %v4244
        %v4645 = vunpack.c.h.b16 %v4244
        %v4646 = vunpack.c.l.b16 %v4245
        %v4647 = vunpack.c.h.b16 %v4245
        %v4648 = vunpack.c.l.b16 %v4246
        %v4649 = vunpack.c.h.b16 %v4246
        %v4650 = vunpack.c.l.b16 %v4247
        %v4651 = vunpack.c.h.b16 %v4247
        %v4652 = vunpack.c.l.b16 %v4248
        %v4653 = vunpack.c.h.b16 %v4248
        %v4654 = vunpack.c.l.b16 %v4249
        %v4655 = vunpack.c.h.b16 %v4249
        %v4656 = vunpack.c.l.b16 %v4250
        %v4657 = vunpack.c.h.b16 %v4250
        %v4658 = vunpack.c.l.b16 %v4251
        %v4659 = vunpack.c.h.b16 %v4251
        %v4660 = vunpack.c.l.b16 %v4252
        %v4661 = vunpack.c.h.b16 %v4252
        %v4662 = vunpack.c.l.b16 %v4253
        %v4663 = vunpack.c.h.b16 %v4253
        %v4664 = vunpack.c.l.b16 %v4254
        %v4665 = vunpack.c.h.b16 %v4254
        %v4666 = vunpack.c.l.b16 %v4255
        %v4667 = vunpack.c.h.b16 %v4255
        %v4668 = vunpack.c.l.b16 %v4256
        %v4669 = vunpack.c.h.b16 %v4256
        %v4670 = vunpack.c.l.b16 %v4257
        %v4671 = vunpack.c.h.b16 %v4257
        %v4672 = vunpack.c.l.b16 %v4258
        %v4673 = vunpack.c.h.b16 %v4258
        %v4674 = vunpack.c.l.b16 %v4259
        %v4675 = vunpack.c.h.b16 %v4259
        %v4676 = vunpack.c.l.b16 %v4260
        %v4677 = vunpack.c.h.b16 %v4260
        %v4678 = vunpack.c.l.b16 %v4261
        %v4679 = vunpack.c.h.b16 %v4261
        %v4680 = vunpack.c.l.b16 %v4262
        %v4681 = vunpack.c.h.b16 %v4262
        %v4682 = vunpack.c.l.b16 %v4263
        %v4683 = vunpack.c.h.b16 %v4263
        %v4684 = vunpack.c.l.b16 %v4264
        %v4685 = vunpack.c.h.b16 %v4264
        %v4686 = vunpack.c.l.b16 %v4265
        %v4687 = vunpack.c.h.b16 %v4265
        %v4688 = vunpack.c.l.b16 %v4266
        %v4689 = vunpack.c.h.b16 %v4266
        %v4690 = vunpack.c.l.b16 %v4267
        %v4691 = vunpack.c.h.b16 %v4267
        %v4692 = vunpack.c.l.b16 %v4268
        %v4693 = vunpack.c.h.b16 %v4268
        %v4694 = vunpack.c.l.b16 %v4269
        %v4695 = vunpack.c.h.b16 %v4269
        %v4696 = vunpack.c.l.b16 %v4270
        %v4697 = vunpack.c.h.b16 %v4270
        %v4698 = vunpack.c.l.b16 %v4271
        %v4699 = vunpack.c.h.b16 %v4271
        %v4700 = vpack.c.b16 %v4452, %v4444
        %v4701 = vpack.c.b16 %v4453, %v4445
        %v4702 = vpack.c.b16 %v4454, %v4446
        %v4703 = vpack.c.b16 %v4455, %v4447
        %v4704 = vpack.c.b16 %v4456, %v4448
        %v4705 = vpack.c.b16 %v4457, %v4449
        %v4706 = vpack.c.b16 %v4458, %v4450
        %v4707 = vpack.c.b16 %v4459, %v4451
        %v4708 = vpack.c.b16 %v4468, %v4460
        %v4709 = vpack.c.b16 %v4469, %v4461
        %v4710 = vpack.c.b16 %v4470, %v4462
        %v4711 = vpack.c.b16 %v4471, %v4463
        %v4712 = vpack.c.b16 %v4472, %v4464
        %v4713 = vpack.c.b16 %v4473, %v4465
        %v4714 = vpack.c.b16 %v4474, %v4466
        %v4715 = vpack.c.b16 %v4475, %v4467
        %v4716 = vpack.c.b16 %v4484, %v4476
        %v4717 = vpack.c.b16 %v4485, %v4477
        %v4718 = vpack.c.b16 %v4486, %v4478
        %v4719 = vpack.c.b16 %v4487, %v4479
        %v4720 = vpack.c.b16 %v4488, %v4480
        %v4721 = vpack.c.b16 %v4489, %v4481
        %v4722 = vpack.c.b16 %v4490, %v4482
        %v4723 = vpack.c.b16 %v4491, %v4483
        %v4724 = vpack.c.b16 %v4500, %v4492
        %v4725 = vpack.c.b16 %v4501, %v4493
        %v4726 = vpack.c.b16 %v4502, %v4494
        %v4727 = vpack.c.b16 %v4503, %v4495
        %v4728 = vpack.c.b16 %v4504, %v4496
        %v4729 = vpack.c.b16 %v4505, %v4497
        %v4730 = vpack.c.b16 %v4506, %v4498
        %v4731 = vpack.c.b16 %v4507, %v4499
        %v4732 = vpack.c.b16 %v4516, %v4508
        %v4733 = vpack.c.b16 %v4517, %v4509
        %v4734 = vpack.c.b16 %v4518, %v4510
        %v4735 = vpack.c.b16 %v4519, %v4511
        %v4736 = vpack.c.b16 %v4520, %v4512
        %v4737 = vpack.c.b16 %v4521, %v4513
        %v4738 = vpack.c.b16 %v4522, %v4514
        %v4739 = vpack.c.b16 %v4523, %v4515
        %v4740 = vpack.c.b16 %v4532, %v4524
        %v4741 = vpack.c.b16 %v4533, %v4525
        %v4742 = vpack.c.b16 %v4534, %v4526
        %v4743 = vpack.c.b16 %v4535, %v4527
        %v4744 = vpack.c.b16 %v4536, %v4528
        %v4745 = vpack.c.b16 %v4537, %v4529
        %v4746 = vpack.c.b16 %v4538, %v4530
        %v4747 = vpack.c.b16 %v4539, %v4531
        %v4748 = vpack.c.b16 %v4548, %v4540
        %v4749 = vpack.c.b16 %v4549, %v4541
        %v4750 = vpack.c.b16 %v4550, %v4542
        %v4751 = vpack.c.b16 %v4551, %v4543
        %v4752 = vpack.c.b16 %v4552, %v4544
        %v4753 = vpack.c.b16 %v4553, %v4545
        %v4754 = vpack.c.b16 %v4554, %v4546
        %v4755 = vpack.c.b16 %v4555, %v4547
        %v4756 = vpack.c.b16 %v4564, %v4556
        %v4757 = vpack.c.b16 %v4565, %v4557
        %v4758 = vpack.c.b16 %v4566, %v4558
        %v4759 = vpack.c.b16 %v4567, %v4559
        %v4760 = vpack.c.b16 %v4568, %v4560
        %v4761 = vpack.c.b16 %v4569, %v4561
        %v4762 = vpack.c.b16 %v4570, %v4562
        %v4763 = vpack.c.b16 %v4571, %v4563
        %v4764 = vpack.c.b16 %v4580, %v4572
        %v4765 = vpack.c.b16 %v4581, %v4573
        %v4766 = vpack.c.b16 %v4582, %v4574
        %v4767 = vpack.c.b16 %v4583, %v4575
        %v4768 = vpack.c.b16 %v4584, %v4576
        %v4769 = vpack.c.b16 %v4585, %v4577
        %v4770 = vpack.c.b16 %v4586, %v4578
        %v4771 = vpack.c.b16 %v4587, %v4579
        %v4772 = vpack.c.b16 %v4596, %v4588
        %v4773 = vpack.c.b16 %v4597, %v4589
        %v4774 = vpack.c.b16 %v4598, %v4590
        %v4775 = vpack.c.b16 %v4599, %v4591
        %v4776 = vpack.c.b16 %v4600, %v4592
        %v4777 = vpack.c.b16 %v4601, %v4593
        %v4778 = vpack.c.b16 %v4602, %v4594
        %v4779 = vpack.c.b16 %v4603, %v4595
        %v4780 = vpack.c.b16 %v4612, %v4604
        %v4781 = vpack.c.b16 %v4613, %v4605
        %v4782 = vpack.c.b16 %v4614, %v4606
        %v4783 = vpack.c.b16 %v4615, %v4607
        %v4784 = vpack.c.b16 %v4616, %v4608
        %v4785 = vpack.c.b16 %v4617, %v4609
        %v4786 = vpack.c.b16 %v4618, %v4610
        %v4787 = vpack.c.b16 %v4619, %v4611
        %v4788 = vpack.c.b16 %v4628, %v4620
        %v4789 = vpack.c.b16 %v4629, %v4621
        %v4790 = vpack.c.b16 %v4630, %v4622
        %v4791 = vpack.c.b16 %v4631, %v4623
        %v4792 = vpack.c.b16 %v4632, %v4624
        %v4793 = vpack.c.b16 %v4633, %v4625
        %v4794 = vpack.c.b16 %v4634, %v4626
        %v4795 = vpack.c.b16 %v4635, %v4627
        %v4796 = vpack.c.b16 %v4644, %v4636
        %v4797 = vpack.c.b16 %v4645, %v4637
        %v4798 = vpack.c.b16 %v4646, %v4638
        %v4799 = vpack.c.b16 %v4647, %v4639
        %v4800 = vpack.c.b16 %v4648, %v4640
        %v4801 = vpack.c.b16 %v4649, %v4641
        %v4802 = vpack.c.b16 %v4650, %v4642
        %v4803 = vpack.c.b16 %v4651, %v4643
        %v4804 = vpack.c.b16 %v4660, %v4652
        %v4805 = vpack.c.b16 %v4661, %v4653
        %v4806 = vpack.c.b16 %v4662, %v4654
        %v4807 = vpack.c.b16 %v4663, %v4655
        %v4808 = vpack.c.b16 %v4664, %v4656
        %v4809 = vpack.c.b16 %v4665, %v4657
        %v4810 = vpack.c.b16 %v4666, %v4658
        %v4811 = vpack.c.b16 %v4667, %v4659
        %v4812 = vpack.c.b16 %v4676, %v4668
        %v4813 = vpack.c.b16 %v4677, %v4669
        %v4814 = vpack.c.b16 %v4678, %v4670
        %v4815 = vpack.c.b16 %v4679, %v4671
        %v4816 = vpack.c.b16 %v4680, %v4672
        %v4817 = vpack.c.b16 %v4681, %v4673
        %v4818 = vpack.c.b16 %v4682, %v4674
        %v4819 = vpack.c.b16 %v4683, %v4675
        %v4820 = vpack.c.b16 %v4692, %v4684
        %v4821 = vpack.c.b16 %v4693, %v4685
        %v4822 = vpack.c.b16 %v4694, %v4686
        %v4823 = vpack.c.b16 %v4695, %v4687
        %v4824 = vpack.c.b16 %v4696, %v4688
        %v4825 = vpack.c.b16 %v4697, %v4689
        %v4826 = vpack.c.b16 %v4698, %v4690
        %v4827 = vpack.c.b16 %v4699, %v4691
        %4956 = vmatprep.subr.bf16.mxu0 %v4757
        %4957 = vmatpush1.bf16.msra.mxu0 %v4756
        %4958 = vmatprep.subr.bf16.mxu0 %v4749
        %4959 = vmatpush1.bf16.msra.mxu0 %v4748
        %4960 = vmatprep.subr.bf16.mxu0 %v4741
        %4961 = vmatpush1.bf16.msra.mxu0 %v4740
        %4962 = vmatprep.subr.bf16.mxu0 %v4733
        %4963 = vmatpush1.bf16.msra.mxu0 %v4732
        %4964 = vmatprep.subr.bf16.mxu0 %v4725
        %4965 = vmatpush1.bf16.msra.mxu0 %v4724
        %4966 = vmatprep.subr.bf16.mxu0 %v4717
        %4967 = vmatpush1.bf16.msra.mxu0 %v4716
        %4968 = vmatprep.subr.bf16.mxu0 %v4709
        %4969 = vmatpush1.bf16.msra.mxu0 %v4708
        %4970 = vmatprep.subr.bf16.mxu0 %v4701
        %4971 = vmatpush1.bf16.msra.mxu0 %v4700
        %4972 = vmatprep.subr.bf16.mxu0 %v4821
        %4973 = vmatpush2.bf16.msra.mxu0 %v4820
        %4974 = vmatprep.subr.bf16.mxu0 %v4813
        %4975 = vmatpush2.bf16.msra.mxu0 %v4812
        %4976 = vmatprep.subr.bf16.mxu0 %v4805
        %4977 = vmatpush2.bf16.msra.mxu0 %v4804
        %4978 = vmatprep.subr.bf16.mxu0 %v4797
        %4979 = vmatpush2.bf16.msra.mxu0 %v4796
        %4980 = vmatprep.subr.bf16.mxu0 %v4789
        %4981 = vmatpush2.bf16.msra.mxu0 %v4788
        %4982 = vmatprep.subr.bf16.mxu0 %v4781
        %4983 = vmatpush2.bf16.msra.mxu0 %v4780
        %4984 = vmatprep.subr.bf16.mxu0 %v4773
        %4985 = vmatpush2.bf16.msra.mxu0 %v4772
        %4986 = vmatprep.subr.bf16.mxu0 %v4765
        %4987 = vmatpush2.bf16.msra.mxu0 %v4764
        %4988 = vmatprep.mubr.bf16.mxu0 %v4273
        %4989 = vmatmul.mubr.bf16.gmra.mxu0 %v4272
        %v4990 = vpop.f32.mrf.mxu0
        %v4991 = vadd.f32 %v4279, %v4990
        %v4992 = vpop.f32.mrf.mxu0
        %v4993 = vadd.f32 %v4283, %v4992
        %v4994 = vpop.f32.mrf.mxu0
        %v4995 = vadd.f32 %v4279, %v4994
        %v4996 = vpop.f32.mrf.mxu0
        %v4997 = vadd.f32 %v4283, %v4996
        %4998 = vdwg.mxu0
        %4999 = vmatprep.subr.bf16.mxu0 %v4759
        %5000 = vmatpush1.bf16.msra.mxu0 %v4758
        %5001 = vmatprep.subr.bf16.mxu0 %v4751
        %5002 = vmatpush1.bf16.msra.mxu0 %v4750
        %5003 = vmatprep.subr.bf16.mxu0 %v4743
        %5004 = vmatpush1.bf16.msra.mxu0 %v4742
        %5005 = vmatprep.subr.bf16.mxu0 %v4735
        %5006 = vmatpush1.bf16.msra.mxu0 %v4734
        %5007 = vmatprep.subr.bf16.mxu0 %v4727
        %5008 = vmatpush1.bf16.msra.mxu0 %v4726
        %5009 = vmatprep.subr.bf16.mxu0 %v4719
        %5010 = vmatpush1.bf16.msra.mxu0 %v4718
        %5011 = vmatprep.subr.bf16.mxu0 %v4711
        %5012 = vmatpush1.bf16.msra.mxu0 %v4710
        %5013 = vmatprep.subr.bf16.mxu0 %v4703
        %5014 = vmatpush1.bf16.msra.mxu0 %v4702
        %5015 = vmatprep.subr.bf16.mxu0 %v4823
        %5016 = vmatpush2.bf16.msra.mxu0 %v4822
        %5017 = vmatprep.subr.bf16.mxu0 %v4815
        %5018 = vmatpush2.bf16.msra.mxu0 %v4814
        %5019 = vmatprep.subr.bf16.mxu0 %v4807
        %5020 = vmatpush2.bf16.msra.mxu0 %v4806
        %5021 = vmatprep.subr.bf16.mxu0 %v4799
        %5022 = vmatpush2.bf16.msra.mxu0 %v4798
        %5023 = vmatprep.subr.bf16.mxu0 %v4791
        %5024 = vmatpush2.bf16.msra.mxu0 %v4790
        %5025 = vmatprep.subr.bf16.mxu0 %v4783
        %5026 = vmatpush2.bf16.msra.mxu0 %v4782
        %5027 = vmatprep.subr.bf16.mxu0 %v4775
        %5028 = vmatpush2.bf16.msra.mxu0 %v4774
        %5029 = vmatprep.subr.bf16.mxu0 %v4767
        %5030 = vmatpush2.bf16.msra.mxu0 %v4766
        %5031 = vmatprep.mubr.bf16.mxu0 %v4273
        %5032 = vmatmul.mubr.bf16.gmra.mxu0 %v4272
        %v5033 = vpop.f32.mrf.mxu0
        %v5034 = vadd.f32 %v4287, %v5033
        %v5035 = vpop.f32.mrf.mxu0
        %v5036 = vadd.f32 %v4291, %v5035
        %v5037 = vpop.f32.mrf.mxu0
        %v5038 = vadd.f32 %v4287, %v5037
        %v5039 = vpop.f32.mrf.mxu0
        %v5040 = vadd.f32 %v4291, %v5039
        %5041 = vdwg.mxu0
        %5042 = vmatprep.subr.bf16.mxu0 %v4761
        %5043 = vmatpush1.bf16.msra.mxu0 %v4760
        %5044 = vmatprep.subr.bf16.mxu0 %v4753
        %5045 = vmatpush1.bf16.msra.mxu0 %v4752
        %5046 = vmatprep.subr.bf16.mxu0 %v4745
        %5047 = vmatpush1.bf16.msra.mxu0 %v4744
        %5048 = vmatprep.subr.bf16.mxu0 %v4737
        %5049 = vmatpush1.bf16.msra.mxu0 %v4736
        %5050 = vmatprep.subr.bf16.mxu0 %v4729
        %5051 = vmatpush1.bf16.msra.mxu0 %v4728
        %5052 = vmatprep.subr.bf16.mxu0 %v4721
        %5053 = vmatpush1.bf16.msra.mxu0 %v4720
        %5054 = vmatprep.subr.bf16.mxu0 %v4713
        %5055 = vmatpush1.bf16.msra.mxu0 %v4712
        %5056 = vmatprep.subr.bf16.mxu0 %v4705
        %5057 = vmatpush1.bf16.msra.mxu0 %v4704
        %5058 = vmatprep.subr.bf16.mxu0 %v4825
        %5059 = vmatpush2.bf16.msra.mxu0 %v4824
        %5060 = vmatprep.subr.bf16.mxu0 %v4817
        %5061 = vmatpush2.bf16.msra.mxu0 %v4816
        %5062 = vmatprep.subr.bf16.mxu0 %v4809
        %5063 = vmatpush2.bf16.msra.mxu0 %v4808
        %5064 = vmatprep.subr.bf16.mxu0 %v4801
        %5065 = vmatpush2.bf16.msra.mxu0 %v4800
        %5066 = vmatprep.subr.bf16.mxu0 %v4793
        %5067 = vmatpush2.bf16.msra.mxu0 %v4792
        %5068 = vmatprep.subr.bf16.mxu0 %v4785
        %5069 = vmatpush2.bf16.msra.mxu0 %v4784
        %5070 = vmatprep.subr.bf16.mxu0 %v4777
        %5071 = vmatpush2.bf16.msra.mxu0 %v4776
        %5072 = vmatprep.subr.bf16.mxu0 %v4769
        %5073 = vmatpush2.bf16.msra.mxu0 %v4768
        %5074 = vmatprep.mubr.bf16.mxu0 %v4273
        %5075 = vmatmul.mubr.bf16.gmra.mxu0 %v4272
        %v5076 = vpop.f32.mrf.mxu0
        %v5077 = vadd.f32 %v4295, %v5076
        %v5078 = vpop.f32.mrf.mxu0
        %v5079 = vadd.f32 %v4299, %v5078
        %v5080 = vpop.f32.mrf.mxu0
        %v5081 = vadd.f32 %v4295, %v5080
        %v5082 = vpop.f32.mrf.mxu0
        %v5083 = vadd.f32 %v4299, %v5082
        %5084 = vdwg.mxu0
        %5085 = vmatprep.subr.bf16.mxu0 %v4763
        %5086 = vmatpush1.bf16.msra.mxu0 %v4762
        %5087 = vmatprep.subr.bf16.mxu0 %v4755
        %5088 = vmatpush1.bf16.msra.mxu0 %v4754
        %5089 = vmatprep.subr.bf16.mxu0 %v4747
        %5090 = vmatpush1.bf16.msra.mxu0 %v4746
        %5091 = vmatprep.subr.bf16.mxu0 %v4739
        %5092 = vmatpush1.bf16.msra.mxu0 %v4738
        %5093 = vmatprep.subr.bf16.mxu0 %v4731
        %5094 = vmatpush1.bf16.msra.mxu0 %v4730
        %5095 = vmatprep.subr.bf16.mxu0 %v4723
        %5096 = vmatpush1.bf16.msra.mxu0 %v4722
        %5097 = vmatprep.subr.bf16.mxu0 %v4715
        %5098 = vmatpush1.bf16.msra.mxu0 %v4714
        %5099 = vmatprep.subr.bf16.mxu0 %v4707
        %5100 = vmatpush1.bf16.msra.mxu0 %v4706
        %5101 = vmatprep.subr.bf16.mxu0 %v4827
        %5102 = vmatpush2.bf16.msra.mxu0 %v4826
        %5103 = vmatprep.subr.bf16.mxu0 %v4819
        %5104 = vmatpush2.bf16.msra.mxu0 %v4818
        %5105 = vmatprep.subr.bf16.mxu0 %v4811
        %5106 = vmatpush2.bf16.msra.mxu0 %v4810
        %5107 = vmatprep.subr.bf16.mxu0 %v4803
        %5108 = vmatpush2.bf16.msra.mxu0 %v4802
        %5109 = vmatprep.subr.bf16.mxu0 %v4795
        %5110 = vmatpush2.bf16.msra.mxu0 %v4794
        %5111 = vmatprep.subr.bf16.mxu0 %v4787
        %5112 = vmatpush2.bf16.msra.mxu0 %v4786
        %5113 = vmatprep.subr.bf16.mxu0 %v4779
        %5114 = vmatpush2.bf16.msra.mxu0 %v4778
        %5115 = vmatprep.subr.bf16.mxu0 %v4771
        %5116 = vmatpush2.bf16.msra.mxu0 %v4770
        %5117 = vmatprep.mubr.bf16.mxu0 %v4273
        %5118 = vmatmul.mubr.bf16.gmra.mxu0 %v4272
        %v5119 = vpop.f32.mrf.mxu0
        %v5120 = vadd.f32 %v4303, %v5119
        %v5121 = vpop.f32.mrf.mxu0
        %v5122 = vadd.f32 %v4307, %v5121
        %v5123 = vpop.f32.mrf.mxu0
        %v5124 = vadd.f32 %v4303, %v5123
        %v5125 = vpop.f32.mrf.mxu0
        %v5126 = vadd.f32 %v4307, %v5125
        %5127 = vdwg.mxu0
        %v5128 = vmul.f32 %v4991, 0.5
        %v5129 = vmul.f32 %v4993, 0.5
        %v5130 = vmul.f32 %v5034, 0.5
        %v5131 = vmul.f32 %v5036, 0.5
        %v5132 = vmul.f32 %v5077, 0.5
        %v5133 = vmul.f32 %v5079, 0.5
        %v5134 = vmul.f32 %v5120, 0.5
        %v5135 = vmul.f32 %v5122, 0.5
        %v5136 = vmul.f32 %v4995, 0.5
        %v5137 = vmul.f32 %v4997, 0.5
        %v5138 = vmul.f32 %v5038, 0.5
        %v5139 = vmul.f32 %v5040, 0.5
        %v5140 = vmul.f32 %v5081, 0.5
        %v5141 = vmul.f32 %v5083, 0.5
        %v5142 = vmul.f32 %v5124, 0.5
        %v5143 = vmul.f32 %v5126, 0.5
        %v5144 = vmul.f32 %v4991, 0.70710677
        %v5145 = vmul.f32 %v4993, 0.70710677
        %v5146 = vmul.f32 %v5034, 0.70710677
        %v5147 = vmul.f32 %v5036, 0.70710677
        %v5148 = vmul.f32 %v5077, 0.70710677
        %v5149 = vmul.f32 %v5079, 0.70710677
        %v5150 = vmul.f32 %v5120, 0.70710677
        %v5151 = vmul.f32 %v5122, 0.70710677
        %v5152 = vmul.f32 %v4995, 0.70710677
        %v5153 = vmul.f32 %v4997, 0.70710677
        %v5154 = vmul.f32 %v5038, 0.70710677
        %v5155 = vmul.f32 %v5040, 0.70710677
        %v5156 = vmul.f32 %v5081, 0.70710677
        %v5157 = vmul.f32 %v5083, 0.70710677
        %v5158 = vmul.f32 %v5124, 0.70710677
        %v5159 = vmul.f32 %v5126, 0.70710677
        %v5160 = vand.u32 2147483647, %v5144
        %v5161 = vand.u32 2147483647, %v5145
        %v5162 = vand.u32 2147483647, %v5146
        %v5163 = vand.u32 2147483647, %v5147
        %v5164 = vand.u32 2147483647, %v5148
        %v5165 = vand.u32 2147483647, %v5149
        %v5166 = vand.u32 2147483647, %v5150
        %v5167 = vand.u32 2147483647, %v5151
        %v5168 = vand.u32 2147483647, %v5152
        %v5169 = vand.u32 2147483647, %v5153
        %v5170 = vand.u32 2147483647, %v5154
        %v5171 = vand.u32 2147483647, %v5155
        %v5172 = vand.u32 2147483647, %v5156
        %v5173 = vand.u32 2147483647, %v5157
        %v5174 = vand.u32 2147483647, %v5158
        %v5175 = vand.u32 2147483647, %v5159
        %v5176 = vmul.f32 %v5160, 0.3275911
        %v5177 = vmul.f32 %v5161, 0.3275911
        %v5178 = vmul.f32 %v5162, 0.3275911
        %v5179 = vmul.f32 %v5163, 0.3275911
        %v5180 = vmul.f32 %v5164, 0.3275911
        %v5181 = vmul.f32 %v5165, 0.3275911
        %v5182 = vmul.f32 %v5166, 0.3275911
        %v5183 = vmul.f32 %v5167, 0.3275911
        %v5184 = vmul.f32 %v5168, 0.3275911
        %v5185 = vmul.f32 %v5169, 0.3275911
        %v5186 = vmul.f32 %v5170, 0.3275911
        %v5187 = vmul.f32 %v5171, 0.3275911
        %v5188 = vmul.f32 %v5172, 0.3275911
        %v5189 = vmul.f32 %v5173, 0.3275911
        %v5190 = vmul.f32 %v5174, 0.3275911
        %v5191 = vmul.f32 %v5175, 0.3275911
        %v5192 = vadd.f32 %v5176, 1.0
        %v5193 = vadd.f32 %v5177, 1.0
        %v5194 = vadd.f32 %v5178, 1.0
        %v5195 = vadd.f32 %v5179, 1.0
        %v5196 = vadd.f32 %v5180, 1.0
        %v5197 = vadd.f32 %v5181, 1.0
        %v5198 = vadd.f32 %v5182, 1.0
        %v5199 = vadd.f32 %v5183, 1.0
        %v5200 = vadd.f32 %v5184, 1.0
        %v5201 = vadd.f32 %v5185, 1.0
        %v5202 = vadd.f32 %v5186, 1.0
        %v5203 = vadd.f32 %v5187, 1.0
        %v5204 = vadd.f32 %v5188, 1.0
        %v5205 = vadd.f32 %v5189, 1.0
        %v5206 = vadd.f32 %v5190, 1.0
        %v5207 = vadd.f32 %v5191, 1.0
        %v5208 = vrcp.pop %v5192
        %v5209 = vmul.f32 1.0, %v5208
        %v5210 = vrcp.pop %v5193
        %v5211 = vmul.f32 1.0, %v5210
        %v5212 = vrcp.pop %v5194
        %v5213 = vmul.f32 1.0, %v5212
        %v5214 = vrcp.pop %v5195
        %v5215 = vmul.f32 1.0, %v5214
        %v5216 = vrcp.pop %v5196
        %v5217 = vmul.f32 1.0, %v5216
        %v5218 = vrcp.pop %v5197
        %v5219 = vmul.f32 1.0, %v5218
        %v5220 = vrcp.pop %v5198
        %v5221 = vmul.f32 1.0, %v5220
        %v5222 = vrcp.pop %v5199
        %v5223 = vmul.f32 1.0, %v5222
        %v5224 = vrcp.pop %v5200
        %v5225 = vmul.f32 1.0, %v5224
        %v5226 = vrcp.pop %v5201
        %v5227 = vmul.f32 1.0, %v5226
        %v5228 = vrcp.pop %v5202
        %v5229 = vmul.f32 1.0, %v5228
        %v5230 = vrcp.pop %v5203
        %v5231 = vmul.f32 1.0, %v5230
        %v5232 = vrcp.pop %v5204
        %v5233 = vmul.f32 1.0, %v5232
        %v5234 = vrcp.pop %v5205
        %v5235 = vmul.f32 1.0, %v5234
        %v5236 = vrcp.pop %v5206
        %v5237 = vmul.f32 1.0, %v5236
        %v5238 = vrcp.pop %v5207
        %v5239 = vmul.f32 1.0, %v5238
        %v5240 = vmul.f32 %v5209, 1.0614054
        %v5241 = vmul.f32 %v5211, 1.0614054
        %v5242 = vmul.f32 %v5213, 1.0614054
        %v5243 = vmul.f32 %v5215, 1.0614054
        %v5244 = vmul.f32 %v5217, 1.0614054
        %v5245 = vmul.f32 %v5219, 1.0614054
        %v5246 = vmul.f32 %v5221, 1.0614054
        %v5247 = vmul.f32 %v5223, 1.0614054
        %v5248 = vmul.f32 %v5225, 1.0614054
        %v5249 = vmul.f32 %v5227, 1.0614054
        %v5250 = vmul.f32 %v5229, 1.0614054
        %v5251 = vmul.f32 %v5231, 1.0614054
        %v5252 = vmul.f32 %v5233, 1.0614054
        %v5253 = vmul.f32 %v5235, 1.0614054
        %v5254 = vmul.f32 %v5237, 1.0614054
        %v5255 = vmul.f32 %v5239, 1.0614054
        %v5256 = vadd.f32 %v5240, -1.4531521
        %v5257 = vadd.f32 %v5241, -1.4531521
        %v5258 = vadd.f32 %v5242, -1.4531521
        %v5259 = vadd.f32 %v5243, -1.4531521
        %v5260 = vadd.f32 %v5244, -1.4531521
        %v5261 = vadd.f32 %v5245, -1.4531521
        %v5262 = vadd.f32 %v5246, -1.4531521
        %v5263 = vadd.f32 %v5247, -1.4531521
        %v5264 = vadd.f32 %v5248, -1.4531521
        %v5265 = vadd.f32 %v5249, -1.4531521
        %v5266 = vadd.f32 %v5250, -1.4531521
        %v5267 = vadd.f32 %v5251, -1.4531521
        %v5268 = vadd.f32 %v5252, -1.4531521
        %v5269 = vadd.f32 %v5253, -1.4531521
        %v5270 = vadd.f32 %v5254, -1.4531521
        %v5271 = vadd.f32 %v5255, -1.4531521
        %v5272 = vmul.f32 %v5209, %v5256
        %v5273 = vmul.f32 %v5211, %v5257
        %v5274 = vmul.f32 %v5213, %v5258
        %v5275 = vmul.f32 %v5215, %v5259
        %v5276 = vmul.f32 %v5217, %v5260
        %v5277 = vmul.f32 %v5219, %v5261
        %v5278 = vmul.f32 %v5221, %v5262
        %v5279 = vmul.f32 %v5223, %v5263
        %v5280 = vmul.f32 %v5225, %v5264
        %v5281 = vmul.f32 %v5227, %v5265
        %v5282 = vmul.f32 %v5229, %v5266
        %v5283 = vmul.f32 %v5231, %v5267
        %v5284 = vmul.f32 %v5233, %v5268
        %v5285 = vmul.f32 %v5235, %v5269
        %v5286 = vmul.f32 %v5237, %v5270
        %v5287 = vmul.f32 %v5239, %v5271
        %v5288 = vadd.f32 %v5272, 1.4214138
        %v5289 = vadd.f32 %v5273, 1.4214138
        %v5290 = vadd.f32 %v5274, 1.4214138
        %v5291 = vadd.f32 %v5275, 1.4214138
        %v5292 = vadd.f32 %v5276, 1.4214138
        %v5293 = vadd.f32 %v5277, 1.4214138
        %v5294 = vadd.f32 %v5278, 1.4214138
        %v5295 = vadd.f32 %v5279, 1.4214138
        %v5296 = vadd.f32 %v5280, 1.4214138
        %v5297 = vadd.f32 %v5281, 1.4214138
        %v5298 = vadd.f32 %v5282, 1.4214138
        %v5299 = vadd.f32 %v5283, 1.4214138
        %v5300 = vadd.f32 %v5284, 1.4214138
        %v5301 = vadd.f32 %v5285, 1.4214138
        %v5302 = vadd.f32 %v5286, 1.4214138
        %v5303 = vadd.f32 %v5287, 1.4214138
        %v5304 = vmul.f32 %v5209, %v5288
        %v5305 = vmul.f32 %v5211, %v5289
        %v5306 = vmul.f32 %v5213, %v5290
        %v5307 = vmul.f32 %v5215, %v5291
        %v5308 = vmul.f32 %v5217, %v5292
        %v5309 = vmul.f32 %v5219, %v5293
        %v5310 = vmul.f32 %v5221, %v5294
        %v5311 = vmul.f32 %v5223, %v5295
        %v5312 = vmul.f32 %v5225, %v5296
        %v5313 = vmul.f32 %v5227, %v5297
        %v5314 = vmul.f32 %v5229, %v5298
        %v5315 = vmul.f32 %v5231, %v5299
        %v5316 = vmul.f32 %v5233, %v5300
        %v5317 = vmul.f32 %v5235, %v5301
        %v5318 = vmul.f32 %v5237, %v5302
        %v5319 = vmul.f32 %v5239, %v5303
        %v5320 = vadd.f32 %v5304, -0.28449672
        %v5321 = vadd.f32 %v5305, -0.28449672
        %v5322 = vadd.f32 %v5306, -0.28449672
        %v5323 = vadd.f32 %v5307, -0.28449672
        %v5324 = vadd.f32 %v5308, -0.28449672
        %v5325 = vadd.f32 %v5309, -0.28449672
        %v5326 = vadd.f32 %v5310, -0.28449672
        %v5327 = vadd.f32 %v5311, -0.28449672
        %v5328 = vadd.f32 %v5312, -0.28449672
        %v5329 = vadd.f32 %v5313, -0.28449672
        %v5330 = vadd.f32 %v5314, -0.28449672
        %v5331 = vadd.f32 %v5315, -0.28449672
        %v5332 = vadd.f32 %v5316, -0.28449672
        %v5333 = vadd.f32 %v5317, -0.28449672
        %v5334 = vadd.f32 %v5318, -0.28449672
        %v5335 = vadd.f32 %v5319, -0.28449672
        %v5336 = vmul.f32 %v5209, %v5320
        %v5337 = vmul.f32 %v5211, %v5321
        %v5338 = vmul.f32 %v5213, %v5322
        %v5339 = vmul.f32 %v5215, %v5323
        %v5340 = vmul.f32 %v5217, %v5324
        %v5341 = vmul.f32 %v5219, %v5325
        %v5342 = vmul.f32 %v5221, %v5326
        %v5343 = vmul.f32 %v5223, %v5327
        %v5344 = vmul.f32 %v5225, %v5328
        %v5345 = vmul.f32 %v5227, %v5329
        %v5346 = vmul.f32 %v5229, %v5330
        %v5347 = vmul.f32 %v5231, %v5331
        %v5348 = vmul.f32 %v5233, %v5332
        %v5349 = vmul.f32 %v5235, %v5333
        %v5350 = vmul.f32 %v5237, %v5334
        %v5351 = vmul.f32 %v5239, %v5335
        %v5352 = vadd.f32 %v5336, 0.2548296
        %v5353 = vadd.f32 %v5337, 0.2548296
        %v5354 = vadd.f32 %v5338, 0.2548296
        %v5355 = vadd.f32 %v5339, 0.2548296
        %v5356 = vadd.f32 %v5340, 0.2548296
        %v5357 = vadd.f32 %v5341, 0.2548296
        %v5358 = vadd.f32 %v5342, 0.2548296
        %v5359 = vadd.f32 %v5343, 0.2548296
        %v5360 = vadd.f32 %v5344, 0.2548296
        %v5361 = vadd.f32 %v5345, 0.2548296
        %v5362 = vadd.f32 %v5346, 0.2548296
        %v5363 = vadd.f32 %v5347, 0.2548296
        %v5364 = vadd.f32 %v5348, 0.2548296
        %v5365 = vadd.f32 %v5349, 0.2548296
        %v5366 = vadd.f32 %v5350, 0.2548296
        %v5367 = vadd.f32 %v5351, 0.2548296
        %v5368 = vmul.f32 %v5209, %v5352
        %v5369 = vmul.f32 %v5211, %v5353
        %v5370 = vmul.f32 %v5213, %v5354
        %v5371 = vmul.f32 %v5215, %v5355
        %v5372 = vmul.f32 %v5217, %v5356
        %v5373 = vmul.f32 %v5219, %v5357
        %v5374 = vmul.f32 %v5221, %v5358
        %v5375 = vmul.f32 %v5223, %v5359
        %v5376 = vmul.f32 %v5225, %v5360
        %v5377 = vmul.f32 %v5227, %v5361
        %v5378 = vmul.f32 %v5229, %v5362
        %v5379 = vmul.f32 %v5231, %v5363
        %v5380 = vmul.f32 %v5233, %v5364
        %v5381 = vmul.f32 %v5235, %v5365
        %v5382 = vmul.f32 %v5237, %v5366
        %v5383 = vmul.f32 %v5239, %v5367
        %v5384 = vsub.f32 0.0, %v5160
        %v5385 = vsub.f32 0.0, %v5161
        %v5386 = vsub.f32 0.0, %v5162
        %v5387 = vsub.f32 0.0, %v5163
        %v5388 = vsub.f32 0.0, %v5164
        %v5389 = vsub.f32 0.0, %v5165
        %v5390 = vsub.f32 0.0, %v5166
        %v5391 = vsub.f32 0.0, %v5167
        %v5392 = vsub.f32 0.0, %v5168
        %v5393 = vsub.f32 0.0, %v5169
        %v5394 = vsub.f32 0.0, %v5170
        %v5395 = vsub.f32 0.0, %v5171
        %v5396 = vsub.f32 0.0, %v5172
        %v5397 = vsub.f32 0.0, %v5173
        %v5398 = vsub.f32 0.0, %v5174
        %v5399 = vsub.f32 0.0, %v5175
        %v5400 = vmul.f32 %v5384, %v5160
        %v5401 = vmul.f32 %v5385, %v5161
        %v5402 = vmul.f32 %v5386, %v5162
        %v5403 = vmul.f32 %v5387, %v5163
        %v5404 = vmul.f32 %v5388, %v5164
        %v5405 = vmul.f32 %v5389, %v5165
        %v5406 = vmul.f32 %v5390, %v5166
        %v5407 = vmul.f32 %v5391, %v5167
        %v5408 = vmul.f32 %v5392, %v5168
        %v5409 = vmul.f32 %v5393, %v5169
        %v5410 = vmul.f32 %v5394, %v5170
        %v5411 = vmul.f32 %v5395, %v5171
        %v5412 = vmul.f32 %v5396, %v5172
        %v5413 = vmul.f32 %v5397, %v5173
        %v5414 = vmul.f32 %v5398, %v5174
        %v5415 = vmul.f32 %v5399, %v5175
        %v5416 = vmul.f32 %v5400, 1.442695
        %v5417 = vpow.pop %v5416
        %v5418 = vmul.f32 %v5401, 1.442695
        %v5419 = vpow.pop %v5418
        %v5420 = vmul.f32 %v5402, 1.442695
        %v5421 = vpow.pop %v5420
        %v5422 = vmul.f32 %v5403, 1.442695
        %v5423 = vpow.pop %v5422
        %v5424 = vmul.f32 %v5404, 1.442695
        %v5425 = vpow.pop %v5424
        %v5426 = vmul.f32 %v5405, 1.442695
        %v5427 = vpow.pop %v5426
        %v5428 = vmul.f32 %v5406, 1.442695
        %v5429 = vpow.pop %v5428
        %v5430 = vmul.f32 %v5407, 1.442695
        %v5431 = vpow.pop %v5430
        %v5432 = vmul.f32 %v5408, 1.442695
        %v5433 = vpow.pop %v5432
        %v5434 = vmul.f32 %v5409, 1.442695
        %v5435 = vpow.pop %v5434
        %v5436 = vmul.f32 %v5410, 1.442695
        %v5437 = vpow.pop %v5436
        %v5438 = vmul.f32 %v5411, 1.442695
        %v5439 = vpow.pop %v5438
        %v5440 = vmul.f32 %v5412, 1.442695
        %v5441 = vpow.pop %v5440
        %v5442 = vmul.f32 %v5413, 1.442695
        %v5443 = vpow.pop %v5442
        %v5444 = vmul.f32 %v5414, 1.442695
        %v5445 = vpow.pop %v5444
        %v5446 = vmul.f32 %v5415, 1.442695
        %v5447 = vpow.pop %v5446
        %v5448 = vmul.f32 %v5368, %v5417
        %v5449 = vmul.f32 %v5369, %v5419
        %v5450 = vmul.f32 %v5370, %v5421
        %v5451 = vmul.f32 %v5371, %v5423
        %v5452 = vmul.f32 %v5372, %v5425
        %v5453 = vmul.f32 %v5373, %v5427
        %v5454 = vmul.f32 %v5374, %v5429
        %v5455 = vmul.f32 %v5375, %v5431
        %v5456 = vmul.f32 %v5376, %v5433
        %v5457 = vmul.f32 %v5377, %v5435
        %v5458 = vmul.f32 %v5378, %v5437
        %v5459 = vmul.f32 %v5379, %v5439
        %v5460 = vmul.f32 %v5380, %v5441
        %v5461 = vmul.f32 %v5381, %v5443
        %v5462 = vmul.f32 %v5382, %v5445
        %v5463 = vmul.f32 %v5383, %v5447
        %v5464 = vsub.f32 1.0, %v5448
        %v5465 = vsub.f32 1.0, %v5449
        %v5466 = vsub.f32 1.0, %v5450
        %v5467 = vsub.f32 1.0, %v5451
        %v5468 = vsub.f32 1.0, %v5452
        %v5469 = vsub.f32 1.0, %v5453
        %v5470 = vsub.f32 1.0, %v5454
        %v5471 = vsub.f32 1.0, %v5455
        %v5472 = vsub.f32 1.0, %v5456
        %v5473 = vsub.f32 1.0, %v5457
        %v5474 = vsub.f32 1.0, %v5458
        %v5475 = vsub.f32 1.0, %v5459
        %v5476 = vsub.f32 1.0, %v5460
        %v5477 = vsub.f32 1.0, %v5461
        %v5478 = vsub.f32 1.0, %v5462
        %v5479 = vsub.f32 1.0, %v5463
        %vm5480 = vcmp.ge.f32.partialorder %v5144, 0.0
        %vm5481 = vcmp.ge.f32.partialorder %v5145, 0.0
        %vm5482 = vcmp.ge.f32.partialorder %v5146, 0.0
        %vm5483 = vcmp.ge.f32.partialorder %v5147, 0.0
        %vm5484 = vcmp.ge.f32.partialorder %v5148, 0.0
        %vm5485 = vcmp.ge.f32.partialorder %v5149, 0.0
        %vm5486 = vcmp.ge.f32.partialorder %v5150, 0.0
        %vm5487 = vcmp.ge.f32.partialorder %v5151, 0.0
        %vm5488 = vcmp.ge.f32.partialorder %v5152, 0.0
        %vm5489 = vcmp.ge.f32.partialorder %v5153, 0.0
        %vm5490 = vcmp.ge.f32.partialorder %v5154, 0.0
        %vm5491 = vcmp.ge.f32.partialorder %v5155, 0.0
        %vm5492 = vcmp.ge.f32.partialorder %v5156, 0.0
        %vm5493 = vcmp.ge.f32.partialorder %v5157, 0.0
        %vm5494 = vcmp.ge.f32.partialorder %v5158, 0.0
        %vm5495 = vcmp.ge.f32.partialorder %v5159, 0.0
        %v5496 = vsub.f32 0.0, %v5464
        %v5497 = vsub.f32 0.0, %v5465
        %v5498 = vsub.f32 0.0, %v5466
        %v5499 = vsub.f32 0.0, %v5467
        %v5500 = vsub.f32 0.0, %v5468
        %v5501 = vsub.f32 0.0, %v5469
        %v5502 = vsub.f32 0.0, %v5470
        %v5503 = vsub.f32 0.0, %v5471
        %v5504 = vsub.f32 0.0, %v5472
        %v5505 = vsub.f32 0.0, %v5473
        %v5506 = vsub.f32 0.0, %v5474
        %v5507 = vsub.f32 0.0, %v5475
        %v5508 = vsub.f32 0.0, %v5476
        %v5509 = vsub.f32 0.0, %v5477
        %v5510 = vsub.f32 0.0, %v5478
        %v5511 = vsub.f32 0.0, %v5479
        %v5512 = vsel %vm5480, %v5464, %v5496
        %v5513 = vsel %vm5481, %v5465, %v5497
        %v5514 = vsel %vm5482, %v5466, %v5498
        %v5515 = vsel %vm5483, %v5467, %v5499
        %v5516 = vsel %vm5484, %v5468, %v5500
        %v5517 = vsel %vm5485, %v5469, %v5501
        %v5518 = vsel %vm5486, %v5470, %v5502
        %v5519 = vsel %vm5487, %v5471, %v5503
        %v5520 = vsel %vm5488, %v5472, %v5504
        %v5521 = vsel %vm5489, %v5473, %v5505
        %v5522 = vsel %vm5490, %v5474, %v5506
        %v5523 = vsel %vm5491, %v5475, %v5507
        %v5524 = vsel %vm5492, %v5476, %v5508
        %v5525 = vsel %vm5493, %v5477, %v5509
        %v5526 = vsel %vm5494, %v5478, %v5510
        %v5527 = vsel %vm5495, %v5479, %v5511
        %v5528 = vadd.f32 %v5512, 1.0
        %v5529 = vadd.f32 %v5513, 1.0
        %v5530 = vadd.f32 %v5514, 1.0
        %v5531 = vadd.f32 %v5515, 1.0
        %v5532 = vadd.f32 %v5516, 1.0
        %v5533 = vadd.f32 %v5517, 1.0
        %v5534 = vadd.f32 %v5518, 1.0
        %v5535 = vadd.f32 %v5519, 1.0
        %v5536 = vadd.f32 %v5520, 1.0
        %v5537 = vadd.f32 %v5521, 1.0
        %v5538 = vadd.f32 %v5522, 1.0
        %v5539 = vadd.f32 %v5523, 1.0
        %v5540 = vadd.f32 %v5524, 1.0
        %v5541 = vadd.f32 %v5525, 1.0
        %v5542 = vadd.f32 %v5526, 1.0
        %v5543 = vadd.f32 %v5527, 1.0
        %v5544 = vmul.f32 %v5128, %v5528
        %v5545 = vmul.f32 %v5129, %v5529
        %v5546 = vmul.f32 %v5130, %v5530
        %v5547 = vmul.f32 %v5131, %v5531
        %v5548 = vmul.f32 %v5132, %v5532
        %v5549 = vmul.f32 %v5133, %v5533
        %v5550 = vmul.f32 %v5134, %v5534
        %v5551 = vmul.f32 %v5135, %v5535
        %v5552 = vmul.f32 %v5136, %v5536
        %v5553 = vmul.f32 %v5137, %v5537
        %v5554 = vmul.f32 %v5138, %v5538
        %v5555 = vmul.f32 %v5139, %v5539
        %v5556 = vmul.f32 %v5140, %v5540
        %v5557 = vmul.f32 %v5141, %v5541
        %v5558 = vmul.f32 %v5142, %v5542
        %v5559 = vmul.f32 %v5143, %v5543
        %v5560 = vld [vmem:[%s776] sm:$0xff]
        %v5561 = vld [vmem:[%s776 + $0x8] sm:$0xff]
        %v5562 = vld [vmem:[%s776 + $0x10] sm:$0xff]
        %v5563 = vld [vmem:[%s776 + $0x18] sm:$0xff]
        %v5564 = vld [vmem:[%s776 + $0x20] sm:$0xff]
        %v5565 = vld [vmem:[%s776 + $0x28] sm:$0xff]
        %v5566 = vld [vmem:[%s776 + $0x30] sm:$0xff]
        %v5567 = vld [vmem:[%s776 + $0x38] sm:$0xff]
        %v5568 = vld [vmem:[%s776 + $0x40] sm:$0xff]
        %v5569 = vld [vmem:[%s776 + $0x48] sm:$0xff]
        %v5570 = vld [vmem:[%s776 + $0x50] sm:$0xff]
        %v5571 = vld [vmem:[%s776 + $0x58] sm:$0xff]
        %v5572 = vld [vmem:[%s776 + $0x60] sm:$0xff]
        %v5573 = vld [vmem:[%s776 + $0x68] sm:$0xff]
        %v5574 = vld [vmem:[%s776 + $0x70] sm:$0xff]
        %v5575 = vld [vmem:[%s776 + $0x78] sm:$0xff]
        %v5576 = vld [vmem:[%s776 + $0x80] sm:$0xff]
        %v5577 = vld [vmem:[%s776 + $0x88] sm:$0xff]
        %v5578 = vld [vmem:[%s776 + $0x90] sm:$0xff]
        %v5579 = vld [vmem:[%s776 + $0x98] sm:$0xff]
        %v5580 = vld [vmem:[%s776 + $0xa0] sm:$0xff]
        %v5581 = vld [vmem:[%s776 + $0xa8] sm:$0xff]
        %v5582 = vld [vmem:[%s776 + $0xb0] sm:$0xff]
        %v5583 = vld [vmem:[%s776 + $0xb8] sm:$0xff]
        %v5584 = vld [vmem:[%s776 + $0xc0] sm:$0xff]
        %v5585 = vld [vmem:[%s776 + $0xc8] sm:$0xff]
        %v5586 = vld [vmem:[%s776 + $0xd0] sm:$0xff]
        %v5587 = vld [vmem:[%s776 + $0xd8] sm:$0xff]
        %v5588 = vld [vmem:[%s776 + $0xe0] sm:$0xff]
        %v5589 = vld [vmem:[%s776 + $0xe8] sm:$0xff]
        %v5590 = vld [vmem:[%s776 + $0xf0] sm:$0xff]
        %v5591 = vld [vmem:[%s776 + $0xf8] sm:$0xff]
        %v5592 = vld [vmem:[%s776 + $0x100] sm:$0xff]
        %v5593 = vld [vmem:[%s776 + $0x108] sm:$0xff]
        %v5594 = vld [vmem:[%s776 + $0x110] sm:$0xff]
        %v5595 = vld [vmem:[%s776 + $0x118] sm:$0xff]
        %v5596 = vld [vmem:[%s776 + $0x120] sm:$0xff]
        %v5597 = vld [vmem:[%s776 + $0x128] sm:$0xff]
        %v5598 = vld [vmem:[%s776 + $0x130] sm:$0xff]
        %v5599 = vld [vmem:[%s776 + $0x138] sm:$0xff]
        %v5600 = vld [vmem:[%s776 + $0x140] sm:$0xff]
        %v5601 = vld [vmem:[%s776 + $0x148] sm:$0xff]
        %v5602 = vld [vmem:[%s776 + $0x150] sm:$0xff]
        %v5603 = vld [vmem:[%s776 + $0x158] sm:$0xff]
        %v5604 = vld [vmem:[%s776 + $0x160] sm:$0xff]
        %v5605 = vld [vmem:[%s776 + $0x168] sm:$0xff]
        %v5606 = vld [vmem:[%s776 + $0x170] sm:$0xff]
        %v5607 = vld [vmem:[%s776 + $0x178] sm:$0xff]
        %v5608 = vld [vmem:[%s776 + $0x180] sm:$0xff]
        %v5609 = vld [vmem:[%s776 + $0x188] sm:$0xff]
        %v5610 = vld [vmem:[%s776 + $0x190] sm:$0xff]
        %v5611 = vld [vmem:[%s776 + $0x198] sm:$0xff]
        %v5612 = vld [vmem:[%s776 + $0x1a0] sm:$0xff]
        %v5613 = vld [vmem:[%s776 + $0x1a8] sm:$0xff]
        %v5614 = vld [vmem:[%s776 + $0x1b0] sm:$0xff]
        %v5615 = vld [vmem:[%s776 + $0x1b8] sm:$0xff]
        %v5616 = vld [vmem:[%s776 + $0x1c0] sm:$0xff]
        %v5617 = vld [vmem:[%s776 + $0x1c8] sm:$0xff]
        %v5618 = vld [vmem:[%s776 + $0x1d0] sm:$0xff]
        %v5619 = vld [vmem:[%s776 + $0x1d8] sm:$0xff]
        %v5620 = vld [vmem:[%s776 + $0x1e0] sm:$0xff]
        %v5621 = vld [vmem:[%s776 + $0x1e8] sm:$0xff]
        %v5622 = vld [vmem:[%s776 + $0x1f0] sm:$0xff]
        %v5623 = vld [vmem:[%s776 + $0x1f8] sm:$0xff]
        %v5624 = vld [vmem:[%s776 + $0x200] sm:$0xff]
        %v5625 = vld [vmem:[%s776 + $0x208] sm:$0xff]
        %v5626 = vld [vmem:[%s776 + $0x210] sm:$0xff]
        %v5627 = vld [vmem:[%s776 + $0x218] sm:$0xff]
        %v5628 = vld [vmem:[%s776 + $0x220] sm:$0xff]
        %v5629 = vld [vmem:[%s776 + $0x228] sm:$0xff]
        %v5630 = vld [vmem:[%s776 + $0x230] sm:$0xff]
        %v5631 = vld [vmem:[%s776 + $0x238] sm:$0xff]
        %v5632 = vld [vmem:[%s776 + $0x240] sm:$0xff]
        %v5633 = vld [vmem:[%s776 + $0x248] sm:$0xff]
        %v5634 = vld [vmem:[%s776 + $0x250] sm:$0xff]
        %v5635 = vld [vmem:[%s776 + $0x258] sm:$0xff]
        %v5636 = vld [vmem:[%s776 + $0x260] sm:$0xff]
        %v5637 = vld [vmem:[%s776 + $0x268] sm:$0xff]
        %v5638 = vld [vmem:[%s776 + $0x270] sm:$0xff]
        %v5639 = vld [vmem:[%s776 + $0x278] sm:$0xff]
        %v5640 = vld [vmem:[%s776 + $0x280] sm:$0xff]
        %v5641 = vld [vmem:[%s776 + $0x288] sm:$0xff]
        %v5642 = vld [vmem:[%s776 + $0x290] sm:$0xff]
        %v5643 = vld [vmem:[%s776 + $0x298] sm:$0xff]
        %v5644 = vld [vmem:[%s776 + $0x2a0] sm:$0xff]
        %v5645 = vld [vmem:[%s776 + $0x2a8] sm:$0xff]
        %v5646 = vld [vmem:[%s776 + $0x2b0] sm:$0xff]
        %v5647 = vld [vmem:[%s776 + $0x2b8] sm:$0xff]
        %v5648 = vld [vmem:[%s776 + $0x2c0] sm:$0xff]
        %v5649 = vld [vmem:[%s776 + $0x2c8] sm:$0xff]
        %v5650 = vld [vmem:[%s776 + $0x2d0] sm:$0xff]
        %v5651 = vld [vmem:[%s776 + $0x2d8] sm:$0xff]
        %v5652 = vld [vmem:[%s776 + $0x2e0] sm:$0xff]
        %v5653 = vld [vmem:[%s776 + $0x2e8] sm:$0xff]
        %v5654 = vld [vmem:[%s776 + $0x2f0] sm:$0xff]
        %v5655 = vld [vmem:[%s776 + $0x2f8] sm:$0xff]
        %v5656 = vld [vmem:[%s776 + $0x300] sm:$0xff]
        %v5657 = vld [vmem:[%s776 + $0x308] sm:$0xff]
        %v5658 = vld [vmem:[%s776 + $0x310] sm:$0xff]
        %v5659 = vld [vmem:[%s776 + $0x318] sm:$0xff]
        %v5660 = vld [vmem:[%s776 + $0x320] sm:$0xff]
        %v5661 = vld [vmem:[%s776 + $0x328] sm:$0xff]
        %v5662 = vld [vmem:[%s776 + $0x330] sm:$0xff]
        %v5663 = vld [vmem:[%s776 + $0x338] sm:$0xff]
        %v5664 = vld [vmem:[%s776 + $0x340] sm:$0xff]
        %v5665 = vld [vmem:[%s776 + $0x348] sm:$0xff]
        %v5666 = vld [vmem:[%s776 + $0x350] sm:$0xff]
        %v5667 = vld [vmem:[%s776 + $0x358] sm:$0xff]
        %v5668 = vld [vmem:[%s776 + $0x360] sm:$0xff]
        %v5669 = vld [vmem:[%s776 + $0x368] sm:$0xff]
        %v5670 = vld [vmem:[%s776 + $0x370] sm:$0xff]
        %v5671 = vld [vmem:[%s776 + $0x378] sm:$0xff]
        %v5672 = vld [vmem:[%s776 + $0x380] sm:$0xff]
        %v5673 = vld [vmem:[%s776 + $0x388] sm:$0xff]
        %v5674 = vld [vmem:[%s776 + $0x390] sm:$0xff]
        %v5675 = vld [vmem:[%s776 + $0x398] sm:$0xff]
        %v5676 = vld [vmem:[%s776 + $0x3a0] sm:$0xff]
        %v5677 = vld [vmem:[%s776 + $0x3a8] sm:$0xff]
        %v5678 = vld [vmem:[%s776 + $0x3b0] sm:$0xff]
        %v5679 = vld [vmem:[%s776 + $0x3b8] sm:$0xff]
        %v5680 = vld [vmem:[%s776 + $0x3c0] sm:$0xff]
        %v5681 = vld [vmem:[%s776 + $0x3c8] sm:$0xff]
        %v5682 = vld [vmem:[%s776 + $0x3d0] sm:$0xff]
        %v5683 = vld [vmem:[%s776 + $0x3d8] sm:$0xff]
        %v5684 = vld [vmem:[%s776 + $0x3e0] sm:$0xff]
        %v5685 = vld [vmem:[%s776 + $0x3e8] sm:$0xff]
        %v5686 = vld [vmem:[%s776 + $0x3f0] sm:$0xff]
        %v5687 = vld [vmem:[%s776 + $0x3f8] sm:$0xff]
        %v5688 = vpack.c.bf16 %v5552, %v5544
        %v5689 = vpack.c.bf16 %v5553, %v5545
        %v5690 = vpack.c.bf16 %v5554, %v5546
        %v5691 = vpack.c.bf16 %v5555, %v5547
        %v5692 = vpack.c.bf16 %v5556, %v5548
        %v5693 = vpack.c.bf16 %v5557, %v5549
        %v5694 = vpack.c.bf16 %v5558, %v5550
        %v5695 = vpack.c.bf16 %v5559, %v5551
        %v5824 = vunpack.c.l.b16 %v5560
        %v5825 = vunpack.c.h.b16 %v5560
        %v5826 = vunpack.c.l.b16 %v5561
        %v5827 = vunpack.c.h.b16 %v5561
        %v5828 = vunpack.c.l.b16 %v5562
        %v5829 = vunpack.c.h.b16 %v5562
        %v5830 = vunpack.c.l.b16 %v5563
        %v5831 = vunpack.c.h.b16 %v5563
        %v5832 = vunpack.c.l.b16 %v5564
        %v5833 = vunpack.c.h.b16 %v5564
        %v5834 = vunpack.c.l.b16 %v5565
        %v5835 = vunpack.c.h.b16 %v5565
        %v5836 = vunpack.c.l.b16 %v5566
        %v5837 = vunpack.c.h.b16 %v5566
        %v5838 = vunpack.c.l.b16 %v5567
        %v5839 = vunpack.c.h.b16 %v5567
        %v5840 = vunpack.c.l.b16 %v5568
        %v5841 = vunpack.c.h.b16 %v5568
        %v5842 = vunpack.c.l.b16 %v5569
        %v5843 = vunpack.c.h.b16 %v5569
        %v5844 = vunpack.c.l.b16 %v5570
        %v5845 = vunpack.c.h.b16 %v5570
        %v5846 = vunpack.c.l.b16 %v5571
        %v5847 = vunpack.c.h.b16 %v5571
        %v5848 = vunpack.c.l.b16 %v5572
        %v5849 = vunpack.c.h.b16 %v5572
        %v5850 = vunpack.c.l.b16 %v5573
        %v5851 = vunpack.c.h.b16 %v5573
        %v5852 = vunpack.c.l.b16 %v5574
        %v5853 = vunpack.c.h.b16 %v5574
        %v5854 = vunpack.c.l.b16 %v5575
        %v5855 = vunpack.c.h.b16 %v5575
        %v5856 = vunpack.c.l.b16 %v5576
        %v5857 = vunpack.c.h.b16 %v5576
        %v5858 = vunpack.c.l.b16 %v5577
        %v5859 = vunpack.c.h.b16 %v5577
        %v5860 = vunpack.c.l.b16 %v5578
        %v5861 = vunpack.c.h.b16 %v5578
        %v5862 = vunpack.c.l.b16 %v5579
        %v5863 = vunpack.c.h.b16 %v5579
        %v5864 = vunpack.c.l.b16 %v5580
        %v5865 = vunpack.c.h.b16 %v5580
        %v5866 = vunpack.c.l.b16 %v5581
        %v5867 = vunpack.c.h.b16 %v5581
        %v5868 = vunpack.c.l.b16 %v5582
        %v5869 = vunpack.c.h.b16 %v5582
        %v5870 = vunpack.c.l.b16 %v5583
        %v5871 = vunpack.c.h.b16 %v5583
        %v5872 = vunpack.c.l.b16 %v5584
        %v5873 = vunpack.c.h.b16 %v5584
        %v5874 = vunpack.c.l.b16 %v5585
        %v5875 = vunpack.c.h.b16 %v5585
        %v5876 = vunpack.c.l.b16 %v5586
        %v5877 = vunpack.c.h.b16 %v5586
        %v5878 = vunpack.c.l.b16 %v5587
        %v5879 = vunpack.c.h.b16 %v5587
        %v5880 = vunpack.c.l.b16 %v5588
        %v5881 = vunpack.c.h.b16 %v5588
        %v5882 = vunpack.c.l.b16 %v5589
        %v5883 = vunpack.c.h.b16 %v5589
        %v5884 = vunpack.c.l.b16 %v5590
        %v5885 = vunpack.c.h.b16 %v5590
        %v5886 = vunpack.c.l.b16 %v5591
        %v5887 = vunpack.c.h.b16 %v5591
        %v5888 = vunpack.c.l.b16 %v5592
        %v5889 = vunpack.c.h.b16 %v5592
        %v5890 = vunpack.c.l.b16 %v5593
        %v5891 = vunpack.c.h.b16 %v5593
        %v5892 = vunpack.c.l.b16 %v5594
        %v5893 = vunpack.c.h.b16 %v5594
        %v5894 = vunpack.c.l.b16 %v5595
        %v5895 = vunpack.c.h.b16 %v5595
        %v5896 = vunpack.c.l.b16 %v5596
        %v5897 = vunpack.c.h.b16 %v5596
        %v5898 = vunpack.c.l.b16 %v5597
        %v5899 = vunpack.c.h.b16 %v5597
        %v5900 = vunpack.c.l.b16 %v5598
        %v5901 = vunpack.c.h.b16 %v5598
        %v5902 = vunpack.c.l.b16 %v5599
        %v5903 = vunpack.c.h.b16 %v5599
        %v5904 = vunpack.c.l.b16 %v5600
        %v5905 = vunpack.c.h.b16 %v5600
        %v5906 = vunpack.c.l.b16 %v5601
        %v5907 = vunpack.c.h.b16 %v5601
        %v5908 = vunpack.c.l.b16 %v5602
        %v5909 = vunpack.c.h.b16 %v5602
        %v5910 = vunpack.c.l.b16 %v5603
        %v5911 = vunpack.c.h.b16 %v5603
        %v5912 = vunpack.c.l.b16 %v5604
        %v5913 = vunpack.c.h.b16 %v5604
        %v5914 = vunpack.c.l.b16 %v5605
        %v5915 = vunpack.c.h.b16 %v5605
        %v5916 = vunpack.c.l.b16 %v5606
        %v5917 = vunpack.c.h.b16 %v5606
        %v5918 = vunpack.c.l.b16 %v5607
        %v5919 = vunpack.c.h.b16 %v5607
        %v5920 = vunpack.c.l.b16 %v5608
        %v5921 = vunpack.c.h.b16 %v5608
        %v5922 = vunpack.c.l.b16 %v5609
        %v5923 = vunpack.c.h.b16 %v5609
        %v5924 = vunpack.c.l.b16 %v5610
        %v5925 = vunpack.c.h.b16 %v5610
        %v5926 = vunpack.c.l.b16 %v5611
        %v5927 = vunpack.c.h.b16 %v5611
        %v5928 = vunpack.c.l.b16 %v5612
        %v5929 = vunpack.c.h.b16 %v5612
        %v5930 = vunpack.c.l.b16 %v5613
        %v5931 = vunpack.c.h.b16 %v5613
        %v5932 = vunpack.c.l.b16 %v5614
        %v5933 = vunpack.c.h.b16 %v5614
        %v5934 = vunpack.c.l.b16 %v5615
        %v5935 = vunpack.c.h.b16 %v5615
        %v5936 = vunpack.c.l.b16 %v5616
        %v5937 = vunpack.c.h.b16 %v5616
        %v5938 = vunpack.c.l.b16 %v5617
        %v5939 = vunpack.c.h.b16 %v5617
        %v5940 = vunpack.c.l.b16 %v5618
        %v5941 = vunpack.c.h.b16 %v5618
        %v5942 = vunpack.c.l.b16 %v5619
        %v5943 = vunpack.c.h.b16 %v5619
        %v5944 = vunpack.c.l.b16 %v5620
        %v5945 = vunpack.c.h.b16 %v5620
        %v5946 = vunpack.c.l.b16 %v5621
        %v5947 = vunpack.c.h.b16 %v5621
        %v5948 = vunpack.c.l.b16 %v5622
        %v5949 = vunpack.c.h.b16 %v5622
        %v5950 = vunpack.c.l.b16 %v5623
        %v5951 = vunpack.c.h.b16 %v5623
        %v5952 = vunpack.c.l.b16 %v5624
        %v5953 = vunpack.c.h.b16 %v5624
        %v5954 = vunpack.c.l.b16 %v5625
        %v5955 = vunpack.c.h.b16 %v5625
        %v5956 = vunpack.c.l.b16 %v5626
        %v5957 = vunpack.c.h.b16 %v5626
        %v5958 = vunpack.c.l.b16 %v5627
        %v5959 = vunpack.c.h.b16 %v5627
        %v5960 = vunpack.c.l.b16 %v5628
        %v5961 = vunpack.c.h.b16 %v5628
        %v5962 = vunpack.c.l.b16 %v5629
        %v5963 = vunpack.c.h.b16 %v5629
        %v5964 = vunpack.c.l.b16 %v5630
        %v5965 = vunpack.c.h.b16 %v5630
        %v5966 = vunpack.c.l.b16 %v5631
        %v5967 = vunpack.c.h.b16 %v5631
        %v5968 = vunpack.c.l.b16 %v5632
        %v5969 = vunpack.c.h.b16 %v5632
        %v5970 = vunpack.c.l.b16 %v5633
        %v5971 = vunpack.c.h.b16 %v5633
        %v5972 = vunpack.c.l.b16 %v5634
        %v5973 = vunpack.c.h.b16 %v5634
        %v5974 = vunpack.c.l.b16 %v5635
        %v5975 = vunpack.c.h.b16 %v5635
        %v5976 = vunpack.c.l.b16 %v5636
        %v5977 = vunpack.c.h.b16 %v5636
        %v5978 = vunpack.c.l.b16 %v5637
        %v5979 = vunpack.c.h.b16 %v5637
        %v5980 = vunpack.c.l.b16 %v5638
        %v5981 = vunpack.c.h.b16 %v5638
        %v5982 = vunpack.c.l.b16 %v5639
        %v5983 = vunpack.c.h.b16 %v5639
        %v5984 = vunpack.c.l.b16 %v5640
        %v5985 = vunpack.c.h.b16 %v5640
        %v5986 = vunpack.c.l.b16 %v5641
        %v5987 = vunpack.c.h.b16 %v5641
        %v5988 = vunpack.c.l.b16 %v5642
        %v5989 = vunpack.c.h.b16 %v5642
        %v5990 = vunpack.c.l.b16 %v5643
        %v5991 = vunpack.c.h.b16 %v5643
        %v5992 = vunpack.c.l.b16 %v5644
        %v5993 = vunpack.c.h.b16 %v5644
        %v5994 = vunpack.c.l.b16 %v5645
        %v5995 = vunpack.c.h.b16 %v5645
        %v5996 = vunpack.c.l.b16 %v5646
        %v5997 = vunpack.c.h.b16 %v5646
        %v5998 = vunpack.c.l.b16 %v5647
        %v5999 = vunpack.c.h.b16 %v5647
        %v6000 = vunpack.c.l.b16 %v5648
        %v6001 = vunpack.c.h.b16 %v5648
        %v6002 = vunpack.c.l.b16 %v5649
        %v6003 = vunpack.c.h.b16 %v5649
        %v6004 = vunpack.c.l.b16 %v5650
        %v6005 = vunpack.c.h.b16 %v5650
        %v6006 = vunpack.c.l.b16 %v5651
        %v6007 = vunpack.c.h.b16 %v5651
        %v6008 = vunpack.c.l.b16 %v5652
        %v6009 = vunpack.c.h.b16 %v5652
        %v6010 = vunpack.c.l.b16 %v5653
        %v6011 = vunpack.c.h.b16 %v5653
        %v6012 = vunpack.c.l.b16 %v5654
        %v6013 = vunpack.c.h.b16 %v5654
        %v6014 = vunpack.c.l.b16 %v5655
        %v6015 = vunpack.c.h.b16 %v5655
        %v6016 = vunpack.c.l.b16 %v5656
        %v6017 = vunpack.c.h.b16 %v5656
        %v6018 = vunpack.c.l.b16 %v5657
        %v6019 = vunpack.c.h.b16 %v5657
        %v6020 = vunpack.c.l.b16 %v5658
        %v6021 = vunpack.c.h.b16 %v5658
        %v6022 = vunpack.c.l.b16 %v5659
        %v6023 = vunpack.c.h.b16 %v5659
        %v6024 = vunpack.c.l.b16 %v5660
        %v6025 = vunpack.c.h.b16 %v5660
        %v6026 = vunpack.c.l.b16 %v5661
        %v6027 = vunpack.c.h.b16 %v5661
        %v6028 = vunpack.c.l.b16 %v5662
        %v6029 = vunpack.c.h.b16 %v5662
        %v6030 = vunpack.c.l.b16 %v5663
        %v6031 = vunpack.c.h.b16 %v5663
        %v6032 = vunpack.c.l.b16 %v5664
        %v6033 = vunpack.c.h.b16 %v5664
        %v6034 = vunpack.c.l.b16 %v5665
        %v6035 = vunpack.c.h.b16 %v5665
        %v6036 = vunpack.c.l.b16 %v5666
        %v6037 = vunpack.c.h.b16 %v5666
        %v6038 = vunpack.c.l.b16 %v5667
        %v6039 = vunpack.c.h.b16 %v5667
        %v6040 = vunpack.c.l.b16 %v5668
        %v6041 = vunpack.c.h.b16 %v5668
        %v6042 = vunpack.c.l.b16 %v5669
        %v6043 = vunpack.c.h.b16 %v5669
        %v6044 = vunpack.c.l.b16 %v5670
        %v6045 = vunpack.c.h.b16 %v5670
        %v6046 = vunpack.c.l.b16 %v5671
        %v6047 = vunpack.c.h.b16 %v5671
        %v6048 = vunpack.c.l.b16 %v5672
        %v6049 = vunpack.c.h.b16 %v5672
        %v6050 = vunpack.c.l.b16 %v5673
        %v6051 = vunpack.c.h.b16 %v5673
        %v6052 = vunpack.c.l.b16 %v5674
        %v6053 = vunpack.c.h.b16 %v5674
        %v6054 = vunpack.c.l.b16 %v5675
        %v6055 = vunpack.c.h.b16 %v5675
        %v6056 = vunpack.c.l.b16 %v5676
        %v6057 = vunpack.c.h.b16 %v5676
        %v6058 = vunpack.c.l.b16 %v5677
        %v6059 = vunpack.c.h.b16 %v5677
        %v6060 = vunpack.c.l.b16 %v5678
        %v6061 = vunpack.c.h.b16 %v5678
        %v6062 = vunpack.c.l.b16 %v5679
        %v6063 = vunpack.c.h.b16 %v5679
        %v6064 = vunpack.c.l.b16 %v5680
        %v6065 = vunpack.c.h.b16 %v5680
        %v6066 = vunpack.c.l.b16 %v5681
        %v6067 = vunpack.c.h.b16 %v5681
        %v6068 = vunpack.c.l.b16 %v5682
        %v6069 = vunpack.c.h.b16 %v5682
        %v6070 = vunpack.c.l.b16 %v5683
        %v6071 = vunpack.c.h.b16 %v5683
        %v6072 = vunpack.c.l.b16 %v5684
        %v6073 = vunpack.c.h.b16 %v5684
        %v6074 = vunpack.c.l.b16 %v5685
        %v6075 = vunpack.c.h.b16 %v5685
        %v6076 = vunpack.c.l.b16 %v5686
        %v6077 = vunpack.c.h.b16 %v5686
        %v6078 = vunpack.c.l.b16 %v5687
        %v6079 = vunpack.c.h.b16 %v5687
        %v6080 = vpack.c.b16 %v5826, %v5824
        %v6081 = vpack.c.b16 %v5827, %v5825
        %v6082 = vpack.c.b16 %v5830, %v5828
        %v6083 = vpack.c.b16 %v5831, %v5829
        %v6084 = vpack.c.b16 %v5834, %v5832
        %v6085 = vpack.c.b16 %v5835, %v5833
        %v6086 = vpack.c.b16 %v5838, %v5836
        %v6087 = vpack.c.b16 %v5839, %v5837
        %v6088 = vpack.c.b16 %v5842, %v5840
        %v6089 = vpack.c.b16 %v5843, %v5841
        %v6090 = vpack.c.b16 %v5846, %v5844
        %v6091 = vpack.c.b16 %v5847, %v5845
        %v6092 = vpack.c.b16 %v5850, %v5848
        %v6093 = vpack.c.b16 %v5851, %v5849
        %v6094 = vpack.c.b16 %v5854, %v5852
        %v6095 = vpack.c.b16 %v5855, %v5853
        %v6096 = vpack.c.b16 %v5858, %v5856
        %v6097 = vpack.c.b16 %v5859, %v5857
        %v6098 = vpack.c.b16 %v5862, %v5860
        %v6099 = vpack.c.b16 %v5863, %v5861
        %v6100 = vpack.c.b16 %v5866, %v5864
        %v6101 = vpack.c.b16 %v5867, %v5865
        %v6102 = vpack.c.b16 %v5870, %v5868
        %v6103 = vpack.c.b16 %v5871, %v5869
        %v6104 = vpack.c.b16 %v5874, %v5872
        %v6105 = vpack.c.b16 %v5875, %v5873
        %v6106 = vpack.c.b16 %v5878, %v5876
        %v6107 = vpack.c.b16 %v5879, %v5877
        %v6108 = vpack.c.b16 %v5882, %v5880
        %v6109 = vpack.c.b16 %v5883, %v5881
        %v6110 = vpack.c.b16 %v5886, %v5884
        %v6111 = vpack.c.b16 %v5887, %v5885
        %v6112 = vpack.c.b16 %v5890, %v5888
        %v6113 = vpack.c.b16 %v5891, %v5889
        %v6114 = vpack.c.b16 %v5894, %v5892
        %v6115 = vpack.c.b16 %v5895, %v5893
        %v6116 = vpack.c.b16 %v5898, %v5896
        %v6117 = vpack.c.b16 %v5899, %v5897
        %v6118 = vpack.c.b16 %v5902, %v5900
        %v6119 = vpack.c.b16 %v5903, %v5901
        %v6120 = vpack.c.b16 %v5906, %v5904
        %v6121 = vpack.c.b16 %v5907, %v5905
        %v6122 = vpack.c.b16 %v5910, %v5908
        %v6123 = vpack.c.b16 %v5911, %v5909
        %v6124 = vpack.c.b16 %v5914, %v5912
        %v6125 = vpack.c.b16 %v5915, %v5913
        %v6126 = vpack.c.b16 %v5918, %v5916
        %v6127 = vpack.c.b16 %v5919, %v5917
        %v6128 = vpack.c.b16 %v5922, %v5920
        %v6129 = vpack.c.b16 %v5923, %v5921
        %v6130 = vpack.c.b16 %v5926, %v5924
        %v6131 = vpack.c.b16 %v5927, %v5925
        %v6132 = vpack.c.b16 %v5930, %v5928
        %v6133 = vpack.c.b16 %v5931, %v5929
        %v6134 = vpack.c.b16 %v5934, %v5932
        %v6135 = vpack.c.b16 %v5935, %v5933
        %v6136 = vpack.c.b16 %v5938, %v5936
        %v6137 = vpack.c.b16 %v5939, %v5937
        %v6138 = vpack.c.b16 %v5942, %v5940
        %v6139 = vpack.c.b16 %v5943, %v5941
        %v6140 = vpack.c.b16 %v5946, %v5944
        %v6141 = vpack.c.b16 %v5947, %v5945
        %v6142 = vpack.c.b16 %v5950, %v5948
        %v6143 = vpack.c.b16 %v5951, %v5949
        %v6144 = vpack.c.b16 %v5954, %v5952
        %v6145 = vpack.c.b16 %v5955, %v5953
        %v6146 = vpack.c.b16 %v5958, %v5956
        %v6147 = vpack.c.b16 %v5959, %v5957
        %v6148 = vpack.c.b16 %v5962, %v5960
        %v6149 = vpack.c.b16 %v5963, %v5961
        %v6150 = vpack.c.b16 %v5966, %v5964
        %v6151 = vpack.c.b16 %v5967, %v5965
        %v6152 = vpack.c.b16 %v5970, %v5968
        %v6153 = vpack.c.b16 %v5971, %v5969
        %v6154 = vpack.c.b16 %v5974, %v5972
        %v6155 = vpack.c.b16 %v5975, %v5973
        %v6156 = vpack.c.b16 %v5978, %v5976
        %v6157 = vpack.c.b16 %v5979, %v5977
        %v6158 = vpack.c.b16 %v5982, %v5980
        %v6159 = vpack.c.b16 %v5983, %v5981
        %v6160 = vpack.c.b16 %v5986, %v5984
        %v6161 = vpack.c.b16 %v5987, %v5985
        %v6162 = vpack.c.b16 %v5990, %v5988
        %v6163 = vpack.c.b16 %v5991, %v5989
        %v6164 = vpack.c.b16 %v5994, %v5992
        %v6165 = vpack.c.b16 %v5995, %v5993
        %v6166 = vpack.c.b16 %v5998, %v5996
        %v6167 = vpack.c.b16 %v5999, %v5997
        %v6168 = vpack.c.b16 %v6002, %v6000
        %v6169 = vpack.c.b16 %v6003, %v6001
        %v6170 = vpack.c.b16 %v6006, %v6004
        %v6171 = vpack.c.b16 %v6007, %v6005
        %v6172 = vpack.c.b16 %v6010, %v6008
        %v6173 = vpack.c.b16 %v6011, %v6009
        %v6174 = vpack.c.b16 %v6014, %v6012
        %v6175 = vpack.c.b16 %v6015, %v6013
        %v6176 = vpack.c.b16 %v6018, %v6016
        %v6177 = vpack.c.b16 %v6019, %v6017
        %v6178 = vpack.c.b16 %v6022, %v6020
        %v6179 = vpack.c.b16 %v6023, %v6021
        %v6180 = vpack.c.b16 %v6026, %v6024
        %v6181 = vpack.c.b16 %v6027, %v6025
        %v6182 = vpack.c.b16 %v6030, %v6028
        %v6183 = vpack.c.b16 %v6031, %v6029
        %v6184 = vpack.c.b16 %v6034, %v6032
        %v6185 = vpack.c.b16 %v6035, %v6033
        %v6186 = vpack.c.b16 %v6038, %v6036
        %v6187 = vpack.c.b16 %v6039, %v6037
        %v6188 = vpack.c.b16 %v6042, %v6040
        %v6189 = vpack.c.b16 %v6043, %v6041
        %v6190 = vpack.c.b16 %v6046, %v6044
        %v6191 = vpack.c.b16 %v6047, %v6045
        %v6192 = vpack.c.b16 %v6050, %v6048
        %v6193 = vpack.c.b16 %v6051, %v6049
        %v6194 = vpack.c.b16 %v6054, %v6052
        %v6195 = vpack.c.b16 %v6055, %v6053
        %v6196 = vpack.c.b16 %v6058, %v6056
        %v6197 = vpack.c.b16 %v6059, %v6057
        %v6198 = vpack.c.b16 %v6062, %v6060
        %v6199 = vpack.c.b16 %v6063, %v6061
        %v6200 = vpack.c.b16 %v6066, %v6064
        %v6201 = vpack.c.b16 %v6067, %v6065
        %v6202 = vpack.c.b16 %v6070, %v6068
        %v6203 = vpack.c.b16 %v6071, %v6069
        %v6204 = vpack.c.b16 %v6074, %v6072
        %v6205 = vpack.c.b16 %v6075, %v6073
        %v6206 = vpack.c.b16 %v6078, %v6076
        %v6207 = vpack.c.b16 %v6079, %v6077
        %6336 = vmatprep.subr.bf16.mxu0 %v6095
        %6337 = vmatpush1.bf16.msra.mxu0 %v6094
        %6338 = vmatprep.subr.bf16.mxu0 %v6093
        %6339 = vmatpush1.bf16.msra.mxu0 %v6092
        %6340 = vmatprep.subr.bf16.mxu0 %v6091
        %6341 = vmatpush1.bf16.msra.mxu0 %v6090
        %6342 = vmatprep.subr.bf16.mxu0 %v6089
        %6343 = vmatpush1.bf16.msra.mxu0 %v6088
        %6344 = vmatprep.subr.bf16.mxu0 %v6087
        %6345 = vmatpush1.bf16.msra.mxu0 %v6086
        %6346 = vmatprep.subr.bf16.mxu0 %v6085
        %6347 = vmatpush1.bf16.msra.mxu0 %v6084
        %6348 = vmatprep.subr.bf16.mxu0 %v6083
        %6349 = vmatpush1.bf16.msra.mxu0 %v6082
        %6350 = vmatprep.subr.bf16.mxu0 %v6081
        %6351 = vmatpush1.bf16.msra.mxu0 %v6080
        %6352 = vmatprep.subr.bf16.mxu0 %v6111
        %6353 = vmatpush2.bf16.msra.mxu0 %v6110
        %6354 = vmatprep.subr.bf16.mxu0 %v6109
        %6355 = vmatpush2.bf16.msra.mxu0 %v6108
        %6356 = vmatprep.subr.bf16.mxu0 %v6107
        %6357 = vmatpush2.bf16.msra.mxu0 %v6106
        %6358 = vmatprep.subr.bf16.mxu0 %v6105
        %6359 = vmatpush2.bf16.msra.mxu0 %v6104
        %6360 = vmatprep.subr.bf16.mxu0 %v6103
        %6361 = vmatpush2.bf16.msra.mxu0 %v6102
        %6362 = vmatprep.subr.bf16.mxu0 %v6101
        %6363 = vmatpush2.bf16.msra.mxu0 %v6100
        %6364 = vmatprep.subr.bf16.mxu0 %v6099
        %6365 = vmatpush2.bf16.msra.mxu0 %v6098
        %6366 = vmatprep.subr.bf16.mxu0 %v6097
        %6367 = vmatpush2.bf16.msra.mxu0 %v6096
        %6368 = vmatprep.mubr.bf16.mxu0 %v5689
        %6369 = vmatmul.mubr.bf16.gmra.mxu0 %v5688
        %v6370 = vpop.f32.mrf.mxu0
        %v6371 = vadd.f32 0.0, %v6370
        %v6372 = vpop.f32.mrf.mxu0
        %v6373 = vadd.f32 0.0, %v6372
        %v6374 = vpop.f32.mrf.mxu0
        %v6375 = vadd.f32 0.0, %v6374
        %v6376 = vpop.f32.mrf.mxu0
        %v6377 = vadd.f32 0.0, %v6376
        %6378 = vdwg.mxu0
        %6379 = vmatprep.subr.bf16.mxu0 %v6127
        %6380 = vmatpush1.bf16.msra.mxu0 %v6126
        %6381 = vmatprep.subr.bf16.mxu0 %v6125
        %6382 = vmatpush1.bf16.msra.mxu0 %v6124
        %6383 = vmatprep.subr.bf16.mxu0 %v6123
        %6384 = vmatpush1.bf16.msra.mxu0 %v6122
        %6385 = vmatprep.subr.bf16.mxu0 %v6121
        %6386 = vmatpush1.bf16.msra.mxu0 %v6120
        %6387 = vmatprep.subr.bf16.mxu0 %v6119
        %6388 = vmatpush1.bf16.msra.mxu0 %v6118
        %6389 = vmatprep.subr.bf16.mxu0 %v6117
        %6390 = vmatpush1.bf16.msra.mxu0 %v6116
        %6391 = vmatprep.subr.bf16.mxu0 %v6115
        %6392 = vmatpush1.bf16.msra.mxu0 %v6114
        %6393 = vmatprep.subr.bf16.mxu0 %v6113
        %6394 = vmatpush1.bf16.msra.mxu0 %v6112
        %6395 = vmatprep.subr.bf16.mxu0 %v6143
        %6396 = vmatpush2.bf16.msra.mxu0 %v6142
        %6397 = vmatprep.subr.bf16.mxu0 %v6141
        %6398 = vmatpush2.bf16.msra.mxu0 %v6140
        %6399 = vmatprep.subr.bf16.mxu0 %v6139
        %6400 = vmatpush2.bf16.msra.mxu0 %v6138
        %6401 = vmatprep.subr.bf16.mxu0 %v6137
        %6402 = vmatpush2.bf16.msra.mxu0 %v6136
        %6403 = vmatprep.subr.bf16.mxu0 %v6135
        %6404 = vmatpush2.bf16.msra.mxu0 %v6134
        %6405 = vmatprep.subr.bf16.mxu0 %v6133
        %6406 = vmatpush2.bf16.msra.mxu0 %v6132
        %6407 = vmatprep.subr.bf16.mxu0 %v6131
        %6408 = vmatpush2.bf16.msra.mxu0 %v6130
        %6409 = vmatprep.subr.bf16.mxu0 %v6129
        %6410 = vmatpush2.bf16.msra.mxu0 %v6128
        %6411 = vmatprep.mubr.bf16.mxu0 %v5691
        %6412 = vmatmul.mubr.bf16.gmra.mxu0 %v5690
        %v6413 = vpop.f32.mrf.mxu0
        %v6414 = vadd.f32 %v6371, %v6413
        %v6415 = vpop.f32.mrf.mxu0
        %v6416 = vadd.f32 %v6373, %v6415
        %v6417 = vpop.f32.mrf.mxu0
        %v6418 = vadd.f32 %v6375, %v6417
        %v6419 = vpop.f32.mrf.mxu0
        %v6420 = vadd.f32 %v6377, %v6419
        %6421 = vdwg.mxu0
        %6422 = vmatprep.subr.bf16.mxu0 %v6159
        %6423 = vmatpush1.bf16.msra.mxu0 %v6158
        %6424 = vmatprep.subr.bf16.mxu0 %v6157
        %6425 = vmatpush1.bf16.msra.mxu0 %v6156
        %6426 = vmatprep.subr.bf16.mxu0 %v6155
        %6427 = vmatpush1.bf16.msra.mxu0 %v6154
        %6428 = vmatprep.subr.bf16.mxu0 %v6153
        %6429 = vmatpush1.bf16.msra.mxu0 %v6152
        %6430 = vmatprep.subr.bf16.mxu0 %v6151
        %6431 = vmatpush1.bf16.msra.mxu0 %v6150
        %6432 = vmatprep.subr.bf16.mxu0 %v6149
        %6433 = vmatpush1.bf16.msra.mxu0 %v6148
        %6434 = vmatprep.subr.bf16.mxu0 %v6147
        %6435 = vmatpush1.bf16.msra.mxu0 %v6146
        %6436 = vmatprep.subr.bf16.mxu0 %v6145
        %6437 = vmatpush1.bf16.msra.mxu0 %v6144
        %6438 = vmatprep.subr.bf16.mxu0 %v6175
        %6439 = vmatpush2.bf16.msra.mxu0 %v6174
        %6440 = vmatprep.subr.bf16.mxu0 %v6173
        %6441 = vmatpush2.bf16.msra.mxu0 %v6172
        %6442 = vmatprep.subr.bf16.mxu0 %v6171
        %6443 = vmatpush2.bf16.msra.mxu0 %v6170
        %6444 = vmatprep.subr.bf16.mxu0 %v6169
        %6445 = vmatpush2.bf16.msra.mxu0 %v6168
        %6446 = vmatprep.subr.bf16.mxu0 %v6167
        %6447 = vmatpush2.bf16.msra.mxu0 %v6166
        %6448 = vmatprep.subr.bf16.mxu0 %v6165
        %6449 = vmatpush2.bf16.msra.mxu0 %v6164
        %6450 = vmatprep.subr.bf16.mxu0 %v6163
        %6451 = vmatpush2.bf16.msra.mxu0 %v6162
        %6452 = vmatprep.subr.bf16.mxu0 %v6161
        %6453 = vmatpush2.bf16.msra.mxu0 %v6160
        %6454 = vmatprep.mubr.bf16.mxu0 %v5693
        %6455 = vmatmul.mubr.bf16.gmra.mxu0 %v5692
        %v6456 = vpop.f32.mrf.mxu0
        %v6457 = vadd.f32 %v6414, %v6456
        %v6458 = vpop.f32.mrf.mxu0
        %v6459 = vadd.f32 %v6416, %v6458
        %v6460 = vpop.f32.mrf.mxu0
        %v6461 = vadd.f32 %v6418, %v6460
        %v6462 = vpop.f32.mrf.mxu0
        %v6463 = vadd.f32 %v6420, %v6462
        %6464 = vdwg.mxu0
        %6465 = vmatprep.subr.bf16.mxu0 %v6191
        %6466 = vmatpush1.bf16.msra.mxu0 %v6190
        %6467 = vmatprep.subr.bf16.mxu0 %v6189
        %6468 = vmatpush1.bf16.msra.mxu0 %v6188
        %6469 = vmatprep.subr.bf16.mxu0 %v6187
        %6470 = vmatpush1.bf16.msra.mxu0 %v6186
        %6471 = vmatprep.subr.bf16.mxu0 %v6185
        %6472 = vmatpush1.bf16.msra.mxu0 %v6184
        %6473 = vmatprep.subr.bf16.mxu0 %v6183
        %6474 = vmatpush1.bf16.msra.mxu0 %v6182
        %6475 = vmatprep.subr.bf16.mxu0 %v6181
        %6476 = vmatpush1.bf16.msra.mxu0 %v6180
        %6477 = vmatprep.subr.bf16.mxu0 %v6179
        %6478 = vmatpush1.bf16.msra.mxu0 %v6178
        %6479 = vmatprep.subr.bf16.mxu0 %v6177
        %6480 = vmatpush1.bf16.msra.mxu0 %v6176
        %6481 = vmatprep.subr.bf16.mxu0 %v6207
        %6482 = vmatpush2.bf16.msra.mxu0 %v6206
        %6483 = vmatprep.subr.bf16.mxu0 %v6205
        %6484 = vmatpush2.bf16.msra.mxu0 %v6204
        %6485 = vmatprep.subr.bf16.mxu0 %v6203
        %6486 = vmatpush2.bf16.msra.mxu0 %v6202
        %6487 = vmatprep.subr.bf16.mxu0 %v6201
        %6488 = vmatpush2.bf16.msra.mxu0 %v6200
        %6489 = vmatprep.subr.bf16.mxu0 %v6199
        %6490 = vmatpush2.bf16.msra.mxu0 %v6198
        %6491 = vmatprep.subr.bf16.mxu0 %v6197
        %6492 = vmatpush2.bf16.msra.mxu0 %v6196
        %6493 = vmatprep.subr.bf16.mxu0 %v6195
        %6494 = vmatpush2.bf16.msra.mxu0 %v6194
        %6495 = vmatprep.subr.bf16.mxu0 %v6193
        %6496 = vmatpush2.bf16.msra.mxu0 %v6192
        %6497 = vmatprep.mubr.bf16.mxu0 %v5695
        %6498 = vmatmul.mubr.bf16.gmra.mxu0 %v5694
        %v6499 = vpop.f32.mrf.mxu0
        %v6500 = vadd.f32 %v6457, %v6499
        %v6501 = vpop.f32.mrf.mxu0
        %v6502 = vadd.f32 %v6459, %v6501
        %v6503 = vpop.f32.mrf.mxu0
        %v6504 = vadd.f32 %v6461, %v6503
        %v6505 = vpop.f32.mrf.mxu0
        %v6506 = vadd.f32 %v6463, %v6505
        %6507 = vdwg.mxu0
        %v6508 = vadd.f32 %v4058, %v6500
        %v6509 = vadd.f32 %v4059, %v6502
        %v6510 = vadd.f32 %v4060, %v6504
        %v6511 = vadd.f32 %v4061, %v6506
        %v6512 = vld [vmem:[%s785] sm:$0x3]
        %v6514 = vlaneseq
        %v6515 = vshrl.u32 %v6514, 7
        %v6516 = vsub.s32 0, %v6515
        %v6517 = vrot.slane %v6512, %v6516
        %v6518 = vlaneseq
        %v6519 = vshrl.u32 %v6518, 7
        %v6520 = vsub.s32 1, %v6519
        %v6521 = vrot.slane %v6512, %v6520
        %v6524 = vadd.f32 %v6508, %v6517
        %v6525 = vadd.f32 %v6509, %v6521
        %v6526 = vadd.f32 %v6510, %v6517
        %v6527 = vadd.f32 %v6511, %v6521
        %6528 = vst [vmem:[#allocation2] sm:$0xff] %v6524
        %6529 = vst [vmem:[#allocation2 + $0x8] sm:$0xff] %v6525
        %6530 = vst [vmem:[#allocation2 + $0x10] sm:$0xff] %v6526
        %6531 = vst [vmem:[#allocation2 + $0x18] sm:$0xff] %v6527
        %p6532 = scmp.eq.s32.totalorder %s44, 1
        // Predicated region
        $region141: #{vit_discriminator_forward.1} parent=83 // pred_check
          %p6533 = pneg %p6532
        $region142: #{vit_discriminator_forward.1} parent=83 // pred_check_branch
          %6535 = sbr.rel (%p6533) target = $region144
        $region143: #{vit_discriminator_forward.1} parent=83 // pred_region
          %v6536 = vld [vmem:[#allocation21] sm:$0xf]
          %v6537 = vadd.f32 %v6524, %v6525
          %6538 = vadd.xlane.f32.xlu0 %v6537
          %v6539 = vpop.xlane.xlu0 %6538
          %v6540 = vadd.f32 %v6526, %v6527
          %6541 = vadd.xlane.f32.xlu0 %v6540
          %v6542 = vpop.xlane.xlu0 %6541
          %v6543 = vmul.f32 %v6539, %v1165
          %v6544 = vmul.f32 %v6542, %v1165
          %v6545 = vmul.f32 %v6524, %v6524
          %v6546 = vmul.f32 %v6525, %v6525
          %v6547 = vmul.f32 %v6526, %v6526
          %v6548 = vmul.f32 %v6527, %v6527
          %v6549 = vadd.f32 %v6545, %v6546
          %6550 = vadd.xlane.f32.xlu0 %v6549
          %v6551 = vpop.xlane.xlu0 %6550
          %v6552 = vadd.f32 %v6547, %v6548
          %6553 = vadd.xlane.f32.xlu0 %v6552
          %v6554 = vpop.xlane.xlu0 %6553
          %v6555 = vmul.f32 %v6551, %v1165
          %v6556 = vmul.f32 %v6554, %v1165
          %v6557 = vmul.f32 %v6543, %v6543
          %v6558 = vmul.f32 %v6544, %v6544
          %v6559 = vsub.f32 %v6555, %v6557
          %v6560 = vsub.f32 %v6556, %v6558
          %v6561 = vsub.f32 %v6524, %v6543
          %v6562 = vsub.f32 %v6525, %v6543
          %v6563 = vsub.f32 %v6526, %v6544
          %v6564 = vsub.f32 %v6527, %v6544
          %v6565 = vadd.f32 %v6559, 1e-06
          %v6566 = vadd.f32 %v6560, 1e-06
          %v6567 = vrsqrt.pop %v6565
          %v6568 = vrsqrt.pop %v6566
          %v6569 = vmul.f32 %v6561, %v6567
          %v6570 = vmul.f32 %v6562, %v6567
          %v6571 = vmul.f32 %v6563, %v6568
          %v6572 = vmul.f32 %v6564, %v6568
          %v6574 = vlaneseq
          %v6575 = vshrl.u32 %v6574, 7
          %v6576 = vsub.s32 0, %v6575
          %v6577 = vrot.slane %v6536, %v6576
          %v6578 = vlaneseq
          %v6579 = vshrl.u32 %v6578, 7
          %v6580 = vsub.s32 2, %v6579
          %v6581 = vrot.slane %v6536, %v6580
          %v6584 = vlaneseq
          %v6585 = vshrl.u32 %v6584, 7
          %v6586 = vsub.s32 0, %v6585
          %v6587 = vrot.slane %v6577, %v6586
          %v6588 = vlaneseq
          %v6589 = vshrl.u32 %v6588, 7
          %v6590 = vsub.s32 0, %v6589
          %v6591 = vrot.slane %v6581, %v6590
          %v6592 = vmul.f32 %v6569, %v6587
          %v6593 = vmul.f32 %v6570, %v6591
          %v6594 = vmul.f32 %v6571, %v6587
          %v6595 = vmul.f32 %v6572, %v6591
          %v6596 = vlaneseq
          %v6597 = vshrl.u32 %v6596, 7
          %v6598 = vsub.s32 1, %v6597
          %v6599 = vrot.slane %v6536, %v6598
          %v6600 = vlaneseq
          %v6601 = vshrl.u32 %v6600, 7
          %v6602 = vsub.s32 3, %v6601
          %v6603 = vrot.slane %v6536, %v6602
          %v6606 = vlaneseq
          %v6607 = vshrl.u32 %v6606, 7
          %v6608 = vsub.s32 1, %v6607
          %v6609 = vrot.slane %v6599, %v6608
          %v6610 = vlaneseq
          %v6611 = vshrl.u32 %v6610, 7
          %v6612 = vsub.s32 1, %v6611
          %v6613 = vrot.slane %v6603, %v6612
          %v6614 = vadd.f32 %v6592, %v6609
          %v6615 = vadd.f32 %v6593, %v6613
          %v6616 = vadd.f32 %v6594, %v6609
          %v6617 = vadd.f32 %v6595, %v6613
          %v6618 = vld [vmem:[%s14] sm:$0xf]
          %v6619 = vld [vmem:[%s14 + $0x4] sm:$0xf]
          %v6620 = vld [vmem:[%s14 + $0x8] sm:$0xf]
          %v6621 = vld [vmem:[%s14 + $0xc] sm:$0xf]
          %v6622 = vld [vmem:[%s14 + $0x10] sm:$0xf]
          %v6623 = vld [vmem:[%s14 + $0x14] sm:$0xf]
          %v6624 = vld [vmem:[%s14 + $0x18] sm:$0xf]
          %v6625 = vld [vmem:[%s14 + $0x1c] sm:$0xf]
          %v6626 = vld [vmem:[%s14 + $0x20] sm:$0xf]
          %v6627 = vld [vmem:[%s14 + $0x24] sm:$0xf]
          %v6628 = vld [vmem:[%s14 + $0x28] sm:$0xf]
          %v6629 = vld [vmem:[%s14 + $0x2c] sm:$0xf]
          %v6630 = vld [vmem:[%s14 + $0x30] sm:$0xf]
          %v6631 = vld [vmem:[%s14 + $0x34] sm:$0xf]
          %v6632 = vld [vmem:[%s14 + $0x38] sm:$0xf]
          %v6633 = vld [vmem:[%s14 + $0x3c] sm:$0xf]
          %v6634 = vld [vmem:[%s14 + $0x40] sm:$0xf]
          %v6635 = vld [vmem:[%s14 + $0x44] sm:$0xf]
          %v6636 = vld [vmem:[%s14 + $0x48] sm:$0xf]
          %v6637 = vld [vmem:[%s14 + $0x4c] sm:$0xf]
          %v6638 = vld [vmem:[%s14 + $0x50] sm:$0xf]
          %v6639 = vld [vmem:[%s14 + $0x54] sm:$0xf]
          %v6640 = vld [vmem:[%s14 + $0x58] sm:$0xf]
          %v6641 = vld [vmem:[%s14 + $0x5c] sm:$0xf]
          %v6642 = vld [vmem:[%s14 + $0x60] sm:$0xf]
          %v6643 = vld [vmem:[%s14 + $0x64] sm:$0xf]
          %v6644 = vld [vmem:[%s14 + $0x68] sm:$0xf]
          %v6645 = vld [vmem:[%s14 + $0x6c] sm:$0xf]
          %v6646 = vld [vmem:[%s14 + $0x70] sm:$0xf]
          %v6647 = vld [vmem:[%s14 + $0x74] sm:$0xf]
          %v6648 = vld [vmem:[%s14 + $0x78] sm:$0xf]
          %v6649 = vld [vmem:[%s14 + $0x7c] sm:$0xf]
          %v6650 = vpack.c.bf16 %v6616, %v6614
          %v6651 = vpack.c.bf16 %v6617, %v6615
          %v6652 = vld [vmem:[#allocation23] sm:$0x1]
          %v6654 = vlaneseq
          %v6655 = vshrl.u32 %v6654, 7
          %v6656 = vsub.s32 0, %v6655
          %v6657 = vrot.slane %v6652, %v6656
          %v6691 = vunpack.c.l.b16 %v6618
          %v6692 = vunpack.c.l.b16 %v6619
          %v6693 = vunpack.c.l.b16 %v6620
          %v6694 = vunpack.c.l.b16 %v6621
          %v6695 = vunpack.c.l.b16 %v6622
          %v6696 = vunpack.c.l.b16 %v6623
          %v6697 = vunpack.c.l.b16 %v6624
          %v6698 = vunpack.c.l.b16 %v6625
          %v6699 = vunpack.c.l.b16 %v6626
          %v6700 = vunpack.c.l.b16 %v6627
          %v6701 = vunpack.c.l.b16 %v6628
          %v6702 = vunpack.c.l.b16 %v6629
          %v6703 = vunpack.c.l.b16 %v6630
          %v6704 = vunpack.c.l.b16 %v6631
          %v6705 = vunpack.c.l.b16 %v6632
          %v6706 = vunpack.c.l.b16 %v6633
          %v6707 = vunpack.c.l.b16 %v6634
          %v6708 = vunpack.c.l.b16 %v6635
          %v6709 = vunpack.c.l.b16 %v6636
          %v6710 = vunpack.c.l.b16 %v6637
          %v6711 = vunpack.c.l.b16 %v6638
          %v6712 = vunpack.c.l.b16 %v6639
          %v6713 = vunpack.c.l.b16 %v6640
          %v6714 = vunpack.c.l.b16 %v6641
          %v6715 = vunpack.c.l.b16 %v6642
          %v6716 = vunpack.c.l.b16 %v6643
          %v6717 = vunpack.c.l.b16 %v6644
          %v6718 = vunpack.c.l.b16 %v6645
          %v6719 = vunpack.c.l.b16 %v6646
          %v6720 = vunpack.c.l.b16 %v6647
          %v6721 = vunpack.c.l.b16 %v6648
          %v6722 = vunpack.c.l.b16 %v6649
          %v6723 = vpack.c.b16 %v6692, %v6691
          %v6724 = vpack.c.b16 %v6694, %v6693
          %v6725 = vpack.c.b16 %v6696, %v6695
          %v6726 = vpack.c.b16 %v6698, %v6697
          %v6727 = vpack.c.b16 %v6700, %v6699
          %v6728 = vpack.c.b16 %v6702, %v6701
          %v6729 = vpack.c.b16 %v6704, %v6703
          %v6730 = vpack.c.b16 %v6706, %v6705
          %v6731 = vpack.c.b16 %v6708, %v6707
          %v6732 = vpack.c.b16 %v6710, %v6709
          %v6733 = vpack.c.b16 %v6712, %v6711
          %v6734 = vpack.c.b16 %v6714, %v6713
          %v6735 = vpack.c.b16 %v6716, %v6715
          %v6736 = vpack.c.b16 %v6718, %v6717
          %v6737 = vpack.c.b16 %v6720, %v6719
          %v6738 = vpack.c.b16 %v6722, %v6721
          %6755 = vmatprep.subr.bf16.mxu0 0
          %6756 = vmatpush1.bf16.msra.mxu0 %v6730
          %6757 = vmatprep.subr.bf16.mxu0 0
          %6758 = vmatpush1.bf16.msra.mxu0 %v6729
          %6759 = vmatprep.subr.bf16.mxu0 0
          %6760 = vmatpush1.bf16.msra.mxu0 %v6728
          %6761 = vmatprep.subr.bf16.mxu0 0
          %6762 = vmatpush1.bf16.msra.mxu0 %v6727
          %6763 = vmatprep.subr.bf16.mxu0 0
          %6764 = vmatpush1.bf16.msra.mxu0 %v6726
          %6765 = vmatprep.subr.bf16.mxu0 0
          %6766 = vmatpush1.bf16.msra.mxu0 %v6725
          %6767 = vmatprep.subr.bf16.mxu0 0
          %6768 = vmatpush1.bf16.msra.mxu0 %v6724
          %6769 = vmatprep.subr.bf16.mxu0 0
          %6770 = vmatpush1.bf16.msra.mxu0 %v6723
          %6771 = vmatprep.subr.bf16.mxu0 0
          %6772 = vmatpush2.bf16.msra.mxu0 %v6738
          %6773 = vmatprep.subr.bf16.mxu0 0
          %6774 = vmatpush2.bf16.msra.mxu0 %v6737
          %6775 = vmatprep.subr.bf16.mxu0 0
          %6776 = vmatpush2.bf16.msra.mxu0 %v6736
          %6777 = vmatprep.subr.bf16.mxu0 0
          %6778 = vmatpush2.bf16.msra.mxu0 %v6735
          %6779 = vmatprep.subr.bf16.mxu0 0
          %6780 = vmatpush2.bf16.msra.mxu0 %v6734
          %6781 = vmatprep.subr.bf16.mxu0 0
          %6782 = vmatpush2.bf16.msra.mxu0 %v6733
          %6783 = vmatprep.subr.bf16.mxu0 0
          %6784 = vmatpush2.bf16.msra.mxu0 %v6732
          %6785 = vmatprep.subr.bf16.mxu0 0
          %6786 = vmatpush2.bf16.msra.mxu0 %v6731
          %6787 = vmatprep.mubr.bf16.mxu0 %v6651
          %6788 = vmatmul.mubr.bf16.gmra.mxu0 %v6650
          %v6789 = vpop.f32.mrf.mxu0
          %v6790 = vadd.f32 %v6657, %v6789
          %v6791 = vpop.f32.mrf.mxu0
          %v6792 = vpop.f32.mrf.mxu0
          %v6793 = vadd.f32 %v6657, %v6792
          %v6794 = vpop.f32.mrf.mxu0
          %6795 = vdwg.mxu0
          %vm6796 = vcmask 15360
          %v6797 = vsel %vm6796, %v6790, -inf
          %6798 = vmax.xlane.f32.xlu0 %v6797
          %v6799 = vpop.xlane.xlu0 %6798
          %v6800 = vsel %vm6796, %v6793, -inf
          %6801 = vmax.xlane.f32.xlu0 %v6800
          %v6802 = vpop.xlane.xlu0 %6801
          %v6803 = vsub.f32 %v6790, %v6799
          %v6804 = vsub.f32 %v6793, %v6802
          %v6805 = vmul.f32 %v6803, 1.442695
          %v6806 = vpow.pop %v6805
          %v6807 = vmul.f32 %v6804, 1.442695
          %v6808 = vpow.pop %v6807
          %v6809 = vsel %vm6796, %v6806, 0.0
          %6810 = vadd.xlane.f32.xlu0 %v6809
          %v6811 = vpop.xlane.xlu0 %6810
          %v6812 = vsel %vm6796, %v6808, 0.0
          %6813 = vadd.xlane.f32.xlu0 %v6812
          %v6814 = vpop.xlane.xlu0 %6813
          %v6815 = vrcp.pop %v6811
          %v6816 = vmul.f32 %v6806, %v6815
          %v6817 = vrcp.pop %v6814
          %v6818 = vmul.f32 %v6808, %v6817
          %6819 = vst.msk [vmem:[%s16] sm:$0xff] %vm6796, %v6816
          %6820 = vst.msk [vmem:[%s16 + $0x8] sm:$0xff] %vm6796, %v6818
        $region144: #{vit_discriminator_forward.1} parent=83 // pred_fallthru
          _
        // Predicated region
        $region145: #{vit_discriminator_forward.1} parent=83 // pred_check
          %p6821 = pneg %p443
        $region146: #{vit_discriminator_forward.1} parent=83 // pred_check_branch
          %6823 = sbr.rel (%p6821) target = $region148
        $region147: #{vit_discriminator_forward.1} parent=83 // pred_region
          _
        $region148: #{vit_discriminator_forward.1} parent=83 // pred_fallthru
          _
        // Predicated region
        $region149: #{vit_discriminator_forward.1} parent=83 // pred_check
          %p6824 = pneg %p443
        $region150: #{vit_discriminator_forward.1} parent=83 // pred_check_branch
          %6826 = sbr.rel (%p6824) target = $region152
        $region151: #{vit_discriminator_forward.1} parent=83 // pred_region
          _
        $region152: #{vit_discriminator_forward.1} parent=83 // pred_fallthru
          _
      $region84: #{vit_discriminator_forward.1} parent=5 // pred_fallthru
        _
      %p6827 = scmp.le.s32.totalorder 2, %s39
      // Predicated region
      $region153: #{vit_discriminator_forward.1} parent=5 // pred_check
        %p6828 = pneg %p6827
      $region154: #{vit_discriminator_forward.1} parent=5 // pred_check_branch
        %6830 = sbr.rel (%p6828) target = $region156
      $region155: #{vit_discriminator_forward.1} parent=5 // pred_region
        %s6831 = ssub.s32 %s39, 2
      $region156: #{vit_discriminator_forward.1} parent=5 // pred_fallthru
        _
    $region6: #{vit_discriminator_forward.1} parent=1 // loop_footer
      %s43 = sadd.s32 1, %s39
    $region7: #{vit_discriminator_forward.1} parent=1 // loop_footer_branch
      %38 = sbr.rel target = $region3
    $region8: #{vit_discriminator_forward.1} parent=1 // loop_exit
      _
    %6832 = vsyncpa [#allocation5], 1
    %s6833 = scalar_lea.sflag [#allocation5], 1
    %6834 = vsyncpa %s6833, 1
    %6835 = vsyncpa [#allocation7], 1
    %s6836 = scalar_lea.sflag [#allocation7], 1
    %6837 = vsyncpa %s6836, 1
    %6838 = vsyncpa [#allocation10], 1
    %s6839 = scalar_lea.sflag [#allocation10], 1
    %6840 = vsyncpa %s6839, 1
    %6841 = vsyncpa [#allocation13], 1
    %s6842 = scalar_lea.sflag [#allocation13], 1
    %6843 = vsyncpa %s6842, 1
    %6844 = vsyncpa [#allocation16], 1
    %s6845 = scalar_lea.sflag [#allocation16], 1
    %6846 = vsyncpa %s6845, 1
    %6847 = vsyncpa [#allocation19], 1
    %s6848 = scalar_lea.sflag [#allocation19], 1
    %6849 = vsyncpa %s6848, 1
    %6850 = vsyncpa [#allocation22], 1

</llo_original>
